<compile_context>
chip_gen: v6e
topology: v6e:2x2x1
jax: 0.10.0
libtpu: 0.0.40
codegen_flags: <defaults>
</compile_context>

<pallas_src>
import functools

import jax
import jax.numpy as jnp
from jax import lax
from jax.experimental import pallas as pl
from jax.experimental.pallas import tpu as pltpu

F32 = jnp.float32
BF16 = jnp.bfloat16


# ----------------------------- helpers -----------------------------

def _round_up(x, m):
    return ((x + m - 1) // m) * m


def _pad_gate_cols(w, h, hp):
    """(..., 4h) -> (..., 4hp): zero-pad each PyTorch LSTM gate block (i, f, g, o) to hp lanes."""
    if hp == h:
        return w
    pad = [(0, 0)] * (w.ndim - 1) + [(0, hp - h)]
    return jnp.concatenate([jnp.pad(w[..., g * h:(g + 1) * h], pad) for g in range(4)], axis=-1)


def _pick_patch_chunk(p, max_rows=1024):
    """Largest multiple-of-8 chunk <= max_rows that divides p (fallback: full extent)."""
    start = min(p, max_rows)
    start -= start % 8
    for cand in range(start, 7, -8):
        if p % cand == 0:
            return cand
    return p


# ----------------------------- kernel 1: conv stem -----------------------------

def conv_stem_kernel(patches_ref, conv_w_ref, conv_b_ref, pooled_ref, acc_ref, *, inv_p):
    """relu(im2col 7x7/2 conv) + global average pool, accumulated over patch chunks."""
    p_idx = pl.program_id(1)

    @pl.when(p_idx == 0)
    def _():
        acc_ref[...] = jnp.zeros_like(acc_ref)

    bsz, rows, kpad = patches_ref.shape
    # One long-M 2-D MXU matmul: (bsz*rows, Kpad) x (Kpad, CC), bf16 operands, f32 accumulation.
    y = jnp.dot(patches_ref[...].reshape(bsz * rows, kpad), conv_w_ref[...],
                preferred_element_type=F32)
    y = jnp.maximum(y + conv_b_ref[...], 0.0)
    # Per-batch segment sum of this chunk (sublane reduction), accumulated in f32 scratch.
    acc_ref[...] += jnp.sum(y.reshape(bsz, rows, y.shape[-1]), axis=1)

    @pl.when(p_idx == pl.num_programs(1) - 1)
    def _():
        pooled_ref[...] = acc_ref[...] * inv_p


# ----------------------------- kernel 2: LSTMs + head -----------------------------

def lstm_head_kernel(xz_ref, pooled_ref, enc_whh_ref,
                     stage_w_ref, stage_b_ref,
                     fc1_w_ref, fc1_b_ref, fc2_w_ref, fc2_b_ref,
                     dec_wl_ref, dec_wr_ref, dec_b_ref, dec_whh_ref,
                     out_w_ref, out_b_ref, out_ref, *,
                     batch, seq_len, target_len, hp):
    B, T, Hp = batch, seq_len, hp

    def lstm_step(z, c):
        # Each gate block is 128-lane padded -> full, lane-0-aligned slices (no XLU realign).
        i_g = jax.nn.sigmoid(z[:, 0 * Hp:1 * Hp])
        f_g = jax.nn.sigmoid(z[:, 1 * Hp:2 * Hp])
        g_g = jnp.tanh(z[:, 2 * Hp:3 * Hp])
        o_g = jax.nn.sigmoid(z[:, 3 * Hp:4 * Hp])
        c_new = f_g * c + i_g * g_g
        h_new = o_g * jnp.tanh(c_new)
        return h_new, c_new

    # ---------------- Encoder LSTM (input projection hoisted to wrapper) ----------------
    xz_all = xz_ref[...]                              # (T*B, 4Hp) f32, lane-dense
    enc_whh = enc_whh_ref[...]                        # (Hp, 4Hp) bf16
    h = jnp.zeros((B, Hp), F32)
    c = jnp.zeros((B, Hp), F32)
    for t in range(T):    # small static trip count; switch to lax.fori_loop if T grows >16
        z = xz_all[t * B:(t + 1) * B, :] + jnp.dot(
            h.astype(BF16), enc_whh, preferred_element_type=F32)
        h, c = lstm_step(z, c)
    # encoder_out = encoder_hidden[1].reshape(batch, -1) == c_n (num_layers == 1)

    # ---------------- ResNet50 stand-in tail + fc1/fc2 head (dropout = identity) --------
    feats = jnp.dot(pooled_ref[...].astype(BF16), stage_w_ref[...],
                    preferred_element_type=F32) + stage_b_ref[...]          # (B, 2048)
    left = jnp.maximum(jnp.dot(c.astype(BF16), fc1_w_ref[...],
                               preferred_element_type=F32) + fc1_b_ref[...], 0.0)
    right = jnp.maximum(jnp.dot(feats.astype(BF16), fc2_w_ref[...],
                                preferred_element_type=F32) + fc2_b_ref[...], 0.0)
    # decoder_input = cat(left, right); the concat is folded into split input weights,
    # and the (constant) decoder input projection is hoisted out of the decoder loop.
    dec_xz = (jnp.dot(left.astype(BF16), dec_wl_ref[...], preferred_element_type=F32)
              + jnp.dot(right.astype(BF16), dec_wr_ref[...], preferred_element_type=F32)
              + dec_b_ref[...])                                             # (B, 4Hp)

    # ---------------- Decoder LSTM (hidden seeded by the encoder's (h, c)) ---------------
    dec_whh = dec_whh_ref[...]
    hs = []
    for t in range(target_len):
        z = dec_xz + jnp.dot(h.astype(BF16), dec_whh, preferred_element_type=F32)
        h, c = lstm_step(z, c)
        hs.append(h)

    # Batched output head: one (target_len*B, Hp) x (Hp, Op) matmul + one lane-dense store.
    h_stack = jnp.concatenate(hs, axis=0)             # sublane-aligned 8-row blocks
    out_ref[...] = (jnp.dot(h_stack.astype(BF16), out_w_ref[...],
                            preferred_element_type=F32) + out_b_ref[...])


# ----------------------------- params -----------------------------

def init_params(key, *, input_size, hidden_size, output_size):
    half = hidden_size // 2
    ks = jax.random.split(key, 16)

    def w(k, shape, scale=0.1):
        return scale * jax.random.normal(k, shape, dtype=F32)

    return dict(
        # encoder LSTM (weights pre-transposed to (in, 4H) / (H, 4H)); b = b_ih + b_hh
        enc_wih=w(ks[0], (input_size, 4 * hidden_size)),
        enc_whh=w(ks[1], (hidden_size, 4 * hidden_size)),
        enc_b=w(ks[2], (1, 4 * hidden_size)),
        # TODO(synk): ResNet50 trunk stand-in: conv1 7x7/2 as (3*7*7, 64) matmul + ReLU + GAP,
        # then a 64 -> 2048 linear (no residual stages / BatchNorm / maxpool).
        conv_w=w(ks[3], (3 * 7 * 7, 64)),
        conv_b=w(ks[4], (1, 64)),
        stage_w=w(ks[5], (64, 2048)),
        stage_b=w(ks[6], (1, 2048)),
        # fc2: 2048 -> hidden/2 ; fc1: hidden -> hidden/2
        fc2_w=w(ks[7], (2048, half)),
        fc2_b=w(ks[8], (1, half)),
        fc1_w=w(ks[9], (hidden_size, half)),
        fc1_b=w(ks[10], (1, half)),
        # decoder LSTM (input = hidden/2 + hidden/2 = hidden) + output head
        dec_wih=w(ks[11], (hidden_size, 4 * hidden_size)),
        dec_whh=w(ks[12], (hidden_size, 4 * hidden_size)),
        dec_b=w(ks[13], (1, 4 * hidden_size)),
        out_w=w(ks[14], (hidden_size, output_size)),
        out_b=w(ks[15], (1, output_size)),
    )


# ----------------------------- wrapper -----------------------------

def bb_crops_encoder_decoder_forward(params, inp, crops_nchw, *, target_len):
    # TODO(synk): only num_layers == 1 is supported (the reference's reshape of c_n to
    # (batch, -1) is only layout-consistent for a single-layer LSTM).
    B, T, I = inp.shape
    H = params['enc_whh'].shape[0]
    half = params['fc1_w'].shape[1]
    O = params['out_w'].shape[1]
    CC = params['conv_w'].shape[1]                 # conv-stem output channels (64)
    Bp = _round_up(B, 8)                           # fill the 8 sublanes
    Hp = _round_up(H, 128)                         # gate-block / hidden-state lane padding
    Op = _round_up(O, 128)                         # lane-dense output-head store

    # ---- weight prep: gate-block lane padding + bf16 casts (f32 state / f32 accumulation) ----
    enc_wih_p = _pad_gate_cols(params['enc_wih'], H, Hp)                         # used in XLA proj
    enc_b_p = _pad_gate_cols(params['enc_b'], H, Hp)
    enc_whh_p = _pad_gate_cols(jnp.pad(params['enc_whh'], ((0, Hp - H), (0, 0))), H, Hp).astype(BF16)
    dec_whh_p = _pad_gate_cols(jnp.pad(params['dec_whh'], ((0, Hp - H), (0, 0))), H, Hp).astype(BF16)
    dec_b_p = _pad_gate_cols(params['dec_b'], H, Hp)
    dec_wl = _pad_gate_cols(params['dec_wih'][:half], H, Hp).astype(BF16)        # fc1 half
    dec_wr = _pad_gate_cols(params['dec_wih'][half:], H, Hp).astype(BF16)        # fc2 half
    fc1_w_p = jnp.pad(params['fc1_w'], ((0, Hp - H), (0, 0))).astype(BF16)
    fc2_w_p = params['fc2_w'].astype(BF16)
    stage_w_p = params['stage_w'].astype(BF16)
    out_w_p = jnp.pad(params['out_w'], ((0, Hp - H), (0, Op - O))).astype(BF16)
    out_b_p = jnp.pad(params['out_b'], ((0, 0), (0, Op - O)))

    # ---- encoder input projection hoisted to XLA (K = input_size is MXU-degenerate) ----
    x_tb = jnp.transpose(inp, (1, 0, 2)).astype(F32)                 # (T, B, I)
    x_tb = jnp.pad(x_tb, ((0, 0), (0, Bp - B), (0, 0))).reshape(T * Bp, I)
    xz_all = jnp.dot(x_tb, enc_wih_p) + enc_b_p                      # (T*Bp, 4Hp), lane-dense

    # ---- crops -> 7x7/2 im2col patches via ONE fused XLA op ----
    x_nhwc = jnp.transpose(crops_nchw, (0, 2, 3, 1)).astype(F32)     # NCHW -> NHWC
    patches = lax.conv_general_dilated_patches(
        x_nhwc, filter_shape=(7, 7), window_strides=(2, 2),
        padding=((3, 3), (3, 3)), dimension_numbers=('NHWC', 'HWIO', 'NHWC'))
    Ho, Wo, K = patches.shape[1], patches.shape[2], patches.shape[3]
    P = Ho * Wo
    Kp = _round_up(K, 128)                                           # 147 -> 256 lane-aligned K
    patches = patches.reshape(B, P, K)
    patches = jnp.pad(patches, ((0, Bp - B), (0, 0), (0, Kp - K))).astype(BF16)
    conv_w_p = jnp.pad(params['conv_w'], ((0, Kp - K), (0, 0))).astype(BF16)

    # ---- kernel 1: gridded conv stem (parallel batch chunks x arbitrary patch chunks) ----
    PC = _pick_patch_chunk(P)
    NC = P // PC
    vmem1 = int(4 * (8 * PC * Kp * 2)            # double-buffered bf16 patch blocks (+ headroom)
                + 4 * (8 * PC * CC * 4)          # f32 activation temporaries
                + 2 * (Kp * CC * 2) + (4 << 20))
    vmem1 = min(max(vmem1, 16 << 20), 64 << 20)
    pooled = pl.pallas_call(
        functools.partial(conv_stem_kernel, inv_p=1.0 / P),
        out_shape=jax.ShapeDtypeStruct((Bp, CC), F32),
        grid_spec=pltpu.PrefetchScalarGridSpec(
            num_scalar_prefetch=0,
            grid=(Bp // 8, NC),
            in_specs=[pl.BlockSpec((8, PC, Kp), lambda b, p: (b, p, 0)),
                      pl.BlockSpec((Kp, CC), lambda b, p: (0, 0)),
                      pl.BlockSpec((1, CC), lambda b, p: (0, 0))],
            out_specs=pl.BlockSpec((8, CC), lambda b, p: (b, 0)),
            scratch_shapes=[pltpu.VMEM((8, CC), F32)]),
        compiler_params=pltpu.CompilerParams(
            dimension_semantics=("parallel", "arbitrary"),
            vmem_limit_bytes=vmem1),
    )(patches, conv_w_p, params['conv_b'])

    # ---- kernel 2: encoder LSTM + head + decoder LSTM (all buffers tiny -> gridless) ----
    y_all = pl.pallas_call(
        functools.partial(lstm_head_kernel, batch=Bp, seq_len=T,
                          target_len=target_len, hp=Hp),
        out_shape=jax.ShapeDtypeStruct((target_len * Bp, Op), F32),
        in_specs=[pl.BlockSpec(memory_space=pltpu.MemorySpace.VMEM)] * 15,
        out_specs=pl.BlockSpec(memory_space=pltpu.MemorySpace.VMEM),
        compiler_params=pltpu.CompilerParams(vmem_limit_bytes=32 << 20),
    )(xz_all, pooled, enc_whh_p,
      stage_w_p, params['stage_b'],
      fc1_w_p, params['fc1_b'], fc2_w_p, params['fc2_b'],
      dec_wl, dec_wr, dec_b_p, dec_whh_p,
      out_w_p, out_b_p)

    # Lane-dense kernel store; the (B, target_len*O) interleave is free wrapper-side layout.
    y = y_all.reshape(target_len, Bp, Op)[:, :B, :O]
    return jnp.transpose(y, (1, 0, 2)).reshape(B, target_len * O)


if __name__ == "__main__":
    input_size, output_size = 4, 4
    batch_size, target_len = 2, 5
    hidden_size, num_layers = 32, 1
    seq_len, crop_hw = 8, 32

    key = jax.random.PRNGKey(0)
    kp, ki, kc = jax.random.split(key, 3)
    params = init_params(kp, input_size=input_size, hidden_size=hidden_size,
                         output_size=output_size)
    inp = jax.random.normal(ki, (batch_size, seq_len, input_size), dtype=F32)
    crops = jax.random.uniform(kc, (batch_size, 3, crop_hw, crop_hw), dtype=F32)

    fwd = jax.jit(lambda p, x, c: bb_crops_encoder_decoder_forward(p, x, c,
                                                                   target_len=target_len))
    out = jax.block_until_ready(fwd(params, inp, crops))
    assert out.shape == (batch_size, target_len * output_size), out.shape
    print("KERNEL_OK")
</pallas_src>

<mosaic_0001>
module attributes {stable_mosaic.version = 11 : i64} {
  func.func @conv_stem_kernel(%arg0: i32, %arg1: i32, %arg2: memref<8x256x256xbf16, #tpu.memory_space<vmem>>, %arg3: memref<256x64xbf16, #tpu.memory_space<vmem>>, %arg4: memref<1x64xf32, #tpu.memory_space<vmem>>, %arg5: memref<8x64xf32, #tpu.memory_space<vmem>>, %arg6: memref<8x64xf32, #tpu.memory_space<vmem>>) attributes {dimension_semantics = [#tpu.dimension_semantics<parallel>, #tpu.dimension_semantics<arbitrary>], iteration_bounds = array<i64: 1, 1>, scalar_prefetch = 0 : i64, scratch_operands = 1 : i64, tpu.core_type = #tpu.core_type<tc>, window_params = [{transform_indices = @transform_0, window_bounds = array<i64: 8, 256, 256>}, {pipeline_mode = #tpu.pipeline_mode<synchronous>, transform_indices = @transform_1, window_bounds = array<i64: 256, 64>}, {pipeline_mode = #tpu.pipeline_mode<synchronous>, transform_indices = @transform_2, window_bounds = array<i64: 1, 64>}, {transform_indices = @transform_3, window_bounds = array<i64: 8, 64>}]} {
    %c0_i32 = arith.constant 0 : i32
    %0 = arith.cmpi eq, %arg1, %c0_i32 : i32
    %1 = arith.extui %0 : i1 to i32
    %c0_i32_0 = arith.constant 0 : i32
    %2 = arith.cmpi ne, %1, %c0_i32_0 : i32
    scf.if %2 {
      %cst_15 = arith.constant 0.000000e+00 : f32
      %20 = vector.broadcast %cst_15 : f32 to vector<8x64xf32>
      %c0_16 = arith.constant 0 : index
      %c0_17 = arith.constant 0 : index
      %21 = vector.load %arg6[%c0_16, %c0_17] : memref<8x64xf32, #tpu.memory_space<vmem>>, vector<8x64xf32>
      tpu.vector_store %arg6[%c0_16, %c0_17], %20 {strides = array<i32>} : memref<8x64xf32, #tpu.memory_space<vmem>>, vector<8x64xf32>,
    } else {
    }
    %c0 = arith.constant 0 : index
    %c0_1 = arith.constant 0 : index
    %c0_2 = arith.constant 0 : index
    %3 = vector.load %arg2[%c0, %c0_1, %c0_2] : memref<8x256x256xbf16, #tpu.memory_space<vmem>>, vector<8x256x256xbf16>
    %4 = vector.shape_cast %3 : vector<8x256x256xbf16> to vector<2048x256xbf16>
    %c0_3 = arith.constant 0 : index
    %c0_4 = arith.constant 0 : index
    %5 = vector.load %arg3[%c0_3, %c0_4] : memref<256x64xbf16, #tpu.memory_space<vmem>>, vector<256x64xbf16>
    %cst = arith.constant dense<0.000000e+00> : vector<2048x64xf32>
    %6 = tpu.matmul %4, %5, %cst {dimension_numbers = #tpu.dot_dimension_numbers<[1], [0], [0], [1], [0, 0, 1, 1], [], []>} : vector<2048x256xbf16>, vector<256x64xbf16>, vector<2048x64xf32> -> vector<2048x64xf32>
    %c0_5 = arith.constant 0 : index
    %c0_6 = arith.constant 0 : index
    %7 = vector.load %arg4[%c0_5, %c0_6] : memref<1x64xf32, #tpu.memory_space<vmem>>, vector<1x64xf32>
    %8 = vector.broadcast %7 : vector<1x64xf32> to vector<2048x64xf32>
    %9 = arith.addf %6, %8 : vector<2048x64xf32>
    %cst_7 = arith.constant 0.000000e+00 : f32
    %10 = vector.broadcast %cst_7 : f32 to vector<2048x64xf32>
    %11 = arith.maximumf %9, %10 : vector<2048x64xf32>
    %c0_8 = arith.constant 0 : index
    %c0_9 = arith.constant 0 : index
    %12 = vector.load %arg6[%c0_8, %c0_9] : memref<8x64xf32, #tpu.memory_space<vmem>>, vector<8x64xf32>
    %13 = vector.shape_cast %11 : vector<2048x64xf32> to vector<8x256x64xf32>
    %cst_10 = arith.constant dense<0.000000e+00> : vector<8x64xf32>
    %14 = vector.multi_reduction <add>, %13, %cst_10 [1] : vector<8x256x64xf32> to vector<8x64xf32>
    %15 = arith.addf %12, %14 : vector<8x64xf32>
    %c0_11 = arith.constant 0 : index
    %c0_12 = arith.constant 0 : index
    %16 = vector.load %arg6[%c0_11, %c0_12] : memref<8x64xf32, #tpu.memory_space<vmem>>, vector<8x64xf32>
    tpu.vector_store %arg6[%c0_11, %c0_12], %15 {strides = array<i32>} : memref<8x64xf32, #tpu.memory_space<vmem>>, vector<8x64xf32>,
    %c0_i32_13 = arith.constant 0 : i32
    %17 = arith.cmpi eq, %arg1, %c0_i32_13 : i32
    %18 = arith.extui %17 : i1 to i32
    %c0_i32_14 = arith.constant 0 : i32
    %19 = arith.cmpi ne, %18, %c0_i32_14 : i32
    scf.if %19 {
      %c0_15 = arith.constant 0 : index
      %c0_16 = arith.constant 0 : index
      %20 = vector.load %arg6[%c0_15, %c0_16] : memref<8x64xf32, #tpu.memory_space<vmem>>, vector<8x64xf32>
      %cst_17 = arith.constant 3.906250e-03 : f32
      %21 = vector.broadcast %cst_17 : f32 to vector<8x64xf32>
      %22 = arith.mulf %20, %21 : vector<8x64xf32>
      %c0_18 = arith.constant 0 : index
      %c0_19 = arith.constant 0 : index
      %23 = vector.load %arg5[%c0_18, %c0_19] : memref<8x64xf32, #tpu.memory_space<vmem>>, vector<8x64xf32>
      tpu.vector_store %arg5[%c0_18, %c0_19], %22 {strides = array<i32>} : memref<8x64xf32, #tpu.memory_space<vmem>>, vector<8x64xf32>,
    } else {
    }
    return
  }
  func.func @transform_0(%arg0: i32, %arg1: i32) -> (i32, i32, i32) {
    %c0_i32 = arith.constant 0 : i32
    %c0_i32_0 = arith.constant 0 : i32
    return %arg0, %arg1, %c0_i32 : i32, i32, i32
  }
  func.func @transform_1(%arg0: i32, %arg1: i32) -> (i32, i32) {
    %c0_i32 = arith.constant 0 : i32
    %c0_i32_0 = arith.constant 0 : i32
    %c0_i32_1 = arith.constant 0 : i32
    return %c0_i32, %c0_i32_0 : i32, i32
  }
  func.func @transform_2(%arg0: i32, %arg1: i32) -> (i32, i32) {
    %c0_i32 = arith.constant 0 : i32
    %c0_i32_0 = arith.constant 0 : i32
    %c0_i32_1 = arith.constant 0 : i32
    return %c0_i32, %c0_i32_0 : i32, i32
  }
  func.func @transform_3(%arg0: i32, %arg1: i32) -> (i32, i32) {
    %c0_i32 = arith.constant 0 : i32
    %c0_i32_0 = arith.constant 0 : i32
    return %arg0, %c0_i32 : i32, i32
  }
}

module attributes {stable_mosaic.version = 11 : i64} {
  func.func @lstm_head_kernel(%arg0: memref<64x512xf32, #tpu.memory_space<vmem>>, %arg1: memref<8x64xf32, #tpu.memory_space<vmem>>, %arg2: memref<128x512xbf16, #tpu.memory_space<vmem>>, %arg3: memref<64x2048xbf16, #tpu.memory_space<vmem>>, %arg4: memref<1x2048xf32, #tpu.memory_space<vmem>>, %arg5: memref<128x16xbf16, #tpu.memory_space<vmem>>, %arg6: memref<1x16xf32, #tpu.memory_space<vmem>>, %arg7: memref<2048x16xbf16, #tpu.memory_space<vmem>>, %arg8: memref<1x16xf32, #tpu.memory_space<vmem>>, %arg9: memref<16x512xbf16, #tpu.memory_space<vmem>>, %arg10: memref<16x512xbf16, #tpu.memory_space<vmem>>, %arg11: memref<1x512xf32, #tpu.memory_space<vmem>>, %arg12: memref<128x512xbf16, #tpu.memory_space<vmem>>, %arg13: memref<128x128xbf16, #tpu.memory_space<vmem>>, %arg14: memref<1x128xf32, #tpu.memory_space<vmem>>, %arg15: memref<40x128xf32, #tpu.memory_space<vmem>>) attributes {dimension_semantics = [], scalar_prefetch = 0 : i64, scratch_operands = 0 : i64, tpu.core_type = #tpu.core_type<tc>} {
    %c0 = arith.constant 0 : index
    %c0_0 = arith.constant 0 : index
    %0 = vector.load %arg0[%c0, %c0_0] : memref<64x512xf32, #tpu.memory_space<vmem>>, vector<64x512xf32>
    %c0_1 = arith.constant 0 : index
    %c0_2 = arith.constant 0 : index
    %1 = vector.load %arg2[%c0_1, %c0_2] : memref<128x512xbf16, #tpu.memory_space<vmem>>, vector<128x512xbf16>
    %cst = arith.constant 0.000000e+00 : f32
    %2 = vector.broadcast %cst : f32 to vector<8x128xf32>
    %cst_3 = arith.constant 0.000000e+00 : f32
    %3 = vector.broadcast %cst_3 : f32 to vector<8x128xf32>
    %4 = vector.extract_strided_slice %0 {offsets = [0, 0], sizes = [8, 512], strides = [1, 1]} : vector<64x512xf32> to vector<8x512xf32>
    %5 = arith.truncf %2 : vector<8x128xf32> to vector<8x128xbf16>
    %cst_4 = arith.constant dense<0.000000e+00> : vector<8x512xf32>
    %6 = tpu.matmul %5, %1, %cst_4 {dimension_numbers = #tpu.dot_dimension_numbers<[1], [0], [0], [1], [0, 0, 1, 1], [], []>} : vector<8x128xbf16>, vector<128x512xbf16>, vector<8x512xf32> -> vector<8x512xf32>
    %7 = arith.addf %4, %6 : vector<8x512xf32>
    %8 = vector.extract_strided_slice %7 {offsets = [0, 0], sizes = [8, 128], strides = [1, 1]} : vector<8x512xf32> to vector<8x128xf32>
    %9 = arith.negf %8 : vector<8x128xf32>
    %10 = math.exp %9 : vector<8x128xf32>
    %cst_5 = arith.constant 1.000000e+00 : f32
    %11 = vector.broadcast %cst_5 : f32 to vector<8x128xf32>
    %12 = arith.addf %11, %10 : vector<8x128xf32>
    %13 = arith.divf %11, %12 : vector<8x128xf32>
    %14 = vector.extract_strided_slice %7 {offsets = [0, 128], sizes = [8, 128], strides = [1, 1]} : vector<8x512xf32> to vector<8x128xf32>
    %15 = arith.negf %14 : vector<8x128xf32>
    %16 = math.exp %15 : vector<8x128xf32>
    %cst_6 = arith.constant 1.000000e+00 : f32
    %17 = vector.broadcast %cst_6 : f32 to vector<8x128xf32>
    %18 = arith.addf %17, %16 : vector<8x128xf32>
    %19 = arith.divf %17, %18 : vector<8x128xf32>
    %20 = vector.extract_strided_slice %7 {offsets = [0, 256], sizes = [8, 128], strides = [1, 1]} : vector<8x512xf32> to vector<8x128xf32>
    %21 = math.tanh %20 : vector<8x128xf32>
    %22 = vector.extract_strided_slice %7 {offsets = [0, 384], sizes = [8, 128], strides = [1, 1]} : vector<8x512xf32> to vector<8x128xf32>
    %23 = arith.negf %22 : vector<8x128xf32>
    %24 = math.exp %23 : vector<8x128xf32>
    %cst_7 = arith.constant 1.000000e+00 : f32
    %25 = vector.broadcast %cst_7 : f32 to vector<8x128xf32>
    %26 = arith.addf %25, %24 : vector<8x128xf32>
    %27 = arith.divf %25, %26 : vector<8x128xf32>
    %28 = arith.mulf %19, %3 : vector<8x128xf32>
    %29 = arith.mulf %13, %21 : vector<8x128xf32>
    %30 = arith.addf %28, %29 : vector<8x128xf32>
    %31 = math.tanh %30 : vector<8x128xf32>
    %32 = arith.mulf %27, %31 : vector<8x128xf32>
    %33 = vector.extract_strided_slice %0 {offsets = [8, 0], sizes = [8, 512], strides = [1, 1]} : vector<64x512xf32> to vector<8x512xf32>
    %34 = arith.truncf %32 : vector<8x128xf32> to vector<8x128xbf16>
    %cst_8 = arith.constant dense<0.000000e+00> : vector<8x512xf32>
    %35 = tpu.matmul %34, %1, %cst_8 {dimension_numbers = #tpu.dot_dimension_numbers<[1], [0], [0], [1], [0, 0, 1, 1], [], []>} : vector<8x128xbf16>, vector<128x512xbf16>, vector<8x512xf32> -> vector<8x512xf32>
    %36 = arith.addf %33, %35 : vector<8x512xf32>
    %37 = vector.extract_strided_slice %36 {offsets = [0, 0], sizes = [8, 128], strides = [1, 1]} : vector<8x512xf32> to vector<8x128xf32>
    %38 = arith.negf %37 : vector<8x128xf32>
    %39 = math.exp %38 : vector<8x128xf32>
    %cst_9 = arith.constant 1.000000e+00 : f32
    %40 = vector.broadcast %cst_9 : f32 to vector<8x128xf32>
    %41 = arith.addf %40, %39 : vector<8x128xf32>
    %42 = arith.divf %40, %41 : vector<8x128xf32>
    %43 = vector.extract_strided_slice %36 {offsets = [0, 128], sizes = [8, 128], strides = [1, 1]} : vector<8x512xf32> to vector<8x128xf32>
    %44 = arith.negf %43 : vector<8x128xf32>
    %45 = math.exp %44 : vector<8x128xf32>
    %cst_10 = arith.constant 1.000000e+00 : f32
    %46 = vector.broadcast %cst_10 : f32 to vector<8x128xf32>
    %47 = arith.addf %46, %45 : vector<8x128xf32>
    %48 = arith.divf %46, %47 : vector<8x128xf32>
    %49 = vector.extract_strided_slice %36 {offsets = [0, 256], sizes = [8, 128], strides = [1, 1]} : vector<8x512xf32> to vector<8x128xf32>
    %50 = math.tanh %49 : vector<8x128xf32>
    %51 = vector.extract_strided_slice %36 {offsets = [0, 384], sizes = [8, 128], strides = [1, 1]} : vector<8x512xf32> to vector<8x128xf32>
    %52 = arith.negf %51 : vector<8x128xf32>
    %53 = math.exp %52 : vector<8x128xf32>
    %cst_11 = arith.constant 1.000000e+00 : f32
    %54 = vector.broadcast %cst_11 : f32 to vector<8x128xf32>
    %55 = arith.addf %54, %53 : vector<8x128xf32>
    %56 = arith.divf %54, %55 : vector<8x128xf32>
    %57 = arith.mulf %48, %30 : vector<8x128xf32>
    %58 = arith.mulf %42, %50 : vector<8x128xf32>
    %59 = arith.addf %57, %58 : vector<8x128xf32>
    %60 = math.tanh %59 : vector<8x128xf32>
    %61 = arith.mulf %56, %60 : vector<8x128xf32>
    %62 = vector.extract_strided_slice %0 {offsets = [16, 0], sizes = [8, 512], strides = [1, 1]} : vector<64x512xf32> to vector<8x512xf32>
    %63 = arith.truncf %61 : vector<8x128xf32> to vector<8x128xbf16>
    %cst_12 = arith.constant dense<0.000000e+00> : vector<8x512xf32>
    %64 = tpu.matmul %63, %1, %cst_12 {dimension_numbers = #tpu.dot_dimension_numbers<[1], [0], [0], [1], [0, 0, 1, 1], [], []>} : vector<8x128xbf16>, vector<128x512xbf16>, vector<8x512xf32> -> vector<8x512xf32>
    %65 = arith.addf %62, %64 : vector<8x512xf32>
    %66 = vector.extract_strided_slice %65 {offsets = [0, 0], sizes = [8, 128], strides = [1, 1]} : vector<8x512xf32> to vector<8x128xf32>
    %67 = arith.negf %66 : vector<8x128xf32>
    %68 = math.exp %67 : vector<8x128xf32>
    %cst_13 = arith.constant 1.000000e+00 : f32
    %69 = vector.broadcast %cst_13 : f32 to vector<8x128xf32>
    %70 = arith.addf %69, %68 : vector<8x128xf32>
    %71 = arith.divf %69, %70 : vector<8x128xf32>
    %72 = vector.extract_strided_slice %65 {offsets = [0, 128], sizes = [8, 128], strides = [1, 1]} : vector<8x512xf32> to vector<8x128xf32>
    %73 = arith.negf %72 : vector<8x128xf32>
    %74 = math.exp %73 : vector<8x128xf32>
    %cst_14 = arith.constant 1.000000e+00 : f32
    %75 = vector.broadcast %cst_14 : f32 to vector<8x128xf32>
    %76 = arith.addf %75, %74 : vector<8x128xf32>
    %77 = arith.divf %75, %76 : vector<8x128xf32>
    %78 = vector.extract_strided_slice %65 {offsets = [0, 256], sizes = [8, 128], strides = [1, 1]} : vector<8x512xf32> to vector<8x128xf32>
    %79 = math.tanh %78 : vector<8x128xf32>
    %80 = vector.extract_strided_slice %65 {offsets = [0, 384], sizes = [8, 128], strides = [1, 1]} : vector<8x512xf32> to vector<8x128xf32>
    %81 = arith.negf %80 : vector<8x128xf32>
    %82 = math.exp %81 : vector<8x128xf32>
    %cst_15 = arith.constant 1.000000e+00 : f32
    %83 = vector.broadcast %cst_15 : f32 to vector<8x128xf32>
    %84 = arith.addf %83, %82 : vector<8x128xf32>
    %85 = arith.divf %83, %84 : vector<8x128xf32>
    %86 = arith.mulf %77, %59 : vector<8x128xf32>
    %87 = arith.mulf %71, %79 : vector<8x128xf32>
    %88 = arith.addf %86, %87 : vector<8x128xf32>
    %89 = math.tanh %88 : vector<8x128xf32>
    %90 = arith.mulf %85, %89 : vector<8x128xf32>
    %91 = vector.extract_strided_slice %0 {offsets = [24, 0], sizes = [8, 512], strides = [1, 1]} : vector<64x512xf32> to vector<8x512xf32>
    %92 = arith.truncf %90 : vector<8x128xf32> to vector<8x128xbf16>
    %cst_16 = arith.constant dense<0.000000e+00> : vector<8x512xf32>
    %93 = tpu.matmul %92, %1, %cst_16 {dimension_numbers = #tpu.dot_dimension_numbers<[1], [0], [0], [1], [0, 0, 1, 1], [], []>} : vector<8x128xbf16>, vector<128x512xbf16>, vector<8x512xf32> -> vector<8x512xf32>
    %94 = arith.addf %91, %93 : vector<8x512xf32>
    %95 = vector.extract_strided_slice %94 {offsets = [0, 0], sizes = [8, 128], strides = [1, 1]} : vector<8x512xf32> to vector<8x128xf32>
    %96 = arith.negf %95 : vector<8x128xf32>
    %97 = math.exp %96 : vector<8x128xf32>
    %cst_17 = arith.constant 1.000000e+00 : f32
    %98 = vector.broadcast %cst_17 : f32 to vector<8x128xf32>
    %99 = arith.addf %98, %97 : vector<8x128xf32>
    %100 = arith.divf %98, %99 : vector<8x128xf32>
    %101 = vector.extract_strided_slice %94 {offsets = [0, 128], sizes = [8, 128], strides = [1, 1]} : vector<8x512xf32> to vector<8x128xf32>
    %102 = arith.negf %101 : vector<8x128xf32>
    %103 = math.exp %102 : vector<8x128xf32>
    %cst_18 = arith.constant 1.000000e+00 : f32
    %104 = vector.broadcast %cst_18 : f32 to vector<8x128xf32>
    %105 = arith.addf %104, %103 : vector<8x128xf32>
    %106 = arith.divf %104, %105 : vector<8x128xf32>
    %107 = vector.extract_strided_slice %94 {offsets = [0, 256], sizes = [8, 128], strides = [1, 1]} : vector<8x512xf32> to vector<8x128xf32>
    %108 = math.tanh %107 : vector<8x128xf32>
    %109 = vector.extract_strided_slice %94 {offsets = [0, 384], sizes = [8, 128], strides = [1, 1]} : vector<8x512xf32> to vector<8x128xf32>
    %110 = arith.negf %109 : vector<8x128xf32>
    %111 = math.exp %110 : vector<8x128xf32>
    %cst_19 = arith.constant 1.000000e+00 : f32
    %112 = vector.broadcast %cst_19 : f32 to vector<8x128xf32>
    %113 = arith.addf %112, %111 : vector<8x128xf32>
    %114 = arith.divf %112, %113 : vector<8x128xf32>
    %115 = arith.mulf %106, %88 : vector<8x128xf32>
    %116 = arith.mulf %100, %108 : vector<8x128xf32>
    %117 = arith.addf %115, %116 : vector<8x128xf32>
    %118 = math.tanh %117 : vector<8x128xf32>
    %119 = arith.mulf %114, %118 : vector<8x128xf32>
    %120 = vector.extract_strided_slice %0 {offsets = [32, 0], sizes = [8, 512], strides = [1, 1]} : vector<64x512xf32> to vector<8x512xf32>
    %121 = arith.truncf %119 : vector<8x128xf32> to vector<8x128xbf16>
    %cst_20 = arith.constant dense<0.000000e+00> : vector<8x512xf32>
    %122 = tpu.matmul %121, %1, %cst_20 {dimension_numbers = #tpu.dot_dimension_numbers<[1], [0], [0], [1], [0, 0, 1, 1], [], []>} : vector<8x128xbf16>, vector<128x512xbf16>, vector<8x512xf32> -> vector<8x512xf32>
    %123 = arith.addf %120, %122 : vector<8x512xf32>
    %124 = vector.extract_strided_slice %123 {offsets = [0, 0], sizes = [8, 128], strides = [1, 1]} : vector<8x512xf32> to vector<8x128xf32>
    %125 = arith.negf %124 : vector<8x128xf32>
    %126 = math.exp %125 : vector<8x128xf32>
    %cst_21 = arith.constant 1.000000e+00 : f32
    %127 = vector.broadcast %cst_21 : f32 to vector<8x128xf32>
    %128 = arith.addf %127, %126 : vector<8x128xf32>
    %129 = arith.divf %127, %128 : vector<8x128xf32>
    %130 = vector.extract_strided_slice %123 {offsets = [0, 128], sizes = [8, 128], strides = [1, 1]} : vector<8x512xf32> to vector<8x128xf32>
    %131 = arith.negf %130 : vector<8x128xf32>
    %132 = math.exp %131 : vector<8x128xf32>
    %cst_22 = arith.constant 1.000000e+00 : f32
    %133 = vector.broadcast %cst_22 : f32 to vector<8x128xf32>
    %134 = arith.addf %133, %132 : vector<8x128xf32>
    %135 = arith.divf %133, %134 : vector<8x128xf32>
    %136 = vector.extract_strided_slice %123 {offsets = [0, 256], sizes = [8, 128], strides = [1, 1]} : vector<8x512xf32> to vector<8x128xf32>
    %137 = math.tanh %136 : vector<8x128xf32>
    %138 = vector.extract_strided_slice %123 {offsets = [0, 384], sizes = [8, 128], strides = [1, 1]} : vector<8x512xf32> to vector<8x128xf32>
    %139 = arith.negf %138 : vector<8x128xf32>
    %140 = math.exp %139 : vector<8x128xf32>
    %cst_23 = arith.constant 1.000000e+00 : f32
    %141 = vector.broadcast %cst_23 : f32 to vector<8x128xf32>
    %142 = arith.addf %141, %140 : vector<8x128xf32>
    %143 = arith.divf %141, %142 : vector<8x128xf32>
    %144 = arith.mulf %135, %117 : vector<8x128xf32>
    %145 = arith.mulf %129, %137 : vector<8x128xf32>
    %146 = arith.addf %144, %145 : vector<8x128xf32>
    %147 = math.tanh %146 : vector<8x128xf32>
    %148 = arith.mulf %143, %147 : vector<8x128xf32>
    %149 = vector.extract_strided_slice %0 {offsets = [40, 0], sizes = [8, 512], strides = [1, 1]} : vector<64x512xf32> to vector<8x512xf32>
    %150 = arith.truncf %148 : vector<8x128xf32> to vector<8x128xbf16>
    %cst_24 = arith.constant dense<0.000000e+00> : vector<8x512xf32>
    %151 = tpu.matmul %150, %1, %cst_24 {dimension_numbers = #tpu.dot_dimension_numbers<[1], [0], [0], [1], [0, 0, 1, 1], [], []>} : vector<8x128xbf16>, vector<128x512xbf16>, vector<8x512xf32> -> vector<8x512xf32>
    %152 = arith.addf %149, %151 : vector<8x512xf32>
    %153 = vector.extract_strided_slice %152 {offsets = [0, 0], sizes = [8, 128], strides = [1, 1]} : vector<8x512xf32> to vector<8x128xf32>
    %154 = arith.negf %153 : vector<8x128xf32>
    %155 = math.exp %154 : vector<8x128xf32>
    %cst_25 = arith.constant 1.000000e+00 : f32
    %156 = vector.broadcast %cst_25 : f32 to vector<8x128xf32>
    %157 = arith.addf %156, %155 : vector<8x128xf32>
    %158 = arith.divf %156, %157 : vector<8x128xf32>
    %159 = vector.extract_strided_slice %152 {offsets = [0, 128], sizes = [8, 128], strides = [1, 1]} : vector<8x512xf32> to vector<8x128xf32>
    %160 = arith.negf %159 : vector<8x128xf32>
    %161 = math.exp %160 : vector<8x128xf32>
    %cst_26 = arith.constant 1.000000e+00 : f32
    %162 = vector.broadcast %cst_26 : f32 to vector<8x128xf32>
    %163 = arith.addf %162, %161 : vector<8x128xf32>
    %164 = arith.divf %162, %163 : vector<8x128xf32>
    %165 = vector.extract_strided_slice %152 {offsets = [0, 256], sizes = [8, 128], strides = [1, 1]} : vector<8x512xf32> to vector<8x128xf32>
    %166 = math.tanh %165 : vector<8x128xf32>
    %167 = vector.extract_strided_slice %152 {offsets = [0, 384], sizes = [8, 128], strides = [1, 1]} : vector<8x512xf32> to vector<8x128xf32>
    %168 = arith.negf %167 : vector<8x128xf32>
    %169 = math.exp %168 : vector<8x128xf32>
    %cst_27 = arith.constant 1.000000e+00 : f32
    %170 = vector.broadcast %cst_27 : f32 to vector<8x128xf32>
    %171 = arith.addf %170, %169 : vector<8x128xf32>
    %172 = arith.divf %170, %171 : vector<8x128xf32>
    %173 = arith.mulf %164, %146 : vector<8x128xf32>
    %174 = arith.mulf %158, %166 : vector<8x128xf32>
    %175 = arith.addf %173, %174 : vector<8x128xf32>
    %176 = math.tanh %175 : vector<8x128xf32>
    %177 = arith.mulf %172, %176 : vector<8x128xf32>
    %178 = vector.extract_strided_slice %0 {offsets = [48, 0], sizes = [8, 512], strides = [1, 1]} : vector<64x512xf32> to vector<8x512xf32>
    %179 = arith.truncf %177 : vector<8x128xf32> to vector<8x128xbf16>
    %cst_28 = arith.constant dense<0.000000e+00> : vector<8x512xf32>
    %180 = tpu.matmul %179, %1, %cst_28 {dimension_numbers = #tpu.dot_dimension_numbers<[1], [0], [0], [1], [0, 0, 1, 1], [], []>} : vector<8x128xbf16>, vector<128x512xbf16>, vector<8x512xf32> -> vector<8x512xf32>
    %181 = arith.addf %178, %180 : vector<8x512xf32>
    %182 = vector.extract_strided_slice %181 {offsets = [0, 0], sizes = [8, 128], strides = [1, 1]} : vector<8x512xf32> to vector<8x128xf32>
    %183 = arith.negf %182 : vector<8x128xf32>
    %184 = math.exp %183 : vector<8x128xf32>
    %cst_29 = arith.constant 1.000000e+00 : f32
    %185 = vector.broadcast %cst_29 : f32 to vector<8x128xf32>
    %186 = arith.addf %185, %184 : vector<8x128xf32>
    %187 = arith.divf %185, %186 : vector<8x128xf32>
    %188 = vector.extract_strided_slice %181 {offsets = [0, 128], sizes = [8, 128], strides = [1, 1]} : vector<8x512xf32> to vector<8x128xf32>
    %189 = arith.negf %188 : vector<8x128xf32>
    %190 = math.exp %189 : vector<8x128xf32>
    %cst_30 = arith.constant 1.000000e+00 : f32
    %191 = vector.broadcast %cst_30 : f32 to vector<8x128xf32>
    %192 = arith.addf %191, %190 : vector<8x128xf32>
    %193 = arith.divf %191, %192 : vector<8x128xf32>
    %194 = vector.extract_strided_slice %181 {offsets = [0, 256], sizes = [8, 128], strides = [1, 1]} : vector<8x512xf32> to vector<8x128xf32>
    %195 = math.tanh %194 : vector<8x128xf32>
    %196 = vector.extract_strided_slice %181 {offsets = [0, 384], sizes = [8, 128], strides = [1, 1]} : vector<8x512xf32> to vector<8x128xf32>
    %197 = arith.negf %196 : vector<8x128xf32>
    %198 = math.exp %197 : vector<8x128xf32>
    %cst_31 = arith.constant 1.000000e+00 : f32
    %199 = vector.broadcast %cst_31 : f32 to vector<8x128xf32>
    %200 = arith.addf %199, %198 : vector<8x128xf32>
    %201 = arith.divf %199, %200 : vector<8x128xf32>
    %202 = arith.mulf %193, %175 : vector<8x128xf32>
    %203 = arith.mulf %187, %195 : vector<8x128xf32>
    %204 = arith.addf %202, %203 : vector<8x128xf32>
    %205 = math.tanh %204 : vector<8x128xf32>
    %206 = arith.mulf %201, %205 : vector<8x128xf32>
    %207 = vector.extract_strided_slice %0 {offsets = [56, 0], sizes = [8, 512], strides = [1, 1]} : vector<64x512xf32> to vector<8x512xf32>
    %208 = arith.truncf %206 : vector<8x128xf32> to vector<8x128xbf16>
    %cst_32 = arith.constant dense<0.000000e+00> : vector<8x512xf32>
    %209 = tpu.matmul %208, %1, %cst_32 {dimension_numbers = #tpu.dot_dimension_numbers<[1], [0], [0], [1], [0, 0, 1, 1], [], []>} : vector<8x128xbf16>, vector<128x512xbf16>, vector<8x512xf32> -> vector<8x512xf32>
    %210 = arith.addf %207, %209 : vector<8x512xf32>
    %211 = vector.extract_strided_slice %210 {offsets = [0, 0], sizes = [8, 128], strides = [1, 1]} : vector<8x512xf32> to vector<8x128xf32>
    %212 = arith.negf %211 : vector<8x128xf32>
    %213 = math.exp %212 : vector<8x128xf32>
    %cst_33 = arith.constant 1.000000e+00 : f32
    %214 = vector.broadcast %cst_33 : f32 to vector<8x128xf32>
    %215 = arith.addf %214, %213 : vector<8x128xf32>
    %216 = arith.divf %214, %215 : vector<8x128xf32>
    %217 = vector.extract_strided_slice %210 {offsets = [0, 128], sizes = [8, 128], strides = [1, 1]} : vector<8x512xf32> to vector<8x128xf32>
    %218 = arith.negf %217 : vector<8x128xf32>
    %219 = math.exp %218 : vector<8x128xf32>
    %cst_34 = arith.constant 1.000000e+00 : f32
    %220 = vector.broadcast %cst_34 : f32 to vector<8x128xf32>
    %221 = arith.addf %220, %219 : vector<8x128xf32>
    %222 = arith.divf %220, %221 : vector<8x128xf32>
    %223 = vector.extract_strided_slice %210 {offsets = [0, 256], sizes = [8, 128], strides = [1, 1]} : vector<8x512xf32> to vector<8x128xf32>
    %224 = math.tanh %223 : vector<8x128xf32>
    %225 = vector.extract_strided_slice %210 {offsets = [0, 384], sizes = [8, 128], strides = [1, 1]} : vector<8x512xf32> to vector<8x128xf32>
    %226 = arith.negf %225 : vector<8x128xf32>
    %227 = math.exp %226 : vector<8x128xf32>
    %cst_35 = arith.constant 1.000000e+00 : f32
    %228 = vector.broadcast %cst_35 : f32 to vector<8x128xf32>
    %229 = arith.addf %228, %227 : vector<8x128xf32>
    %230 = arith.divf %228, %229 : vector<8x128xf32>
    %231 = arith.mulf %222, %204 : vector<8x128xf32>
    %232 = arith.mulf %216, %224 : vector<8x128xf32>
    %233 = arith.addf %231, %232 : vector<8x128xf32>
    %234 = math.tanh %233 : vector<8x128xf32>
    %235 = arith.mulf %230, %234 : vector<8x128xf32>
    %c0_36 = arith.constant 0 : index
    %c0_37 = arith.constant 0 : index
    %236 = vector.load %arg1[%c0_36, %c0_37] : memref<8x64xf32, #tpu.memory_space<vmem>>, vector<8x64xf32>
    %237 = arith.truncf %236 : vector<8x64xf32> to vector<8x64xbf16>
    %c0_38 = arith.constant 0 : index
    %c0_39 = arith.constant 0 : index
    %238 = vector.load %arg3[%c0_38, %c0_39] : memref<64x2048xbf16, #tpu.memory_space<vmem>>, vector<64x2048xbf16>
    %cst_40 = arith.constant dense<0.000000e+00> : vector<8x2048xf32>
    %239 = tpu.matmul %237, %238, %cst_40 {dimension_numbers = #tpu.dot_dimension_numbers<[1], [0], [0], [1], [0, 0, 1, 1], [], []>} : vector<8x64xbf16>, vector<64x2048xbf16>, vector<8x2048xf32> -> vector<8x2048xf32>
    %c0_41 = arith.constant 0 : index
    %c0_42 = arith.constant 0 : index
    %240 = vector.load %arg4[%c0_41, %c0_42] : memref<1x2048xf32, #tpu.memory_space<vmem>>, vector<1x2048xf32>
    %241 = vector.broadcast %240 : vector<1x2048xf32> to vector<8x2048xf32>
    %242 = arith.addf %239, %241 : vector<8x2048xf32>
    %243 = arith.truncf %233 : vector<8x128xf32> to vector<8x128xbf16>
    %c0_43 = arith.constant 0 : index
    %c0_44 = arith.constant 0 : index
    %244 = vector.load %arg5[%c0_43, %c0_44] : memref<128x16xbf16, #tpu.memory_space<vmem>>, vector<128x16xbf16>
    %cst_45 = arith.constant dense<0.000000e+00> : vector<8x16xf32>
    %245 = tpu.matmul %243, %244, %cst_45 {dimension_numbers = #tpu.dot_dimension_numbers<[1], [0], [0], [1], [0, 0, 1, 1], [], []>} : vector<8x128xbf16>, vector<128x16xbf16>, vector<8x16xf32> -> vector<8x16xf32>
    %c0_46 = arith.constant 0 : index
    %c0_47 = arith.constant 0 : index
    %246 = vector.load %arg6[%c0_46, %c0_47] : memref<1x16xf32, #tpu.memory_space<vmem>>, vector<1x16xf32>
    %247 = vector.broadcast %246 : vector<1x16xf32> to vector<8x16xf32>
    %248 = arith.addf %245, %247 : vector<8x16xf32>
    %cst_48 = arith.constant 0.000000e+00 : f32
    %249 = vector.broadcast %cst_48 : f32 to vector<8x16xf32>
    %250 = arith.maximumf %248, %249 : vector<8x16xf32>
    %251 = arith.truncf %242 : vector<8x2048xf32> to vector<8x2048xbf16>
    %c0_49 = arith.constant 0 : index
    %c0_50 = arith.constant 0 : index
    %252 = vector.load %arg7[%c0_49, %c0_50] : memref<2048x16xbf16, #tpu.memory_space<vmem>>, vector<2048x16xbf16>
    %cst_51 = arith.constant dense<0.000000e+00> : vector<8x16xf32>
    %253 = tpu.matmul %251, %252, %cst_51 {dimension_numbers = #tpu.dot_dimension_numbers<[1], [0], [0], [1], [0, 0, 1, 1], [], []>} : vector<8x2048xbf16>, vector<2048x16xbf16>, vector<8x16xf32> -> vector<8x16xf32>
    %c0_52 = arith.constant 0 : index
    %c0_53 = arith.constant 0 : index
    %254 = vector.load %arg8[%c0_52, %c0_53] : memref<1x16xf32, #tpu.memory_space<vmem>>, vector<1x16xf32>
    %255 = vector.broadcast %254 : vector<1x16xf32> to vector<8x16xf32>
    %256 = arith.addf %253, %255 : vector<8x16xf32>
    %cst_54 = arith.constant 0.000000e+00 : f32
    %257 = vector.broadcast %cst_54 : f32 to vector<8x16xf32>
    %258 = arith.maximumf %256, %257 : vector<8x16xf32>
    %259 = arith.truncf %250 : vector<8x16xf32> to vector<8x16xbf16>
    %c0_55 = arith.constant 0 : index
    %c0_56 = arith.constant 0 : index
    %260 = vector.load %arg9[%c0_55, %c0_56] : memref<16x512xbf16, #tpu.memory_space<vmem>>, vector<16x512xbf16>
    %cst_57 = arith.constant dense<0.000000e+00> : vector<8x512xf32>
    %261 = tpu.matmul %259, %260, %cst_57 {dimension_numbers = #tpu.dot_dimension_numbers<[1], [0], [0], [1], [0, 0, 1, 1], [], []>} : vector<8x16xbf16>, vector<16x512xbf16>, vector<8x512xf32> -> vector<8x512xf32>
    %262 = arith.truncf %258 : vector<8x16xf32> to vector<8x16xbf16>
    %c0_58 = arith.constant 0 : index
    %c0_59 = arith.constant 0 : index
    %263 = vector.load %arg10[%c0_58, %c0_59] : memref<16x512xbf16, #tpu.memory_space<vmem>>, vector<16x512xbf16>
    %cst_60 = arith.constant dense<0.000000e+00> : vector<8x512xf32>
    %264 = tpu.matmul %262, %263, %cst_60 {dimension_numbers = #tpu.dot_dimension_numbers<[1], [0], [0], [1], [0, 0, 1, 1], [], []>} : vector<8x16xbf16>, vector<16x512xbf16>, vector<8x512xf32> -> vector<8x512xf32>
    %265 = arith.addf %261, %264 : vector<8x512xf32>
    %c0_61 = arith.constant 0 : index
    %c0_62 = arith.constant 0 : index
    %266 = vector.load %arg11[%c0_61, %c0_62] : memref<1x512xf32, #tpu.memory_space<vmem>>, vector<1x512xf32>
    %267 = vector.broadcast %266 : vector<1x512xf32> to vector<8x512xf32>
    %268 = arith.addf %265, %267 : vector<8x512xf32>
    %c0_63 = arith.constant 0 : index
    %c0_64 = arith.constant 0 : index
    %269 = vector.load %arg12[%c0_63, %c0_64] : memref<128x512xbf16, #tpu.memory_space<vmem>>, vector<128x512xbf16>
    %270 = arith.truncf %235 : vector<8x128xf32> to vector<8x128xbf16>
    %cst_65 = arith.constant dense<0.000000e+00> : vector<8x512xf32>
    %271 = tpu.matmul %270, %269, %cst_65 {dimension_numbers = #tpu.dot_dimension_numbers<[1], [0], [0], [1], [0, 0, 1, 1], [], []>} : vector<8x128xbf16>, vector<128x512xbf16>, vector<8x512xf32> -> vector<8x512xf32>
    %272 = arith.addf %268, %271 : vector<8x512xf32>
    %273 = vector.extract_strided_slice %272 {offsets = [0, 0], sizes = [8, 128], strides = [1, 1]} : vector<8x512xf32> to vector<8x128xf32>
    %274 = arith.negf %273 : vector<8x128xf32>
    %275 = math.exp %274 : vector<8x128xf32>
    %cst_66 = arith.constant 1.000000e+00 : f32
    %276 = vector.broadcast %cst_66 : f32 to vector<8x128xf32>
    %277 = arith.addf %276, %275 : vector<8x128xf32>
    %278 = arith.divf %276, %277 : vector<8x128xf32>
    %279 = vector.extract_strided_slice %272 {offsets = [0, 128], sizes = [8, 128], strides = [1, 1]} : vector<8x512xf32> to vector<8x128xf32>
    %280 = arith.negf %279 : vector<8x128xf32>
    %281 = math.exp %280 : vector<8x128xf32>
    %cst_67 = arith.constant 1.000000e+00 : f32
    %282 = vector.broadcast %cst_67 : f32 to vector<8x128xf32>
    %283 = arith.addf %282, %281 : vector<8x128xf32>
    %284 = arith.divf %282, %283 : vector<8x128xf32>
    %285 = vector.extract_strided_slice %272 {offsets = [0, 256], sizes = [8, 128], strides = [1, 1]} : vector<8x512xf32> to vector<8x128xf32>
    %286 = math.tanh %285 : vector<8x128xf32>
    %287 = vector.extract_strided_slice %272 {offsets = [0, 384], sizes = [8, 128], strides = [1, 1]} : vector<8x512xf32> to vector<8x128xf32>
    %288 = arith.negf %287 : vector<8x128xf32>
    %289 = math.exp %288 : vector<8x128xf32>
    %cst_68 = arith.constant 1.000000e+00 : f32
    %290 = vector.broadcast %cst_68 : f32 to vector<8x128xf32>
    %291 = arith.addf %290, %289 : vector<8x128xf32>
    %292 = arith.divf %290, %291 : vector<8x128xf32>
    %293 = arith.mulf %284, %233 : vector<8x128xf32>
    %294 = arith.mulf %278, %286 : vector<8x128xf32>
    %295 = arith.addf %293, %294 : vector<8x128xf32>
    %296 = math.tanh %295 : vector<8x128xf32>
    %297 = arith.mulf %292, %296 : vector<8x128xf32>
    %298 = arith.truncf %297 : vector<8x128xf32> to vector<8x128xbf16>
    %cst_69 = arith.constant dense<0.000000e+00> : vector<8x512xf32>
    %299 = tpu.matmul %298, %269, %cst_69 {dimension_numbers = #tpu.dot_dimension_numbers<[1], [0], [0], [1], [0, 0, 1, 1], [], []>} : vector<8x128xbf16>, vector<128x512xbf16>, vector<8x512xf32> -> vector<8x512xf32>
    %300 = arith.addf %268, %299 : vector<8x512xf32>
    %301 = vector.extract_strided_slice %300 {offsets = [0, 0], sizes = [8, 128], strides = [1, 1]} : vector<8x512xf32> to vector<8x128xf32>
    %302 = arith.negf %301 : vector<8x128xf32>
    %303 = math.exp %302 : vector<8x128xf32>
    %cst_70 = arith.constant 1.000000e+00 : f32
    %304 = vector.broadcast %cst_70 : f32 to vector<8x128xf32>
    %305 = arith.addf %304, %303 : vector<8x128xf32>
    %306 = arith.divf %304, %305 : vector<8x128xf32>
    %307 = vector.extract_strided_slice %300 {offsets = [0, 128], sizes = [8, 128], strides = [1, 1]} : vector<8x512xf32> to vector<8x128xf32>
    %308 = arith.negf %307 : vector<8x128xf32>
    %309 = math.exp %308 : vector<8x128xf32>
    %cst_71 = arith.constant 1.000000e+00 : f32
    %310 = vector.broadcast %cst_71 : f32 to vector<8x128xf32>
    %311 = arith.addf %310, %309 : vector<8x128xf32>
    %312 = arith.divf %310, %311 : vector<8x128xf32>
    %313 = vector.extract_strided_slice %300 {offsets = [0, 256], sizes = [8, 128], strides = [1, 1]} : vector<8x512xf32> to vector<8x128xf32>
    %314 = math.tanh %313 : vector<8x128xf32>
    %315 = vector.extract_strided_slice %300 {offsets = [0, 384], sizes = [8, 128], strides = [1, 1]} : vector<8x512xf32> to vector<8x128xf32>
    %316 = arith.negf %315 : vector<8x128xf32>
    %317 = math.exp %316 : vector<8x128xf32>
    %cst_72 = arith.constant 1.000000e+00 : f32
    %318 = vector.broadcast %cst_72 : f32 to vector<8x128xf32>
    %319 = arith.addf %318, %317 : vector<8x128xf32>
    %320 = arith.divf %318, %319 : vector<8x128xf32>
    %321 = arith.mulf %312, %295 : vector<8x128xf32>
    %322 = arith.mulf %306, %314 : vector<8x128xf32>
    %323 = arith.addf %321, %322 : vector<8x128xf32>
    %324 = math.tanh %323 : vector<8x128xf32>
    %325 = arith.mulf %320, %324 : vector<8x128xf32>
    %326 = arith.truncf %325 : vector<8x128xf32> to vector<8x128xbf16>
    %cst_73 = arith.constant dense<0.000000e+00> : vector<8x512xf32>
    %327 = tpu.matmul %326, %269, %cst_73 {dimension_numbers = #tpu.dot_dimension_numbers<[1], [0], [0], [1], [0, 0, 1, 1], [], []>} : vector<8x128xbf16>, vector<128x512xbf16>, vector<8x512xf32> -> vector<8x512xf32>
    %328 = arith.addf %268, %327 : vector<8x512xf32>
    %329 = vector.extract_strided_slice %328 {offsets = [0, 0], sizes = [8, 128], strides = [1, 1]} : vector<8x512xf32> to vector<8x128xf32>
    %330 = arith.negf %329 : vector<8x128xf32>
    %331 = math.exp %330 : vector<8x128xf32>
    %cst_74 = arith.constant 1.000000e+00 : f32
    %332 = vector.broadcast %cst_74 : f32 to vector<8x128xf32>
    %333 = arith.addf %332, %331 : vector<8x128xf32>
    %334 = arith.divf %332, %333 : vector<8x128xf32>
    %335 = vector.extract_strided_slice %328 {offsets = [0, 128], sizes = [8, 128], strides = [1, 1]} : vector<8x512xf32> to vector<8x128xf32>
    %336 = arith.negf %335 : vector<8x128xf32>
    %337 = math.exp %336 : vector<8x128xf32>
    %cst_75 = arith.constant 1.000000e+00 : f32
    %338 = vector.broadcast %cst_75 : f32 to vector<8x128xf32>
    %339 = arith.addf %338, %337 : vector<8x128xf32>
    %340 = arith.divf %338, %339 : vector<8x128xf32>
    %341 = vector.extract_strided_slice %328 {offsets = [0, 256], sizes = [8, 128], strides = [1, 1]} : vector<8x512xf32> to vector<8x128xf32>
    %342 = math.tanh %341 : vector<8x128xf32>
    %343 = vector.extract_strided_slice %328 {offsets = [0, 384], sizes = [8, 128], strides = [1, 1]} : vector<8x512xf32> to vector<8x128xf32>
    %344 = arith.negf %343 : vector<8x128xf32>
    %345 = math.exp %344 : vector<8x128xf32>
    %cst_76 = arith.constant 1.000000e+00 : f32
    %346 = vector.broadcast %cst_76 : f32 to vector<8x128xf32>
    %347 = arith.addf %346, %345 : vector<8x128xf32>
    %348 = arith.divf %346, %347 : vector<8x128xf32>
    %349 = arith.mulf %340, %323 : vector<8x128xf32>
    %350 = arith.mulf %334, %342 : vector<8x128xf32>
    %351 = arith.addf %349, %350 : vector<8x128xf32>
    %352 = math.tanh %351 : vector<8x128xf32>
    %353 = arith.mulf %348, %352 : vector<8x128xf32>
    %354 = arith.truncf %353 : vector<8x128xf32> to vector<8x128xbf16>
    %cst_77 = arith.constant dense<0.000000e+00> : vector<8x512xf32>
    %355 = tpu.matmul %354, %269, %cst_77 {dimension_numbers = #tpu.dot_dimension_numbers<[1], [0], [0], [1], [0, 0, 1, 1], [], []>} : vector<8x128xbf16>, vector<128x512xbf16>, vector<8x512xf32> -> vector<8x512xf32>
    %356 = arith.addf %268, %355 : vector<8x512xf32>
    %357 = vector.extract_strided_slice %356 {offsets = [0, 0], sizes = [8, 128], strides = [1, 1]} : vector<8x512xf32> to vector<8x128xf32>
    %358 = arith.negf %357 : vector<8x128xf32>
    %359 = math.exp %358 : vector<8x128xf32>
    %cst_78 = arith.constant 1.000000e+00 : f32
    %360 = vector.broadcast %cst_78 : f32 to vector<8x128xf32>
    %361 = arith.addf %360, %359 : vector<8x128xf32>
    %362 = arith.divf %360, %361 : vector<8x128xf32>
    %363 = vector.extract_strided_slice %356 {offsets = [0, 128], sizes = [8, 128], strides = [1, 1]} : vector<8x512xf32> to vector<8x128xf32>
    %364 = arith.negf %363 : vector<8x128xf32>
    %365 = math.exp %364 : vector<8x128xf32>
    %cst_79 = arith.constant 1.000000e+00 : f32
    %366 = vector.broadcast %cst_79 : f32 to vector<8x128xf32>
    %367 = arith.addf %366, %365 : vector<8x128xf32>
    %368 = arith.divf %366, %367 : vector<8x128xf32>
    %369 = vector.extract_strided_slice %356 {offsets = [0, 256], sizes = [8, 128], strides = [1, 1]} : vector<8x512xf32> to vector<8x128xf32>
    %370 = math.tanh %369 : vector<8x128xf32>
    %371 = vector.extract_strided_slice %356 {offsets = [0, 384], sizes = [8, 128], strides = [1, 1]} : vector<8x512xf32> to vector<8x128xf32>
    %372 = arith.negf %371 : vector<8x128xf32>
    %373 = math.exp %372 : vector<8x128xf32>
    %cst_80 = arith.constant 1.000000e+00 : f32
    %374 = vector.broadcast %cst_80 : f32 to vector<8x128xf32>
    %375 = arith.addf %374, %373 : vector<8x128xf32>
    %376 = arith.divf %374, %375 : vector<8x128xf32>
    %377 = arith.mulf %368, %351 : vector<8x128xf32>
    %378 = arith.mulf %362, %370 : vector<8x128xf32>
    %379 = arith.addf %377, %378 : vector<8x128xf32>
    %380 = math.tanh %379 : vector<8x128xf32>
    %381 = arith.mulf %376, %380 : vector<8x128xf32>
    %382 = arith.truncf %381 : vector<8x128xf32> to vector<8x128xbf16>
    %cst_81 = arith.constant dense<0.000000e+00> : vector<8x512xf32>
    %383 = tpu.matmul %382, %269, %cst_81 {dimension_numbers = #tpu.dot_dimension_numbers<[1], [0], [0], [1], [0, 0, 1, 1], [], []>} : vector<8x128xbf16>, vector<128x512xbf16>, vector<8x512xf32> -> vector<8x512xf32>
    %384 = arith.addf %268, %383 : vector<8x512xf32>
    %385 = vector.extract_strided_slice %384 {offsets = [0, 0], sizes = [8, 128], strides = [1, 1]} : vector<8x512xf32> to vector<8x128xf32>
    %386 = arith.negf %385 : vector<8x128xf32>
    %387 = math.exp %386 : vector<8x128xf32>
    %cst_82 = arith.constant 1.000000e+00 : f32
    %388 = vector.broadcast %cst_82 : f32 to vector<8x128xf32>
    %389 = arith.addf %388, %387 : vector<8x128xf32>
    %390 = arith.divf %388, %389 : vector<8x128xf32>
    %391 = vector.extract_strided_slice %384 {offsets = [0, 128], sizes = [8, 128], strides = [1, 1]} : vector<8x512xf32> to vector<8x128xf32>
    %392 = arith.negf %391 : vector<8x128xf32>
    %393 = math.exp %392 : vector<8x128xf32>
    %cst_83 = arith.constant 1.000000e+00 : f32
    %394 = vector.broadcast %cst_83 : f32 to vector<8x128xf32>
    %395 = arith.addf %394, %393 : vector<8x128xf32>
    %396 = arith.divf %394, %395 : vector<8x128xf32>
    %397 = vector.extract_strided_slice %384 {offsets = [0, 256], sizes = [8, 128], strides = [1, 1]} : vector<8x512xf32> to vector<8x128xf32>
    %398 = math.tanh %397 : vector<8x128xf32>
    %399 = vector.extract_strided_slice %384 {offsets = [0, 384], sizes = [8, 128], strides = [1, 1]} : vector<8x512xf32> to vector<8x128xf32>
    %400 = arith.negf %399 : vector<8x128xf32>
    %401 = math.exp %400 : vector<8x128xf32>
    %cst_84 = arith.constant 1.000000e+00 : f32
    %402 = vector.broadcast %cst_84 : f32 to vector<8x128xf32>
    %403 = arith.addf %402, %401 : vector<8x128xf32>
    %404 = arith.divf %402, %403 : vector<8x128xf32>
    %405 = arith.mulf %396, %379 : vector<8x128xf32>
    %406 = arith.mulf %390, %398 : vector<8x128xf32>
    %407 = arith.addf %405, %406 : vector<8x128xf32>
    %408 = math.tanh %407 : vector<8x128xf32>
    %409 = arith.mulf %404, %408 : vector<8x128xf32>
    %410 = tpu.concatenate %297, %325, %353, %381, %409 in 0 : vector<8x128xf32>, vector<8x128xf32>, vector<8x128xf32>, vector<8x128xf32>, vector<8x128xf32> -> vector<40x128xf32>
    %411 = arith.truncf %410 : vector<40x128xf32> to vector<40x128xbf16>
    %c0_85 = arith.constant 0 : index
    %c0_86 = arith.constant 0 : index
    %412 = vector.load %arg13[%c0_85, %c0_86] : memref<128x128xbf16, #tpu.memory_space<vmem>>, vector<128x128xbf16>
    %cst_87 = arith.constant dense<0.000000e+00> : vector<40x128xf32>
    %413 = tpu.matmul %411, %412, %cst_87 {dimension_numbers = #tpu.dot_dimension_numbers<[1], [0], [0], [1], [0, 0, 1, 1], [], []>} : vector<40x128xbf16>, vector<128x128xbf16>, vector<40x128xf32> -> vector<40x128xf32>
    %c0_88 = arith.constant 0 : index
    %c0_89 = arith.constant 0 : index
    %414 = vector.load %arg14[%c0_88, %c0_89] : memref<1x128xf32, #tpu.memory_space<vmem>>, vector<1x128xf32>
    %415 = vector.broadcast %414 : vector<1x128xf32> to vector<40x128xf32>
    %416 = arith.addf %413, %415 : vector<40x128xf32>
    %c0_90 = arith.constant 0 : index
    %c0_91 = arith.constant 0 : index
    %417 = vector.load %arg15[%c0_90, %c0_91] : memref<40x128xf32, #tpu.memory_space<vmem>>, vector<40x128xf32>
    tpu.vector_store %arg15[%c0_90, %c0_91], %416 {strides = array<i32>} : memref<40x128xf32, #tpu.memory_space<vmem>>, vector<40x128xf32>,
    return
  }
}

</mosaic_0001>

<llo_original>
// kernel: _lambda_.2
$region0: #{_lambda_.2}
  #allocation0 [shape = 'u32[]', space=smem, size = 0x4, offset = 0x4, fixed_abs, tag = 'smem constant byte address 0x4 - core index']
  #allocation1 [shape = 'u32[144,128]{1,0:T(1,128)}', space=vmem, size = 0x12000, scoped, tag = 'internal scratch']
  #allocation2 [shape = 'f32[8,64]{1,0:T(8,128)}', space=vmem, size = 0x1000, scoped, tag = 'scratch operand']
  %s0 = inlined_call_operand.vmem [shape: bf16[8,256,256], index: 0, kind: input, shape index: {}]
  %s1 = inlined_call_operand.vmem [shape: bf16[256,64], index: 1, kind: input, shape index: {}]
  %s2 = inlined_call_operand.vmem [shape: f32[1,64], index: 2, kind: input, shape index: {}]
  %s3 = inlined_call_operand.vmem [shape: f32[8,64], index: 3, kind: output, shape index: {}]
  %s4 = sld [smem:[#allocation0]]
  $region30: #{_lambda_.2} parent=0
    _
  %s6 = ssub.s32 1, %s4
  %s7 = scalar_select 0, %s6, %s4
  // Predicated region
  $region2: #{_lambda_.2} parent=0 // pred_check
    _
  $region3: #{_lambda_.2} parent=0 // pred_check_branch
    %9 = sbr.rel (0) target = $region5
  $region4: #{_lambda_.2} parent=0 // pred_region
    _
  $region5: #{_lambda_.2} parent=0 // pred_fallthru
    _
  // Predicated region
  $region6: #{_lambda_.2} parent=0 // pred_check
    _
  $region7: #{_lambda_.2} parent=0 // pred_check_branch
    %11 = sbr.rel (0) target = $region9
  $region8: #{_lambda_.2} parent=0 // pred_region
    _
  $region9: #{_lambda_.2} parent=0 // pred_fallthru
    _
  // Predicated region
  $region10: #{_lambda_.2} parent=0 // pred_check
    _
  $region11: #{_lambda_.2} parent=0 // pred_check_branch
    %13 = sbr.rel (0) target = $region13
  $region12: #{_lambda_.2} parent=0 // pred_region
    _
  $region13: #{_lambda_.2} parent=0 // pred_fallthru
    _
  %p15 = scmp.eq.s32.totalorder 0, 0
  // Predicated region
  $region14: #{_lambda_.2} parent=0 // pred_check
    %p16 = pneg %p15
  $region15: #{_lambda_.2} parent=0 // pred_check_branch
    %18 = sbr.rel (%p16) target = $region17
  $region16: #{_lambda_.2} parent=0 // pred_region
    %vm19 = vcmask 523264
    %20 = vst.msk [vmem:[#allocation2] sm:$0xff] %vm19, 0.0
  $region17: #{_lambda_.2} parent=0 // pred_fallthru
    _
  %v21 = vld [vmem:[%s0] sm:$0xff]
  %v22 = vld [vmem:[%s0 + $0x8] sm:$0xff]
  %v23 = vld [vmem:[%s0 + $0x10] sm:$0xff]
  %v24 = vld [vmem:[%s0 + $0x18] sm:$0xff]
  %v25 = vld [vmem:[%s0 + $0x20] sm:$0xff]
  %v26 = vld [vmem:[%s0 + $0x28] sm:$0xff]
  %v27 = vld [vmem:[%s0 + $0x30] sm:$0xff]
  %v28 = vld [vmem:[%s0 + $0x38] sm:$0xff]
  %v29 = vld [vmem:[%s0 + $0x40] sm:$0xff]
  %v30 = vld [vmem:[%s0 + $0x48] sm:$0xff]
  %v31 = vld [vmem:[%s0 + $0x50] sm:$0xff]
  %v32 = vld [vmem:[%s0 + $0x58] sm:$0xff]
  %v33 = vld [vmem:[%s0 + $0x60] sm:$0xff]
  %v34 = vld [vmem:[%s0 + $0x68] sm:$0xff]
  %v35 = vld [vmem:[%s0 + $0x70] sm:$0xff]
  %v36 = vld [vmem:[%s0 + $0x78] sm:$0xff]
  %v37 = vld [vmem:[%s0 + $0x80] sm:$0xff]
  %v38 = vld [vmem:[%s0 + $0x88] sm:$0xff]
  %v39 = vld [vmem:[%s0 + $0x90] sm:$0xff]
  %v40 = vld [vmem:[%s0 + $0x98] sm:$0xff]
  %v41 = vld [vmem:[%s0 + $0xa0] sm:$0xff]
  %v42 = vld [vmem:[%s0 + $0xa8] sm:$0xff]
  %v43 = vld [vmem:[%s0 + $0xb0] sm:$0xff]
  %v44 = vld [vmem:[%s0 + $0xb8] sm:$0xff]
  %v45 = vld [vmem:[%s0 + $0xc0] sm:$0xff]
  %v46 = vld [vmem:[%s0 + $0xc8] sm:$0xff]
  %v47 = vld [vmem:[%s0 + $0xd0] sm:$0xff]
  %v48 = vld [vmem:[%s0 + $0xd8] sm:$0xff]
  %v49 = vld [vmem:[%s0 + $0xe0] sm:$0xff]
  %v50 = vld [vmem:[%s0 + $0xe8] sm:$0xff]
  %v51 = vld [vmem:[%s0 + $0xf0] sm:$0xff]
  %v52 = vld [vmem:[%s0 + $0xf8] sm:$0xff]
  %v53 = vld [vmem:[%s0 + $0x100] sm:$0xff]
  %v54 = vld [vmem:[%s0 + $0x108] sm:$0xff]
  %v55 = vld [vmem:[%s0 + $0x110] sm:$0xff]
  %v56 = vld [vmem:[%s0 + $0x118] sm:$0xff]
  %v57 = vld [vmem:[%s0 + $0x120] sm:$0xff]
  %v58 = vld [vmem:[%s0 + $0x128] sm:$0xff]
  %v59 = vld [vmem:[%s0 + $0x130] sm:$0xff]
  %v60 = vld [vmem:[%s0 + $0x138] sm:$0xff]
  %v61 = vld [vmem:[%s0 + $0x140] sm:$0xff]
  %v62 = vld [vmem:[%s0 + $0x148] sm:$0xff]
  %v63 = vld [vmem:[%s0 + $0x150] sm:$0xff]
  %v64 = vld [vmem:[%s0 + $0x158] sm:$0xff]
  %v65 = vld [vmem:[%s0 + $0x160] sm:$0xff]
  %v66 = vld [vmem:[%s0 + $0x168] sm:$0xff]
  %v67 = vld [vmem:[%s0 + $0x170] sm:$0xff]
  %v68 = vld [vmem:[%s0 + $0x178] sm:$0xff]
  %v69 = vld [vmem:[%s0 + $0x180] sm:$0xff]
  %v70 = vld [vmem:[%s0 + $0x188] sm:$0xff]
  %v71 = vld [vmem:[%s0 + $0x190] sm:$0xff]
  %v72 = vld [vmem:[%s0 + $0x198] sm:$0xff]
  %v73 = vld [vmem:[%s0 + $0x1a0] sm:$0xff]
  %v74 = vld [vmem:[%s0 + $0x1a8] sm:$0xff]
  %v75 = vld [vmem:[%s0 + $0x1b0] sm:$0xff]
  %v76 = vld [vmem:[%s0 + $0x1b8] sm:$0xff]
  %v77 = vld [vmem:[%s0 + $0x1c0] sm:$0xff]
  %v78 = vld [vmem:[%s0 + $0x1c8] sm:$0xff]
  %v79 = vld [vmem:[%s0 + $0x1d0] sm:$0xff]
  %v80 = vld [vmem:[%s0 + $0x1d8] sm:$0xff]
  %v81 = vld [vmem:[%s0 + $0x1e0] sm:$0xff]
  %v82 = vld [vmem:[%s0 + $0x1e8] sm:$0xff]
  %v83 = vld [vmem:[%s0 + $0x1f0] sm:$0xff]
  %v84 = vld [vmem:[%s0 + $0x1f8] sm:$0xff]
  %v85 = vld [vmem:[%s0 + $0x200] sm:$0xff]
  %v86 = vld [vmem:[%s0 + $0x208] sm:$0xff]
  %v87 = vld [vmem:[%s0 + $0x210] sm:$0xff]
  %v88 = vld [vmem:[%s0 + $0x218] sm:$0xff]
  %v89 = vld [vmem:[%s0 + $0x220] sm:$0xff]
  %v90 = vld [vmem:[%s0 + $0x228] sm:$0xff]
  %v91 = vld [vmem:[%s0 + $0x230] sm:$0xff]
  %v92 = vld [vmem:[%s0 + $0x238] sm:$0xff]
  %v93 = vld [vmem:[%s0 + $0x240] sm:$0xff]
  %v94 = vld [vmem:[%s0 + $0x248] sm:$0xff]
  %v95 = vld [vmem:[%s0 + $0x250] sm:$0xff]
  %v96 = vld [vmem:[%s0 + $0x258] sm:$0xff]
  %v97 = vld [vmem:[%s0 + $0x260] sm:$0xff]
  %v98 = vld [vmem:[%s0 + $0x268] sm:$0xff]
  %v99 = vld [vmem:[%s0 + $0x270] sm:$0xff]
  %v100 = vld [vmem:[%s0 + $0x278] sm:$0xff]
  %v101 = vld [vmem:[%s0 + $0x280] sm:$0xff]
  %v102 = vld [vmem:[%s0 + $0x288] sm:$0xff]
  %v103 = vld [vmem:[%s0 + $0x290] sm:$0xff]
  %v104 = vld [vmem:[%s0 + $0x298] sm:$0xff]
  %v105 = vld [vmem:[%s0 + $0x2a0] sm:$0xff]
  %v106 = vld [vmem:[%s0 + $0x2a8] sm:$0xff]
  %v107 = vld [vmem:[%s0 + $0x2b0] sm:$0xff]
  %v108 = vld [vmem:[%s0 + $0x2b8] sm:$0xff]
  %v109 = vld [vmem:[%s0 + $0x2c0] sm:$0xff]
  %v110 = vld [vmem:[%s0 + $0x2c8] sm:$0xff]
  %v111 = vld [vmem:[%s0 + $0x2d0] sm:$0xff]
  %v112 = vld [vmem:[%s0 + $0x2d8] sm:$0xff]
  %v113 = vld [vmem:[%s0 + $0x2e0] sm:$0xff]
  %v114 = vld [vmem:[%s0 + $0x2e8] sm:$0xff]
  %v115 = vld [vmem:[%s0 + $0x2f0] sm:$0xff]
  %v116 = vld [vmem:[%s0 + $0x2f8] sm:$0xff]
  %v117 = vld [vmem:[%s0 + $0x300] sm:$0xff]
  %v118 = vld [vmem:[%s0 + $0x308] sm:$0xff]
  %v119 = vld [vmem:[%s0 + $0x310] sm:$0xff]
  %v120 = vld [vmem:[%s0 + $0x318] sm:$0xff]
  %v121 = vld [vmem:[%s0 + $0x320] sm:$0xff]
  %v122 = vld [vmem:[%s0 + $0x328] sm:$0xff]
  %v123 = vld [vmem:[%s0 + $0x330] sm:$0xff]
  %v124 = vld [vmem:[%s0 + $0x338] sm:$0xff]
  %v125 = vld [vmem:[%s0 + $0x340] sm:$0xff]
  %v126 = vld [vmem:[%s0 + $0x348] sm:$0xff]
  %v127 = vld [vmem:[%s0 + $0x350] sm:$0xff]
  %v128 = vld [vmem:[%s0 + $0x358] sm:$0xff]
  %v129 = vld [vmem:[%s0 + $0x360] sm:$0xff]
  %v130 = vld [vmem:[%s0 + $0x368] sm:$0xff]
  %v131 = vld [vmem:[%s0 + $0x370] sm:$0xff]
  %v132 = vld [vmem:[%s0 + $0x378] sm:$0xff]
  %v133 = vld [vmem:[%s0 + $0x380] sm:$0xff]
  %v134 = vld [vmem:[%s0 + $0x388] sm:$0xff]
  %v135 = vld [vmem:[%s0 + $0x390] sm:$0xff]
  %v136 = vld [vmem:[%s0 + $0x398] sm:$0xff]
  %v137 = vld [vmem:[%s0 + $0x3a0] sm:$0xff]
  %v138 = vld [vmem:[%s0 + $0x3a8] sm:$0xff]
  %v139 = vld [vmem:[%s0 + $0x3b0] sm:$0xff]
  %v140 = vld [vmem:[%s0 + $0x3b8] sm:$0xff]
  %v141 = vld [vmem:[%s0 + $0x3c0] sm:$0xff]
  %v142 = vld [vmem:[%s0 + $0x3c8] sm:$0xff]
  %v143 = vld [vmem:[%s0 + $0x3d0] sm:$0xff]
  %v144 = vld [vmem:[%s0 + $0x3d8] sm:$0xff]
  %v145 = vld [vmem:[%s0 + $0x3e0] sm:$0xff]
  %v146 = vld [vmem:[%s0 + $0x3e8] sm:$0xff]
  %v147 = vld [vmem:[%s0 + $0x3f0] sm:$0xff]
  %v148 = vld [vmem:[%s0 + $0x3f8] sm:$0xff]
  %v149 = vld [vmem:[%s0 + $0x400] sm:$0xff]
  %v150 = vld [vmem:[%s0 + $0x408] sm:$0xff]
  %v151 = vld [vmem:[%s0 + $0x410] sm:$0xff]
  %v152 = vld [vmem:[%s0 + $0x418] sm:$0xff]
  %v153 = vld [vmem:[%s0 + $0x420] sm:$0xff]
  %v154 = vld [vmem:[%s0 + $0x428] sm:$0xff]
  %v155 = vld [vmem:[%s0 + $0x430] sm:$0xff]
  %v156 = vld [vmem:[%s0 + $0x438] sm:$0xff]
  %v157 = vld [vmem:[%s0 + $0x440] sm:$0xff]
  %v158 = vld [vmem:[%s0 + $0x448] sm:$0xff]
  %v159 = vld [vmem:[%s0 + $0x450] sm:$0xff]
  %v160 = vld [vmem:[%s0 + $0x458] sm:$0xff]
  %v161 = vld [vmem:[%s0 + $0x460] sm:$0xff]
  %v162 = vld [vmem:[%s0 + $0x468] sm:$0xff]
  %v163 = vld [vmem:[%s0 + $0x470] sm:$0xff]
  %v164 = vld [vmem:[%s0 + $0x478] sm:$0xff]
  %v165 = vld [vmem:[%s0 + $0x480] sm:$0xff]
  %v166 = vld [vmem:[%s0 + $0x488] sm:$0xff]
  %v167 = vld [vmem:[%s0 + $0x490] sm:$0xff]
  %v168 = vld [vmem:[%s0 + $0x498] sm:$0xff]
  %v169 = vld [vmem:[%s0 + $0x4a0] sm:$0xff]
  %v170 = vld [vmem:[%s0 + $0x4a8] sm:$0xff]
  %v171 = vld [vmem:[%s0 + $0x4b0] sm:$0xff]
  %v172 = vld [vmem:[%s0 + $0x4b8] sm:$0xff]
  %v173 = vld [vmem:[%s0 + $0x4c0] sm:$0xff]
  %v174 = vld [vmem:[%s0 + $0x4c8] sm:$0xff]
  %v175 = vld [vmem:[%s0 + $0x4d0] sm:$0xff]
  %v176 = vld [vmem:[%s0 + $0x4d8] sm:$0xff]
  %v177 = vld [vmem:[%s0 + $0x4e0] sm:$0xff]
  %v178 = vld [vmem:[%s0 + $0x4e8] sm:$0xff]
  %v179 = vld [vmem:[%s0 + $0x4f0] sm:$0xff]
  %v180 = vld [vmem:[%s0 + $0x4f8] sm:$0xff]
  %v181 = vld [vmem:[%s0 + $0x500] sm:$0xff]
  %v182 = vld [vmem:[%s0 + $0x508] sm:$0xff]
  %v183 = vld [vmem:[%s0 + $0x510] sm:$0xff]
  %v184 = vld [vmem:[%s0 + $0x518] sm:$0xff]
  %v185 = vld [vmem:[%s0 + $0x520] sm:$0xff]
  %v186 = vld [vmem:[%s0 + $0x528] sm:$0xff]
  %v187 = vld [vmem:[%s0 + $0x530] sm:$0xff]
  %v188 = vld [vmem:[%s0 + $0x538] sm:$0xff]
  %v189 = vld [vmem:[%s0 + $0x540] sm:$0xff]
  %v190 = vld [vmem:[%s0 + $0x548] sm:$0xff]
  %v191 = vld [vmem:[%s0 + $0x550] sm:$0xff]
  %v192 = vld [vmem:[%s0 + $0x558] sm:$0xff]
  %v193 = vld [vmem:[%s0 + $0x560] sm:$0xff]
  %v194 = vld [vmem:[%s0 + $0x568] sm:$0xff]
  %v195 = vld [vmem:[%s0 + $0x570] sm:$0xff]
  %v196 = vld [vmem:[%s0 + $0x578] sm:$0xff]
  %v197 = vld [vmem:[%s0 + $0x580] sm:$0xff]
  %v198 = vld [vmem:[%s0 + $0x588] sm:$0xff]
  %v199 = vld [vmem:[%s0 + $0x590] sm:$0xff]
  %v200 = vld [vmem:[%s0 + $0x598] sm:$0xff]
  %v201 = vld [vmem:[%s0 + $0x5a0] sm:$0xff]
  %v202 = vld [vmem:[%s0 + $0x5a8] sm:$0xff]
  %v203 = vld [vmem:[%s0 + $0x5b0] sm:$0xff]
  %v204 = vld [vmem:[%s0 + $0x5b8] sm:$0xff]
  %v205 = vld [vmem:[%s0 + $0x5c0] sm:$0xff]
  %v206 = vld [vmem:[%s0 + $0x5c8] sm:$0xff]
  %v207 = vld [vmem:[%s0 + $0x5d0] sm:$0xff]
  %v208 = vld [vmem:[%s0 + $0x5d8] sm:$0xff]
  %v209 = vld [vmem:[%s0 + $0x5e0] sm:$0xff]
  %v210 = vld [vmem:[%s0 + $0x5e8] sm:$0xff]
  %v211 = vld [vmem:[%s0 + $0x5f0] sm:$0xff]
  %v212 = vld [vmem:[%s0 + $0x5f8] sm:$0xff]
  %v213 = vld [vmem:[%s0 + $0x600] sm:$0xff]
  %v214 = vld [vmem:[%s0 + $0x608] sm:$0xff]
  %v215 = vld [vmem:[%s0 + $0x610] sm:$0xff]
  %v216 = vld [vmem:[%s0 + $0x618] sm:$0xff]
  %v217 = vld [vmem:[%s0 + $0x620] sm:$0xff]
  %v218 = vld [vmem:[%s0 + $0x628] sm:$0xff]
  %v219 = vld [vmem:[%s0 + $0x630] sm:$0xff]
  %v220 = vld [vmem:[%s0 + $0x638] sm:$0xff]
  %v221 = vld [vmem:[%s0 + $0x640] sm:$0xff]
  %v222 = vld [vmem:[%s0 + $0x648] sm:$0xff]
  %v223 = vld [vmem:[%s0 + $0x650] sm:$0xff]
  %v224 = vld [vmem:[%s0 + $0x658] sm:$0xff]
  %v225 = vld [vmem:[%s0 + $0x660] sm:$0xff]
  %v226 = vld [vmem:[%s0 + $0x668] sm:$0xff]
  %v227 = vld [vmem:[%s0 + $0x670] sm:$0xff]
  %v228 = vld [vmem:[%s0 + $0x678] sm:$0xff]
  %v229 = vld [vmem:[%s0 + $0x680] sm:$0xff]
  %v230 = vld [vmem:[%s0 + $0x688] sm:$0xff]
  %v231 = vld [vmem:[%s0 + $0x690] sm:$0xff]
  %v232 = vld [vmem:[%s0 + $0x698] sm:$0xff]
  %v233 = vld [vmem:[%s0 + $0x6a0] sm:$0xff]
  %v234 = vld [vmem:[%s0 + $0x6a8] sm:$0xff]
  %v235 = vld [vmem:[%s0 + $0x6b0] sm:$0xff]
  %v236 = vld [vmem:[%s0 + $0x6b8] sm:$0xff]
  %v237 = vld [vmem:[%s0 + $0x6c0] sm:$0xff]
  %v238 = vld [vmem:[%s0 + $0x6c8] sm:$0xff]
  %v239 = vld [vmem:[%s0 + $0x6d0] sm:$0xff]
  %v240 = vld [vmem:[%s0 + $0x6d8] sm:$0xff]
  %v241 = vld [vmem:[%s0 + $0x6e0] sm:$0xff]
  %v242 = vld [vmem:[%s0 + $0x6e8] sm:$0xff]
  %v243 = vld [vmem:[%s0 + $0x6f0] sm:$0xff]
  %v244 = vld [vmem:[%s0 + $0x6f8] sm:$0xff]
  %v245 = vld [vmem:[%s0 + $0x700] sm:$0xff]
  %v246 = vld [vmem:[%s0 + $0x708] sm:$0xff]
  %v247 = vld [vmem:[%s0 + $0x710] sm:$0xff]
  %v248 = vld [vmem:[%s0 + $0x718] sm:$0xff]
  %v249 = vld [vmem:[%s0 + $0x720] sm:$0xff]
  %v250 = vld [vmem:[%s0 + $0x728] sm:$0xff]
  %v251 = vld [vmem:[%s0 + $0x730] sm:$0xff]
  %v252 = vld [vmem:[%s0 + $0x738] sm:$0xff]
  %v253 = vld [vmem:[%s0 + $0x740] sm:$0xff]
  %v254 = vld [vmem:[%s0 + $0x748] sm:$0xff]
  %v255 = vld [vmem:[%s0 + $0x750] sm:$0xff]
  %v256 = vld [vmem:[%s0 + $0x758] sm:$0xff]
  %v257 = vld [vmem:[%s0 + $0x760] sm:$0xff]
  %v258 = vld [vmem:[%s0 + $0x768] sm:$0xff]
  %v259 = vld [vmem:[%s0 + $0x770] sm:$0xff]
  %v260 = vld [vmem:[%s0 + $0x778] sm:$0xff]
  %v261 = vld [vmem:[%s0 + $0x780] sm:$0xff]
  %v262 = vld [vmem:[%s0 + $0x788] sm:$0xff]
  %v263 = vld [vmem:[%s0 + $0x790] sm:$0xff]
  %v264 = vld [vmem:[%s0 + $0x798] sm:$0xff]
  %v265 = vld [vmem:[%s0 + $0x7a0] sm:$0xff]
  %v266 = vld [vmem:[%s0 + $0x7a8] sm:$0xff]
  %v267 = vld [vmem:[%s0 + $0x7b0] sm:$0xff]
  %v268 = vld [vmem:[%s0 + $0x7b8] sm:$0xff]
  %v269 = vld [vmem:[%s0 + $0x7c0] sm:$0xff]
  %v270 = vld [vmem:[%s0 + $0x7c8] sm:$0xff]
  %v271 = vld [vmem:[%s0 + $0x7d0] sm:$0xff]
  %v272 = vld [vmem:[%s0 + $0x7d8] sm:$0xff]
  %v273 = vld [vmem:[%s0 + $0x7e0] sm:$0xff]
  %v274 = vld [vmem:[%s0 + $0x7e8] sm:$0xff]
  %v275 = vld [vmem:[%s0 + $0x7f0] sm:$0xff]
  %v276 = vld [vmem:[%s0 + $0x7f8] sm:$0xff]
  %v277 = vld [vmem:[%s1] sm:$0xf]
  %v278 = vld [vmem:[%s1 + $0x4] sm:$0xf]
  %v279 = vld [vmem:[%s1 + $0x8] sm:$0xf]
  %v280 = vld [vmem:[%s1 + $0xc] sm:$0xf]
  %v281 = vld [vmem:[%s1 + $0x10] sm:$0xf]
  %v282 = vld [vmem:[%s1 + $0x14] sm:$0xf]
  %v283 = vld [vmem:[%s1 + $0x18] sm:$0xf]
  %v284 = vld [vmem:[%s1 + $0x1c] sm:$0xf]
  %v285 = vld [vmem:[%s1 + $0x20] sm:$0xf]
  %v286 = vld [vmem:[%s1 + $0x24] sm:$0xf]
  %v287 = vld [vmem:[%s1 + $0x28] sm:$0xf]
  %v288 = vld [vmem:[%s1 + $0x2c] sm:$0xf]
  %v289 = vld [vmem:[%s1 + $0x30] sm:$0xf]
  %v290 = vld [vmem:[%s1 + $0x34] sm:$0xf]
  %v291 = vld [vmem:[%s1 + $0x38] sm:$0xf]
  %v292 = vld [vmem:[%s1 + $0x3c] sm:$0xf]
  %v293 = vld [vmem:[%s1 + $0x40] sm:$0xf]
  %v294 = vld [vmem:[%s1 + $0x44] sm:$0xf]
  %v295 = vld [vmem:[%s1 + $0x48] sm:$0xf]
  %v296 = vld [vmem:[%s1 + $0x4c] sm:$0xf]
  %v297 = vld [vmem:[%s1 + $0x50] sm:$0xf]
  %v298 = vld [vmem:[%s1 + $0x54] sm:$0xf]
  %v299 = vld [vmem:[%s1 + $0x58] sm:$0xf]
  %v300 = vld [vmem:[%s1 + $0x5c] sm:$0xf]
  %v301 = vld [vmem:[%s1 + $0x60] sm:$0xf]
  %v302 = vld [vmem:[%s1 + $0x64] sm:$0xf]
  %v303 = vld [vmem:[%s1 + $0x68] sm:$0xf]
  %v304 = vld [vmem:[%s1 + $0x6c] sm:$0xf]
  %v305 = vld [vmem:[%s1 + $0x70] sm:$0xf]
  %v306 = vld [vmem:[%s1 + $0x74] sm:$0xf]
  %v307 = vld [vmem:[%s1 + $0x78] sm:$0xf]
  %v308 = vld [vmem:[%s1 + $0x7c] sm:$0xf]
  %v309 = vld [vmem:[%s2] sm:$0x1]
  %v311 = vlaneseq
  %v312 = vshrl.u32 %v311, 7
  %v313 = vsub.s32 0, %v312
  %v314 = vrot.slane %v309, %v313
  %v572 = vunpack.c.l.b16 %v21
  %v573 = vunpack.c.h.b16 %v21
  %v574 = vunpack.c.l.b16 %v22
  %v575 = vunpack.c.h.b16 %v22
  %v576 = vunpack.c.l.b16 %v23
  %v577 = vunpack.c.h.b16 %v23
  %v578 = vunpack.c.l.b16 %v24
  %v579 = vunpack.c.h.b16 %v24
  %v580 = vunpack.c.l.b16 %v25
  %v581 = vunpack.c.h.b16 %v25
  %v582 = vunpack.c.l.b16 %v26
  %v583 = vunpack.c.h.b16 %v26
  %v584 = vunpack.c.l.b16 %v27
  %v585 = vunpack.c.h.b16 %v27
  %v586 = vunpack.c.l.b16 %v28
  %v587 = vunpack.c.h.b16 %v28
  %v588 = vunpack.c.l.b16 %v29
  %v589 = vunpack.c.h.b16 %v29
  %v590 = vunpack.c.l.b16 %v30
  %v591 = vunpack.c.h.b16 %v30
  %v592 = vunpack.c.l.b16 %v31
  %v593 = vunpack.c.h.b16 %v31
  %v594 = vunpack.c.l.b16 %v32
  %v595 = vunpack.c.h.b16 %v32
  %v596 = vunpack.c.l.b16 %v33
  %v597 = vunpack.c.h.b16 %v33
  %v598 = vunpack.c.l.b16 %v34
  %v599 = vunpack.c.h.b16 %v34
  %v600 = vunpack.c.l.b16 %v35
  %v601 = vunpack.c.h.b16 %v35
  %v602 = vunpack.c.l.b16 %v36
  %v603 = vunpack.c.h.b16 %v36
  %v604 = vunpack.c.l.b16 %v37
  %v605 = vunpack.c.h.b16 %v37
  %v606 = vunpack.c.l.b16 %v38
  %v607 = vunpack.c.h.b16 %v38
  %v608 = vunpack.c.l.b16 %v39
  %v609 = vunpack.c.h.b16 %v39
  %v610 = vunpack.c.l.b16 %v40
  %v611 = vunpack.c.h.b16 %v40
  %v612 = vunpack.c.l.b16 %v41
  %v613 = vunpack.c.h.b16 %v41
  %v614 = vunpack.c.l.b16 %v42
  %v615 = vunpack.c.h.b16 %v42
  %v616 = vunpack.c.l.b16 %v43
  %v617 = vunpack.c.h.b16 %v43
  %v618 = vunpack.c.l.b16 %v44
  %v619 = vunpack.c.h.b16 %v44
  %v620 = vunpack.c.l.b16 %v45
  %v621 = vunpack.c.h.b16 %v45
  %v622 = vunpack.c.l.b16 %v46
  %v623 = vunpack.c.h.b16 %v46
  %v624 = vunpack.c.l.b16 %v47
  %v625 = vunpack.c.h.b16 %v47
  %v626 = vunpack.c.l.b16 %v48
  %v627 = vunpack.c.h.b16 %v48
  %v628 = vunpack.c.l.b16 %v49
  %v629 = vunpack.c.h.b16 %v49
  %v630 = vunpack.c.l.b16 %v50
  %v631 = vunpack.c.h.b16 %v50
  %v632 = vunpack.c.l.b16 %v51
  %v633 = vunpack.c.h.b16 %v51
  %v634 = vunpack.c.l.b16 %v52
  %v635 = vunpack.c.h.b16 %v52
  %v636 = vunpack.c.l.b16 %v53
  %v637 = vunpack.c.h.b16 %v53
  %v638 = vunpack.c.l.b16 %v54
  %v639 = vunpack.c.h.b16 %v54
  %v640 = vunpack.c.l.b16 %v55
  %v641 = vunpack.c.h.b16 %v55
  %v642 = vunpack.c.l.b16 %v56
  %v643 = vunpack.c.h.b16 %v56
  %v644 = vunpack.c.l.b16 %v57
  %v645 = vunpack.c.h.b16 %v57
  %v646 = vunpack.c.l.b16 %v58
  %v647 = vunpack.c.h.b16 %v58
  %v648 = vunpack.c.l.b16 %v59
  %v649 = vunpack.c.h.b16 %v59
  %v650 = vunpack.c.l.b16 %v60
  %v651 = vunpack.c.h.b16 %v60
  %v652 = vunpack.c.l.b16 %v61
  %v653 = vunpack.c.h.b16 %v61
  %v654 = vunpack.c.l.b16 %v62
  %v655 = vunpack.c.h.b16 %v62
  %v656 = vunpack.c.l.b16 %v63
  %v657 = vunpack.c.h.b16 %v63
  %v658 = vunpack.c.l.b16 %v64
  %v659 = vunpack.c.h.b16 %v64
  %v660 = vunpack.c.l.b16 %v65
  %v661 = vunpack.c.h.b16 %v65
  %v662 = vunpack.c.l.b16 %v66
  %v663 = vunpack.c.h.b16 %v66
  %v664 = vunpack.c.l.b16 %v67
  %v665 = vunpack.c.h.b16 %v67
  %v666 = vunpack.c.l.b16 %v68
  %v667 = vunpack.c.h.b16 %v68
  %v668 = vunpack.c.l.b16 %v69
  %v669 = vunpack.c.h.b16 %v69
  %v670 = vunpack.c.l.b16 %v70
  %v671 = vunpack.c.h.b16 %v70
  %v672 = vunpack.c.l.b16 %v71
  %v673 = vunpack.c.h.b16 %v71
  %v674 = vunpack.c.l.b16 %v72
  %v675 = vunpack.c.h.b16 %v72
  %v676 = vunpack.c.l.b16 %v73
  %v677 = vunpack.c.h.b16 %v73
  %v678 = vunpack.c.l.b16 %v74
  %v679 = vunpack.c.h.b16 %v74
  %v680 = vunpack.c.l.b16 %v75
  %v681 = vunpack.c.h.b16 %v75
  %v682 = vunpack.c.l.b16 %v76
  %v683 = vunpack.c.h.b16 %v76
  %v684 = vunpack.c.l.b16 %v77
  %v685 = vunpack.c.h.b16 %v77
  %v686 = vunpack.c.l.b16 %v78
  %v687 = vunpack.c.h.b16 %v78
  %v688 = vunpack.c.l.b16 %v79
  %v689 = vunpack.c.h.b16 %v79
  %v690 = vunpack.c.l.b16 %v80
  %v691 = vunpack.c.h.b16 %v80
  %v692 = vunpack.c.l.b16 %v81
  %v693 = vunpack.c.h.b16 %v81
  %v694 = vunpack.c.l.b16 %v82
  %v695 = vunpack.c.h.b16 %v82
  %v696 = vunpack.c.l.b16 %v83
  %v697 = vunpack.c.h.b16 %v83
  %v698 = vunpack.c.l.b16 %v84
  %v699 = vunpack.c.h.b16 %v84
  %v700 = vunpack.c.l.b16 %v85
  %v701 = vunpack.c.h.b16 %v85
  %v702 = vunpack.c.l.b16 %v86
  %v703 = vunpack.c.h.b16 %v86
  %v704 = vunpack.c.l.b16 %v87
  %v705 = vunpack.c.h.b16 %v87
  %v706 = vunpack.c.l.b16 %v88
  %v707 = vunpack.c.h.b16 %v88
  %v708 = vunpack.c.l.b16 %v89
  %v709 = vunpack.c.h.b16 %v89
  %v710 = vunpack.c.l.b16 %v90
  %v711 = vunpack.c.h.b16 %v90
  %v712 = vunpack.c.l.b16 %v91
  %v713 = vunpack.c.h.b16 %v91
  %v714 = vunpack.c.l.b16 %v92
  %v715 = vunpack.c.h.b16 %v92
  %v716 = vunpack.c.l.b16 %v93
  %v717 = vunpack.c.h.b16 %v93
  %v718 = vunpack.c.l.b16 %v94
  %v719 = vunpack.c.h.b16 %v94
  %v720 = vunpack.c.l.b16 %v95
  %v721 = vunpack.c.h.b16 %v95
  %v722 = vunpack.c.l.b16 %v96
  %v723 = vunpack.c.h.b16 %v96
  %v724 = vunpack.c.l.b16 %v97
  %v725 = vunpack.c.h.b16 %v97
  %v726 = vunpack.c.l.b16 %v98
  %v727 = vunpack.c.h.b16 %v98
  %v728 = vunpack.c.l.b16 %v99
  %v729 = vunpack.c.h.b16 %v99
  %v730 = vunpack.c.l.b16 %v100
  %v731 = vunpack.c.h.b16 %v100
  %v732 = vunpack.c.l.b16 %v101
  %v733 = vunpack.c.h.b16 %v101
  %v734 = vunpack.c.l.b16 %v102
  %v735 = vunpack.c.h.b16 %v102
  %v736 = vunpack.c.l.b16 %v103
  %v737 = vunpack.c.h.b16 %v103
  %v738 = vunpack.c.l.b16 %v104
  %v739 = vunpack.c.h.b16 %v104
  %v740 = vunpack.c.l.b16 %v105
  %v741 = vunpack.c.h.b16 %v105
  %v742 = vunpack.c.l.b16 %v106
  %v743 = vunpack.c.h.b16 %v106
  %v744 = vunpack.c.l.b16 %v107
  %v745 = vunpack.c.h.b16 %v107
  %v746 = vunpack.c.l.b16 %v108
  %v747 = vunpack.c.h.b16 %v108
  %v748 = vunpack.c.l.b16 %v109
  %v749 = vunpack.c.h.b16 %v109
  %v750 = vunpack.c.l.b16 %v110
  %v751 = vunpack.c.h.b16 %v110
  %v752 = vunpack.c.l.b16 %v111
  %v753 = vunpack.c.h.b16 %v111
  %v754 = vunpack.c.l.b16 %v112
  %v755 = vunpack.c.h.b16 %v112
  %v756 = vunpack.c.l.b16 %v113
  %v757 = vunpack.c.h.b16 %v113
  %v758 = vunpack.c.l.b16 %v114
  %v759 = vunpack.c.h.b16 %v114
  %v760 = vunpack.c.l.b16 %v115
  %v761 = vunpack.c.h.b16 %v115
  %v762 = vunpack.c.l.b16 %v116
  %v763 = vunpack.c.h.b16 %v116
  %v764 = vunpack.c.l.b16 %v117
  %v765 = vunpack.c.h.b16 %v117
  %v766 = vunpack.c.l.b16 %v118
  %v767 = vunpack.c.h.b16 %v118
  %v768 = vunpack.c.l.b16 %v119
  %v769 = vunpack.c.h.b16 %v119
  %v770 = vunpack.c.l.b16 %v120
  %v771 = vunpack.c.h.b16 %v120
  %v772 = vunpack.c.l.b16 %v121
  %v773 = vunpack.c.h.b16 %v121
  %v774 = vunpack.c.l.b16 %v122
  %v775 = vunpack.c.h.b16 %v122
  %v776 = vunpack.c.l.b16 %v123
  %v777 = vunpack.c.h.b16 %v123
  %v778 = vunpack.c.l.b16 %v124
  %v779 = vunpack.c.h.b16 %v124
  %v780 = vunpack.c.l.b16 %v125
  %v781 = vunpack.c.h.b16 %v125
  %v782 = vunpack.c.l.b16 %v126
  %v783 = vunpack.c.h.b16 %v126
  %v784 = vunpack.c.l.b16 %v127
  %v785 = vunpack.c.h.b16 %v127
  %v786 = vunpack.c.l.b16 %v128
  %v787 = vunpack.c.h.b16 %v128
  %v788 = vunpack.c.l.b16 %v129
  %v789 = vunpack.c.h.b16 %v129
  %v790 = vunpack.c.l.b16 %v130
  %v791 = vunpack.c.h.b16 %v130
  %v792 = vunpack.c.l.b16 %v131
  %v793 = vunpack.c.h.b16 %v131
  %v794 = vunpack.c.l.b16 %v132
  %v795 = vunpack.c.h.b16 %v132
  %v796 = vunpack.c.l.b16 %v133
  %v797 = vunpack.c.h.b16 %v133
  %v798 = vunpack.c.l.b16 %v134
  %v799 = vunpack.c.h.b16 %v134
  %v800 = vunpack.c.l.b16 %v135
  %v801 = vunpack.c.h.b16 %v135
  %v802 = vunpack.c.l.b16 %v136
  %v803 = vunpack.c.h.b16 %v136
  %v804 = vunpack.c.l.b16 %v137
  %v805 = vunpack.c.h.b16 %v137
  %v806 = vunpack.c.l.b16 %v138
  %v807 = vunpack.c.h.b16 %v138
  %v808 = vunpack.c.l.b16 %v139
  %v809 = vunpack.c.h.b16 %v139
  %v810 = vunpack.c.l.b16 %v140
  %v811 = vunpack.c.h.b16 %v140
  %v812 = vunpack.c.l.b16 %v141
  %v813 = vunpack.c.h.b16 %v141
  %v814 = vunpack.c.l.b16 %v142
  %v815 = vunpack.c.h.b16 %v142
  %v816 = vunpack.c.l.b16 %v143
  %v817 = vunpack.c.h.b16 %v143
  %v818 = vunpack.c.l.b16 %v144
  %v819 = vunpack.c.h.b16 %v144
  %v820 = vunpack.c.l.b16 %v145
  %v821 = vunpack.c.h.b16 %v145
  %v822 = vunpack.c.l.b16 %v146
  %v823 = vunpack.c.h.b16 %v146
  %v824 = vunpack.c.l.b16 %v147
  %v825 = vunpack.c.h.b16 %v147
  %v826 = vunpack.c.l.b16 %v148
  %v827 = vunpack.c.h.b16 %v148
  %v828 = vunpack.c.l.b16 %v149
  %v829 = vunpack.c.h.b16 %v149
  %v830 = vunpack.c.l.b16 %v150
  %v831 = vunpack.c.h.b16 %v150
  %v832 = vunpack.c.l.b16 %v151
  %v833 = vunpack.c.h.b16 %v151
  %v834 = vunpack.c.l.b16 %v152
  %v835 = vunpack.c.h.b16 %v152
  %v836 = vunpack.c.l.b16 %v153
  %v837 = vunpack.c.h.b16 %v153
  %v838 = vunpack.c.l.b16 %v154
  %v839 = vunpack.c.h.b16 %v154
  %v840 = vunpack.c.l.b16 %v155
  %v841 = vunpack.c.h.b16 %v155
  %v842 = vunpack.c.l.b16 %v156
  %v843 = vunpack.c.h.b16 %v156
  %v844 = vunpack.c.l.b16 %v157
  %v845 = vunpack.c.h.b16 %v157
  %v846 = vunpack.c.l.b16 %v158
  %v847 = vunpack.c.h.b16 %v158
  %v848 = vunpack.c.l.b16 %v159
  %v849 = vunpack.c.h.b16 %v159
  %v850 = vunpack.c.l.b16 %v160
  %v851 = vunpack.c.h.b16 %v160
  %v852 = vunpack.c.l.b16 %v161
  %v853 = vunpack.c.h.b16 %v161
  %v854 = vunpack.c.l.b16 %v162
  %v855 = vunpack.c.h.b16 %v162
  %v856 = vunpack.c.l.b16 %v163
  %v857 = vunpack.c.h.b16 %v163
  %v858 = vunpack.c.l.b16 %v164
  %v859 = vunpack.c.h.b16 %v164
  %v860 = vunpack.c.l.b16 %v165
  %v861 = vunpack.c.h.b16 %v165
  %v862 = vunpack.c.l.b16 %v166
  %v863 = vunpack.c.h.b16 %v166
  %v864 = vunpack.c.l.b16 %v167
  %v865 = vunpack.c.h.b16 %v167
  %v866 = vunpack.c.l.b16 %v168
  %v867 = vunpack.c.h.b16 %v168
  %v868 = vunpack.c.l.b16 %v169
  %v869 = vunpack.c.h.b16 %v169
  %v870 = vunpack.c.l.b16 %v170
  %v871 = vunpack.c.h.b16 %v170
  %v872 = vunpack.c.l.b16 %v171
  %v873 = vunpack.c.h.b16 %v171
  %v874 = vunpack.c.l.b16 %v172
  %v875 = vunpack.c.h.b16 %v172
  %v876 = vunpack.c.l.b16 %v173
  %v877 = vunpack.c.h.b16 %v173
  %v878 = vunpack.c.l.b16 %v174
  %v879 = vunpack.c.h.b16 %v174
  %v880 = vunpack.c.l.b16 %v175
  %v881 = vunpack.c.h.b16 %v175
  %v882 = vunpack.c.l.b16 %v176
  %v883 = vunpack.c.h.b16 %v176
  %v884 = vunpack.c.l.b16 %v177
  %v885 = vunpack.c.h.b16 %v177
  %v886 = vunpack.c.l.b16 %v178
  %v887 = vunpack.c.h.b16 %v178
  %v888 = vunpack.c.l.b16 %v179
  %v889 = vunpack.c.h.b16 %v179
  %v890 = vunpack.c.l.b16 %v180
  %v891 = vunpack.c.h.b16 %v180
  %v892 = vunpack.c.l.b16 %v181
  %v893 = vunpack.c.h.b16 %v181
  %v894 = vunpack.c.l.b16 %v182
  %v895 = vunpack.c.h.b16 %v182
  %v896 = vunpack.c.l.b16 %v183
  %v897 = vunpack.c.h.b16 %v183
  %v898 = vunpack.c.l.b16 %v184
  %v899 = vunpack.c.h.b16 %v184
  %v900 = vunpack.c.l.b16 %v185
  %v901 = vunpack.c.h.b16 %v185
  %v902 = vunpack.c.l.b16 %v186
  %v903 = vunpack.c.h.b16 %v186
  %v904 = vunpack.c.l.b16 %v187
  %v905 = vunpack.c.h.b16 %v187
  %v906 = vunpack.c.l.b16 %v188
  %v907 = vunpack.c.h.b16 %v188
  %v908 = vunpack.c.l.b16 %v189
  %v909 = vunpack.c.h.b16 %v189
  %v910 = vunpack.c.l.b16 %v190
  %v911 = vunpack.c.h.b16 %v190
  %v912 = vunpack.c.l.b16 %v191
  %v913 = vunpack.c.h.b16 %v191
  %v914 = vunpack.c.l.b16 %v192
  %v915 = vunpack.c.h.b16 %v192
  %v916 = vunpack.c.l.b16 %v193
  %v917 = vunpack.c.h.b16 %v193
  %v918 = vunpack.c.l.b16 %v194
  %v919 = vunpack.c.h.b16 %v194
  %v920 = vunpack.c.l.b16 %v195
  %v921 = vunpack.c.h.b16 %v195
  %v922 = vunpack.c.l.b16 %v196
  %v923 = vunpack.c.h.b16 %v196
  %v924 = vunpack.c.l.b16 %v197
  %v925 = vunpack.c.h.b16 %v197
  %v926 = vunpack.c.l.b16 %v198
  %v927 = vunpack.c.h.b16 %v198
  %v928 = vunpack.c.l.b16 %v199
  %v929 = vunpack.c.h.b16 %v199
  %v930 = vunpack.c.l.b16 %v200
  %v931 = vunpack.c.h.b16 %v200
  %v932 = vunpack.c.l.b16 %v201
  %v933 = vunpack.c.h.b16 %v201
  %v934 = vunpack.c.l.b16 %v202
  %v935 = vunpack.c.h.b16 %v202
  %v936 = vunpack.c.l.b16 %v203
  %v937 = vunpack.c.h.b16 %v203
  %v938 = vunpack.c.l.b16 %v204
  %v939 = vunpack.c.h.b16 %v204
  %v940 = vunpack.c.l.b16 %v205
  %v941 = vunpack.c.h.b16 %v205
  %v942 = vunpack.c.l.b16 %v206
  %v943 = vunpack.c.h.b16 %v206
  %v944 = vunpack.c.l.b16 %v207
  %v945 = vunpack.c.h.b16 %v207
  %v946 = vunpack.c.l.b16 %v208
  %v947 = vunpack.c.h.b16 %v208
  %v948 = vunpack.c.l.b16 %v209
  %v949 = vunpack.c.h.b16 %v209
  %v950 = vunpack.c.l.b16 %v210
  %v951 = vunpack.c.h.b16 %v210
  %v952 = vunpack.c.l.b16 %v211
  %v953 = vunpack.c.h.b16 %v211
  %v954 = vunpack.c.l.b16 %v212
  %v955 = vunpack.c.h.b16 %v212
  %v956 = vunpack.c.l.b16 %v213
  %v957 = vunpack.c.h.b16 %v213
  %v958 = vunpack.c.l.b16 %v214
  %v959 = vunpack.c.h.b16 %v214
  %v960 = vunpack.c.l.b16 %v215
  %v961 = vunpack.c.h.b16 %v215
  %v962 = vunpack.c.l.b16 %v216
  %v963 = vunpack.c.h.b16 %v216
  %v964 = vunpack.c.l.b16 %v217
  %v965 = vunpack.c.h.b16 %v217
  %v966 = vunpack.c.l.b16 %v218
  %v967 = vunpack.c.h.b16 %v218
  %v968 = vunpack.c.l.b16 %v219
  %v969 = vunpack.c.h.b16 %v219
  %v970 = vunpack.c.l.b16 %v220
  %v971 = vunpack.c.h.b16 %v220
  %v972 = vunpack.c.l.b16 %v221
  %v973 = vunpack.c.h.b16 %v221
  %v974 = vunpack.c.l.b16 %v222
  %v975 = vunpack.c.h.b16 %v222
  %v976 = vunpack.c.l.b16 %v223
  %v977 = vunpack.c.h.b16 %v223
  %v978 = vunpack.c.l.b16 %v224
  %v979 = vunpack.c.h.b16 %v224
  %v980 = vunpack.c.l.b16 %v225
  %v981 = vunpack.c.h.b16 %v225
  %v982 = vunpack.c.l.b16 %v226
  %v983 = vunpack.c.h.b16 %v226
  %v984 = vunpack.c.l.b16 %v227
  %v985 = vunpack.c.h.b16 %v227
  %v986 = vunpack.c.l.b16 %v228
  %v987 = vunpack.c.h.b16 %v228
  %v988 = vunpack.c.l.b16 %v229
  %v989 = vunpack.c.h.b16 %v229
  %v990 = vunpack.c.l.b16 %v230
  %v991 = vunpack.c.h.b16 %v230
  %v992 = vunpack.c.l.b16 %v231
  %v993 = vunpack.c.h.b16 %v231
  %v994 = vunpack.c.l.b16 %v232
  %v995 = vunpack.c.h.b16 %v232
  %v996 = vunpack.c.l.b16 %v233
  %v997 = vunpack.c.h.b16 %v233
  %v998 = vunpack.c.l.b16 %v234
  %v999 = vunpack.c.h.b16 %v234
  %v1000 = vunpack.c.l.b16 %v235
  %v1001 = vunpack.c.h.b16 %v235
  %v1002 = vunpack.c.l.b16 %v236
  %v1003 = vunpack.c.h.b16 %v236
  %v1004 = vunpack.c.l.b16 %v237
  %v1005 = vunpack.c.h.b16 %v237
  %v1006 = vunpack.c.l.b16 %v238
  %v1007 = vunpack.c.h.b16 %v238
  %v1008 = vunpack.c.l.b16 %v239
  %v1009 = vunpack.c.h.b16 %v239
  %v1010 = vunpack.c.l.b16 %v240
  %v1011 = vunpack.c.h.b16 %v240
  %v1012 = vunpack.c.l.b16 %v241
  %v1013 = vunpack.c.h.b16 %v241
  %v1014 = vunpack.c.l.b16 %v242
  %v1015 = vunpack.c.h.b16 %v242
  %v1016 = vunpack.c.l.b16 %v243
  %v1017 = vunpack.c.h.b16 %v243
  %v1018 = vunpack.c.l.b16 %v244
  %v1019 = vunpack.c.h.b16 %v244
  %v1020 = vunpack.c.l.b16 %v245
  %v1021 = vunpack.c.h.b16 %v245
  %v1022 = vunpack.c.l.b16 %v246
  %v1023 = vunpack.c.h.b16 %v246
  %v1024 = vunpack.c.l.b16 %v247
  %v1025 = vunpack.c.h.b16 %v247
  %v1026 = vunpack.c.l.b16 %v248
  %v1027 = vunpack.c.h.b16 %v248
  %v1028 = vunpack.c.l.b16 %v249
  %v1029 = vunpack.c.h.b16 %v249
  %v1030 = vunpack.c.l.b16 %v250
  %v1031 = vunpack.c.h.b16 %v250
  %v1032 = vunpack.c.l.b16 %v251
  %v1033 = vunpack.c.h.b16 %v251
  %v1034 = vunpack.c.l.b16 %v252
  %v1035 = vunpack.c.h.b16 %v252
  %v1036 = vunpack.c.l.b16 %v253
  %v1037 = vunpack.c.h.b16 %v253
  %v1038 = vunpack.c.l.b16 %v254
  %v1039 = vunpack.c.h.b16 %v254
  %v1040 = vunpack.c.l.b16 %v255
  %v1041 = vunpack.c.h.b16 %v255
  %v1042 = vunpack.c.l.b16 %v256
  %v1043 = vunpack.c.h.b16 %v256
  %v1044 = vunpack.c.l.b16 %v257
  %v1045 = vunpack.c.h.b16 %v257
  %v1046 = vunpack.c.l.b16 %v258
  %v1047 = vunpack.c.h.b16 %v258
  %v1048 = vunpack.c.l.b16 %v259
  %v1049 = vunpack.c.h.b16 %v259
  %v1050 = vunpack.c.l.b16 %v260
  %v1051 = vunpack.c.h.b16 %v260
  %v1052 = vunpack.c.l.b16 %v261
  %v1053 = vunpack.c.h.b16 %v261
  %v1054 = vunpack.c.l.b16 %v262
  %v1055 = vunpack.c.h.b16 %v262
  %v1056 = vunpack.c.l.b16 %v263
  %v1057 = vunpack.c.h.b16 %v263
  %v1058 = vunpack.c.l.b16 %v264
  %v1059 = vunpack.c.h.b16 %v264
  %v1060 = vunpack.c.l.b16 %v265
  %v1061 = vunpack.c.h.b16 %v265
  %v1062 = vunpack.c.l.b16 %v266
  %v1063 = vunpack.c.h.b16 %v266
  %v1064 = vunpack.c.l.b16 %v267
  %v1065 = vunpack.c.h.b16 %v267
  %v1066 = vunpack.c.l.b16 %v268
  %v1067 = vunpack.c.h.b16 %v268
  %v1068 = vunpack.c.l.b16 %v269
  %v1069 = vunpack.c.h.b16 %v269
  %v1070 = vunpack.c.l.b16 %v270
  %v1071 = vunpack.c.h.b16 %v270
  %v1072 = vunpack.c.l.b16 %v271
  %v1073 = vunpack.c.h.b16 %v271
  %v1074 = vunpack.c.l.b16 %v272
  %v1075 = vunpack.c.h.b16 %v272
  %v1076 = vunpack.c.l.b16 %v273
  %v1077 = vunpack.c.h.b16 %v273
  %v1078 = vunpack.c.l.b16 %v274
  %v1079 = vunpack.c.h.b16 %v274
  %v1080 = vunpack.c.l.b16 %v275
  %v1081 = vunpack.c.h.b16 %v275
  %v1082 = vunpack.c.l.b16 %v276
  %v1083 = vunpack.c.h.b16 %v276
  %v1084 = vpack.c.b16 %v574, %v572
  %v1085 = vpack.c.b16 %v575, %v573
  %v1086 = vpack.c.b16 %v578, %v576
  %v1087 = vpack.c.b16 %v579, %v577
  %v1088 = vpack.c.b16 %v582, %v580
  %v1089 = vpack.c.b16 %v583, %v581
  %v1090 = vpack.c.b16 %v586, %v584
  %v1091 = vpack.c.b16 %v587, %v585
  %v1092 = vpack.c.b16 %v590, %v588
  %v1093 = vpack.c.b16 %v591, %v589
  %v1094 = vpack.c.b16 %v594, %v592
  %v1095 = vpack.c.b16 %v595, %v593
  %v1096 = vpack.c.b16 %v598, %v596
  %v1097 = vpack.c.b16 %v599, %v597
  %v1098 = vpack.c.b16 %v602, %v600
  %v1099 = vpack.c.b16 %v603, %v601
  %v1100 = vpack.c.b16 %v606, %v604
  %v1101 = vpack.c.b16 %v607, %v605
  %v1102 = vpack.c.b16 %v610, %v608
  %v1103 = vpack.c.b16 %v611, %v609
  %v1104 = vpack.c.b16 %v614, %v612
  %v1105 = vpack.c.b16 %v615, %v613
  %v1106 = vpack.c.b16 %v618, %v616
  %v1107 = vpack.c.b16 %v619, %v617
  %v1108 = vpack.c.b16 %v622, %v620
  %v1109 = vpack.c.b16 %v623, %v621
  %v1110 = vpack.c.b16 %v626, %v624
  %v1111 = vpack.c.b16 %v627, %v625
  %v1112 = vpack.c.b16 %v630, %v628
  %v1113 = vpack.c.b16 %v631, %v629
  %v1114 = vpack.c.b16 %v634, %v632
  %v1115 = vpack.c.b16 %v635, %v633
  %v1116 = vpack.c.b16 %v638, %v636
  %v1117 = vpack.c.b16 %v639, %v637
  %v1118 = vpack.c.b16 %v642, %v640
  %v1119 = vpack.c.b16 %v643, %v641
  %v1120 = vpack.c.b16 %v646, %v644
  %v1121 = vpack.c.b16 %v647, %v645
  %v1122 = vpack.c.b16 %v650, %v648
  %v1123 = vpack.c.b16 %v651, %v649
  %v1124 = vpack.c.b16 %v654, %v652
  %v1125 = vpack.c.b16 %v655, %v653
  %v1126 = vpack.c.b16 %v658, %v656
  %v1127 = vpack.c.b16 %v659, %v657
  %v1128 = vpack.c.b16 %v662, %v660
  %v1129 = vpack.c.b16 %v663, %v661
  %v1130 = vpack.c.b16 %v666, %v664
  %v1131 = vpack.c.b16 %v667, %v665
  %v1132 = vpack.c.b16 %v670, %v668
  %v1133 = vpack.c.b16 %v671, %v669
  %v1134 = vpack.c.b16 %v674, %v672
  %v1135 = vpack.c.b16 %v675, %v673
  %v1136 = vpack.c.b16 %v678, %v676
  %v1137 = vpack.c.b16 %v679, %v677
  %v1138 = vpack.c.b16 %v682, %v680
  %v1139 = vpack.c.b16 %v683, %v681
  %v1140 = vpack.c.b16 %v686, %v684
  %v1141 = vpack.c.b16 %v687, %v685
  %v1142 = vpack.c.b16 %v690, %v688
  %v1143 = vpack.c.b16 %v691, %v689
  %v1144 = vpack.c.b16 %v694, %v692
  %v1145 = vpack.c.b16 %v695, %v693
  %v1146 = vpack.c.b16 %v698, %v696
  %v1147 = vpack.c.b16 %v699, %v697
  %v1148 = vpack.c.b16 %v702, %v700
  %v1149 = vpack.c.b16 %v703, %v701
  %v1150 = vpack.c.b16 %v706, %v704
  %v1151 = vpack.c.b16 %v707, %v705
  %v1152 = vpack.c.b16 %v710, %v708
  %v1153 = vpack.c.b16 %v711, %v709
  %v1154 = vpack.c.b16 %v714, %v712
  %v1155 = vpack.c.b16 %v715, %v713
  %v1156 = vpack.c.b16 %v718, %v716
  %v1157 = vpack.c.b16 %v719, %v717
  %v1158 = vpack.c.b16 %v722, %v720
  %v1159 = vpack.c.b16 %v723, %v721
  %v1160 = vpack.c.b16 %v726, %v724
  %v1161 = vpack.c.b16 %v727, %v725
  %v1162 = vpack.c.b16 %v730, %v728
  %v1163 = vpack.c.b16 %v731, %v729
  %v1164 = vpack.c.b16 %v734, %v732
  %v1165 = vpack.c.b16 %v735, %v733
  %v1166 = vpack.c.b16 %v738, %v736
  %v1167 = vpack.c.b16 %v739, %v737
  %v1168 = vpack.c.b16 %v742, %v740
  %v1169 = vpack.c.b16 %v743, %v741
  %v1170 = vpack.c.b16 %v746, %v744
  %v1171 = vpack.c.b16 %v747, %v745
  %v1172 = vpack.c.b16 %v750, %v748
  %v1173 = vpack.c.b16 %v751, %v749
  %v1174 = vpack.c.b16 %v754, %v752
  %v1175 = vpack.c.b16 %v755, %v753
  %v1176 = vpack.c.b16 %v758, %v756
  %v1177 = vpack.c.b16 %v759, %v757
  %v1178 = vpack.c.b16 %v762, %v760
  %v1179 = vpack.c.b16 %v763, %v761
  %v1180 = vpack.c.b16 %v766, %v764
  %v1181 = vpack.c.b16 %v767, %v765
  %v1182 = vpack.c.b16 %v770, %v768
  %v1183 = vpack.c.b16 %v771, %v769
  %v1184 = vpack.c.b16 %v774, %v772
  %v1185 = vpack.c.b16 %v775, %v773
  %v1186 = vpack.c.b16 %v778, %v776
  %v1187 = vpack.c.b16 %v779, %v777
  %v1188 = vpack.c.b16 %v782, %v780
  %v1189 = vpack.c.b16 %v783, %v781
  %v1190 = vpack.c.b16 %v786, %v784
  %v1191 = vpack.c.b16 %v787, %v785
  %v1192 = vpack.c.b16 %v790, %v788
  %v1193 = vpack.c.b16 %v791, %v789
  %v1194 = vpack.c.b16 %v794, %v792
  %v1195 = vpack.c.b16 %v795, %v793
  %v1196 = vpack.c.b16 %v798, %v796
  %v1197 = vpack.c.b16 %v799, %v797
  %v1198 = vpack.c.b16 %v802, %v800
  %v1199 = vpack.c.b16 %v803, %v801
  %v1200 = vpack.c.b16 %v806, %v804
  %v1201 = vpack.c.b16 %v807, %v805
  %v1202 = vpack.c.b16 %v810, %v808
  %v1203 = vpack.c.b16 %v811, %v809
  %v1204 = vpack.c.b16 %v814, %v812
  %v1205 = vpack.c.b16 %v815, %v813
  %v1206 = vpack.c.b16 %v818, %v816
  %v1207 = vpack.c.b16 %v819, %v817
  %v1208 = vpack.c.b16 %v822, %v820
  %v1209 = vpack.c.b16 %v823, %v821
  %v1210 = vpack.c.b16 %v826, %v824
  %v1211 = vpack.c.b16 %v827, %v825
  %v1212 = vpack.c.b16 %v830, %v828
  %v1213 = vpack.c.b16 %v831, %v829
  %v1214 = vpack.c.b16 %v834, %v832
  %v1215 = vpack.c.b16 %v835, %v833
  %v1216 = vpack.c.b16 %v838, %v836
  %v1217 = vpack.c.b16 %v839, %v837
  %v1218 = vpack.c.b16 %v842, %v840
  %v1219 = vpack.c.b16 %v843, %v841
  %v1220 = vpack.c.b16 %v846, %v844
  %v1221 = vpack.c.b16 %v847, %v845
  %v1222 = vpack.c.b16 %v850, %v848
  %v1223 = vpack.c.b16 %v851, %v849
  %v1224 = vpack.c.b16 %v854, %v852
  %v1225 = vpack.c.b16 %v855, %v853
  %v1226 = vpack.c.b16 %v858, %v856
  %v1227 = vpack.c.b16 %v859, %v857
  %v1228 = vpack.c.b16 %v862, %v860
  %v1229 = vpack.c.b16 %v863, %v861
  %v1230 = vpack.c.b16 %v866, %v864
  %v1231 = vpack.c.b16 %v867, %v865
  %v1232 = vpack.c.b16 %v870, %v868
  %v1233 = vpack.c.b16 %v871, %v869
  %v1234 = vpack.c.b16 %v874, %v872
  %v1235 = vpack.c.b16 %v875, %v873
  %v1236 = vpack.c.b16 %v878, %v876
  %v1237 = vpack.c.b16 %v879, %v877
  %v1238 = vpack.c.b16 %v882, %v880
  %v1239 = vpack.c.b16 %v883, %v881
  %v1240 = vpack.c.b16 %v886, %v884
  %v1241 = vpack.c.b16 %v887, %v885
  %v1242 = vpack.c.b16 %v890, %v888
  %v1243 = vpack.c.b16 %v891, %v889
  %v1244 = vpack.c.b16 %v894, %v892
  %v1245 = vpack.c.b16 %v895, %v893
  %v1246 = vpack.c.b16 %v898, %v896
  %v1247 = vpack.c.b16 %v899, %v897
  %v1248 = vpack.c.b16 %v902, %v900
  %v1249 = vpack.c.b16 %v903, %v901
  %v1250 = vpack.c.b16 %v906, %v904
  %v1251 = vpack.c.b16 %v907, %v905
  %v1252 = vpack.c.b16 %v910, %v908
  %v1253 = vpack.c.b16 %v911, %v909
  %v1254 = vpack.c.b16 %v914, %v912
  %v1255 = vpack.c.b16 %v915, %v913
  %v1256 = vpack.c.b16 %v918, %v916
  %v1257 = vpack.c.b16 %v919, %v917
  %v1258 = vpack.c.b16 %v922, %v920
  %v1259 = vpack.c.b16 %v923, %v921
  %v1260 = vpack.c.b16 %v926, %v924
  %v1261 = vpack.c.b16 %v927, %v925
  %v1262 = vpack.c.b16 %v930, %v928
  %v1263 = vpack.c.b16 %v931, %v929
  %v1264 = vpack.c.b16 %v934, %v932
  %v1265 = vpack.c.b16 %v935, %v933
  %v1266 = vpack.c.b16 %v938, %v936
  %v1267 = vpack.c.b16 %v939, %v937
  %v1268 = vpack.c.b16 %v942, %v940
  %v1269 = vpack.c.b16 %v943, %v941
  %v1270 = vpack.c.b16 %v946, %v944
  %v1271 = vpack.c.b16 %v947, %v945
  %v1272 = vpack.c.b16 %v950, %v948
  %v1273 = vpack.c.b16 %v951, %v949
  %v1274 = vpack.c.b16 %v954, %v952
  %v1275 = vpack.c.b16 %v955, %v953
  %v1276 = vpack.c.b16 %v958, %v956
  %v1277 = vpack.c.b16 %v959, %v957
  %v1278 = vpack.c.b16 %v962, %v960
  %v1279 = vpack.c.b16 %v963, %v961
  %v1280 = vpack.c.b16 %v966, %v964
  %v1281 = vpack.c.b16 %v967, %v965
  %v1282 = vpack.c.b16 %v970, %v968
  %v1283 = vpack.c.b16 %v971, %v969
  %v1284 = vpack.c.b16 %v974, %v972
  %v1285 = vpack.c.b16 %v975, %v973
  %v1286 = vpack.c.b16 %v978, %v976
  %v1287 = vpack.c.b16 %v979, %v977
  %v1288 = vpack.c.b16 %v982, %v980
  %v1289 = vpack.c.b16 %v983, %v981
  %v1290 = vpack.c.b16 %v986, %v984
  %v1291 = vpack.c.b16 %v987, %v985
  %v1292 = vpack.c.b16 %v990, %v988
  %v1293 = vpack.c.b16 %v991, %v989
  %v1294 = vpack.c.b16 %v994, %v992
  %v1295 = vpack.c.b16 %v995, %v993
  %v1296 = vpack.c.b16 %v998, %v996
  %v1297 = vpack.c.b16 %v999, %v997
  %v1298 = vpack.c.b16 %v1002, %v1000
  %v1299 = vpack.c.b16 %v1003, %v1001
  %v1300 = vpack.c.b16 %v1006, %v1004
  %v1301 = vpack.c.b16 %v1007, %v1005
  %v1302 = vpack.c.b16 %v1010, %v1008
  %v1303 = vpack.c.b16 %v1011, %v1009
  %v1304 = vpack.c.b16 %v1014, %v1012
  %v1305 = vpack.c.b16 %v1015, %v1013
  %v1306 = vpack.c.b16 %v1018, %v1016
  %v1307 = vpack.c.b16 %v1019, %v1017
  %v1308 = vpack.c.b16 %v1022, %v1020
  %v1309 = vpack.c.b16 %v1023, %v1021
  %v1310 = vpack.c.b16 %v1026, %v1024
  %v1311 = vpack.c.b16 %v1027, %v1025
  %v1312 = vpack.c.b16 %v1030, %v1028
  %v1313 = vpack.c.b16 %v1031, %v1029
  %v1314 = vpack.c.b16 %v1034, %v1032
  %v1315 = vpack.c.b16 %v1035, %v1033
  %v1316 = vpack.c.b16 %v1038, %v1036
  %v1317 = vpack.c.b16 %v1039, %v1037
  %v1318 = vpack.c.b16 %v1042, %v1040
  %v1319 = vpack.c.b16 %v1043, %v1041
  %v1320 = vpack.c.b16 %v1046, %v1044
  %v1321 = vpack.c.b16 %v1047, %v1045
  %v1322 = vpack.c.b16 %v1050, %v1048
  %v1323 = vpack.c.b16 %v1051, %v1049
  %v1324 = vpack.c.b16 %v1054, %v1052
  %v1325 = vpack.c.b16 %v1055, %v1053
  %v1326 = vpack.c.b16 %v1058, %v1056
  %v1327 = vpack.c.b16 %v1059, %v1057
  %v1328 = vpack.c.b16 %v1062, %v1060
  %v1329 = vpack.c.b16 %v1063, %v1061
  %v1330 = vpack.c.b16 %v1066, %v1064
  %v1331 = vpack.c.b16 %v1067, %v1065
  %v1332 = vpack.c.b16 %v1070, %v1068
  %v1333 = vpack.c.b16 %v1071, %v1069
  %v1334 = vpack.c.b16 %v1074, %v1072
  %v1335 = vpack.c.b16 %v1075, %v1073
  %v1336 = vpack.c.b16 %v1078, %v1076
  %v1337 = vpack.c.b16 %v1079, %v1077
  %v1338 = vpack.c.b16 %v1082, %v1080
  %v1339 = vpack.c.b16 %v1083, %v1081
  %v1628 = vunpack.c.l.b16 %v277
  %v1629 = vunpack.c.l.b16 %v278
  %v1630 = vunpack.c.l.b16 %v279
  %v1631 = vunpack.c.l.b16 %v280
  %v1632 = vunpack.c.l.b16 %v281
  %v1633 = vunpack.c.l.b16 %v282
  %v1634 = vunpack.c.l.b16 %v283
  %v1635 = vunpack.c.l.b16 %v284
  %v1636 = vunpack.c.l.b16 %v285
  %v1637 = vunpack.c.l.b16 %v286
  %v1638 = vunpack.c.l.b16 %v287
  %v1639 = vunpack.c.l.b16 %v288
  %v1640 = vunpack.c.l.b16 %v289
  %v1641 = vunpack.c.l.b16 %v290
  %v1642 = vunpack.c.l.b16 %v291
  %v1643 = vunpack.c.l.b16 %v292
  %v1644 = vunpack.c.l.b16 %v293
  %v1645 = vunpack.c.l.b16 %v294
  %v1646 = vunpack.c.l.b16 %v295
  %v1647 = vunpack.c.l.b16 %v296
  %v1648 = vunpack.c.l.b16 %v297
  %v1649 = vunpack.c.l.b16 %v298
  %v1650 = vunpack.c.l.b16 %v299
  %v1651 = vunpack.c.l.b16 %v300
  %v1652 = vunpack.c.l.b16 %v301
  %v1653 = vunpack.c.l.b16 %v302
  %v1654 = vunpack.c.l.b16 %v303
  %v1655 = vunpack.c.l.b16 %v304
  %v1656 = vunpack.c.l.b16 %v305
  %v1657 = vunpack.c.l.b16 %v306
  %v1658 = vunpack.c.l.b16 %v307
  %v1659 = vunpack.c.l.b16 %v308
  %v1660 = vpack.c.b16 %v1629, %v1628
  %v1661 = vpack.c.b16 %v1631, %v1630
  %v1662 = vpack.c.b16 %v1633, %v1632
  %v1663 = vpack.c.b16 %v1635, %v1634
  %v1664 = vpack.c.b16 %v1637, %v1636
  %v1665 = vpack.c.b16 %v1639, %v1638
  %v1666 = vpack.c.b16 %v1641, %v1640
  %v1667 = vpack.c.b16 %v1643, %v1642
  %v1668 = vpack.c.b16 %v1645, %v1644
  %v1669 = vpack.c.b16 %v1647, %v1646
  %v1670 = vpack.c.b16 %v1649, %v1648
  %v1671 = vpack.c.b16 %v1651, %v1650
  %v1672 = vpack.c.b16 %v1653, %v1652
  %v1673 = vpack.c.b16 %v1655, %v1654
  %v1674 = vpack.c.b16 %v1657, %v1656
  %v1675 = vpack.c.b16 %v1659, %v1658
  %1692 = vmatprep.subr.bf16.mxu0 0
  %1693 = vmatpush1.bf16.msra.mxu0 %v1667
  %1694 = vmatprep.subr.bf16.mxu0 0
  %1695 = vmatpush1.bf16.msra.mxu0 %v1666
  %1696 = vmatprep.subr.bf16.mxu0 0
  %1697 = vmatpush1.bf16.msra.mxu0 %v1665
  %1698 = vmatprep.subr.bf16.mxu0 0
  %1699 = vmatpush1.bf16.msra.mxu0 %v1664
  %1700 = vmatprep.subr.bf16.mxu0 0
  %1701 = vmatpush1.bf16.msra.mxu0 %v1663
  %1702 = vmatprep.subr.bf16.mxu0 0
  %1703 = vmatpush1.bf16.msra.mxu0 %v1662
  %1704 = vmatprep.subr.bf16.mxu0 0
  %1705 = vmatpush1.bf16.msra.mxu0 %v1661
  %1706 = vmatprep.subr.bf16.mxu0 0
  %1707 = vmatpush1.bf16.msra.mxu0 %v1660
  %1708 = vmatprep.subr.bf16.mxu0 0
  %1709 = vmatpush2.bf16.msra.mxu0 %v1675
  %1710 = vmatprep.subr.bf16.mxu0 0
  %1711 = vmatpush2.bf16.msra.mxu0 %v1674
  %1712 = vmatprep.subr.bf16.mxu0 0
  %1713 = vmatpush2.bf16.msra.mxu0 %v1673
  %1714 = vmatprep.subr.bf16.mxu0 0
  %1715 = vmatpush2.bf16.msra.mxu0 %v1672
  %1716 = vmatprep.subr.bf16.mxu0 0
  %1717 = vmatpush2.bf16.msra.mxu0 %v1671
  %1718 = vmatprep.subr.bf16.mxu0 0
  %1719 = vmatpush2.bf16.msra.mxu0 %v1670
  %1720 = vmatprep.subr.bf16.mxu0 0
  %1721 = vmatpush2.bf16.msra.mxu0 %v1669
  %1722 = vmatprep.subr.bf16.mxu0 0
  %1723 = vmatpush2.bf16.msra.mxu0 %v1668
  %1724 = vmatprep.mubr.bf16.mxu0 %v1085
  %1725 = vmatmul.mubr.bf16.gmra.mxu0 %v1084
  %v1726 = vpop.f32.mrf.mxu0
  %v1727 = vadd.f32 %v314, %v1726
  %v1728 = vpop.f32.mrf.mxu0
  %v1729 = vpop.f32.mrf.mxu0
  %v1730 = vadd.f32 %v314, %v1729
  %v1731 = vpop.f32.mrf.mxu0
  %1732 = vmatprep.mubr.bf16.mxu0 %v1087
  %1733 = vmatmul.mubr.bf16.gmra.mxu0 %v1086
  %v1734 = vpop.f32.mrf.mxu0
  %v1735 = vadd.f32 %v314, %v1734
  %v1736 = vpop.f32.mrf.mxu0
  %v1737 = vpop.f32.mrf.mxu0
  %v1738 = vadd.f32 %v314, %v1737
  %v1739 = vpop.f32.mrf.mxu0
  %1740 = vmatprep.mubr.bf16.mxu0 %v1089
  %1741 = vmatmul.mubr.bf16.gmra.mxu0 %v1088
  %v1742 = vpop.f32.mrf.mxu0
  %v1743 = vadd.f32 %v314, %v1742
  %v1744 = vpop.f32.mrf.mxu0
  %v1745 = vpop.f32.mrf.mxu0
  %v1746 = vadd.f32 %v314, %v1745
  %v1747 = vpop.f32.mrf.mxu0
  %1748 = vmatprep.mubr.bf16.mxu0 %v1091
  %1749 = vmatmul.mubr.bf16.gmra.mxu0 %v1090
  %v1750 = vpop.f32.mrf.mxu0
  %v1751 = vadd.f32 %v314, %v1750
  %v1752 = vpop.f32.mrf.mxu0
  %v1753 = vpop.f32.mrf.mxu0
  %v1754 = vadd.f32 %v314, %v1753
  %v1755 = vpop.f32.mrf.mxu0
  %1756 = vmatprep.mubr.bf16.mxu0 %v1093
  %1757 = vmatmul.mubr.bf16.gmra.mxu0 %v1092
  %v1758 = vpop.f32.mrf.mxu0
  %v1759 = vadd.f32 %v314, %v1758
  %v1760 = vpop.f32.mrf.mxu0
  %v1761 = vpop.f32.mrf.mxu0
  %v1762 = vadd.f32 %v314, %v1761
  %v1763 = vpop.f32.mrf.mxu0
  %1764 = vmatprep.mubr.bf16.mxu0 %v1095
  %1765 = vmatmul.mubr.bf16.gmra.mxu0 %v1094
  %v1766 = vpop.f32.mrf.mxu0
  %v1767 = vadd.f32 %v314, %v1766
  %v1768 = vpop.f32.mrf.mxu0
  %v1769 = vpop.f32.mrf.mxu0
  %v1770 = vadd.f32 %v314, %v1769
  %v1771 = vpop.f32.mrf.mxu0
  %1772 = vmatprep.mubr.bf16.mxu0 %v1097
  %1773 = vmatmul.mubr.bf16.gmra.mxu0 %v1096
  %v1774 = vpop.f32.mrf.mxu0
  %v1775 = vadd.f32 %v314, %v1774
  %v1776 = vpop.f32.mrf.mxu0
  %v1777 = vpop.f32.mrf.mxu0
  %v1778 = vadd.f32 %v314, %v1777
  %v1779 = vpop.f32.mrf.mxu0
  %1780 = vmatprep.mubr.bf16.mxu0 %v1099
  %1781 = vmatmul.mubr.bf16.gmra.mxu0 %v1098
  %v1782 = vpop.f32.mrf.mxu0
  %v1783 = vadd.f32 %v314, %v1782
  %v1784 = vpop.f32.mrf.mxu0
  %v1785 = vpop.f32.mrf.mxu0
  %v1786 = vadd.f32 %v314, %v1785
  %v1787 = vpop.f32.mrf.mxu0
  %1788 = vmatprep.mubr.bf16.mxu0 %v1101
  %1789 = vmatmul.mubr.bf16.gmra.mxu0 %v1100
  %v1790 = vpop.f32.mrf.mxu0
  %v1791 = vadd.f32 %v314, %v1790
  %v1792 = vpop.f32.mrf.mxu0
  %v1793 = vpop.f32.mrf.mxu0
  %v1794 = vadd.f32 %v314, %v1793
  %v1795 = vpop.f32.mrf.mxu0
  %1796 = vmatprep.mubr.bf16.mxu0 %v1103
  %1797 = vmatmul.mubr.bf16.gmra.mxu0 %v1102
  %v1798 = vpop.f32.mrf.mxu0
  %v1799 = vadd.f32 %v314, %v1798
  %v1800 = vpop.f32.mrf.mxu0
  %v1801 = vpop.f32.mrf.mxu0
  %v1802 = vadd.f32 %v314, %v1801
  %v1803 = vpop.f32.mrf.mxu0
  %1804 = vmatprep.mubr.bf16.mxu0 %v1105
  %1805 = vmatmul.mubr.bf16.gmra.mxu0 %v1104
  %v1806 = vpop.f32.mrf.mxu0
  %v1807 = vadd.f32 %v314, %v1806
  %v1808 = vpop.f32.mrf.mxu0
  %v1809 = vpop.f32.mrf.mxu0
  %v1810 = vadd.f32 %v314, %v1809
  %v1811 = vpop.f32.mrf.mxu0
  %1812 = vmatprep.mubr.bf16.mxu0 %v1107
  %1813 = vmatmul.mubr.bf16.gmra.mxu0 %v1106
  %v1814 = vpop.f32.mrf.mxu0
  %v1815 = vadd.f32 %v314, %v1814
  %v1816 = vpop.f32.mrf.mxu0
  %v1817 = vpop.f32.mrf.mxu0
  %v1818 = vadd.f32 %v314, %v1817
  %v1819 = vpop.f32.mrf.mxu0
  %1820 = vmatprep.mubr.bf16.mxu0 %v1109
  %1821 = vmatmul.mubr.bf16.gmra.mxu0 %v1108
  %v1822 = vpop.f32.mrf.mxu0
  %v1823 = vadd.f32 %v314, %v1822
  %v1824 = vpop.f32.mrf.mxu0
  %v1825 = vpop.f32.mrf.mxu0
  %v1826 = vadd.f32 %v314, %v1825
  %v1827 = vpop.f32.mrf.mxu0
  %1828 = vmatprep.mubr.bf16.mxu0 %v1111
  %1829 = vmatmul.mubr.bf16.gmra.mxu0 %v1110
  %v1830 = vpop.f32.mrf.mxu0
  %v1831 = vadd.f32 %v314, %v1830
  %v1832 = vpop.f32.mrf.mxu0
  %v1833 = vpop.f32.mrf.mxu0
  %v1834 = vadd.f32 %v314, %v1833
  %v1835 = vpop.f32.mrf.mxu0
  %1836 = vmatprep.mubr.bf16.mxu0 %v1113
  %1837 = vmatmul.mubr.bf16.gmra.mxu0 %v1112
  %v1838 = vpop.f32.mrf.mxu0
  %v1839 = vadd.f32 %v314, %v1838
  %v1840 = vpop.f32.mrf.mxu0
  %v1841 = vpop.f32.mrf.mxu0
  %v1842 = vadd.f32 %v314, %v1841
  %v1843 = vpop.f32.mrf.mxu0
  %1844 = vmatprep.mubr.bf16.mxu0 %v1115
  %1845 = vmatmul.mubr.bf16.gmra.mxu0 %v1114
  %v1846 = vpop.f32.mrf.mxu0
  %v1847 = vadd.f32 %v314, %v1846
  %v1848 = vpop.f32.mrf.mxu0
  %v1849 = vpop.f32.mrf.mxu0
  %v1850 = vadd.f32 %v314, %v1849
  %v1851 = vpop.f32.mrf.mxu0
  %1852 = vmatprep.mubr.bf16.mxu0 %v1117
  %1853 = vmatmul.mubr.bf16.gmra.mxu0 %v1116
  %v1854 = vpop.f32.mrf.mxu0
  %v1855 = vadd.f32 %v314, %v1854
  %v1856 = vpop.f32.mrf.mxu0
  %v1857 = vpop.f32.mrf.mxu0
  %v1858 = vadd.f32 %v314, %v1857
  %v1859 = vpop.f32.mrf.mxu0
  %1860 = vmatprep.mubr.bf16.mxu0 %v1119
  %1861 = vmatmul.mubr.bf16.gmra.mxu0 %v1118
  %v1862 = vpop.f32.mrf.mxu0
  %v1863 = vadd.f32 %v314, %v1862
  %v1864 = vpop.f32.mrf.mxu0
  %v1865 = vpop.f32.mrf.mxu0
  %v1866 = vadd.f32 %v314, %v1865
  %v1867 = vpop.f32.mrf.mxu0
  %1868 = vmatprep.mubr.bf16.mxu0 %v1121
  %1869 = vmatmul.mubr.bf16.gmra.mxu0 %v1120
  %v1870 = vpop.f32.mrf.mxu0
  %v1871 = vadd.f32 %v314, %v1870
  %v1872 = vpop.f32.mrf.mxu0
  %v1873 = vpop.f32.mrf.mxu0
  %v1874 = vadd.f32 %v314, %v1873
  %v1875 = vpop.f32.mrf.mxu0
  %1876 = vmatprep.mubr.bf16.mxu0 %v1123
  %1877 = vmatmul.mubr.bf16.gmra.mxu0 %v1122
  %v1878 = vpop.f32.mrf.mxu0
  %v1879 = vadd.f32 %v314, %v1878
  %v1880 = vpop.f32.mrf.mxu0
  %v1881 = vpop.f32.mrf.mxu0
  %v1882 = vadd.f32 %v314, %v1881
  %v1883 = vpop.f32.mrf.mxu0
  %1884 = vmatprep.mubr.bf16.mxu0 %v1125
  %1885 = vmatmul.mubr.bf16.gmra.mxu0 %v1124
  %v1886 = vpop.f32.mrf.mxu0
  %v1887 = vadd.f32 %v314, %v1886
  %v1888 = vpop.f32.mrf.mxu0
  %v1889 = vpop.f32.mrf.mxu0
  %v1890 = vadd.f32 %v314, %v1889
  %v1891 = vpop.f32.mrf.mxu0
  %1892 = vmatprep.mubr.bf16.mxu0 %v1127
  %1893 = vmatmul.mubr.bf16.gmra.mxu0 %v1126
  %v1894 = vpop.f32.mrf.mxu0
  %v1895 = vadd.f32 %v314, %v1894
  %v1896 = vpop.f32.mrf.mxu0
  %v1897 = vpop.f32.mrf.mxu0
  %v1898 = vadd.f32 %v314, %v1897
  %v1899 = vpop.f32.mrf.mxu0
  %1900 = vmatprep.mubr.bf16.mxu0 %v1129
  %1901 = vmatmul.mubr.bf16.gmra.mxu0 %v1128
  %v1902 = vpop.f32.mrf.mxu0
  %v1903 = vadd.f32 %v314, %v1902
  %v1904 = vpop.f32.mrf.mxu0
  %v1905 = vpop.f32.mrf.mxu0
  %v1906 = vadd.f32 %v314, %v1905
  %v1907 = vpop.f32.mrf.mxu0
  %1908 = vmatprep.mubr.bf16.mxu0 %v1131
  %1909 = vmatmul.mubr.bf16.gmra.mxu0 %v1130
  %v1910 = vpop.f32.mrf.mxu0
  %v1911 = vadd.f32 %v314, %v1910
  %v1912 = vpop.f32.mrf.mxu0
  %v1913 = vpop.f32.mrf.mxu0
  %v1914 = vadd.f32 %v314, %v1913
  %v1915 = vpop.f32.mrf.mxu0
  %1916 = vmatprep.mubr.bf16.mxu0 %v1133
  %1917 = vmatmul.mubr.bf16.gmra.mxu0 %v1132
  %v1918 = vpop.f32.mrf.mxu0
  %v1919 = vadd.f32 %v314, %v1918
  %v1920 = vpop.f32.mrf.mxu0
  %v1921 = vpop.f32.mrf.mxu0
  %v1922 = vadd.f32 %v314, %v1921
  %v1923 = vpop.f32.mrf.mxu0
  %1924 = vmatprep.mubr.bf16.mxu0 %v1135
  %1925 = vmatmul.mubr.bf16.gmra.mxu0 %v1134
  %v1926 = vpop.f32.mrf.mxu0
  %v1927 = vadd.f32 %v314, %v1926
  %v1928 = vpop.f32.mrf.mxu0
  %v1929 = vpop.f32.mrf.mxu0
  %v1930 = vadd.f32 %v314, %v1929
  %v1931 = vpop.f32.mrf.mxu0
  %1932 = vmatprep.mubr.bf16.mxu0 %v1137
  %1933 = vmatmul.mubr.bf16.gmra.mxu0 %v1136
  %v1934 = vpop.f32.mrf.mxu0
  %v1935 = vadd.f32 %v314, %v1934
  %v1936 = vpop.f32.mrf.mxu0
  %v1937 = vpop.f32.mrf.mxu0
  %v1938 = vadd.f32 %v314, %v1937
  %v1939 = vpop.f32.mrf.mxu0
  %1940 = vmatprep.mubr.bf16.mxu0 %v1139
  %1941 = vmatmul.mubr.bf16.gmra.mxu0 %v1138
  %v1942 = vpop.f32.mrf.mxu0
  %v1943 = vadd.f32 %v314, %v1942
  %v1944 = vpop.f32.mrf.mxu0
  %v1945 = vpop.f32.mrf.mxu0
  %v1946 = vadd.f32 %v314, %v1945
  %v1947 = vpop.f32.mrf.mxu0
  %1948 = vmatprep.mubr.bf16.mxu0 %v1141
  %1949 = vmatmul.mubr.bf16.gmra.mxu0 %v1140
  %v1950 = vpop.f32.mrf.mxu0
  %v1951 = vadd.f32 %v314, %v1950
  %v1952 = vpop.f32.mrf.mxu0
  %v1953 = vpop.f32.mrf.mxu0
  %v1954 = vadd.f32 %v314, %v1953
  %v1955 = vpop.f32.mrf.mxu0
  %1956 = vmatprep.mubr.bf16.mxu0 %v1143
  %1957 = vmatmul.mubr.bf16.gmra.mxu0 %v1142
  %v1958 = vpop.f32.mrf.mxu0
  %v1959 = vadd.f32 %v314, %v1958
  %v1960 = vpop.f32.mrf.mxu0
  %v1961 = vpop.f32.mrf.mxu0
  %v1962 = vadd.f32 %v314, %v1961
  %v1963 = vpop.f32.mrf.mxu0
  %1964 = vmatprep.mubr.bf16.mxu0 %v1145
  %1965 = vmatmul.mubr.bf16.gmra.mxu0 %v1144
  %v1966 = vpop.f32.mrf.mxu0
  %v1967 = vadd.f32 %v314, %v1966
  %v1968 = vpop.f32.mrf.mxu0
  %v1969 = vpop.f32.mrf.mxu0
  %v1970 = vadd.f32 %v314, %v1969
  %v1971 = vpop.f32.mrf.mxu0
  %1972 = vmatprep.mubr.bf16.mxu0 %v1147
  %1973 = vmatmul.mubr.bf16.gmra.mxu0 %v1146
  %v1974 = vpop.f32.mrf.mxu0
  %v1975 = vadd.f32 %v314, %v1974
  %v1976 = vpop.f32.mrf.mxu0
  %v1977 = vpop.f32.mrf.mxu0
  %v1978 = vadd.f32 %v314, %v1977
  %v1979 = vpop.f32.mrf.mxu0
  %1980 = vmatprep.mubr.bf16.mxu0 %v1149
  %1981 = vmatmul.mubr.bf16.gmra.mxu0 %v1148
  %v1982 = vpop.f32.mrf.mxu0
  %v1983 = vadd.f32 %v314, %v1982
  %v1984 = vpop.f32.mrf.mxu0
  %v1985 = vpop.f32.mrf.mxu0
  %v1986 = vadd.f32 %v314, %v1985
  %v1987 = vpop.f32.mrf.mxu0
  %1988 = vmatprep.mubr.bf16.mxu0 %v1151
  %1989 = vmatmul.mubr.bf16.gmra.mxu0 %v1150
  %v1990 = vpop.f32.mrf.mxu0
  %v1991 = vadd.f32 %v314, %v1990
  %v1992 = vpop.f32.mrf.mxu0
  %v1993 = vpop.f32.mrf.mxu0
  %v1994 = vadd.f32 %v314, %v1993
  %v1995 = vpop.f32.mrf.mxu0
  %1996 = vmatprep.mubr.bf16.mxu0 %v1153
  %1997 = vmatmul.mubr.bf16.gmra.mxu0 %v1152
  %v1998 = vpop.f32.mrf.mxu0
  %v1999 = vadd.f32 %v314, %v1998
  %v2000 = vpop.f32.mrf.mxu0
  %v2001 = vpop.f32.mrf.mxu0
  %v2002 = vadd.f32 %v314, %v2001
  %v2003 = vpop.f32.mrf.mxu0
  %2004 = vmatprep.mubr.bf16.mxu0 %v1155
  %2005 = vmatmul.mubr.bf16.gmra.mxu0 %v1154
  %v2006 = vpop.f32.mrf.mxu0
  %v2007 = vadd.f32 %v314, %v2006
  %v2008 = vpop.f32.mrf.mxu0
  %v2009 = vpop.f32.mrf.mxu0
  %v2010 = vadd.f32 %v314, %v2009
  %v2011 = vpop.f32.mrf.mxu0
  %2012 = vmatprep.mubr.bf16.mxu0 %v1157
  %2013 = vmatmul.mubr.bf16.gmra.mxu0 %v1156
  %v2014 = vpop.f32.mrf.mxu0
  %v2015 = vadd.f32 %v314, %v2014
  %v2016 = vpop.f32.mrf.mxu0
  %v2017 = vpop.f32.mrf.mxu0
  %v2018 = vadd.f32 %v314, %v2017
  %v2019 = vpop.f32.mrf.mxu0
  %2020 = vmatprep.mubr.bf16.mxu0 %v1159
  %2021 = vmatmul.mubr.bf16.gmra.mxu0 %v1158
  %v2022 = vpop.f32.mrf.mxu0
  %v2023 = vadd.f32 %v314, %v2022
  %v2024 = vpop.f32.mrf.mxu0
  %v2025 = vpop.f32.mrf.mxu0
  %v2026 = vadd.f32 %v314, %v2025
  %v2027 = vpop.f32.mrf.mxu0
  %2028 = vmatprep.mubr.bf16.mxu0 %v1161
  %2029 = vmatmul.mubr.bf16.gmra.mxu0 %v1160
  %v2030 = vpop.f32.mrf.mxu0
  %v2031 = vadd.f32 %v314, %v2030
  %v2032 = vpop.f32.mrf.mxu0
  %v2033 = vpop.f32.mrf.mxu0
  %v2034 = vadd.f32 %v314, %v2033
  %v2035 = vpop.f32.mrf.mxu0
  %2036 = vmatprep.mubr.bf16.mxu0 %v1163
  %2037 = vmatmul.mubr.bf16.gmra.mxu0 %v1162
  %v2038 = vpop.f32.mrf.mxu0
  %v2039 = vadd.f32 %v314, %v2038
  %v2040 = vpop.f32.mrf.mxu0
  %v2041 = vpop.f32.mrf.mxu0
  %v2042 = vadd.f32 %v314, %v2041
  %v2043 = vpop.f32.mrf.mxu0
  %2044 = vmatprep.mubr.bf16.mxu0 %v1165
  %2045 = vmatmul.mubr.bf16.gmra.mxu0 %v1164
  %v2046 = vpop.f32.mrf.mxu0
  %v2047 = vadd.f32 %v314, %v2046
  %v2048 = vpop.f32.mrf.mxu0
  %v2049 = vpop.f32.mrf.mxu0
  %v2050 = vadd.f32 %v314, %v2049
  %v2051 = vpop.f32.mrf.mxu0
  %2052 = vmatprep.mubr.bf16.mxu0 %v1167
  %2053 = vmatmul.mubr.bf16.gmra.mxu0 %v1166
  %v2054 = vpop.f32.mrf.mxu0
  %v2055 = vadd.f32 %v314, %v2054
  %v2056 = vpop.f32.mrf.mxu0
  %v2057 = vpop.f32.mrf.mxu0
  %v2058 = vadd.f32 %v314, %v2057
  %v2059 = vpop.f32.mrf.mxu0
  %2060 = vmatprep.mubr.bf16.mxu0 %v1169
  %2061 = vmatmul.mubr.bf16.gmra.mxu0 %v1168
  %v2062 = vpop.f32.mrf.mxu0
  %v2063 = vadd.f32 %v314, %v2062
  %v2064 = vpop.f32.mrf.mxu0
  %v2065 = vpop.f32.mrf.mxu0
  %v2066 = vadd.f32 %v314, %v2065
  %v2067 = vpop.f32.mrf.mxu0
  %2068 = vmatprep.mubr.bf16.mxu0 %v1171
  %2069 = vmatmul.mubr.bf16.gmra.mxu0 %v1170
  %v2070 = vpop.f32.mrf.mxu0
  %v2071 = vadd.f32 %v314, %v2070
  %v2072 = vpop.f32.mrf.mxu0
  %v2073 = vpop.f32.mrf.mxu0
  %v2074 = vadd.f32 %v314, %v2073
  %v2075 = vpop.f32.mrf.mxu0
  %2076 = vmatprep.mubr.bf16.mxu0 %v1173
  %2077 = vmatmul.mubr.bf16.gmra.mxu0 %v1172
  %v2078 = vpop.f32.mrf.mxu0
  %v2079 = vadd.f32 %v314, %v2078
  %v2080 = vpop.f32.mrf.mxu0
  %v2081 = vpop.f32.mrf.mxu0
  %v2082 = vadd.f32 %v314, %v2081
  %v2083 = vpop.f32.mrf.mxu0
  %2084 = vmatprep.mubr.bf16.mxu0 %v1175
  %2085 = vmatmul.mubr.bf16.gmra.mxu0 %v1174
  %v2086 = vpop.f32.mrf.mxu0
  %v2087 = vadd.f32 %v314, %v2086
  %v2088 = vpop.f32.mrf.mxu0
  %v2089 = vpop.f32.mrf.mxu0
  %v2090 = vadd.f32 %v314, %v2089
  %v2091 = vpop.f32.mrf.mxu0
  %2092 = vmatprep.mubr.bf16.mxu0 %v1177
  %2093 = vmatmul.mubr.bf16.gmra.mxu0 %v1176
  %v2094 = vpop.f32.mrf.mxu0
  %v2095 = vadd.f32 %v314, %v2094
  %v2096 = vpop.f32.mrf.mxu0
  %v2097 = vpop.f32.mrf.mxu0
  %v2098 = vadd.f32 %v314, %v2097
  %v2099 = vpop.f32.mrf.mxu0
  %2100 = vmatprep.mubr.bf16.mxu0 %v1179
  %2101 = vmatmul.mubr.bf16.gmra.mxu0 %v1178
  %v2102 = vpop.f32.mrf.mxu0
  %v2103 = vadd.f32 %v314, %v2102
  %v2104 = vpop.f32.mrf.mxu0
  %v2105 = vpop.f32.mrf.mxu0
  %v2106 = vadd.f32 %v314, %v2105
  %v2107 = vpop.f32.mrf.mxu0
  %2108 = vmatprep.mubr.bf16.mxu0 %v1181
  %2109 = vmatmul.mubr.bf16.gmra.mxu0 %v1180
  %v2110 = vpop.f32.mrf.mxu0
  %v2111 = vadd.f32 %v314, %v2110
  %v2112 = vpop.f32.mrf.mxu0
  %v2113 = vpop.f32.mrf.mxu0
  %v2114 = vadd.f32 %v314, %v2113
  %v2115 = vpop.f32.mrf.mxu0
  %2116 = vmatprep.mubr.bf16.mxu0 %v1183
  %2117 = vmatmul.mubr.bf16.gmra.mxu0 %v1182
  %v2118 = vpop.f32.mrf.mxu0
  %v2119 = vadd.f32 %v314, %v2118
  %v2120 = vpop.f32.mrf.mxu0
  %v2121 = vpop.f32.mrf.mxu0
  %v2122 = vadd.f32 %v314, %v2121
  %v2123 = vpop.f32.mrf.mxu0
  %2124 = vmatprep.mubr.bf16.mxu0 %v1185
  %2125 = vmatmul.mubr.bf16.gmra.mxu0 %v1184
  %v2126 = vpop.f32.mrf.mxu0
  %v2127 = vadd.f32 %v314, %v2126
  %v2128 = vpop.f32.mrf.mxu0
  %v2129 = vpop.f32.mrf.mxu0
  %v2130 = vadd.f32 %v314, %v2129
  %v2131 = vpop.f32.mrf.mxu0
  %2132 = vmatprep.mubr.bf16.mxu0 %v1187
  %2133 = vmatmul.mubr.bf16.gmra.mxu0 %v1186
  %v2134 = vpop.f32.mrf.mxu0
  %v2135 = vadd.f32 %v314, %v2134
  %v2136 = vpop.f32.mrf.mxu0
  %v2137 = vpop.f32.mrf.mxu0
  %v2138 = vadd.f32 %v314, %v2137
  %v2139 = vpop.f32.mrf.mxu0
  %2140 = vmatprep.mubr.bf16.mxu0 %v1189
  %2141 = vmatmul.mubr.bf16.gmra.mxu0 %v1188
  %v2142 = vpop.f32.mrf.mxu0
  %v2143 = vadd.f32 %v314, %v2142
  %v2144 = vpop.f32.mrf.mxu0
  %v2145 = vpop.f32.mrf.mxu0
  %v2146 = vadd.f32 %v314, %v2145
  %v2147 = vpop.f32.mrf.mxu0
  %2148 = vmatprep.mubr.bf16.mxu0 %v1191
  %2149 = vmatmul.mubr.bf16.gmra.mxu0 %v1190
  %v2150 = vpop.f32.mrf.mxu0
  %v2151 = vadd.f32 %v314, %v2150
  %v2152 = vpop.f32.mrf.mxu0
  %v2153 = vpop.f32.mrf.mxu0
  %v2154 = vadd.f32 %v314, %v2153
  %v2155 = vpop.f32.mrf.mxu0
  %2156 = vmatprep.mubr.bf16.mxu0 %v1193
  %2157 = vmatmul.mubr.bf16.gmra.mxu0 %v1192
  %v2158 = vpop.f32.mrf.mxu0
  %v2159 = vadd.f32 %v314, %v2158
  %v2160 = vpop.f32.mrf.mxu0
  %v2161 = vpop.f32.mrf.mxu0
  %v2162 = vadd.f32 %v314, %v2161
  %v2163 = vpop.f32.mrf.mxu0
  %2164 = vmatprep.mubr.bf16.mxu0 %v1195
  %2165 = vmatmul.mubr.bf16.gmra.mxu0 %v1194
  %v2166 = vpop.f32.mrf.mxu0
  %v2167 = vadd.f32 %v314, %v2166
  %v2168 = vpop.f32.mrf.mxu0
  %v2169 = vpop.f32.mrf.mxu0
  %v2170 = vadd.f32 %v314, %v2169
  %v2171 = vpop.f32.mrf.mxu0
  %2172 = vmatprep.mubr.bf16.mxu0 %v1197
  %2173 = vmatmul.mubr.bf16.gmra.mxu0 %v1196
  %v2174 = vpop.f32.mrf.mxu0
  %v2175 = vadd.f32 %v314, %v2174
  %v2176 = vpop.f32.mrf.mxu0
  %v2177 = vpop.f32.mrf.mxu0
  %v2178 = vadd.f32 %v314, %v2177
  %v2179 = vpop.f32.mrf.mxu0
  %2180 = vmatprep.mubr.bf16.mxu0 %v1199
  %2181 = vmatmul.mubr.bf16.gmra.mxu0 %v1198
  %v2182 = vpop.f32.mrf.mxu0
  %v2183 = vadd.f32 %v314, %v2182
  %v2184 = vpop.f32.mrf.mxu0
  %v2185 = vpop.f32.mrf.mxu0
  %v2186 = vadd.f32 %v314, %v2185
  %v2187 = vpop.f32.mrf.mxu0
  %2188 = vmatprep.mubr.bf16.mxu0 %v1201
  %2189 = vmatmul.mubr.bf16.gmra.mxu0 %v1200
  %v2190 = vpop.f32.mrf.mxu0
  %v2191 = vadd.f32 %v314, %v2190
  %v2192 = vpop.f32.mrf.mxu0
  %v2193 = vpop.f32.mrf.mxu0
  %v2194 = vadd.f32 %v314, %v2193
  %v2195 = vpop.f32.mrf.mxu0
  %2196 = vmatprep.mubr.bf16.mxu0 %v1203
  %2197 = vmatmul.mubr.bf16.gmra.mxu0 %v1202
  %v2198 = vpop.f32.mrf.mxu0
  %v2199 = vadd.f32 %v314, %v2198
  %v2200 = vpop.f32.mrf.mxu0
  %v2201 = vpop.f32.mrf.mxu0
  %v2202 = vadd.f32 %v314, %v2201
  %v2203 = vpop.f32.mrf.mxu0
  %2204 = vmatprep.mubr.bf16.mxu0 %v1205
  %2205 = vmatmul.mubr.bf16.gmra.mxu0 %v1204
  %v2206 = vpop.f32.mrf.mxu0
  %v2207 = vadd.f32 %v314, %v2206
  %v2208 = vpop.f32.mrf.mxu0
  %v2209 = vpop.f32.mrf.mxu0
  %v2210 = vadd.f32 %v314, %v2209
  %v2211 = vpop.f32.mrf.mxu0
  %2212 = vmatprep.mubr.bf16.mxu0 %v1207
  %2213 = vmatmul.mubr.bf16.gmra.mxu0 %v1206
  %v2214 = vpop.f32.mrf.mxu0
  %v2215 = vadd.f32 %v314, %v2214
  %v2216 = vpop.f32.mrf.mxu0
  %v2217 = vpop.f32.mrf.mxu0
  %v2218 = vadd.f32 %v314, %v2217
  %v2219 = vpop.f32.mrf.mxu0
  %2220 = vmatprep.mubr.bf16.mxu0 %v1209
  %2221 = vmatmul.mubr.bf16.gmra.mxu0 %v1208
  %v2222 = vpop.f32.mrf.mxu0
  %v2223 = vadd.f32 %v314, %v2222
  %v2224 = vpop.f32.mrf.mxu0
  %v2225 = vpop.f32.mrf.mxu0
  %v2226 = vadd.f32 %v314, %v2225
  %v2227 = vpop.f32.mrf.mxu0
  %2228 = vmatprep.mubr.bf16.mxu0 %v1211
  %2229 = vmatmul.mubr.bf16.gmra.mxu0 %v1210
  %v2230 = vpop.f32.mrf.mxu0
  %v2231 = vadd.f32 %v314, %v2230
  %v2232 = vpop.f32.mrf.mxu0
  %v2233 = vpop.f32.mrf.mxu0
  %v2234 = vadd.f32 %v314, %v2233
  %v2235 = vpop.f32.mrf.mxu0
  %2236 = vmatprep.mubr.bf16.mxu0 %v1213
  %2237 = vmatmul.mubr.bf16.gmra.mxu0 %v1212
  %v2238 = vpop.f32.mrf.mxu0
  %v2239 = vadd.f32 %v314, %v2238
  %v2240 = vpop.f32.mrf.mxu0
  %v2241 = vpop.f32.mrf.mxu0
  %v2242 = vadd.f32 %v314, %v2241
  %v2243 = vpop.f32.mrf.mxu0
  %2244 = vmatprep.mubr.bf16.mxu0 %v1215
  %2245 = vmatmul.mubr.bf16.gmra.mxu0 %v1214
  %v2246 = vpop.f32.mrf.mxu0
  %v2247 = vadd.f32 %v314, %v2246
  %v2248 = vpop.f32.mrf.mxu0
  %v2249 = vpop.f32.mrf.mxu0
  %v2250 = vadd.f32 %v314, %v2249
  %v2251 = vpop.f32.mrf.mxu0
  %2252 = vmatprep.mubr.bf16.mxu0 %v1217
  %2253 = vmatmul.mubr.bf16.gmra.mxu0 %v1216
  %v2254 = vpop.f32.mrf.mxu0
  %v2255 = vadd.f32 %v314, %v2254
  %v2256 = vpop.f32.mrf.mxu0
  %v2257 = vpop.f32.mrf.mxu0
  %v2258 = vadd.f32 %v314, %v2257
  %v2259 = vpop.f32.mrf.mxu0
  %2260 = vmatprep.mubr.bf16.mxu0 %v1219
  %2261 = vmatmul.mubr.bf16.gmra.mxu0 %v1218
  %v2262 = vpop.f32.mrf.mxu0
  %v2263 = vadd.f32 %v314, %v2262
  %v2264 = vpop.f32.mrf.mxu0
  %v2265 = vpop.f32.mrf.mxu0
  %v2266 = vadd.f32 %v314, %v2265
  %v2267 = vpop.f32.mrf.mxu0
  %2268 = vmatprep.mubr.bf16.mxu0 %v1221
  %2269 = vmatmul.mubr.bf16.gmra.mxu0 %v1220
  %v2270 = vpop.f32.mrf.mxu0
  %v2271 = vadd.f32 %v314, %v2270
  %v2272 = vpop.f32.mrf.mxu0
  %v2273 = vpop.f32.mrf.mxu0
  %v2274 = vadd.f32 %v314, %v2273
  %v2275 = vpop.f32.mrf.mxu0
  %2276 = vmatprep.mubr.bf16.mxu0 %v1223
  %2277 = vmatmul.mubr.bf16.gmra.mxu0 %v1222
  %v2278 = vpop.f32.mrf.mxu0
  %v2279 = vadd.f32 %v314, %v2278
  %v2280 = vpop.f32.mrf.mxu0
  %v2281 = vpop.f32.mrf.mxu0
  %v2282 = vadd.f32 %v314, %v2281
  %v2283 = vpop.f32.mrf.mxu0
  %2284 = vmatprep.mubr.bf16.mxu0 %v1225
  %2285 = vmatmul.mubr.bf16.gmra.mxu0 %v1224
  %v2286 = vpop.f32.mrf.mxu0
  %v2287 = vadd.f32 %v314, %v2286
  %v2288 = vpop.f32.mrf.mxu0
  %v2289 = vpop.f32.mrf.mxu0
  %v2290 = vadd.f32 %v314, %v2289
  %v2291 = vpop.f32.mrf.mxu0
  %2292 = vmatprep.mubr.bf16.mxu0 %v1227
  %2293 = vmatmul.mubr.bf16.gmra.mxu0 %v1226
  %v2294 = vpop.f32.mrf.mxu0
  %v2295 = vadd.f32 %v314, %v2294
  %v2296 = vpop.f32.mrf.mxu0
  %v2297 = vpop.f32.mrf.mxu0
  %v2298 = vadd.f32 %v314, %v2297
  %v2299 = vpop.f32.mrf.mxu0
  %2300 = vmatprep.mubr.bf16.mxu0 %v1229
  %2301 = vmatmul.mubr.bf16.gmra.mxu0 %v1228
  %v2302 = vpop.f32.mrf.mxu0
  %v2303 = vadd.f32 %v314, %v2302
  %v2304 = vpop.f32.mrf.mxu0
  %v2305 = vpop.f32.mrf.mxu0
  %v2306 = vadd.f32 %v314, %v2305
  %v2307 = vpop.f32.mrf.mxu0
  %2308 = vmatprep.mubr.bf16.mxu0 %v1231
  %2309 = vmatmul.mubr.bf16.gmra.mxu0 %v1230
  %v2310 = vpop.f32.mrf.mxu0
  %v2311 = vadd.f32 %v314, %v2310
  %v2312 = vpop.f32.mrf.mxu0
  %v2313 = vpop.f32.mrf.mxu0
  %v2314 = vadd.f32 %v314, %v2313
  %v2315 = vpop.f32.mrf.mxu0
  %2316 = vmatprep.mubr.bf16.mxu0 %v1233
  %2317 = vmatmul.mubr.bf16.gmra.mxu0 %v1232
  %v2318 = vpop.f32.mrf.mxu0
  %v2319 = vadd.f32 %v314, %v2318
  %v2320 = vpop.f32.mrf.mxu0
  %v2321 = vpop.f32.mrf.mxu0
  %v2322 = vadd.f32 %v314, %v2321
  %v2323 = vpop.f32.mrf.mxu0
  %2324 = vmatprep.mubr.bf16.mxu0 %v1235
  %2325 = vmatmul.mubr.bf16.gmra.mxu0 %v1234
  %v2326 = vpop.f32.mrf.mxu0
  %v2327 = vadd.f32 %v314, %v2326
  %v2328 = vpop.f32.mrf.mxu0
  %v2329 = vpop.f32.mrf.mxu0
  %v2330 = vadd.f32 %v314, %v2329
  %v2331 = vpop.f32.mrf.mxu0
  %2332 = vmatprep.mubr.bf16.mxu0 %v1237
  %2333 = vmatmul.mubr.bf16.gmra.mxu0 %v1236
  %v2334 = vpop.f32.mrf.mxu0
  %v2335 = vadd.f32 %v314, %v2334
  %v2336 = vpop.f32.mrf.mxu0
  %v2337 = vpop.f32.mrf.mxu0
  %v2338 = vadd.f32 %v314, %v2337
  %v2339 = vpop.f32.mrf.mxu0
  %2340 = vmatprep.mubr.bf16.mxu0 %v1239
  %2341 = vmatmul.mubr.bf16.gmra.mxu0 %v1238
  %v2342 = vpop.f32.mrf.mxu0
  %v2343 = vadd.f32 %v314, %v2342
  %v2344 = vpop.f32.mrf.mxu0
  %v2345 = vpop.f32.mrf.mxu0
  %v2346 = vadd.f32 %v314, %v2345
  %v2347 = vpop.f32.mrf.mxu0
  %2348 = vmatprep.mubr.bf16.mxu0 %v1241
  %2349 = vmatmul.mubr.bf16.gmra.mxu0 %v1240
  %v2350 = vpop.f32.mrf.mxu0
  %v2351 = vadd.f32 %v314, %v2350
  %v2352 = vpop.f32.mrf.mxu0
  %v2353 = vpop.f32.mrf.mxu0
  %v2354 = vadd.f32 %v314, %v2353
  %v2355 = vpop.f32.mrf.mxu0
  %2356 = vmatprep.mubr.bf16.mxu0 %v1243
  %2357 = vmatmul.mubr.bf16.gmra.mxu0 %v1242
  %v2358 = vpop.f32.mrf.mxu0
  %v2359 = vadd.f32 %v314, %v2358
  %v2360 = vpop.f32.mrf.mxu0
  %v2361 = vpop.f32.mrf.mxu0
  %v2362 = vadd.f32 %v314, %v2361
  %v2363 = vpop.f32.mrf.mxu0
  %2364 = vmatprep.mubr.bf16.mxu0 %v1245
  %2365 = vmatmul.mubr.bf16.gmra.mxu0 %v1244
  %v2366 = vpop.f32.mrf.mxu0
  %v2367 = vadd.f32 %v314, %v2366
  %v2368 = vpop.f32.mrf.mxu0
  %v2369 = vpop.f32.mrf.mxu0
  %v2370 = vadd.f32 %v314, %v2369
  %v2371 = vpop.f32.mrf.mxu0
  %2372 = vmatprep.mubr.bf16.mxu0 %v1247
  %2373 = vmatmul.mubr.bf16.gmra.mxu0 %v1246
  %v2374 = vpop.f32.mrf.mxu0
  %v2375 = vadd.f32 %v314, %v2374
  %v2376 = vpop.f32.mrf.mxu0
  %v2377 = vpop.f32.mrf.mxu0
  %v2378 = vadd.f32 %v314, %v2377
  %v2379 = vpop.f32.mrf.mxu0
  %2380 = vmatprep.mubr.bf16.mxu0 %v1249
  %2381 = vmatmul.mubr.bf16.gmra.mxu0 %v1248
  %v2382 = vpop.f32.mrf.mxu0
  %v2383 = vadd.f32 %v314, %v2382
  %v2384 = vpop.f32.mrf.mxu0
  %v2385 = vpop.f32.mrf.mxu0
  %v2386 = vadd.f32 %v314, %v2385
  %v2387 = vpop.f32.mrf.mxu0
  %2388 = vmatprep.mubr.bf16.mxu0 %v1251
  %2389 = vmatmul.mubr.bf16.gmra.mxu0 %v1250
  %v2390 = vpop.f32.mrf.mxu0
  %v2391 = vadd.f32 %v314, %v2390
  %v2392 = vpop.f32.mrf.mxu0
  %v2393 = vpop.f32.mrf.mxu0
  %v2394 = vadd.f32 %v314, %v2393
  %v2395 = vpop.f32.mrf.mxu0
  %2396 = vmatprep.mubr.bf16.mxu0 %v1253
  %2397 = vmatmul.mubr.bf16.gmra.mxu0 %v1252
  %v2398 = vpop.f32.mrf.mxu0
  %v2399 = vadd.f32 %v314, %v2398
  %v2400 = vpop.f32.mrf.mxu0
  %v2401 = vpop.f32.mrf.mxu0
  %v2402 = vadd.f32 %v314, %v2401
  %v2403 = vpop.f32.mrf.mxu0
  %2404 = vmatprep.mubr.bf16.mxu0 %v1255
  %2405 = vmatmul.mubr.bf16.gmra.mxu0 %v1254
  %v2406 = vpop.f32.mrf.mxu0
  %v2407 = vadd.f32 %v314, %v2406
  %v2408 = vpop.f32.mrf.mxu0
  %v2409 = vpop.f32.mrf.mxu0
  %v2410 = vadd.f32 %v314, %v2409
  %v2411 = vpop.f32.mrf.mxu0
  %2412 = vmatprep.mubr.bf16.mxu0 %v1257
  %2413 = vmatmul.mubr.bf16.gmra.mxu0 %v1256
  %v2414 = vpop.f32.mrf.mxu0
  %v2415 = vadd.f32 %v314, %v2414
  %v2416 = vpop.f32.mrf.mxu0
  %v2417 = vpop.f32.mrf.mxu0
  %v2418 = vadd.f32 %v314, %v2417
  %v2419 = vpop.f32.mrf.mxu0
  %2420 = vmatprep.mubr.bf16.mxu0 %v1259
  %2421 = vmatmul.mubr.bf16.gmra.mxu0 %v1258
  %v2422 = vpop.f32.mrf.mxu0
  %v2423 = vadd.f32 %v314, %v2422
  %v2424 = vpop.f32.mrf.mxu0
  %v2425 = vpop.f32.mrf.mxu0
  %v2426 = vadd.f32 %v314, %v2425
  %v2427 = vpop.f32.mrf.mxu0
  %2428 = vmatprep.mubr.bf16.mxu0 %v1261
  %2429 = vmatmul.mubr.bf16.gmra.mxu0 %v1260
  %v2430 = vpop.f32.mrf.mxu0
  %v2431 = vadd.f32 %v314, %v2430
  %v2432 = vpop.f32.mrf.mxu0
  %v2433 = vpop.f32.mrf.mxu0
  %v2434 = vadd.f32 %v314, %v2433
  %v2435 = vpop.f32.mrf.mxu0
  %2436 = vmatprep.mubr.bf16.mxu0 %v1263
  %2437 = vmatmul.mubr.bf16.gmra.mxu0 %v1262
  %v2438 = vpop.f32.mrf.mxu0
  %v2439 = vadd.f32 %v314, %v2438
  %v2440 = vpop.f32.mrf.mxu0
  %v2441 = vpop.f32.mrf.mxu0
  %v2442 = vadd.f32 %v314, %v2441
  %v2443 = vpop.f32.mrf.mxu0
  %2444 = vmatprep.mubr.bf16.mxu0 %v1265
  %2445 = vmatmul.mubr.bf16.gmra.mxu0 %v1264
  %v2446 = vpop.f32.mrf.mxu0
  %v2447 = vadd.f32 %v314, %v2446
  %v2448 = vpop.f32.mrf.mxu0
  %v2449 = vpop.f32.mrf.mxu0
  %v2450 = vadd.f32 %v314, %v2449
  %v2451 = vpop.f32.mrf.mxu0
  %2452 = vmatprep.mubr.bf16.mxu0 %v1267
  %2453 = vmatmul.mubr.bf16.gmra.mxu0 %v1266
  %v2454 = vpop.f32.mrf.mxu0
  %v2455 = vadd.f32 %v314, %v2454
  %v2456 = vpop.f32.mrf.mxu0
  %v2457 = vpop.f32.mrf.mxu0
  %v2458 = vadd.f32 %v314, %v2457
  %v2459 = vpop.f32.mrf.mxu0
  %2460 = vmatprep.mubr.bf16.mxu0 %v1269
  %2461 = vmatmul.mubr.bf16.gmra.mxu0 %v1268
  %v2462 = vpop.f32.mrf.mxu0
  %v2463 = vadd.f32 %v314, %v2462
  %v2464 = vpop.f32.mrf.mxu0
  %v2465 = vpop.f32.mrf.mxu0
  %v2466 = vadd.f32 %v314, %v2465
  %v2467 = vpop.f32.mrf.mxu0
  %2468 = vmatprep.mubr.bf16.mxu0 %v1271
  %2469 = vmatmul.mubr.bf16.gmra.mxu0 %v1270
  %v2470 = vpop.f32.mrf.mxu0
  %v2471 = vadd.f32 %v314, %v2470
  %v2472 = vpop.f32.mrf.mxu0
  %v2473 = vpop.f32.mrf.mxu0
  %v2474 = vadd.f32 %v314, %v2473
  %v2475 = vpop.f32.mrf.mxu0
  %2476 = vmatprep.mubr.bf16.mxu0 %v1273
  %2477 = vmatmul.mubr.bf16.gmra.mxu0 %v1272
  %v2478 = vpop.f32.mrf.mxu0
  %v2479 = vadd.f32 %v314, %v2478
  %v2480 = vpop.f32.mrf.mxu0
  %v2481 = vpop.f32.mrf.mxu0
  %v2482 = vadd.f32 %v314, %v2481
  %v2483 = vpop.f32.mrf.mxu0
  %2484 = vmatprep.mubr.bf16.mxu0 %v1275
  %2485 = vmatmul.mubr.bf16.gmra.mxu0 %v1274
  %v2486 = vpop.f32.mrf.mxu0
  %v2487 = vadd.f32 %v314, %v2486
  %v2488 = vpop.f32.mrf.mxu0
  %v2489 = vpop.f32.mrf.mxu0
  %v2490 = vadd.f32 %v314, %v2489
  %v2491 = vpop.f32.mrf.mxu0
  %2492 = vmatprep.mubr.bf16.mxu0 %v1277
  %2493 = vmatmul.mubr.bf16.gmra.mxu0 %v1276
  %v2494 = vpop.f32.mrf.mxu0
  %v2495 = vadd.f32 %v314, %v2494
  %v2496 = vpop.f32.mrf.mxu0
  %v2497 = vpop.f32.mrf.mxu0
  %v2498 = vadd.f32 %v314, %v2497
  %v2499 = vpop.f32.mrf.mxu0
  %2500 = vmatprep.mubr.bf16.mxu0 %v1279
  %2501 = vmatmul.mubr.bf16.gmra.mxu0 %v1278
  %v2502 = vpop.f32.mrf.mxu0
  %v2503 = vadd.f32 %v314, %v2502
  %v2504 = vpop.f32.mrf.mxu0
  %v2505 = vpop.f32.mrf.mxu0
  %v2506 = vadd.f32 %v314, %v2505
  %v2507 = vpop.f32.mrf.mxu0
  %2508 = vmatprep.mubr.bf16.mxu0 %v1281
  %2509 = vmatmul.mubr.bf16.gmra.mxu0 %v1280
  %v2510 = vpop.f32.mrf.mxu0
  %v2511 = vadd.f32 %v314, %v2510
  %v2512 = vpop.f32.mrf.mxu0
  %v2513 = vpop.f32.mrf.mxu0
  %v2514 = vadd.f32 %v314, %v2513
  %v2515 = vpop.f32.mrf.mxu0
  %2516 = vmatprep.mubr.bf16.mxu0 %v1283
  %2517 = vmatmul.mubr.bf16.gmra.mxu0 %v1282
  %v2518 = vpop.f32.mrf.mxu0
  %v2519 = vadd.f32 %v314, %v2518
  %v2520 = vpop.f32.mrf.mxu0
  %v2521 = vpop.f32.mrf.mxu0
  %v2522 = vadd.f32 %v314, %v2521
  %v2523 = vpop.f32.mrf.mxu0
  %2524 = vmatprep.mubr.bf16.mxu0 %v1285
  %2525 = vmatmul.mubr.bf16.gmra.mxu0 %v1284
  %v2526 = vpop.f32.mrf.mxu0
  %v2527 = vadd.f32 %v314, %v2526
  %v2528 = vpop.f32.mrf.mxu0
  %v2529 = vpop.f32.mrf.mxu0
  %v2530 = vadd.f32 %v314, %v2529
  %v2531 = vpop.f32.mrf.mxu0
  %2532 = vmatprep.mubr.bf16.mxu0 %v1287
  %2533 = vmatmul.mubr.bf16.gmra.mxu0 %v1286
  %v2534 = vpop.f32.mrf.mxu0
  %v2535 = vadd.f32 %v314, %v2534
  %v2536 = vpop.f32.mrf.mxu0
  %v2537 = vpop.f32.mrf.mxu0
  %v2538 = vadd.f32 %v314, %v2537
  %v2539 = vpop.f32.mrf.mxu0
  %2540 = vmatprep.mubr.bf16.mxu0 %v1289
  %2541 = vmatmul.mubr.bf16.gmra.mxu0 %v1288
  %v2542 = vpop.f32.mrf.mxu0
  %v2543 = vadd.f32 %v314, %v2542
  %v2544 = vpop.f32.mrf.mxu0
  %v2545 = vpop.f32.mrf.mxu0
  %v2546 = vadd.f32 %v314, %v2545
  %v2547 = vpop.f32.mrf.mxu0
  %2548 = vmatprep.mubr.bf16.mxu0 %v1291
  %2549 = vmatmul.mubr.bf16.gmra.mxu0 %v1290
  %v2550 = vpop.f32.mrf.mxu0
  %v2551 = vadd.f32 %v314, %v2550
  %v2552 = vpop.f32.mrf.mxu0
  %v2553 = vpop.f32.mrf.mxu0
  %v2554 = vadd.f32 %v314, %v2553
  %v2555 = vpop.f32.mrf.mxu0
  %2556 = vmatprep.mubr.bf16.mxu0 %v1293
  %2557 = vmatmul.mubr.bf16.gmra.mxu0 %v1292
  %v2558 = vpop.f32.mrf.mxu0
  %v2559 = vadd.f32 %v314, %v2558
  %v2560 = vpop.f32.mrf.mxu0
  %v2561 = vpop.f32.mrf.mxu0
  %v2562 = vadd.f32 %v314, %v2561
  %v2563 = vpop.f32.mrf.mxu0
  %2564 = vmatprep.mubr.bf16.mxu0 %v1295
  %2565 = vmatmul.mubr.bf16.gmra.mxu0 %v1294
  %v2566 = vpop.f32.mrf.mxu0
  %v2567 = vadd.f32 %v314, %v2566
  %v2568 = vpop.f32.mrf.mxu0
  %v2569 = vpop.f32.mrf.mxu0
  %v2570 = vadd.f32 %v314, %v2569
  %v2571 = vpop.f32.mrf.mxu0
  %2572 = vmatprep.mubr.bf16.mxu0 %v1297
  %2573 = vmatmul.mubr.bf16.gmra.mxu0 %v1296
  %v2574 = vpop.f32.mrf.mxu0
  %v2575 = vadd.f32 %v314, %v2574
  %v2576 = vpop.f32.mrf.mxu0
  %v2577 = vpop.f32.mrf.mxu0
  %v2578 = vadd.f32 %v314, %v2577
  %v2579 = vpop.f32.mrf.mxu0
  %2580 = vmatprep.mubr.bf16.mxu0 %v1299
  %2581 = vmatmul.mubr.bf16.gmra.mxu0 %v1298
  %v2582 = vpop.f32.mrf.mxu0
  %v2583 = vadd.f32 %v314, %v2582
  %v2584 = vpop.f32.mrf.mxu0
  %v2585 = vpop.f32.mrf.mxu0
  %v2586 = vadd.f32 %v314, %v2585
  %v2587 = vpop.f32.mrf.mxu0
  %2588 = vmatprep.mubr.bf16.mxu0 %v1301
  %2589 = vmatmul.mubr.bf16.gmra.mxu0 %v1300
  %v2590 = vpop.f32.mrf.mxu0
  %v2591 = vadd.f32 %v314, %v2590
  %v2592 = vpop.f32.mrf.mxu0
  %v2593 = vpop.f32.mrf.mxu0
  %v2594 = vadd.f32 %v314, %v2593
  %v2595 = vpop.f32.mrf.mxu0
  %2596 = vmatprep.mubr.bf16.mxu0 %v1303
  %2597 = vmatmul.mubr.bf16.gmra.mxu0 %v1302
  %v2598 = vpop.f32.mrf.mxu0
  %v2599 = vadd.f32 %v314, %v2598
  %v2600 = vpop.f32.mrf.mxu0
  %v2601 = vpop.f32.mrf.mxu0
  %v2602 = vadd.f32 %v314, %v2601
  %v2603 = vpop.f32.mrf.mxu0
  %2604 = vmatprep.mubr.bf16.mxu0 %v1305
  %2605 = vmatmul.mubr.bf16.gmra.mxu0 %v1304
  %v2606 = vpop.f32.mrf.mxu0
  %v2607 = vadd.f32 %v314, %v2606
  %v2608 = vpop.f32.mrf.mxu0
  %v2609 = vpop.f32.mrf.mxu0
  %v2610 = vadd.f32 %v314, %v2609
  %v2611 = vpop.f32.mrf.mxu0
  %2612 = vmatprep.mubr.bf16.mxu0 %v1307
  %2613 = vmatmul.mubr.bf16.gmra.mxu0 %v1306
  %v2614 = vpop.f32.mrf.mxu0
  %v2615 = vadd.f32 %v314, %v2614
  %v2616 = vpop.f32.mrf.mxu0
  %v2617 = vpop.f32.mrf.mxu0
  %v2618 = vadd.f32 %v314, %v2617
  %v2619 = vpop.f32.mrf.mxu0
  %2620 = vmatprep.mubr.bf16.mxu0 %v1309
  %2621 = vmatmul.mubr.bf16.gmra.mxu0 %v1308
  %v2622 = vpop.f32.mrf.mxu0
  %v2623 = vadd.f32 %v314, %v2622
  %v2624 = vpop.f32.mrf.mxu0
  %v2625 = vpop.f32.mrf.mxu0
  %v2626 = vadd.f32 %v314, %v2625
  %v2627 = vpop.f32.mrf.mxu0
  %2628 = vmatprep.mubr.bf16.mxu0 %v1311
  %2629 = vmatmul.mubr.bf16.gmra.mxu0 %v1310
  %v2630 = vpop.f32.mrf.mxu0
  %v2631 = vadd.f32 %v314, %v2630
  %v2632 = vpop.f32.mrf.mxu0
  %v2633 = vpop.f32.mrf.mxu0
  %v2634 = vadd.f32 %v314, %v2633
  %v2635 = vpop.f32.mrf.mxu0
  %2636 = vmatprep.mubr.bf16.mxu0 %v1313
  %2637 = vmatmul.mubr.bf16.gmra.mxu0 %v1312
  %v2638 = vpop.f32.mrf.mxu0
  %v2639 = vadd.f32 %v314, %v2638
  %v2640 = vpop.f32.mrf.mxu0
  %v2641 = vpop.f32.mrf.mxu0
  %v2642 = vadd.f32 %v314, %v2641
  %v2643 = vpop.f32.mrf.mxu0
  %2644 = vmatprep.mubr.bf16.mxu0 %v1315
  %2645 = vmatmul.mubr.bf16.gmra.mxu0 %v1314
  %v2646 = vpop.f32.mrf.mxu0
  %v2647 = vadd.f32 %v314, %v2646
  %v2648 = vpop.f32.mrf.mxu0
  %v2649 = vpop.f32.mrf.mxu0
  %v2650 = vadd.f32 %v314, %v2649
  %v2651 = vpop.f32.mrf.mxu0
  %2652 = vmatprep.mubr.bf16.mxu0 %v1317
  %2653 = vmatmul.mubr.bf16.gmra.mxu0 %v1316
  %v2654 = vpop.f32.mrf.mxu0
  %v2655 = vadd.f32 %v314, %v2654
  %v2656 = vpop.f32.mrf.mxu0
  %v2657 = vpop.f32.mrf.mxu0
  %v2658 = vadd.f32 %v314, %v2657
  %v2659 = vpop.f32.mrf.mxu0
  %2660 = vmatprep.mubr.bf16.mxu0 %v1319
  %2661 = vmatmul.mubr.bf16.gmra.mxu0 %v1318
  %v2662 = vpop.f32.mrf.mxu0
  %v2663 = vadd.f32 %v314, %v2662
  %v2664 = vpop.f32.mrf.mxu0
  %v2665 = vpop.f32.mrf.mxu0
  %v2666 = vadd.f32 %v314, %v2665
  %v2667 = vpop.f32.mrf.mxu0
  %2668 = vmatprep.mubr.bf16.mxu0 %v1321
  %2669 = vmatmul.mubr.bf16.gmra.mxu0 %v1320
  %v2670 = vpop.f32.mrf.mxu0
  %v2671 = vadd.f32 %v314, %v2670
  %v2672 = vpop.f32.mrf.mxu0
  %v2673 = vpop.f32.mrf.mxu0
  %v2674 = vadd.f32 %v314, %v2673
  %v2675 = vpop.f32.mrf.mxu0
  %2676 = vmatprep.mubr.bf16.mxu0 %v1323
  %2677 = vmatmul.mubr.bf16.gmra.mxu0 %v1322
  %v2678 = vpop.f32.mrf.mxu0
  %v2679 = vadd.f32 %v314, %v2678
  %v2680 = vpop.f32.mrf.mxu0
  %v2681 = vpop.f32.mrf.mxu0
  %v2682 = vadd.f32 %v314, %v2681
  %v2683 = vpop.f32.mrf.mxu0
  %2684 = vmatprep.mubr.bf16.mxu0 %v1325
  %2685 = vmatmul.mubr.bf16.gmra.mxu0 %v1324
  %v2686 = vpop.f32.mrf.mxu0
  %v2687 = vadd.f32 %v314, %v2686
  %v2688 = vpop.f32.mrf.mxu0
  %v2689 = vpop.f32.mrf.mxu0
  %v2690 = vadd.f32 %v314, %v2689
  %v2691 = vpop.f32.mrf.mxu0
  %2692 = vmatprep.mubr.bf16.mxu0 %v1327
  %2693 = vmatmul.mubr.bf16.gmra.mxu0 %v1326
  %v2694 = vpop.f32.mrf.mxu0
  %v2695 = vadd.f32 %v314, %v2694
  %v2696 = vpop.f32.mrf.mxu0
  %v2697 = vpop.f32.mrf.mxu0
  %v2698 = vadd.f32 %v314, %v2697
  %v2699 = vpop.f32.mrf.mxu0
  %2700 = vmatprep.mubr.bf16.mxu0 %v1329
  %2701 = vmatmul.mubr.bf16.gmra.mxu0 %v1328
  %v2702 = vpop.f32.mrf.mxu0
  %v2703 = vadd.f32 %v314, %v2702
  %v2704 = vpop.f32.mrf.mxu0
  %v2705 = vpop.f32.mrf.mxu0
  %v2706 = vadd.f32 %v314, %v2705
  %v2707 = vpop.f32.mrf.mxu0
  %2708 = vmatprep.mubr.bf16.mxu0 %v1331
  %2709 = vmatmul.mubr.bf16.gmra.mxu0 %v1330
  %v2710 = vpop.f32.mrf.mxu0
  %v2711 = vadd.f32 %v314, %v2710
  %v2712 = vpop.f32.mrf.mxu0
  %v2713 = vpop.f32.mrf.mxu0
  %v2714 = vadd.f32 %v314, %v2713
  %v2715 = vpop.f32.mrf.mxu0
  %2716 = vmatprep.mubr.bf16.mxu0 %v1333
  %2717 = vmatmul.mubr.bf16.gmra.mxu0 %v1332
  %v2718 = vpop.f32.mrf.mxu0
  %v2719 = vadd.f32 %v314, %v2718
  %v2720 = vpop.f32.mrf.mxu0
  %v2721 = vpop.f32.mrf.mxu0
  %v2722 = vadd.f32 %v314, %v2721
  %v2723 = vpop.f32.mrf.mxu0
  %2724 = vmatprep.mubr.bf16.mxu0 %v1335
  %2725 = vmatmul.mubr.bf16.gmra.mxu0 %v1334
  %v2726 = vpop.f32.mrf.mxu0
  %v2727 = vadd.f32 %v314, %v2726
  %v2728 = vpop.f32.mrf.mxu0
  %v2729 = vpop.f32.mrf.mxu0
  %v2730 = vadd.f32 %v314, %v2729
  %v2731 = vpop.f32.mrf.mxu0
  %2732 = vmatprep.mubr.bf16.mxu0 %v1337
  %2733 = vmatmul.mubr.bf16.gmra.mxu0 %v1336
  %v2734 = vpop.f32.mrf.mxu0
  %v2735 = vadd.f32 %v314, %v2734
  %v2736 = vpop.f32.mrf.mxu0
  %v2737 = vpop.f32.mrf.mxu0
  %v2738 = vadd.f32 %v314, %v2737
  %v2739 = vpop.f32.mrf.mxu0
  %2740 = vmatprep.mubr.bf16.mxu0 %v1339
  %2741 = vmatmul.mubr.bf16.gmra.mxu0 %v1338
  %v2742 = vpop.f32.mrf.mxu0
  %v2743 = vadd.f32 %v314, %v2742
  %v2744 = vpop.f32.mrf.mxu0
  %v2745 = vpop.f32.mrf.mxu0
  %v2746 = vadd.f32 %v314, %v2745
  %v2747 = vpop.f32.mrf.mxu0
  %2748 = vdwg.mxu0
  %v2749 = vmax.f32 %v1727, 0.0
  %v2750 = vmax.f32 %v1730, 0.0
  %v2751 = vmax.f32 %v1735, 0.0
  %v2752 = vmax.f32 %v1738, 0.0
  %v2753 = vmax.f32 %v1743, 0.0
  %v2754 = vmax.f32 %v1746, 0.0
  %v2755 = vmax.f32 %v1751, 0.0
  %v2756 = vmax.f32 %v1754, 0.0
  %v2757 = vmax.f32 %v1759, 0.0
  %v2758 = vmax.f32 %v1762, 0.0
  %v2759 = vmax.f32 %v1767, 0.0
  %v2760 = vmax.f32 %v1770, 0.0
  %v2761 = vmax.f32 %v1775, 0.0
  %v2762 = vmax.f32 %v1778, 0.0
  %v2763 = vmax.f32 %v1783, 0.0
  %v2764 = vmax.f32 %v1786, 0.0
  %v2765 = vmax.f32 %v1791, 0.0
  %v2766 = vmax.f32 %v1794, 0.0
  %v2767 = vmax.f32 %v1799, 0.0
  %v2768 = vmax.f32 %v1802, 0.0
  %v2769 = vmax.f32 %v1807, 0.0
  %v2770 = vmax.f32 %v1810, 0.0
  %v2771 = vmax.f32 %v1815, 0.0
  %v2772 = vmax.f32 %v1818, 0.0
  %v2773 = vmax.f32 %v1823, 0.0
  %v2774 = vmax.f32 %v1826, 0.0
  %v2775 = vmax.f32 %v1831, 0.0
  %v2776 = vmax.f32 %v1834, 0.0
  %v2777 = vmax.f32 %v1839, 0.0
  %v2778 = vmax.f32 %v1842, 0.0
  %v2779 = vmax.f32 %v1847, 0.0
  %v2780 = vmax.f32 %v1850, 0.0
  %v2781 = vmax.f32 %v1855, 0.0
  %v2782 = vmax.f32 %v1858, 0.0
  %v2783 = vmax.f32 %v1863, 0.0
  %v2784 = vmax.f32 %v1866, 0.0
  %v2785 = vmax.f32 %v1871, 0.0
  %v2786 = vmax.f32 %v1874, 0.0
  %v2787 = vmax.f32 %v1879, 0.0
  %v2788 = vmax.f32 %v1882, 0.0
  %v2789 = vmax.f32 %v1887, 0.0
  %v2790 = vmax.f32 %v1890, 0.0
  %v2791 = vmax.f32 %v1895, 0.0
  %v2792 = vmax.f32 %v1898, 0.0
  %v2793 = vmax.f32 %v1903, 0.0
  %v2794 = vmax.f32 %v1906, 0.0
  %v2795 = vmax.f32 %v1911, 0.0
  %v2796 = vmax.f32 %v1914, 0.0
  %v2797 = vmax.f32 %v1919, 0.0
  %v2798 = vmax.f32 %v1922, 0.0
  %v2799 = vmax.f32 %v1927, 0.0
  %v2800 = vmax.f32 %v1930, 0.0
  %v2801 = vmax.f32 %v1935, 0.0
  %v2802 = vmax.f32 %v1938, 0.0
  %v2803 = vmax.f32 %v1943, 0.0
  %v2804 = vmax.f32 %v1946, 0.0
  %v2805 = vmax.f32 %v1951, 0.0
  %v2806 = vmax.f32 %v1954, 0.0
  %v2807 = vmax.f32 %v1959, 0.0
  %v2808 = vmax.f32 %v1962, 0.0
  %v2809 = vmax.f32 %v1967, 0.0
  %v2810 = vmax.f32 %v1970, 0.0
  %v2811 = vmax.f32 %v1975, 0.0
  %v2812 = vmax.f32 %v1978, 0.0
  %v2813 = vmax.f32 %v1983, 0.0
  %v2814 = vmax.f32 %v1986, 0.0
  %v2815 = vmax.f32 %v1991, 0.0
  %v2816 = vmax.f32 %v1994, 0.0
  %v2817 = vmax.f32 %v1999, 0.0
  %v2818 = vmax.f32 %v2002, 0.0
  %v2819 = vmax.f32 %v2007, 0.0
  %v2820 = vmax.f32 %v2010, 0.0
  %v2821 = vmax.f32 %v2015, 0.0
  %v2822 = vmax.f32 %v2018, 0.0
  %v2823 = vmax.f32 %v2023, 0.0
  %v2824 = vmax.f32 %v2026, 0.0
  %v2825 = vmax.f32 %v2031, 0.0
  %v2826 = vmax.f32 %v2034, 0.0
  %v2827 = vmax.f32 %v2039, 0.0
  %v2828 = vmax.f32 %v2042, 0.0
  %v2829 = vmax.f32 %v2047, 0.0
  %v2830 = vmax.f32 %v2050, 0.0
  %v2831 = vmax.f32 %v2055, 0.0
  %v2832 = vmax.f32 %v2058, 0.0
  %v2833 = vmax.f32 %v2063, 0.0
  %v2834 = vmax.f32 %v2066, 0.0
  %v2835 = vmax.f32 %v2071, 0.0
  %v2836 = vmax.f32 %v2074, 0.0
  %v2837 = vmax.f32 %v2079, 0.0
  %v2838 = vmax.f32 %v2082, 0.0
  %v2839 = vmax.f32 %v2087, 0.0
  %v2840 = vmax.f32 %v2090, 0.0
  %v2841 = vmax.f32 %v2095, 0.0
  %v2842 = vmax.f32 %v2098, 0.0
  %v2843 = vmax.f32 %v2103, 0.0
  %v2844 = vmax.f32 %v2106, 0.0
  %v2845 = vmax.f32 %v2111, 0.0
  %v2846 = vmax.f32 %v2114, 0.0
  %v2847 = vmax.f32 %v2119, 0.0
  %v2848 = vmax.f32 %v2122, 0.0
  %v2849 = vmax.f32 %v2127, 0.0
  %v2850 = vmax.f32 %v2130, 0.0
  %v2851 = vmax.f32 %v2135, 0.0
  %v2852 = vmax.f32 %v2138, 0.0
  %v2853 = vmax.f32 %v2143, 0.0
  %v2854 = vmax.f32 %v2146, 0.0
  %v2855 = vmax.f32 %v2151, 0.0
  %v2856 = vmax.f32 %v2154, 0.0
  %v2857 = vmax.f32 %v2159, 0.0
  %v2858 = vmax.f32 %v2162, 0.0
  %v2859 = vmax.f32 %v2167, 0.0
  %v2860 = vmax.f32 %v2170, 0.0
  %v2861 = vmax.f32 %v2175, 0.0
  %v2862 = vmax.f32 %v2178, 0.0
  %v2863 = vmax.f32 %v2183, 0.0
  %v2864 = vmax.f32 %v2186, 0.0
  %v2865 = vmax.f32 %v2191, 0.0
  %v2866 = vmax.f32 %v2194, 0.0
  %v2867 = vmax.f32 %v2199, 0.0
  %v2868 = vmax.f32 %v2202, 0.0
  %v2869 = vmax.f32 %v2207, 0.0
  %v2870 = vmax.f32 %v2210, 0.0
  %v2871 = vmax.f32 %v2215, 0.0
  %v2872 = vmax.f32 %v2218, 0.0
  %v2873 = vmax.f32 %v2223, 0.0
  %v2874 = vmax.f32 %v2226, 0.0
  %v2875 = vmax.f32 %v2231, 0.0
  %v2876 = vmax.f32 %v2234, 0.0
  %v2877 = vmax.f32 %v2239, 0.0
  %v2878 = vmax.f32 %v2242, 0.0
  %v2879 = vmax.f32 %v2247, 0.0
  %v2880 = vmax.f32 %v2250, 0.0
  %v2881 = vmax.f32 %v2255, 0.0
  %v2882 = vmax.f32 %v2258, 0.0
  %v2883 = vmax.f32 %v2263, 0.0
  %v2884 = vmax.f32 %v2266, 0.0
  %v2885 = vmax.f32 %v2271, 0.0
  %v2886 = vmax.f32 %v2274, 0.0
  %v2887 = vmax.f32 %v2279, 0.0
  %v2888 = vmax.f32 %v2282, 0.0
  %v2889 = vmax.f32 %v2287, 0.0
  %v2890 = vmax.f32 %v2290, 0.0
  %v2891 = vmax.f32 %v2295, 0.0
  %v2892 = vmax.f32 %v2298, 0.0
  %v2893 = vmax.f32 %v2303, 0.0
  %v2894 = vmax.f32 %v2306, 0.0
  %v2895 = vmax.f32 %v2311, 0.0
  %v2896 = vmax.f32 %v2314, 0.0
  %v2897 = vmax.f32 %v2319, 0.0
  %v2898 = vmax.f32 %v2322, 0.0
  %v2899 = vmax.f32 %v2327, 0.0
  %v2900 = vmax.f32 %v2330, 0.0
  %v2901 = vmax.f32 %v2335, 0.0
  %v2902 = vmax.f32 %v2338, 0.0
  %v2903 = vmax.f32 %v2343, 0.0
  %v2904 = vmax.f32 %v2346, 0.0
  %v2905 = vmax.f32 %v2351, 0.0
  %v2906 = vmax.f32 %v2354, 0.0
  %v2907 = vmax.f32 %v2359, 0.0
  %v2908 = vmax.f32 %v2362, 0.0
  %v2909 = vmax.f32 %v2367, 0.0
  %v2910 = vmax.f32 %v2370, 0.0
  %v2911 = vmax.f32 %v2375, 0.0
  %v2912 = vmax.f32 %v2378, 0.0
  %v2913 = vmax.f32 %v2383, 0.0
  %v2914 = vmax.f32 %v2386, 0.0
  %v2915 = vmax.f32 %v2391, 0.0
  %v2916 = vmax.f32 %v2394, 0.0
  %v2917 = vmax.f32 %v2399, 0.0
  %v2918 = vmax.f32 %v2402, 0.0
  %v2919 = vmax.f32 %v2407, 0.0
  %v2920 = vmax.f32 %v2410, 0.0
  %v2921 = vmax.f32 %v2415, 0.0
  %v2922 = vmax.f32 %v2418, 0.0
  %v2923 = vmax.f32 %v2423, 0.0
  %v2924 = vmax.f32 %v2426, 0.0
  %v2925 = vmax.f32 %v2431, 0.0
  %v2926 = vmax.f32 %v2434, 0.0
  %v2927 = vmax.f32 %v2439, 0.0
  %v2928 = vmax.f32 %v2442, 0.0
  %v2929 = vmax.f32 %v2447, 0.0
  %v2930 = vmax.f32 %v2450, 0.0
  %v2931 = vmax.f32 %v2455, 0.0
  %v2932 = vmax.f32 %v2458, 0.0
  %v2933 = vmax.f32 %v2463, 0.0
  %v2934 = vmax.f32 %v2466, 0.0
  %v2935 = vmax.f32 %v2471, 0.0
  %v2936 = vmax.f32 %v2474, 0.0
  %v2937 = vmax.f32 %v2479, 0.0
  %v2938 = vmax.f32 %v2482, 0.0
  %v2939 = vmax.f32 %v2487, 0.0
  %v2940 = vmax.f32 %v2490, 0.0
  %v2941 = vmax.f32 %v2495, 0.0
  %v2942 = vmax.f32 %v2498, 0.0
  %v2943 = vmax.f32 %v2503, 0.0
  %v2944 = vmax.f32 %v2506, 0.0
  %v2945 = vmax.f32 %v2511, 0.0
  %v2946 = vmax.f32 %v2514, 0.0
  %v2947 = vmax.f32 %v2519, 0.0
  %v2948 = vmax.f32 %v2522, 0.0
  %v2949 = vmax.f32 %v2527, 0.0
  %v2950 = vmax.f32 %v2530, 0.0
  %v2951 = vmax.f32 %v2535, 0.0
  %v2952 = vmax.f32 %v2538, 0.0
  %v2953 = vmax.f32 %v2543, 0.0
  %v2954 = vmax.f32 %v2546, 0.0
  %v2955 = vmax.f32 %v2551, 0.0
  %v2956 = vmax.f32 %v2554, 0.0
  %v2957 = vmax.f32 %v2559, 0.0
  %v2958 = vmax.f32 %v2562, 0.0
  %v2959 = vmax.f32 %v2567, 0.0
  %v2960 = vmax.f32 %v2570, 0.0
  %v2961 = vmax.f32 %v2575, 0.0
  %v2962 = vmax.f32 %v2578, 0.0
  %v2963 = vmax.f32 %v2583, 0.0
  %v2964 = vmax.f32 %v2586, 0.0
  %v2965 = vmax.f32 %v2591, 0.0
  %v2966 = vmax.f32 %v2594, 0.0
  %v2967 = vmax.f32 %v2599, 0.0
  %v2968 = vmax.f32 %v2602, 0.0
  %v2969 = vmax.f32 %v2607, 0.0
  %v2970 = vmax.f32 %v2610, 0.0
  %v2971 = vmax.f32 %v2615, 0.0
  %v2972 = vmax.f32 %v2618, 0.0
  %v2973 = vmax.f32 %v2623, 0.0
  %v2974 = vmax.f32 %v2626, 0.0
  %v2975 = vmax.f32 %v2631, 0.0
  %v2976 = vmax.f32 %v2634, 0.0
  %v2977 = vmax.f32 %v2639, 0.0
  %v2978 = vmax.f32 %v2642, 0.0
  %v2979 = vmax.f32 %v2647, 0.0
  %v2980 = vmax.f32 %v2650, 0.0
  %v2981 = vmax.f32 %v2655, 0.0
  %v2982 = vmax.f32 %v2658, 0.0
  %v2983 = vmax.f32 %v2663, 0.0
  %v2984 = vmax.f32 %v2666, 0.0
  %v2985 = vmax.f32 %v2671, 0.0
  %v2986 = vmax.f32 %v2674, 0.0
  %v2987 = vmax.f32 %v2679, 0.0
  %v2988 = vmax.f32 %v2682, 0.0
  %v2989 = vmax.f32 %v2687, 0.0
  %v2990 = vmax.f32 %v2690, 0.0
  %v2991 = vmax.f32 %v2695, 0.0
  %v2992 = vmax.f32 %v2698, 0.0
  %v2993 = vmax.f32 %v2703, 0.0
  %v2994 = vmax.f32 %v2706, 0.0
  %v2995 = vmax.f32 %v2711, 0.0
  %v2996 = vmax.f32 %v2714, 0.0
  %v2997 = vmax.f32 %v2719, 0.0
  %v2998 = vmax.f32 %v2722, 0.0
  %v2999 = vmax.f32 %v2727, 0.0
  %v3000 = vmax.f32 %v2730, 0.0
  %v3001 = vmax.f32 %v2735, 0.0
  %v3002 = vmax.f32 %v2738, 0.0
  %v3003 = vmax.f32 %v2743, 0.0
  %v3004 = vmax.f32 %v2746, 0.0
  %v3005 = vld [vmem:[#allocation2] sm:$0xff]
  %vm3006 = vcmask 523264
  %v3007 = vsel %vm3006, %v2749, 0.0
  %v3008 = vsel %vm3006, %v2750, 0.0
  %v3009 = vadd.f32 %v3007, %v3008
  %v3010 = vsel %vm3006, %v2751, 0.0
  %v3011 = vadd.f32 %v3009, %v3010
  %v3012 = vsel %vm3006, %v2752, 0.0
  %v3013 = vadd.f32 %v3011, %v3012
  %v3014 = vsel %vm3006, %v2753, 0.0
  %v3015 = vadd.f32 %v3013, %v3014
  %v3016 = vsel %vm3006, %v2754, 0.0
  %v3017 = vadd.f32 %v3015, %v3016
  %v3018 = vsel %vm3006, %v2755, 0.0
  %v3019 = vadd.f32 %v3017, %v3018
  %v3020 = vsel %vm3006, %v2756, 0.0
  %v3021 = vadd.f32 %v3019, %v3020
  %v3022 = vsel %vm3006, %v2757, 0.0
  %v3023 = vadd.f32 %v3021, %v3022
  %v3024 = vsel %vm3006, %v2758, 0.0
  %v3025 = vadd.f32 %v3023, %v3024
  %v3026 = vsel %vm3006, %v2759, 0.0
  %v3027 = vadd.f32 %v3025, %v3026
  %v3028 = vsel %vm3006, %v2760, 0.0
  %v3029 = vadd.f32 %v3027, %v3028
  %v3030 = vsel %vm3006, %v2761, 0.0
  %v3031 = vadd.f32 %v3029, %v3030
  %v3032 = vsel %vm3006, %v2762, 0.0
  %v3033 = vadd.f32 %v3031, %v3032
  %v3034 = vsel %vm3006, %v2763, 0.0
  %v3035 = vadd.f32 %v3033, %v3034
  %v3036 = vsel %vm3006, %v2764, 0.0
  %v3037 = vadd.f32 %v3035, %v3036
  %v3038 = vsel %vm3006, %v2765, 0.0
  %v3039 = vadd.f32 %v3037, %v3038
  %v3040 = vsel %vm3006, %v2766, 0.0
  %v3041 = vadd.f32 %v3039, %v3040
  %v3042 = vsel %vm3006, %v2767, 0.0
  %v3043 = vadd.f32 %v3041, %v3042
  %v3044 = vsel %vm3006, %v2768, 0.0
  %v3045 = vadd.f32 %v3043, %v3044
  %v3046 = vsel %vm3006, %v2769, 0.0
  %v3047 = vadd.f32 %v3045, %v3046
  %v3048 = vsel %vm3006, %v2770, 0.0
  %v3049 = vadd.f32 %v3047, %v3048
  %v3050 = vsel %vm3006, %v2771, 0.0
  %v3051 = vadd.f32 %v3049, %v3050
  %v3052 = vsel %vm3006, %v2772, 0.0
  %v3053 = vadd.f32 %v3051, %v3052
  %v3054 = vsel %vm3006, %v2773, 0.0
  %v3055 = vadd.f32 %v3053, %v3054
  %v3056 = vsel %vm3006, %v2774, 0.0
  %v3057 = vadd.f32 %v3055, %v3056
  %v3058 = vsel %vm3006, %v2775, 0.0
  %v3059 = vadd.f32 %v3057, %v3058
  %v3060 = vsel %vm3006, %v2776, 0.0
  %v3061 = vadd.f32 %v3059, %v3060
  %v3062 = vsel %vm3006, %v2777, 0.0
  %v3063 = vadd.f32 %v3061, %v3062
  %v3064 = vsel %vm3006, %v2778, 0.0
  %v3065 = vadd.f32 %v3063, %v3064
  %v3066 = vsel %vm3006, %v2779, 0.0
  %v3067 = vadd.f32 %v3065, %v3066
  %v3068 = vsel %vm3006, %v2780, 0.0
  %v3069 = vadd.f32 %v3067, %v3068
  %v3070 = vrot.slane %v3069, 4
  %v3071 = vadd.f32 %v3069, %v3070
  %v3072 = vrot.slane %v3071, 2
  %v3073 = vadd.f32 %v3071, %v3072
  %v3074 = vrot.slane %v3073, 1
  %v3075 = vadd.f32 %v3073, %v3074
  %v3076 = vsel %vm3006, %v2781, 0.0
  %v3077 = vsel %vm3006, %v2782, 0.0
  %v3078 = vadd.f32 %v3076, %v3077
  %v3079 = vsel %vm3006, %v2783, 0.0
  %v3080 = vadd.f32 %v3078, %v3079
  %v3081 = vsel %vm3006, %v2784, 0.0
  %v3082 = vadd.f32 %v3080, %v3081
  %v3083 = vsel %vm3006, %v2785, 0.0
  %v3084 = vadd.f32 %v3082, %v3083
  %v3085 = vsel %vm3006, %v2786, 0.0
  %v3086 = vadd.f32 %v3084, %v3085
  %v3087 = vsel %vm3006, %v2787, 0.0
  %v3088 = vadd.f32 %v3086, %v3087
  %v3089 = vsel %vm3006, %v2788, 0.0
  %v3090 = vadd.f32 %v3088, %v3089
  %v3091 = vsel %vm3006, %v2789, 0.0
  %v3092 = vadd.f32 %v3090, %v3091
  %v3093 = vsel %vm3006, %v2790, 0.0
  %v3094 = vadd.f32 %v3092, %v3093
  %v3095 = vsel %vm3006, %v2791, 0.0
  %v3096 = vadd.f32 %v3094, %v3095
  %v3097 = vsel %vm3006, %v2792, 0.0
  %v3098 = vadd.f32 %v3096, %v3097
  %v3099 = vsel %vm3006, %v2793, 0.0
  %v3100 = vadd.f32 %v3098, %v3099
  %v3101 = vsel %vm3006, %v2794, 0.0
  %v3102 = vadd.f32 %v3100, %v3101
  %v3103 = vsel %vm3006, %v2795, 0.0
  %v3104 = vadd.f32 %v3102, %v3103
  %v3105 = vsel %vm3006, %v2796, 0.0
  %v3106 = vadd.f32 %v3104, %v3105
  %v3107 = vsel %vm3006, %v2797, 0.0
  %v3108 = vadd.f32 %v3106, %v3107
  %v3109 = vsel %vm3006, %v2798, 0.0
  %v3110 = vadd.f32 %v3108, %v3109
  %v3111 = vsel %vm3006, %v2799, 0.0
  %v3112 = vadd.f32 %v3110, %v3111
  %v3113 = vsel %vm3006, %v2800, 0.0
  %v3114 = vadd.f32 %v3112, %v3113
  %v3115 = vsel %vm3006, %v2801, 0.0
  %v3116 = vadd.f32 %v3114, %v3115
  %v3117 = vsel %vm3006, %v2802, 0.0
  %v3118 = vadd.f32 %v3116, %v3117
  %v3119 = vsel %vm3006, %v2803, 0.0
  %v3120 = vadd.f32 %v3118, %v3119
  %v3121 = vsel %vm3006, %v2804, 0.0
  %v3122 = vadd.f32 %v3120, %v3121
  %v3123 = vsel %vm3006, %v2805, 0.0
  %v3124 = vadd.f32 %v3122, %v3123
  %v3125 = vsel %vm3006, %v2806, 0.0
  %v3126 = vadd.f32 %v3124, %v3125
  %v3127 = vsel %vm3006, %v2807, 0.0
  %v3128 = vadd.f32 %v3126, %v3127
  %v3129 = vsel %vm3006, %v2808, 0.0
  %v3130 = vadd.f32 %v3128, %v3129
  %v3131 = vsel %vm3006, %v2809, 0.0
  %v3132 = vadd.f32 %v3130, %v3131
  %v3133 = vsel %vm3006, %v2810, 0.0
  %v3134 = vadd.f32 %v3132, %v3133
  %v3135 = vsel %vm3006, %v2811, 0.0
  %v3136 = vadd.f32 %v3134, %v3135
  %v3137 = vsel %vm3006, %v2812, 0.0
  %v3138 = vadd.f32 %v3136, %v3137
  %v3139 = vrot.slane %v3138, 4
  %v3140 = vadd.f32 %v3138, %v3139
  %v3141 = vrot.slane %v3140, 2
  %v3142 = vadd.f32 %v3140, %v3141
  %v3143 = vrot.slane %v3142, 1
  %v3144 = vadd.f32 %v3142, %v3143
  %v3145 = vsel %vm3006, %v2813, 0.0
  %v3146 = vsel %vm3006, %v2814, 0.0
  %v3147 = vadd.f32 %v3145, %v3146
  %v3148 = vsel %vm3006, %v2815, 0.0
  %v3149 = vadd.f32 %v3147, %v3148
  %v3150 = vsel %vm3006, %v2816, 0.0
  %v3151 = vadd.f32 %v3149, %v3150
  %v3152 = vsel %vm3006, %v2817, 0.0
  %v3153 = vadd.f32 %v3151, %v3152
  %v3154 = vsel %vm3006, %v2818, 0.0
  %v3155 = vadd.f32 %v3153, %v3154
  %v3156 = vsel %vm3006, %v2819, 0.0
  %v3157 = vadd.f32 %v3155, %v3156
  %v3158 = vsel %vm3006, %v2820, 0.0
  %v3159 = vadd.f32 %v3157, %v3158
  %v3160 = vsel %vm3006, %v2821, 0.0
  %v3161 = vadd.f32 %v3159, %v3160
  %v3162 = vsel %vm3006, %v2822, 0.0
  %v3163 = vadd.f32 %v3161, %v3162
  %v3164 = vsel %vm3006, %v2823, 0.0
  %v3165 = vadd.f32 %v3163, %v3164
  %v3166 = vsel %vm3006, %v2824, 0.0
  %v3167 = vadd.f32 %v3165, %v3166
  %v3168 = vsel %vm3006, %v2825, 0.0
  %v3169 = vadd.f32 %v3167, %v3168
  %v3170 = vsel %vm3006, %v2826, 0.0
  %v3171 = vadd.f32 %v3169, %v3170
  %v3172 = vsel %vm3006, %v2827, 0.0
  %v3173 = vadd.f32 %v3171, %v3172
  %v3174 = vsel %vm3006, %v2828, 0.0
  %v3175 = vadd.f32 %v3173, %v3174
  %v3176 = vsel %vm3006, %v2829, 0.0
  %v3177 = vadd.f32 %v3175, %v3176
  %v3178 = vsel %vm3006, %v2830, 0.0
  %v3179 = vadd.f32 %v3177, %v3178
  %v3180 = vsel %vm3006, %v2831, 0.0
  %v3181 = vadd.f32 %v3179, %v3180
  %v3182 = vsel %vm3006, %v2832, 0.0
  %v3183 = vadd.f32 %v3181, %v3182
  %v3184 = vsel %vm3006, %v2833, 0.0
  %v3185 = vadd.f32 %v3183, %v3184
  %v3186 = vsel %vm3006, %v2834, 0.0
  %v3187 = vadd.f32 %v3185, %v3186
  %v3188 = vsel %vm3006, %v2835, 0.0
  %v3189 = vadd.f32 %v3187, %v3188
  %v3190 = vsel %vm3006, %v2836, 0.0
  %v3191 = vadd.f32 %v3189, %v3190
  %v3192 = vsel %vm3006, %v2837, 0.0
  %v3193 = vadd.f32 %v3191, %v3192
  %v3194 = vsel %vm3006, %v2838, 0.0
  %v3195 = vadd.f32 %v3193, %v3194
  %v3196 = vsel %vm3006, %v2839, 0.0
  %v3197 = vadd.f32 %v3195, %v3196
  %v3198 = vsel %vm3006, %v2840, 0.0
  %v3199 = vadd.f32 %v3197, %v3198
  %v3200 = vsel %vm3006, %v2841, 0.0
  %v3201 = vadd.f32 %v3199, %v3200
  %v3202 = vsel %vm3006, %v2842, 0.0
  %v3203 = vadd.f32 %v3201, %v3202
  %v3204 = vsel %vm3006, %v2843, 0.0
  %v3205 = vadd.f32 %v3203, %v3204
  %v3206 = vsel %vm3006, %v2844, 0.0
  %v3207 = vadd.f32 %v3205, %v3206
  %v3208 = vrot.slane %v3207, 4
  %v3209 = vadd.f32 %v3207, %v3208
  %v3210 = vrot.slane %v3209, 2
  %v3211 = vadd.f32 %v3209, %v3210
  %v3212 = vrot.slane %v3211, 1
  %v3213 = vadd.f32 %v3211, %v3212
  %v3214 = vsel %vm3006, %v2845, 0.0
  %v3215 = vsel %vm3006, %v2846, 0.0
  %v3216 = vadd.f32 %v3214, %v3215
  %v3217 = vsel %vm3006, %v2847, 0.0
  %v3218 = vadd.f32 %v3216, %v3217
  %v3219 = vsel %vm3006, %v2848, 0.0
  %v3220 = vadd.f32 %v3218, %v3219
  %v3221 = vsel %vm3006, %v2849, 0.0
  %v3222 = vadd.f32 %v3220, %v3221
  %v3223 = vsel %vm3006, %v2850, 0.0
  %v3224 = vadd.f32 %v3222, %v3223
  %v3225 = vsel %vm3006, %v2851, 0.0
  %v3226 = vadd.f32 %v3224, %v3225
  %v3227 = vsel %vm3006, %v2852, 0.0
  %v3228 = vadd.f32 %v3226, %v3227
  %v3229 = vsel %vm3006, %v2853, 0.0
  %v3230 = vadd.f32 %v3228, %v3229
  %v3231 = vsel %vm3006, %v2854, 0.0
  %v3232 = vadd.f32 %v3230, %v3231
  %v3233 = vsel %vm3006, %v2855, 0.0
  %v3234 = vadd.f32 %v3232, %v3233
  %v3235 = vsel %vm3006, %v2856, 0.0
  %v3236 = vadd.f32 %v3234, %v3235
  %v3237 = vsel %vm3006, %v2857, 0.0
  %v3238 = vadd.f32 %v3236, %v3237
  %v3239 = vsel %vm3006, %v2858, 0.0
  %v3240 = vadd.f32 %v3238, %v3239
  %v3241 = vsel %vm3006, %v2859, 0.0
  %v3242 = vadd.f32 %v3240, %v3241
  %v3243 = vsel %vm3006, %v2860, 0.0
  %v3244 = vadd.f32 %v3242, %v3243
  %v3245 = vsel %vm3006, %v2861, 0.0
  %v3246 = vadd.f32 %v3244, %v3245
  %v3247 = vsel %vm3006, %v2862, 0.0
  %v3248 = vadd.f32 %v3246, %v3247
  %v3249 = vsel %vm3006, %v2863, 0.0
  %v3250 = vadd.f32 %v3248, %v3249
  %v3251 = vsel %vm3006, %v2864, 0.0
  %v3252 = vadd.f32 %v3250, %v3251
  %v3253 = vsel %vm3006, %v2865, 0.0
  %v3254 = vadd.f32 %v3252, %v3253
  %v3255 = vsel %vm3006, %v2866, 0.0
  %v3256 = vadd.f32 %v3254, %v3255
  %v3257 = vsel %vm3006, %v2867, 0.0
  %v3258 = vadd.f32 %v3256, %v3257
  %v3259 = vsel %vm3006, %v2868, 0.0
  %v3260 = vadd.f32 %v3258, %v3259
  %v3261 = vsel %vm3006, %v2869, 0.0
  %v3262 = vadd.f32 %v3260, %v3261
  %v3263 = vsel %vm3006, %v2870, 0.0
  %v3264 = vadd.f32 %v3262, %v3263
  %v3265 = vsel %vm3006, %v2871, 0.0
  %v3266 = vadd.f32 %v3264, %v3265
  %v3267 = vsel %vm3006, %v2872, 0.0
  %v3268 = vadd.f32 %v3266, %v3267
  %v3269 = vsel %vm3006, %v2873, 0.0
  %v3270 = vadd.f32 %v3268, %v3269
  %v3271 = vsel %vm3006, %v2874, 0.0
  %v3272 = vadd.f32 %v3270, %v3271
  %v3273 = vsel %vm3006, %v2875, 0.0
  %v3274 = vadd.f32 %v3272, %v3273
  %v3275 = vsel %vm3006, %v2876, 0.0
  %v3276 = vadd.f32 %v3274, %v3275
  %v3277 = vrot.slane %v3276, 4
  %v3278 = vadd.f32 %v3276, %v3277
  %v3279 = vrot.slane %v3278, 2
  %v3280 = vadd.f32 %v3278, %v3279
  %v3281 = vrot.slane %v3280, 1
  %v3282 = vadd.f32 %v3280, %v3281
  %v3283 = vsel %vm3006, %v2877, 0.0
  %v3284 = vsel %vm3006, %v2878, 0.0
  %v3285 = vadd.f32 %v3283, %v3284
  %v3286 = vsel %vm3006, %v2879, 0.0
  %v3287 = vadd.f32 %v3285, %v3286
  %v3288 = vsel %vm3006, %v2880, 0.0
  %v3289 = vadd.f32 %v3287, %v3288
  %v3290 = vsel %vm3006, %v2881, 0.0
  %v3291 = vadd.f32 %v3289, %v3290
  %v3292 = vsel %vm3006, %v2882, 0.0
  %v3293 = vadd.f32 %v3291, %v3292
  %v3294 = vsel %vm3006, %v2883, 0.0
  %v3295 = vadd.f32 %v3293, %v3294
  %v3296 = vsel %vm3006, %v2884, 0.0
  %v3297 = vadd.f32 %v3295, %v3296
  %v3298 = vsel %vm3006, %v2885, 0.0
  %v3299 = vadd.f32 %v3297, %v3298
  %v3300 = vsel %vm3006, %v2886, 0.0
  %v3301 = vadd.f32 %v3299, %v3300
  %v3302 = vsel %vm3006, %v2887, 0.0
  %v3303 = vadd.f32 %v3301, %v3302
  %v3304 = vsel %vm3006, %v2888, 0.0
  %v3305 = vadd.f32 %v3303, %v3304
  %v3306 = vsel %vm3006, %v2889, 0.0
  %v3307 = vadd.f32 %v3305, %v3306
  %v3308 = vsel %vm3006, %v2890, 0.0
  %v3309 = vadd.f32 %v3307, %v3308
  %v3310 = vsel %vm3006, %v2891, 0.0
  %v3311 = vadd.f32 %v3309, %v3310
  %v3312 = vsel %vm3006, %v2892, 0.0
  %v3313 = vadd.f32 %v3311, %v3312
  %v3314 = vsel %vm3006, %v2893, 0.0
  %v3315 = vadd.f32 %v3313, %v3314
  %v3316 = vsel %vm3006, %v2894, 0.0
  %v3317 = vadd.f32 %v3315, %v3316
  %v3318 = vsel %vm3006, %v2895, 0.0
  %v3319 = vadd.f32 %v3317, %v3318
  %v3320 = vsel %vm3006, %v2896, 0.0
  %v3321 = vadd.f32 %v3319, %v3320
  %v3322 = vsel %vm3006, %v2897, 0.0
  %v3323 = vadd.f32 %v3321, %v3322
  %v3324 = vsel %vm3006, %v2898, 0.0
  %v3325 = vadd.f32 %v3323, %v3324
  %v3326 = vsel %vm3006, %v2899, 0.0
  %v3327 = vadd.f32 %v3325, %v3326
  %v3328 = vsel %vm3006, %v2900, 0.0
  %v3329 = vadd.f32 %v3327, %v3328
  %v3330 = vsel %vm3006, %v2901, 0.0
  %v3331 = vadd.f32 %v3329, %v3330
  %v3332 = vsel %vm3006, %v2902, 0.0
  %v3333 = vadd.f32 %v3331, %v3332
  %v3334 = vsel %vm3006, %v2903, 0.0
  %v3335 = vadd.f32 %v3333, %v3334
  %v3336 = vsel %vm3006, %v2904, 0.0
  %v3337 = vadd.f32 %v3335, %v3336
  %v3338 = vsel %vm3006, %v2905, 0.0
  %v3339 = vadd.f32 %v3337, %v3338
  %v3340 = vsel %vm3006, %v2906, 0.0
  %v3341 = vadd.f32 %v3339, %v3340
  %v3342 = vsel %vm3006, %v2907, 0.0
  %v3343 = vadd.f32 %v3341, %v3342
  %v3344 = vsel %vm3006, %v2908, 0.0
  %v3345 = vadd.f32 %v3343, %v3344
  %v3346 = vrot.slane %v3345, 4
  %v3347 = vadd.f32 %v3345, %v3346
  %v3348 = vrot.slane %v3347, 2
  %v3349 = vadd.f32 %v3347, %v3348
  %v3350 = vrot.slane %v3349, 1
  %v3351 = vadd.f32 %v3349, %v3350
  %v3352 = vsel %vm3006, %v2909, 0.0
  %v3353 = vsel %vm3006, %v2910, 0.0
  %v3354 = vadd.f32 %v3352, %v3353
  %v3355 = vsel %vm3006, %v2911, 0.0
  %v3356 = vadd.f32 %v3354, %v3355
  %v3357 = vsel %vm3006, %v2912, 0.0
  %v3358 = vadd.f32 %v3356, %v3357
  %v3359 = vsel %vm3006, %v2913, 0.0
  %v3360 = vadd.f32 %v3358, %v3359
  %v3361 = vsel %vm3006, %v2914, 0.0
  %v3362 = vadd.f32 %v3360, %v3361
  %v3363 = vsel %vm3006, %v2915, 0.0
  %v3364 = vadd.f32 %v3362, %v3363
  %v3365 = vsel %vm3006, %v2916, 0.0
  %v3366 = vadd.f32 %v3364, %v3365
  %v3367 = vsel %vm3006, %v2917, 0.0
  %v3368 = vadd.f32 %v3366, %v3367
  %v3369 = vsel %vm3006, %v2918, 0.0
  %v3370 = vadd.f32 %v3368, %v3369
  %v3371 = vsel %vm3006, %v2919, 0.0
  %v3372 = vadd.f32 %v3370, %v3371
  %v3373 = vsel %vm3006, %v2920, 0.0
  %v3374 = vadd.f32 %v3372, %v3373
  %v3375 = vsel %vm3006, %v2921, 0.0
  %v3376 = vadd.f32 %v3374, %v3375
  %v3377 = vsel %vm3006, %v2922, 0.0
  %v3378 = vadd.f32 %v3376, %v3377
  %v3379 = vsel %vm3006, %v2923, 0.0
  %v3380 = vadd.f32 %v3378, %v3379
  %v3381 = vsel %vm3006, %v2924, 0.0
  %v3382 = vadd.f32 %v3380, %v3381
  %v3383 = vsel %vm3006, %v2925, 0.0
  %v3384 = vadd.f32 %v3382, %v3383
  %v3385 = vsel %vm3006, %v2926, 0.0
  %v3386 = vadd.f32 %v3384, %v3385
  %v3387 = vsel %vm3006, %v2927, 0.0
  %v3388 = vadd.f32 %v3386, %v3387
  %v3389 = vsel %vm3006, %v2928, 0.0
  %v3390 = vadd.f32 %v3388, %v3389
  %v3391 = vsel %vm3006, %v2929, 0.0
  %v3392 = vadd.f32 %v3390, %v3391
  %v3393 = vsel %vm3006, %v2930, 0.0
  %v3394 = vadd.f32 %v3392, %v3393
  %v3395 = vsel %vm3006, %v2931, 0.0
  %v3396 = vadd.f32 %v3394, %v3395
  %v3397 = vsel %vm3006, %v2932, 0.0
  %v3398 = vadd.f32 %v3396, %v3397
  %v3399 = vsel %vm3006, %v2933, 0.0
  %v3400 = vadd.f32 %v3398, %v3399
  %v3401 = vsel %vm3006, %v2934, 0.0
  %v3402 = vadd.f32 %v3400, %v3401
  %v3403 = vsel %vm3006, %v2935, 0.0
  %v3404 = vadd.f32 %v3402, %v3403
  %v3405 = vsel %vm3006, %v2936, 0.0
  %v3406 = vadd.f32 %v3404, %v3405
  %v3407 = vsel %vm3006, %v2937, 0.0
  %v3408 = vadd.f32 %v3406, %v3407
  %v3409 = vsel %vm3006, %v2938, 0.0
  %v3410 = vadd.f32 %v3408, %v3409
  %v3411 = vsel %vm3006, %v2939, 0.0
  %v3412 = vadd.f32 %v3410, %v3411
  %v3413 = vsel %vm3006, %v2940, 0.0
  %v3414 = vadd.f32 %v3412, %v3413
  %v3415 = vrot.slane %v3414, 4
  %v3416 = vadd.f32 %v3414, %v3415
  %v3417 = vrot.slane %v3416, 2
  %v3418 = vadd.f32 %v3416, %v3417
  %v3419 = vrot.slane %v3418, 1
  %v3420 = vadd.f32 %v3418, %v3419
  %v3421 = vsel %vm3006, %v2941, 0.0
  %v3422 = vsel %vm3006, %v2942, 0.0
  %v3423 = vadd.f32 %v3421, %v3422
  %v3424 = vsel %vm3006, %v2943, 0.0
  %v3425 = vadd.f32 %v3423, %v3424
  %v3426 = vsel %vm3006, %v2944, 0.0
  %v3427 = vadd.f32 %v3425, %v3426
  %v3428 = vsel %vm3006, %v2945, 0.0
  %v3429 = vadd.f32 %v3427, %v3428
  %v3430 = vsel %vm3006, %v2946, 0.0
  %v3431 = vadd.f32 %v3429, %v3430
  %v3432 = vsel %vm3006, %v2947, 0.0
  %v3433 = vadd.f32 %v3431, %v3432
  %v3434 = vsel %vm3006, %v2948, 0.0
  %v3435 = vadd.f32 %v3433, %v3434
  %v3436 = vsel %vm3006, %v2949, 0.0
  %v3437 = vadd.f32 %v3435, %v3436
  %v3438 = vsel %vm3006, %v2950, 0.0
  %v3439 = vadd.f32 %v3437, %v3438
  %v3440 = vsel %vm3006, %v2951, 0.0
  %v3441 = vadd.f32 %v3439, %v3440
  %v3442 = vsel %vm3006, %v2952, 0.0
  %v3443 = vadd.f32 %v3441, %v3442
  %v3444 = vsel %vm3006, %v2953, 0.0
  %v3445 = vadd.f32 %v3443, %v3444
  %v3446 = vsel %vm3006, %v2954, 0.0
  %v3447 = vadd.f32 %v3445, %v3446
  %v3448 = vsel %vm3006, %v2955, 0.0
  %v3449 = vadd.f32 %v3447, %v3448
  %v3450 = vsel %vm3006, %v2956, 0.0
  %v3451 = vadd.f32 %v3449, %v3450
  %v3452 = vsel %vm3006, %v2957, 0.0
  %v3453 = vadd.f32 %v3451, %v3452
  %v3454 = vsel %vm3006, %v2958, 0.0
  %v3455 = vadd.f32 %v3453, %v3454
  %v3456 = vsel %vm3006, %v2959, 0.0
  %v3457 = vadd.f32 %v3455, %v3456
  %v3458 = vsel %vm3006, %v2960, 0.0
  %v3459 = vadd.f32 %v3457, %v3458
  %v3460 = vsel %vm3006, %v2961, 0.0
  %v3461 = vadd.f32 %v3459, %v3460
  %v3462 = vsel %vm3006, %v2962, 0.0
  %v3463 = vadd.f32 %v3461, %v3462
  %v3464 = vsel %vm3006, %v2963, 0.0
  %v3465 = vadd.f32 %v3463, %v3464
  %v3466 = vsel %vm3006, %v2964, 0.0
  %v3467 = vadd.f32 %v3465, %v3466
  %v3468 = vsel %vm3006, %v2965, 0.0
  %v3469 = vadd.f32 %v3467, %v3468
  %v3470 = vsel %vm3006, %v2966, 0.0
  %v3471 = vadd.f32 %v3469, %v3470
  %v3472 = vsel %vm3006, %v2967, 0.0
  %v3473 = vadd.f32 %v3471, %v3472
  %v3474 = vsel %vm3006, %v2968, 0.0
  %v3475 = vadd.f32 %v3473, %v3474
  %v3476 = vsel %vm3006, %v2969, 0.0
  %v3477 = vadd.f32 %v3475, %v3476
  %v3478 = vsel %vm3006, %v2970, 0.0
  %v3479 = vadd.f32 %v3477, %v3478
  %v3480 = vsel %vm3006, %v2971, 0.0
  %v3481 = vadd.f32 %v3479, %v3480
  %v3482 = vsel %vm3006, %v2972, 0.0
  %v3483 = vadd.f32 %v3481, %v3482
  %v3484 = vrot.slane %v3483, 4
  %v3485 = vadd.f32 %v3483, %v3484
  %v3486 = vrot.slane %v3485, 2
  %v3487 = vadd.f32 %v3485, %v3486
  %v3488 = vrot.slane %v3487, 1
  %v3489 = vadd.f32 %v3487, %v3488
  %v3490 = vsel %vm3006, %v2973, 0.0
  %v3491 = vsel %vm3006, %v2974, 0.0
  %v3492 = vadd.f32 %v3490, %v3491
  %v3493 = vsel %vm3006, %v2975, 0.0
  %v3494 = vadd.f32 %v3492, %v3493
  %v3495 = vsel %vm3006, %v2976, 0.0
  %v3496 = vadd.f32 %v3494, %v3495
  %v3497 = vsel %vm3006, %v2977, 0.0
  %v3498 = vadd.f32 %v3496, %v3497
  %v3499 = vsel %vm3006, %v2978, 0.0
  %v3500 = vadd.f32 %v3498, %v3499
  %v3501 = vsel %vm3006, %v2979, 0.0
  %v3502 = vadd.f32 %v3500, %v3501
  %v3503 = vsel %vm3006, %v2980, 0.0
  %v3504 = vadd.f32 %v3502, %v3503
  %v3505 = vsel %vm3006, %v2981, 0.0
  %v3506 = vadd.f32 %v3504, %v3505
  %v3507 = vsel %vm3006, %v2982, 0.0
  %v3508 = vadd.f32 %v3506, %v3507
  %v3509 = vsel %vm3006, %v2983, 0.0
  %v3510 = vadd.f32 %v3508, %v3509
  %v3511 = vsel %vm3006, %v2984, 0.0
  %v3512 = vadd.f32 %v3510, %v3511
  %v3513 = vsel %vm3006, %v2985, 0.0
  %v3514 = vadd.f32 %v3512, %v3513
  %v3515 = vsel %vm3006, %v2986, 0.0
  %v3516 = vadd.f32 %v3514, %v3515
  %v3517 = vsel %vm3006, %v2987, 0.0
  %v3518 = vadd.f32 %v3516, %v3517
  %v3519 = vsel %vm3006, %v2988, 0.0
  %v3520 = vadd.f32 %v3518, %v3519
  %v3521 = vsel %vm3006, %v2989, 0.0
  %v3522 = vadd.f32 %v3520, %v3521
  %v3523 = vsel %vm3006, %v2990, 0.0
  %v3524 = vadd.f32 %v3522, %v3523
  %v3525 = vsel %vm3006, %v2991, 0.0
  %v3526 = vadd.f32 %v3524, %v3525
  %v3527 = vsel %vm3006, %v2992, 0.0
  %v3528 = vadd.f32 %v3526, %v3527
  %v3529 = vsel %vm3006, %v2993, 0.0
  %v3530 = vadd.f32 %v3528, %v3529
  %v3531 = vsel %vm3006, %v2994, 0.0
  %v3532 = vadd.f32 %v3530, %v3531
  %v3533 = vsel %vm3006, %v2995, 0.0
  %v3534 = vadd.f32 %v3532, %v3533
  %v3535 = vsel %vm3006, %v2996, 0.0
  %v3536 = vadd.f32 %v3534, %v3535
  %v3537 = vsel %vm3006, %v2997, 0.0
  %v3538 = vadd.f32 %v3536, %v3537
  %v3539 = vsel %vm3006, %v2998, 0.0
  %v3540 = vadd.f32 %v3538, %v3539
  %v3541 = vsel %vm3006, %v2999, 0.0
  %v3542 = vadd.f32 %v3540, %v3541
  %v3543 = vsel %vm3006, %v3000, 0.0
  %v3544 = vadd.f32 %v3542, %v3543
  %v3545 = vsel %vm3006, %v3001, 0.0
  %v3546 = vadd.f32 %v3544, %v3545
  %v3547 = vsel %vm3006, %v3002, 0.0
  %v3548 = vadd.f32 %v3546, %v3547
  %v3549 = vsel %vm3006, %v3003, 0.0
  %v3550 = vadd.f32 %v3548, %v3549
  %v3551 = vsel %vm3006, %v3004, 0.0
  %v3552 = vadd.f32 %v3550, %v3551
  %v3553 = vrot.slane %v3552, 4
  %v3554 = vadd.f32 %v3552, %v3553
  %v3555 = vrot.slane %v3554, 2
  %v3556 = vadd.f32 %v3554, %v3555
  %v3557 = vrot.slane %v3556, 1
  %v3558 = vadd.f32 %v3556, %v3557
  %vm3567 = vcmask 1041409
  %v3568 = vsel %vm3567, %v3144, %v3075
  %vm3569 = vcmask 1042434
  %v3570 = vsel %vm3569, %v3213, %v3568
  %vm3571 = vcmask 1043459
  %v3572 = vsel %vm3571, %v3282, %v3570
  %vm3573 = vcmask 1044484
  %v3574 = vsel %vm3573, %v3351, %v3572
  %vm3575 = vcmask 1045509
  %v3576 = vsel %vm3575, %v3420, %v3574
  %vm3577 = vcmask 1046534
  %v3578 = vsel %vm3577, %v3489, %v3576
  %vm3579 = vcmask 1047559
  %v3580 = vsel %vm3579, %v3558, %v3578
  %v3582 = vadd.f32 %v3005, %v3580
  %3583 = vst.msk [vmem:[#allocation2] sm:$0xff] %vm3006, %v3582
  // Predicated region
  $region18: #{_lambda_.2} parent=0 // pred_check
    %p3584 = pneg %p15
  $region19: #{_lambda_.2} parent=0 // pred_check_branch
    %3586 = sbr.rel (%p3584) target = $region21
  $region20: #{_lambda_.2} parent=0 // pred_region
    %v3587 = vld [vmem:[#allocation2] sm:$0xff]
    %v3588 = vmul.f32 %v3587, 0.00390625
    %3589 = vst.msk [vmem:[%s3] sm:$0xff] %vm3006, %v3588
  $region21: #{_lambda_.2} parent=0 // pred_fallthru
    _
  // Predicated region
  $region22: #{_lambda_.2} parent=0 // pred_check
    _
  $region23: #{_lambda_.2} parent=0 // pred_check_branch
    %3591 = sbr.rel (0) target = $region25
  $region24: #{_lambda_.2} parent=0 // pred_region
    _
  $region25: #{_lambda_.2} parent=0 // pred_fallthru
    _
  // Predicated region
  $region26: #{_lambda_.2} parent=0 // pred_check
    _
  $region27: #{_lambda_.2} parent=0 // pred_check_branch
    %3593 = sbr.rel (0) target = $region29
  $region28: #{_lambda_.2} parent=0 // pred_region
    _
  $region29: #{_lambda_.2} parent=0 // pred_fallthru
    _

// kernel: _lambda_.3
$region0: #{_lambda_.3}
  #allocation0 [shape = 'u32[]', space=smem, size = 0x4, offset = 0x4, fixed_abs, tag = 'smem constant byte address 0x4 - core index']
  #allocation1 [shape = 'u32[144,128]{1,0:T(1,128)}', space=vmem, size = 0x12000, scoped, tag = 'internal scratch']
  %s0 = inlined_call_operand.vmem [shape: f32[64,512], index: 0, kind: input, shape index: {}]
  %s1 = inlined_call_operand.vmem [shape: f32[8,64], index: 1, kind: input, shape index: {}]
  %s2 = inlined_call_operand.vmem [shape: bf16[128,512], index: 2, kind: input, shape index: {}]
  %s3 = inlined_call_operand.vmem [shape: bf16[64,2048], index: 3, kind: input, shape index: {}]
  %s4 = inlined_call_operand.vmem [shape: f32[1,2048], index: 4, kind: input, shape index: {}]
  %s5 = inlined_call_operand.vmem [shape: bf16[128,16], index: 5, kind: input, shape index: {}]
  %s6 = inlined_call_operand.vmem [shape: f32[1,16], index: 6, kind: input, shape index: {}]
  %s7 = inlined_call_operand.vmem [shape: bf16[2048,16], index: 7, kind: input, shape index: {}]
  %s8 = inlined_call_operand.vmem [shape: f32[1,16], index: 8, kind: input, shape index: {}]
  %s9 = inlined_call_operand.vmem [shape: bf16[16,512], index: 9, kind: input, shape index: {}]
  %s10 = inlined_call_operand.vmem [shape: bf16[16,512], index: 10, kind: input, shape index: {}]
  %s11 = inlined_call_operand.vmem [shape: f32[1,512], index: 11, kind: input, shape index: {}]
  %s12 = inlined_call_operand.vmem [shape: bf16[128,512], index: 12, kind: input, shape index: {}]
  %s13 = inlined_call_operand.vmem [shape: bf16[128,128], index: 13, kind: input, shape index: {}]
  %s14 = inlined_call_operand.vmem [shape: f32[1,128], index: 14, kind: input, shape index: {}]
  %s15 = inlined_call_operand.vmem [shape: f32[40,128], index: 15, kind: output, shape index: {}]
  %s16 = sld [smem:[#allocation0]]
  $region70: #{_lambda_.3} parent=0
    _
  %s18 = ssub.s32 1, %s16
  %s19 = scalar_select 0, %s18, %s16
  // Predicated region
  $region2: #{_lambda_.3} parent=0 // pred_check
    _
  $region3: #{_lambda_.3} parent=0 // pred_check_branch
    %21 = sbr.rel (0) target = $region5
  $region4: #{_lambda_.3} parent=0 // pred_region
    _
  $region5: #{_lambda_.3} parent=0 // pred_fallthru
    _
  // Predicated region
  $region6: #{_lambda_.3} parent=0 // pred_check
    _
  $region7: #{_lambda_.3} parent=0 // pred_check_branch
    %23 = sbr.rel (0) target = $region9
  $region8: #{_lambda_.3} parent=0 // pred_region
    _
  $region9: #{_lambda_.3} parent=0 // pred_fallthru
    _
  // Predicated region
  $region10: #{_lambda_.3} parent=0 // pred_check
    _
  $region11: #{_lambda_.3} parent=0 // pred_check_branch
    %25 = sbr.rel (0) target = $region13
  $region12: #{_lambda_.3} parent=0 // pred_region
    _
  $region13: #{_lambda_.3} parent=0 // pred_fallthru
    _
  // Predicated region
  $region14: #{_lambda_.3} parent=0 // pred_check
    _
  $region15: #{_lambda_.3} parent=0 // pred_check_branch
    %27 = sbr.rel (0) target = $region17
  $region16: #{_lambda_.3} parent=0 // pred_region
    _
  $region17: #{_lambda_.3} parent=0 // pred_fallthru
    _
  // Predicated region
  $region18: #{_lambda_.3} parent=0 // pred_check
    _
  $region19: #{_lambda_.3} parent=0 // pred_check_branch
    %29 = sbr.rel (0) target = $region21
  $region20: #{_lambda_.3} parent=0 // pred_region
    _
  $region21: #{_lambda_.3} parent=0 // pred_fallthru
    _
  // Predicated region
  $region22: #{_lambda_.3} parent=0 // pred_check
    _
  $region23: #{_lambda_.3} parent=0 // pred_check_branch
    %31 = sbr.rel (0) target = $region25
  $region24: #{_lambda_.3} parent=0 // pred_region
    _
  $region25: #{_lambda_.3} parent=0 // pred_fallthru
    _
  // Predicated region
  $region26: #{_lambda_.3} parent=0 // pred_check
    _
  $region27: #{_lambda_.3} parent=0 // pred_check_branch
    %33 = sbr.rel (0) target = $region29
  $region28: #{_lambda_.3} parent=0 // pred_region
    _
  $region29: #{_lambda_.3} parent=0 // pred_fallthru
    _
  // Predicated region
  $region30: #{_lambda_.3} parent=0 // pred_check
    _
  $region31: #{_lambda_.3} parent=0 // pred_check_branch
    %35 = sbr.rel (0) target = $region33
  $region32: #{_lambda_.3} parent=0 // pred_region
    _
  $region33: #{_lambda_.3} parent=0 // pred_fallthru
    _
  // Predicated region
  $region34: #{_lambda_.3} parent=0 // pred_check
    _
  $region35: #{_lambda_.3} parent=0 // pred_check_branch
    %37 = sbr.rel (0) target = $region37
  $region36: #{_lambda_.3} parent=0 // pred_region
    _
  $region37: #{_lambda_.3} parent=0 // pred_fallthru
    _
  // Predicated region
  $region38: #{_lambda_.3} parent=0 // pred_check
    _
  $region39: #{_lambda_.3} parent=0 // pred_check_branch
    %39 = sbr.rel (0) target = $region41
  $region40: #{_lambda_.3} parent=0 // pred_region
    _
  $region41: #{_lambda_.3} parent=0 // pred_fallthru
    _
  // Predicated region
  $region42: #{_lambda_.3} parent=0 // pred_check
    _
  $region43: #{_lambda_.3} parent=0 // pred_check_branch
    %41 = sbr.rel (0) target = $region45
  $region44: #{_lambda_.3} parent=0 // pred_region
    _
  $region45: #{_lambda_.3} parent=0 // pred_fallthru
    _
  // Predicated region
  $region46: #{_lambda_.3} parent=0 // pred_check
    _
  $region47: #{_lambda_.3} parent=0 // pred_check_branch
    %43 = sbr.rel (0) target = $region49
  $region48: #{_lambda_.3} parent=0 // pred_region
    _
  $region49: #{_lambda_.3} parent=0 // pred_fallthru
    _
  // Predicated region
  $region50: #{_lambda_.3} parent=0 // pred_check
    _
  $region51: #{_lambda_.3} parent=0 // pred_check_branch
    %45 = sbr.rel (0) target = $region53
  $region52: #{_lambda_.3} parent=0 // pred_region
    _
  $region53: #{_lambda_.3} parent=0 // pred_fallthru
    _
  // Predicated region
  $region54: #{_lambda_.3} parent=0 // pred_check
    _
  $region55: #{_lambda_.3} parent=0 // pred_check_branch
    %47 = sbr.rel (0) target = $region57
  $region56: #{_lambda_.3} parent=0 // pred_region
    _
  $region57: #{_lambda_.3} parent=0 // pred_fallthru
    _
  // Predicated region
  $region58: #{_lambda_.3} parent=0 // pred_check
    _
  $region59: #{_lambda_.3} parent=0 // pred_check_branch
    %49 = sbr.rel (0) target = $region61
  $region60: #{_lambda_.3} parent=0 // pred_region
    _
  $region61: #{_lambda_.3} parent=0 // pred_fallthru
    _
  %v51 = vld [vmem:[%s0] sm:$0xff]
  %v52 = vld [vmem:[%s0 + $0x8] sm:$0xff]
  %v53 = vld [vmem:[%s0 + $0x10] sm:$0xff]
  %v54 = vld [vmem:[%s0 + $0x18] sm:$0xff]
  %v55 = vld [vmem:[%s0 + $0x20] sm:$0xff]
  %v56 = vld [vmem:[%s0 + $0x28] sm:$0xff]
  %v57 = vld [vmem:[%s0 + $0x30] sm:$0xff]
  %v58 = vld [vmem:[%s0 + $0x38] sm:$0xff]
  %v59 = vld [vmem:[%s0 + $0x40] sm:$0xff]
  %v60 = vld [vmem:[%s0 + $0x48] sm:$0xff]
  %v61 = vld [vmem:[%s0 + $0x50] sm:$0xff]
  %v62 = vld [vmem:[%s0 + $0x58] sm:$0xff]
  %v63 = vld [vmem:[%s0 + $0x60] sm:$0xff]
  %v64 = vld [vmem:[%s0 + $0x68] sm:$0xff]
  %v65 = vld [vmem:[%s0 + $0x70] sm:$0xff]
  %v66 = vld [vmem:[%s0 + $0x78] sm:$0xff]
  %v67 = vld [vmem:[%s0 + $0x80] sm:$0xff]
  %v68 = vld [vmem:[%s0 + $0x88] sm:$0xff]
  %v69 = vld [vmem:[%s0 + $0x90] sm:$0xff]
  %v70 = vld [vmem:[%s0 + $0x98] sm:$0xff]
  %v71 = vld [vmem:[%s0 + $0xa0] sm:$0xff]
  %v72 = vld [vmem:[%s0 + $0xa8] sm:$0xff]
  %v73 = vld [vmem:[%s0 + $0xb0] sm:$0xff]
  %v74 = vld [vmem:[%s0 + $0xb8] sm:$0xff]
  %v75 = vld [vmem:[%s0 + $0xc0] sm:$0xff]
  %v76 = vld [vmem:[%s0 + $0xc8] sm:$0xff]
  %v77 = vld [vmem:[%s0 + $0xd0] sm:$0xff]
  %v78 = vld [vmem:[%s0 + $0xd8] sm:$0xff]
  %v79 = vld [vmem:[%s0 + $0xe0] sm:$0xff]
  %v80 = vld [vmem:[%s0 + $0xe8] sm:$0xff]
  %v81 = vld [vmem:[%s0 + $0xf0] sm:$0xff]
  %v82 = vld [vmem:[%s0 + $0xf8] sm:$0xff]
  %v83 = vld [vmem:[%s2] sm:$0xff]
  %v84 = vld [vmem:[%s2 + $0x8] sm:$0xff]
  %v85 = vld [vmem:[%s2 + $0x10] sm:$0xff]
  %v86 = vld [vmem:[%s2 + $0x18] sm:$0xff]
  %v87 = vld [vmem:[%s2 + $0x20] sm:$0xff]
  %v88 = vld [vmem:[%s2 + $0x28] sm:$0xff]
  %v89 = vld [vmem:[%s2 + $0x30] sm:$0xff]
  %v90 = vld [vmem:[%s2 + $0x38] sm:$0xff]
  %v91 = vld [vmem:[%s2 + $0x40] sm:$0xff]
  %v92 = vld [vmem:[%s2 + $0x48] sm:$0xff]
  %v93 = vld [vmem:[%s2 + $0x50] sm:$0xff]
  %v94 = vld [vmem:[%s2 + $0x58] sm:$0xff]
  %v95 = vld [vmem:[%s2 + $0x60] sm:$0xff]
  %v96 = vld [vmem:[%s2 + $0x68] sm:$0xff]
  %v97 = vld [vmem:[%s2 + $0x70] sm:$0xff]
  %v98 = vld [vmem:[%s2 + $0x78] sm:$0xff]
  %v99 = vld [vmem:[%s2 + $0x80] sm:$0xff]
  %v100 = vld [vmem:[%s2 + $0x88] sm:$0xff]
  %v101 = vld [vmem:[%s2 + $0x90] sm:$0xff]
  %v102 = vld [vmem:[%s2 + $0x98] sm:$0xff]
  %v103 = vld [vmem:[%s2 + $0xa0] sm:$0xff]
  %v104 = vld [vmem:[%s2 + $0xa8] sm:$0xff]
  %v105 = vld [vmem:[%s2 + $0xb0] sm:$0xff]
  %v106 = vld [vmem:[%s2 + $0xb8] sm:$0xff]
  %v107 = vld [vmem:[%s2 + $0xc0] sm:$0xff]
  %v108 = vld [vmem:[%s2 + $0xc8] sm:$0xff]
  %v109 = vld [vmem:[%s2 + $0xd0] sm:$0xff]
  %v110 = vld [vmem:[%s2 + $0xd8] sm:$0xff]
  %v111 = vld [vmem:[%s2 + $0xe0] sm:$0xff]
  %v112 = vld [vmem:[%s2 + $0xe8] sm:$0xff]
  %v113 = vld [vmem:[%s2 + $0xf0] sm:$0xff]
  %v114 = vld [vmem:[%s2 + $0xf8] sm:$0xff]
  %v147 = vunpack.c.l.b16 %v83
  %v148 = vunpack.c.h.b16 %v83
  %v149 = vunpack.c.l.b16 %v84
  %v150 = vunpack.c.h.b16 %v84
  %v151 = vunpack.c.l.b16 %v85
  %v152 = vunpack.c.h.b16 %v85
  %v153 = vunpack.c.l.b16 %v86
  %v154 = vunpack.c.h.b16 %v86
  %v155 = vunpack.c.l.b16 %v87
  %v156 = vunpack.c.h.b16 %v87
  %v157 = vunpack.c.l.b16 %v88
  %v158 = vunpack.c.h.b16 %v88
  %v159 = vunpack.c.l.b16 %v89
  %v160 = vunpack.c.h.b16 %v89
  %v161 = vunpack.c.l.b16 %v90
  %v162 = vunpack.c.h.b16 %v90
  %v163 = vunpack.c.l.b16 %v91
  %v164 = vunpack.c.h.b16 %v91
  %v165 = vunpack.c.l.b16 %v92
  %v166 = vunpack.c.h.b16 %v92
  %v167 = vunpack.c.l.b16 %v93
  %v168 = vunpack.c.h.b16 %v93
  %v169 = vunpack.c.l.b16 %v94
  %v170 = vunpack.c.h.b16 %v94
  %v171 = vunpack.c.l.b16 %v95
  %v172 = vunpack.c.h.b16 %v95
  %v173 = vunpack.c.l.b16 %v96
  %v174 = vunpack.c.h.b16 %v96
  %v175 = vunpack.c.l.b16 %v97
  %v176 = vunpack.c.h.b16 %v97
  %v177 = vunpack.c.l.b16 %v98
  %v178 = vunpack.c.h.b16 %v98
  %v179 = vunpack.c.l.b16 %v99
  %v180 = vunpack.c.h.b16 %v99
  %v181 = vunpack.c.l.b16 %v100
  %v182 = vunpack.c.h.b16 %v100
  %v183 = vunpack.c.l.b16 %v101
  %v184 = vunpack.c.h.b16 %v101
  %v185 = vunpack.c.l.b16 %v102
  %v186 = vunpack.c.h.b16 %v102
  %v187 = vunpack.c.l.b16 %v103
  %v188 = vunpack.c.h.b16 %v103
  %v189 = vunpack.c.l.b16 %v104
  %v190 = vunpack.c.h.b16 %v104
  %v191 = vunpack.c.l.b16 %v105
  %v192 = vunpack.c.h.b16 %v105
  %v193 = vunpack.c.l.b16 %v106
  %v194 = vunpack.c.h.b16 %v106
  %v195 = vunpack.c.l.b16 %v107
  %v196 = vunpack.c.h.b16 %v107
  %v197 = vunpack.c.l.b16 %v108
  %v198 = vunpack.c.h.b16 %v108
  %v199 = vunpack.c.l.b16 %v109
  %v200 = vunpack.c.h.b16 %v109
  %v201 = vunpack.c.l.b16 %v110
  %v202 = vunpack.c.h.b16 %v110
  %v203 = vunpack.c.l.b16 %v111
  %v204 = vunpack.c.h.b16 %v111
  %v205 = vunpack.c.l.b16 %v112
  %v206 = vunpack.c.h.b16 %v112
  %v207 = vunpack.c.l.b16 %v113
  %v208 = vunpack.c.h.b16 %v113
  %v209 = vunpack.c.l.b16 %v114
  %v210 = vunpack.c.h.b16 %v114
  %v211 = vpack.c.b16 %v151, %v147
  %v212 = vpack.c.b16 %v152, %v148
  %v213 = vpack.c.b16 %v153, %v149
  %v214 = vpack.c.b16 %v154, %v150
  %v215 = vpack.c.b16 %v159, %v155
  %v216 = vpack.c.b16 %v160, %v156
  %v217 = vpack.c.b16 %v161, %v157
  %v218 = vpack.c.b16 %v162, %v158
  %v219 = vpack.c.b16 %v167, %v163
  %v220 = vpack.c.b16 %v168, %v164
  %v221 = vpack.c.b16 %v169, %v165
  %v222 = vpack.c.b16 %v170, %v166
  %v223 = vpack.c.b16 %v175, %v171
  %v224 = vpack.c.b16 %v176, %v172
  %v225 = vpack.c.b16 %v177, %v173
  %v226 = vpack.c.b16 %v178, %v174
  %v227 = vpack.c.b16 %v183, %v179
  %v228 = vpack.c.b16 %v184, %v180
  %v229 = vpack.c.b16 %v185, %v181
  %v230 = vpack.c.b16 %v186, %v182
  %v231 = vpack.c.b16 %v191, %v187
  %v232 = vpack.c.b16 %v192, %v188
  %v233 = vpack.c.b16 %v193, %v189
  %v234 = vpack.c.b16 %v194, %v190
  %v235 = vpack.c.b16 %v199, %v195
  %v236 = vpack.c.b16 %v200, %v196
  %v237 = vpack.c.b16 %v201, %v197
  %v238 = vpack.c.b16 %v202, %v198
  %v239 = vpack.c.b16 %v207, %v203
  %v240 = vpack.c.b16 %v208, %v204
  %v241 = vpack.c.b16 %v209, %v205
  %v242 = vpack.c.b16 %v210, %v206
  %275 = vmatprep.subr.bf16.mxu0 %v240
  %276 = vmatpush1.bf16.msra.mxu0 %v239
  %277 = vmatprep.subr.bf16.mxu0 %v236
  %278 = vmatpush1.bf16.msra.mxu0 %v235
  %279 = vmatprep.subr.bf16.mxu0 %v232
  %280 = vmatpush1.bf16.msra.mxu0 %v231
  %281 = vmatprep.subr.bf16.mxu0 %v228
  %282 = vmatpush1.bf16.msra.mxu0 %v227
  %283 = vmatprep.subr.bf16.mxu0 %v224
  %284 = vmatpush1.bf16.msra.mxu0 %v223
  %285 = vmatprep.subr.bf16.mxu0 %v220
  %286 = vmatpush1.bf16.msra.mxu0 %v219
  %287 = vmatprep.subr.bf16.mxu0 %v216
  %288 = vmatpush1.bf16.msra.mxu0 %v215
  %289 = vmatprep.subr.bf16.mxu0 %v212
  %290 = vmatpush1.bf16.msra.mxu0 %v211
  %291 = vmatprep.subr.bf16.mxu0 0
  %292 = vmatpush2.bf16.msra.mxu0 0
  %293 = vmatprep.subr.bf16.mxu0 0
  %294 = vmatpush2.bf16.msra.mxu0 0
  %295 = vmatprep.subr.bf16.mxu0 0
  %296 = vmatpush2.bf16.msra.mxu0 0
  %297 = vmatprep.subr.bf16.mxu0 0
  %298 = vmatpush2.bf16.msra.mxu0 0
  %299 = vmatprep.subr.bf16.mxu0 0
  %300 = vmatpush2.bf16.msra.mxu0 0
  %301 = vmatprep.subr.bf16.mxu0 0
  %302 = vmatpush2.bf16.msra.mxu0 0
  %303 = vmatprep.subr.bf16.mxu0 0
  %304 = vmatpush2.bf16.msra.mxu0 0
  %305 = vmatprep.subr.bf16.mxu0 0
  %306 = vmatpush2.bf16.msra.mxu0 0
  %307 = vmatprep.mubr.bf16.mxu0 0
  %308 = vmatmul.mubr.bf16.gmra.mxu0 0
  %v309 = vpop.f32.mrf.mxu0
  %v310 = vadd.f32 0.0, %v309
  %v311 = vpop.f32.mrf.mxu0
  %v312 = vadd.f32 0.0, %v311
  %v313 = vpop.f32.mrf.mxu0
  %v314 = vpop.f32.mrf.mxu0
  %315 = vdwg.mxu0
  %316 = vmatprep.subr.bf16.mxu0 %v242
  %317 = vmatpush1.bf16.msra.mxu0 %v241
  %318 = vmatprep.subr.bf16.mxu0 %v238
  %319 = vmatpush1.bf16.msra.mxu0 %v237
  %320 = vmatprep.subr.bf16.mxu0 %v234
  %321 = vmatpush1.bf16.msra.mxu0 %v233
  %322 = vmatprep.subr.bf16.mxu0 %v230
  %323 = vmatpush1.bf16.msra.mxu0 %v229
  %324 = vmatprep.subr.bf16.mxu0 %v226
  %325 = vmatpush1.bf16.msra.mxu0 %v225
  %326 = vmatprep.subr.bf16.mxu0 %v222
  %327 = vmatpush1.bf16.msra.mxu0 %v221
  %328 = vmatprep.subr.bf16.mxu0 %v218
  %329 = vmatpush1.bf16.msra.mxu0 %v217
  %330 = vmatprep.subr.bf16.mxu0 %v214
  %331 = vmatpush1.bf16.msra.mxu0 %v213
  %332 = vmatprep.subr.bf16.mxu0 0
  %333 = vmatpush2.bf16.msra.mxu0 0
  %334 = vmatprep.subr.bf16.mxu0 0
  %335 = vmatpush2.bf16.msra.mxu0 0
  %336 = vmatprep.subr.bf16.mxu0 0
  %337 = vmatpush2.bf16.msra.mxu0 0
  %338 = vmatprep.subr.bf16.mxu0 0
  %339 = vmatpush2.bf16.msra.mxu0 0
  %340 = vmatprep.subr.bf16.mxu0 0
  %341 = vmatpush2.bf16.msra.mxu0 0
  %342 = vmatprep.subr.bf16.mxu0 0
  %343 = vmatpush2.bf16.msra.mxu0 0
  %344 = vmatprep.subr.bf16.mxu0 0
  %345 = vmatpush2.bf16.msra.mxu0 0
  %346 = vmatprep.subr.bf16.mxu0 0
  %347 = vmatpush2.bf16.msra.mxu0 0
  %348 = vmatprep.mubr.bf16.mxu0 0
  %349 = vmatmul.mubr.bf16.gmra.mxu0 0
  %v350 = vpop.f32.mrf.mxu0
  %v351 = vadd.f32 0.0, %v350
  %v352 = vpop.f32.mrf.mxu0
  %v353 = vadd.f32 0.0, %v352
  %v354 = vpop.f32.mrf.mxu0
  %v355 = vpop.f32.mrf.mxu0
  %356 = vdwg.mxu0
  %v357 = vadd.f32 %v51, %v310
  %v358 = vadd.f32 %v52, %v312
  %v359 = vadd.f32 %v53, %v351
  %v360 = vadd.f32 %v54, %v353
  %v361 = vxor.u32 %v357, 2147483648
  %v362 = vmul.f32 %v361, 1.442695
  %v363 = vpow.pop %v362
  %v364 = vadd.f32 %v363, 1.0
  %v365 = vrcp.pop %v364
  %v366 = vmul.f32 1.0, %v365
  %v367 = vxor.u32 %v358, 2147483648
  %v368 = vmul.f32 %v367, 1.442695
  %v369 = vpow.pop %v368
  %v370 = vadd.f32 %v369, 1.0
  %v371 = vrcp.pop %v370
  %v372 = vmul.f32 1.0, %v371
  %v373 = vtanh.pop %v359
  %v374 = vxor.u32 %v360, 2147483648
  %v375 = vmul.f32 %v374, 1.442695
  %v376 = vpow.pop %v375
  %v377 = vadd.f32 %v376, 1.0
  %v378 = vrcp.pop %v377
  %v379 = vmul.f32 1.0, %v378
  %v380 = vmul.f32 %v372, 0.0
  %v381 = vmul.f32 %v366, %v373
  %v382 = vadd.f32 %v380, %v381
  %v383 = vtanh.pop %v382
  %v384 = vmul.f32 %v379, %v383
  %v385 = vpack.c.bf16 %v384, %v384
  %386 = vmatprep.subr.bf16.mxu0 %v240
  %387 = vmatpush1.bf16.msra.mxu0 %v239
  %388 = vmatprep.subr.bf16.mxu0 %v236
  %389 = vmatpush1.bf16.msra.mxu0 %v235
  %390 = vmatprep.subr.bf16.mxu0 %v232
  %391 = vmatpush1.bf16.msra.mxu0 %v231
  %392 = vmatprep.subr.bf16.mxu0 %v228
  %393 = vmatpush1.bf16.msra.mxu0 %v227
  %394 = vmatprep.subr.bf16.mxu0 %v224
  %395 = vmatpush1.bf16.msra.mxu0 %v223
  %396 = vmatprep.subr.bf16.mxu0 %v220
  %397 = vmatpush1.bf16.msra.mxu0 %v219
  %398 = vmatprep.subr.bf16.mxu0 %v216
  %399 = vmatpush1.bf16.msra.mxu0 %v215
  %400 = vmatprep.subr.bf16.mxu0 %v212
  %401 = vmatpush1.bf16.msra.mxu0 %v211
  %402 = vmatprep.subr.bf16.mxu0 0
  %403 = vmatpush2.bf16.msra.mxu0 0
  %404 = vmatprep.subr.bf16.mxu0 0
  %405 = vmatpush2.bf16.msra.mxu0 0
  %406 = vmatprep.subr.bf16.mxu0 0
  %407 = vmatpush2.bf16.msra.mxu0 0
  %408 = vmatprep.subr.bf16.mxu0 0
  %409 = vmatpush2.bf16.msra.mxu0 0
  %410 = vmatprep.subr.bf16.mxu0 0
  %411 = vmatpush2.bf16.msra.mxu0 0
  %412 = vmatprep.subr.bf16.mxu0 0
  %413 = vmatpush2.bf16.msra.mxu0 0
  %414 = vmatprep.subr.bf16.mxu0 0
  %415 = vmatpush2.bf16.msra.mxu0 0
  %416 = vmatprep.subr.bf16.mxu0 0
  %417 = vmatpush2.bf16.msra.mxu0 0
  %418 = vmatprep.mubr.bf16.mxu0 0
  %419 = vmatmul.mubr.bf16.gmra.mxu0 %v385
  %v420 = vpop.f32.mrf.mxu0
  %v421 = vadd.f32 0.0, %v420
  %v422 = vpop.f32.mrf.mxu0
  %v423 = vadd.f32 0.0, %v422
  %v424 = vpop.f32.mrf.mxu0
  %v425 = vpop.f32.mrf.mxu0
  %426 = vdwg.mxu0
  %427 = vmatprep.subr.bf16.mxu0 %v242
  %428 = vmatpush1.bf16.msra.mxu0 %v241
  %429 = vmatprep.subr.bf16.mxu0 %v238
  %430 = vmatpush1.bf16.msra.mxu0 %v237
  %431 = vmatprep.subr.bf16.mxu0 %v234
  %432 = vmatpush1.bf16.msra.mxu0 %v233
  %433 = vmatprep.subr.bf16.mxu0 %v230
  %434 = vmatpush1.bf16.msra.mxu0 %v229
  %435 = vmatprep.subr.bf16.mxu0 %v226
  %436 = vmatpush1.bf16.msra.mxu0 %v225
  %437 = vmatprep.subr.bf16.mxu0 %v222
  %438 = vmatpush1.bf16.msra.mxu0 %v221
  %439 = vmatprep.subr.bf16.mxu0 %v218
  %440 = vmatpush1.bf16.msra.mxu0 %v217
  %441 = vmatprep.subr.bf16.mxu0 %v214
  %442 = vmatpush1.bf16.msra.mxu0 %v213
  %443 = vmatprep.subr.bf16.mxu0 0
  %444 = vmatpush2.bf16.msra.mxu0 0
  %445 = vmatprep.subr.bf16.mxu0 0
  %446 = vmatpush2.bf16.msra.mxu0 0
  %447 = vmatprep.subr.bf16.mxu0 0
  %448 = vmatpush2.bf16.msra.mxu0 0
  %449 = vmatprep.subr.bf16.mxu0 0
  %450 = vmatpush2.bf16.msra.mxu0 0
  %451 = vmatprep.subr.bf16.mxu0 0
  %452 = vmatpush2.bf16.msra.mxu0 0
  %453 = vmatprep.subr.bf16.mxu0 0
  %454 = vmatpush2.bf16.msra.mxu0 0
  %455 = vmatprep.subr.bf16.mxu0 0
  %456 = vmatpush2.bf16.msra.mxu0 0
  %457 = vmatprep.subr.bf16.mxu0 0
  %458 = vmatpush2.bf16.msra.mxu0 0
  %459 = vmatprep.mubr.bf16.mxu0 0
  %460 = vmatmul.mubr.bf16.gmra.mxu0 %v385
  %v461 = vpop.f32.mrf.mxu0
  %v462 = vadd.f32 0.0, %v461
  %v463 = vpop.f32.mrf.mxu0
  %v464 = vadd.f32 0.0, %v463
  %v465 = vpop.f32.mrf.mxu0
  %v466 = vpop.f32.mrf.mxu0
  %467 = vdwg.mxu0
  %v468 = vadd.f32 %v55, %v421
  %v469 = vadd.f32 %v56, %v423
  %v470 = vadd.f32 %v57, %v462
  %v471 = vadd.f32 %v58, %v464
  %v472 = vxor.u32 %v468, 2147483648
  %v473 = vmul.f32 %v472, 1.442695
  %v474 = vpow.pop %v473
  %v475 = vadd.f32 %v474, 1.0
  %v476 = vrcp.pop %v475
  %v477 = vmul.f32 1.0, %v476
  %v478 = vxor.u32 %v469, 2147483648
  %v479 = vmul.f32 %v478, 1.442695
  %v480 = vpow.pop %v479
  %v481 = vadd.f32 %v480, 1.0
  %v482 = vrcp.pop %v481
  %v483 = vmul.f32 1.0, %v482
  %v484 = vtanh.pop %v470
  %v485 = vxor.u32 %v471, 2147483648
  %v486 = vmul.f32 %v485, 1.442695
  %v487 = vpow.pop %v486
  %v488 = vadd.f32 %v487, 1.0
  %v489 = vrcp.pop %v488
  %v490 = vmul.f32 1.0, %v489
  %v491 = vmul.f32 %v483, %v382
  %v492 = vmul.f32 %v477, %v484
  %v493 = vadd.f32 %v491, %v492
  %v494 = vtanh.pop %v493
  %v495 = vmul.f32 %v490, %v494
  %v496 = vpack.c.bf16 %v495, %v495
  %497 = vmatprep.subr.bf16.mxu0 %v240
  %498 = vmatpush1.bf16.msra.mxu0 %v239
  %499 = vmatprep.subr.bf16.mxu0 %v236
  %500 = vmatpush1.bf16.msra.mxu0 %v235
  %501 = vmatprep.subr.bf16.mxu0 %v232
  %502 = vmatpush1.bf16.msra.mxu0 %v231
  %503 = vmatprep.subr.bf16.mxu0 %v228
  %504 = vmatpush1.bf16.msra.mxu0 %v227
  %505 = vmatprep.subr.bf16.mxu0 %v224
  %506 = vmatpush1.bf16.msra.mxu0 %v223
  %507 = vmatprep.subr.bf16.mxu0 %v220
  %508 = vmatpush1.bf16.msra.mxu0 %v219
  %509 = vmatprep.subr.bf16.mxu0 %v216
  %510 = vmatpush1.bf16.msra.mxu0 %v215
  %511 = vmatprep.subr.bf16.mxu0 %v212
  %512 = vmatpush1.bf16.msra.mxu0 %v211
  %513 = vmatprep.subr.bf16.mxu0 0
  %514 = vmatpush2.bf16.msra.mxu0 0
  %515 = vmatprep.subr.bf16.mxu0 0
  %516 = vmatpush2.bf16.msra.mxu0 0
  %517 = vmatprep.subr.bf16.mxu0 0
  %518 = vmatpush2.bf16.msra.mxu0 0
  %519 = vmatprep.subr.bf16.mxu0 0
  %520 = vmatpush2.bf16.msra.mxu0 0
  %521 = vmatprep.subr.bf16.mxu0 0
  %522 = vmatpush2.bf16.msra.mxu0 0
  %523 = vmatprep.subr.bf16.mxu0 0
  %524 = vmatpush2.bf16.msra.mxu0 0
  %525 = vmatprep.subr.bf16.mxu0 0
  %526 = vmatpush2.bf16.msra.mxu0 0
  %527 = vmatprep.subr.bf16.mxu0 0
  %528 = vmatpush2.bf16.msra.mxu0 0
  %529 = vmatprep.mubr.bf16.mxu0 0
  %530 = vmatmul.mubr.bf16.gmra.mxu0 %v496
  %v531 = vpop.f32.mrf.mxu0
  %v532 = vadd.f32 0.0, %v531
  %v533 = vpop.f32.mrf.mxu0
  %v534 = vadd.f32 0.0, %v533
  %v535 = vpop.f32.mrf.mxu0
  %v536 = vpop.f32.mrf.mxu0
  %537 = vdwg.mxu0
  %538 = vmatprep.subr.bf16.mxu0 %v242
  %539 = vmatpush1.bf16.msra.mxu0 %v241
  %540 = vmatprep.subr.bf16.mxu0 %v238
  %541 = vmatpush1.bf16.msra.mxu0 %v237
  %542 = vmatprep.subr.bf16.mxu0 %v234
  %543 = vmatpush1.bf16.msra.mxu0 %v233
  %544 = vmatprep.subr.bf16.mxu0 %v230
  %545 = vmatpush1.bf16.msra.mxu0 %v229
  %546 = vmatprep.subr.bf16.mxu0 %v226
  %547 = vmatpush1.bf16.msra.mxu0 %v225
  %548 = vmatprep.subr.bf16.mxu0 %v222
  %549 = vmatpush1.bf16.msra.mxu0 %v221
  %550 = vmatprep.subr.bf16.mxu0 %v218
  %551 = vmatpush1.bf16.msra.mxu0 %v217
  %552 = vmatprep.subr.bf16.mxu0 %v214
  %553 = vmatpush1.bf16.msra.mxu0 %v213
  %554 = vmatprep.subr.bf16.mxu0 0
  %555 = vmatpush2.bf16.msra.mxu0 0
  %556 = vmatprep.subr.bf16.mxu0 0
  %557 = vmatpush2.bf16.msra.mxu0 0
  %558 = vmatprep.subr.bf16.mxu0 0
  %559 = vmatpush2.bf16.msra.mxu0 0
  %560 = vmatprep.subr.bf16.mxu0 0
  %561 = vmatpush2.bf16.msra.mxu0 0
  %562 = vmatprep.subr.bf16.mxu0 0
  %563 = vmatpush2.bf16.msra.mxu0 0
  %564 = vmatprep.subr.bf16.mxu0 0
  %565 = vmatpush2.bf16.msra.mxu0 0
  %566 = vmatprep.subr.bf16.mxu0 0
  %567 = vmatpush2.bf16.msra.mxu0 0
  %568 = vmatprep.subr.bf16.mxu0 0
  %569 = vmatpush2.bf16.msra.mxu0 0
  %570 = vmatprep.mubr.bf16.mxu0 0
  %571 = vmatmul.mubr.bf16.gmra.mxu0 %v496
  %v572 = vpop.f32.mrf.mxu0
  %v573 = vadd.f32 0.0, %v572
  %v574 = vpop.f32.mrf.mxu0
  %v575 = vadd.f32 0.0, %v574
  %v576 = vpop.f32.mrf.mxu0
  %v577 = vpop.f32.mrf.mxu0
  %578 = vdwg.mxu0
  %v579 = vadd.f32 %v59, %v532
  %v580 = vadd.f32 %v60, %v534
  %v581 = vadd.f32 %v61, %v573
  %v582 = vadd.f32 %v62, %v575
  %v583 = vxor.u32 %v579, 2147483648
  %v584 = vmul.f32 %v583, 1.442695
  %v585 = vpow.pop %v584
  %v586 = vadd.f32 %v585, 1.0
  %v587 = vrcp.pop %v586
  %v588 = vmul.f32 1.0, %v587
  %v589 = vxor.u32 %v580, 2147483648
  %v590 = vmul.f32 %v589, 1.442695
  %v591 = vpow.pop %v590
  %v592 = vadd.f32 %v591, 1.0
  %v593 = vrcp.pop %v592
  %v594 = vmul.f32 1.0, %v593
  %v595 = vtanh.pop %v581
  %v596 = vxor.u32 %v582, 2147483648
  %v597 = vmul.f32 %v596, 1.442695
  %v598 = vpow.pop %v597
  %v599 = vadd.f32 %v598, 1.0
  %v600 = vrcp.pop %v599
  %v601 = vmul.f32 1.0, %v600
  %v602 = vmul.f32 %v594, %v493
  %v603 = vmul.f32 %v588, %v595
  %v604 = vadd.f32 %v602, %v603
  %v605 = vtanh.pop %v604
  %v606 = vmul.f32 %v601, %v605
  %v607 = vpack.c.bf16 %v606, %v606
  %608 = vmatprep.subr.bf16.mxu0 %v240
  %609 = vmatpush1.bf16.msra.mxu0 %v239
  %610 = vmatprep.subr.bf16.mxu0 %v236
  %611 = vmatpush1.bf16.msra.mxu0 %v235
  %612 = vmatprep.subr.bf16.mxu0 %v232
  %613 = vmatpush1.bf16.msra.mxu0 %v231
  %614 = vmatprep.subr.bf16.mxu0 %v228
  %615 = vmatpush1.bf16.msra.mxu0 %v227
  %616 = vmatprep.subr.bf16.mxu0 %v224
  %617 = vmatpush1.bf16.msra.mxu0 %v223
  %618 = vmatprep.subr.bf16.mxu0 %v220
  %619 = vmatpush1.bf16.msra.mxu0 %v219
  %620 = vmatprep.subr.bf16.mxu0 %v216
  %621 = vmatpush1.bf16.msra.mxu0 %v215
  %622 = vmatprep.subr.bf16.mxu0 %v212
  %623 = vmatpush1.bf16.msra.mxu0 %v211
  %624 = vmatprep.subr.bf16.mxu0 0
  %625 = vmatpush2.bf16.msra.mxu0 0
  %626 = vmatprep.subr.bf16.mxu0 0
  %627 = vmatpush2.bf16.msra.mxu0 0
  %628 = vmatprep.subr.bf16.mxu0 0
  %629 = vmatpush2.bf16.msra.mxu0 0
  %630 = vmatprep.subr.bf16.mxu0 0
  %631 = vmatpush2.bf16.msra.mxu0 0
  %632 = vmatprep.subr.bf16.mxu0 0
  %633 = vmatpush2.bf16.msra.mxu0 0
  %634 = vmatprep.subr.bf16.mxu0 0
  %635 = vmatpush2.bf16.msra.mxu0 0
  %636 = vmatprep.subr.bf16.mxu0 0
  %637 = vmatpush2.bf16.msra.mxu0 0
  %638 = vmatprep.subr.bf16.mxu0 0
  %639 = vmatpush2.bf16.msra.mxu0 0
  %640 = vmatprep.mubr.bf16.mxu0 0
  %641 = vmatmul.mubr.bf16.gmra.mxu0 %v607
  %v642 = vpop.f32.mrf.mxu0
  %v643 = vadd.f32 0.0, %v642
  %v644 = vpop.f32.mrf.mxu0
  %v645 = vadd.f32 0.0, %v644
  %v646 = vpop.f32.mrf.mxu0
  %v647 = vpop.f32.mrf.mxu0
  %648 = vdwg.mxu0
  %649 = vmatprep.subr.bf16.mxu0 %v242
  %650 = vmatpush1.bf16.msra.mxu0 %v241
  %651 = vmatprep.subr.bf16.mxu0 %v238
  %652 = vmatpush1.bf16.msra.mxu0 %v237
  %653 = vmatprep.subr.bf16.mxu0 %v234
  %654 = vmatpush1.bf16.msra.mxu0 %v233
  %655 = vmatprep.subr.bf16.mxu0 %v230
  %656 = vmatpush1.bf16.msra.mxu0 %v229
  %657 = vmatprep.subr.bf16.mxu0 %v226
  %658 = vmatpush1.bf16.msra.mxu0 %v225
  %659 = vmatprep.subr.bf16.mxu0 %v222
  %660 = vmatpush1.bf16.msra.mxu0 %v221
  %661 = vmatprep.subr.bf16.mxu0 %v218
  %662 = vmatpush1.bf16.msra.mxu0 %v217
  %663 = vmatprep.subr.bf16.mxu0 %v214
  %664 = vmatpush1.bf16.msra.mxu0 %v213
  %665 = vmatprep.subr.bf16.mxu0 0
  %666 = vmatpush2.bf16.msra.mxu0 0
  %667 = vmatprep.subr.bf16.mxu0 0
  %668 = vmatpush2.bf16.msra.mxu0 0
  %669 = vmatprep.subr.bf16.mxu0 0
  %670 = vmatpush2.bf16.msra.mxu0 0
  %671 = vmatprep.subr.bf16.mxu0 0
  %672 = vmatpush2.bf16.msra.mxu0 0
  %673 = vmatprep.subr.bf16.mxu0 0
  %674 = vmatpush2.bf16.msra.mxu0 0
  %675 = vmatprep.subr.bf16.mxu0 0
  %676 = vmatpush2.bf16.msra.mxu0 0
  %677 = vmatprep.subr.bf16.mxu0 0
  %678 = vmatpush2.bf16.msra.mxu0 0
  %679 = vmatprep.subr.bf16.mxu0 0
  %680 = vmatpush2.bf16.msra.mxu0 0
  %681 = vmatprep.mubr.bf16.mxu0 0
  %682 = vmatmul.mubr.bf16.gmra.mxu0 %v607
  %v683 = vpop.f32.mrf.mxu0
  %v684 = vadd.f32 0.0, %v683
  %v685 = vpop.f32.mrf.mxu0
  %v686 = vadd.f32 0.0, %v685
  %v687 = vpop.f32.mrf.mxu0
  %v688 = vpop.f32.mrf.mxu0
  %689 = vdwg.mxu0
  %v690 = vadd.f32 %v63, %v643
  %v691 = vadd.f32 %v64, %v645
  %v692 = vadd.f32 %v65, %v684
  %v693 = vadd.f32 %v66, %v686
  %v694 = vxor.u32 %v690, 2147483648
  %v695 = vmul.f32 %v694, 1.442695
  %v696 = vpow.pop %v695
  %v697 = vadd.f32 %v696, 1.0
  %v698 = vrcp.pop %v697
  %v699 = vmul.f32 1.0, %v698
  %v700 = vxor.u32 %v691, 2147483648
  %v701 = vmul.f32 %v700, 1.442695
  %v702 = vpow.pop %v701
  %v703 = vadd.f32 %v702, 1.0
  %v704 = vrcp.pop %v703
  %v705 = vmul.f32 1.0, %v704
  %v706 = vtanh.pop %v692
  %v707 = vxor.u32 %v693, 2147483648
  %v708 = vmul.f32 %v707, 1.442695
  %v709 = vpow.pop %v708
  %v710 = vadd.f32 %v709, 1.0
  %v711 = vrcp.pop %v710
  %v712 = vmul.f32 1.0, %v711
  %v713 = vmul.f32 %v705, %v604
  %v714 = vmul.f32 %v699, %v706
  %v715 = vadd.f32 %v713, %v714
  %v716 = vtanh.pop %v715
  %v717 = vmul.f32 %v712, %v716
  %v718 = vpack.c.bf16 %v717, %v717
  %719 = vmatprep.subr.bf16.mxu0 %v240
  %720 = vmatpush1.bf16.msra.mxu0 %v239
  %721 = vmatprep.subr.bf16.mxu0 %v236
  %722 = vmatpush1.bf16.msra.mxu0 %v235
  %723 = vmatprep.subr.bf16.mxu0 %v232
  %724 = vmatpush1.bf16.msra.mxu0 %v231
  %725 = vmatprep.subr.bf16.mxu0 %v228
  %726 = vmatpush1.bf16.msra.mxu0 %v227
  %727 = vmatprep.subr.bf16.mxu0 %v224
  %728 = vmatpush1.bf16.msra.mxu0 %v223
  %729 = vmatprep.subr.bf16.mxu0 %v220
  %730 = vmatpush1.bf16.msra.mxu0 %v219
  %731 = vmatprep.subr.bf16.mxu0 %v216
  %732 = vmatpush1.bf16.msra.mxu0 %v215
  %733 = vmatprep.subr.bf16.mxu0 %v212
  %734 = vmatpush1.bf16.msra.mxu0 %v211
  %735 = vmatprep.subr.bf16.mxu0 0
  %736 = vmatpush2.bf16.msra.mxu0 0
  %737 = vmatprep.subr.bf16.mxu0 0
  %738 = vmatpush2.bf16.msra.mxu0 0
  %739 = vmatprep.subr.bf16.mxu0 0
  %740 = vmatpush2.bf16.msra.mxu0 0
  %741 = vmatprep.subr.bf16.mxu0 0
  %742 = vmatpush2.bf16.msra.mxu0 0
  %743 = vmatprep.subr.bf16.mxu0 0
  %744 = vmatpush2.bf16.msra.mxu0 0
  %745 = vmatprep.subr.bf16.mxu0 0
  %746 = vmatpush2.bf16.msra.mxu0 0
  %747 = vmatprep.subr.bf16.mxu0 0
  %748 = vmatpush2.bf16.msra.mxu0 0
  %749 = vmatprep.subr.bf16.mxu0 0
  %750 = vmatpush2.bf16.msra.mxu0 0
  %751 = vmatprep.mubr.bf16.mxu0 0
  %752 = vmatmul.mubr.bf16.gmra.mxu0 %v718
  %v753 = vpop.f32.mrf.mxu0
  %v754 = vadd.f32 0.0, %v753
  %v755 = vpop.f32.mrf.mxu0
  %v756 = vadd.f32 0.0, %v755
  %v757 = vpop.f32.mrf.mxu0
  %v758 = vpop.f32.mrf.mxu0
  %759 = vdwg.mxu0
  %760 = vmatprep.subr.bf16.mxu0 %v242
  %761 = vmatpush1.bf16.msra.mxu0 %v241
  %762 = vmatprep.subr.bf16.mxu0 %v238
  %763 = vmatpush1.bf16.msra.mxu0 %v237
  %764 = vmatprep.subr.bf16.mxu0 %v234
  %765 = vmatpush1.bf16.msra.mxu0 %v233
  %766 = vmatprep.subr.bf16.mxu0 %v230
  %767 = vmatpush1.bf16.msra.mxu0 %v229
  %768 = vmatprep.subr.bf16.mxu0 %v226
  %769 = vmatpush1.bf16.msra.mxu0 %v225
  %770 = vmatprep.subr.bf16.mxu0 %v222
  %771 = vmatpush1.bf16.msra.mxu0 %v221
  %772 = vmatprep.subr.bf16.mxu0 %v218
  %773 = vmatpush1.bf16.msra.mxu0 %v217
  %774 = vmatprep.subr.bf16.mxu0 %v214
  %775 = vmatpush1.bf16.msra.mxu0 %v213
  %776 = vmatprep.subr.bf16.mxu0 0
  %777 = vmatpush2.bf16.msra.mxu0 0
  %778 = vmatprep.subr.bf16.mxu0 0
  %779 = vmatpush2.bf16.msra.mxu0 0
  %780 = vmatprep.subr.bf16.mxu0 0
  %781 = vmatpush2.bf16.msra.mxu0 0
  %782 = vmatprep.subr.bf16.mxu0 0
  %783 = vmatpush2.bf16.msra.mxu0 0
  %784 = vmatprep.subr.bf16.mxu0 0
  %785 = vmatpush2.bf16.msra.mxu0 0
  %786 = vmatprep.subr.bf16.mxu0 0
  %787 = vmatpush2.bf16.msra.mxu0 0
  %788 = vmatprep.subr.bf16.mxu0 0
  %789 = vmatpush2.bf16.msra.mxu0 0
  %790 = vmatprep.subr.bf16.mxu0 0
  %791 = vmatpush2.bf16.msra.mxu0 0
  %792 = vmatprep.mubr.bf16.mxu0 0
  %793 = vmatmul.mubr.bf16.gmra.mxu0 %v718
  %v794 = vpop.f32.mrf.mxu0
  %v795 = vadd.f32 0.0, %v794
  %v796 = vpop.f32.mrf.mxu0
  %v797 = vadd.f32 0.0, %v796
  %v798 = vpop.f32.mrf.mxu0
  %v799 = vpop.f32.mrf.mxu0
  %800 = vdwg.mxu0
  %v801 = vadd.f32 %v67, %v754
  %v802 = vadd.f32 %v68, %v756
  %v803 = vadd.f32 %v69, %v795
  %v804 = vadd.f32 %v70, %v797
  %v805 = vxor.u32 %v801, 2147483648
  %v806 = vmul.f32 %v805, 1.442695
  %v807 = vpow.pop %v806
  %v808 = vadd.f32 %v807, 1.0
  %v809 = vrcp.pop %v808
  %v810 = vmul.f32 1.0, %v809
  %v811 = vxor.u32 %v802, 2147483648
  %v812 = vmul.f32 %v811, 1.442695
  %v813 = vpow.pop %v812
  %v814 = vadd.f32 %v813, 1.0
  %v815 = vrcp.pop %v814
  %v816 = vmul.f32 1.0, %v815
  %v817 = vtanh.pop %v803
  %v818 = vxor.u32 %v804, 2147483648
  %v819 = vmul.f32 %v818, 1.442695
  %v820 = vpow.pop %v819
  %v821 = vadd.f32 %v820, 1.0
  %v822 = vrcp.pop %v821
  %v823 = vmul.f32 1.0, %v822
  %v824 = vmul.f32 %v816, %v715
  %v825 = vmul.f32 %v810, %v817
  %v826 = vadd.f32 %v824, %v825
  %v827 = vtanh.pop %v826
  %v828 = vmul.f32 %v823, %v827
  %v829 = vpack.c.bf16 %v828, %v828
  %830 = vmatprep.subr.bf16.mxu0 %v240
  %831 = vmatpush1.bf16.msra.mxu0 %v239
  %832 = vmatprep.subr.bf16.mxu0 %v236
  %833 = vmatpush1.bf16.msra.mxu0 %v235
  %834 = vmatprep.subr.bf16.mxu0 %v232
  %835 = vmatpush1.bf16.msra.mxu0 %v231
  %836 = vmatprep.subr.bf16.mxu0 %v228
  %837 = vmatpush1.bf16.msra.mxu0 %v227
  %838 = vmatprep.subr.bf16.mxu0 %v224
  %839 = vmatpush1.bf16.msra.mxu0 %v223
  %840 = vmatprep.subr.bf16.mxu0 %v220
  %841 = vmatpush1.bf16.msra.mxu0 %v219
  %842 = vmatprep.subr.bf16.mxu0 %v216
  %843 = vmatpush1.bf16.msra.mxu0 %v215
  %844 = vmatprep.subr.bf16.mxu0 %v212
  %845 = vmatpush1.bf16.msra.mxu0 %v211
  %846 = vmatprep.subr.bf16.mxu0 0
  %847 = vmatpush2.bf16.msra.mxu0 0
  %848 = vmatprep.subr.bf16.mxu0 0
  %849 = vmatpush2.bf16.msra.mxu0 0
  %850 = vmatprep.subr.bf16.mxu0 0
  %851 = vmatpush2.bf16.msra.mxu0 0
  %852 = vmatprep.subr.bf16.mxu0 0
  %853 = vmatpush2.bf16.msra.mxu0 0
  %854 = vmatprep.subr.bf16.mxu0 0
  %855 = vmatpush2.bf16.msra.mxu0 0
  %856 = vmatprep.subr.bf16.mxu0 0
  %857 = vmatpush2.bf16.msra.mxu0 0
  %858 = vmatprep.subr.bf16.mxu0 0
  %859 = vmatpush2.bf16.msra.mxu0 0
  %860 = vmatprep.subr.bf16.mxu0 0
  %861 = vmatpush2.bf16.msra.mxu0 0
  %862 = vmatprep.mubr.bf16.mxu0 0
  %863 = vmatmul.mubr.bf16.gmra.mxu0 %v829
  %v864 = vpop.f32.mrf.mxu0
  %v865 = vadd.f32 0.0, %v864
  %v866 = vpop.f32.mrf.mxu0
  %v867 = vadd.f32 0.0, %v866
  %v868 = vpop.f32.mrf.mxu0
  %v869 = vpop.f32.mrf.mxu0
  %870 = vdwg.mxu0
  %871 = vmatprep.subr.bf16.mxu0 %v242
  %872 = vmatpush1.bf16.msra.mxu0 %v241
  %873 = vmatprep.subr.bf16.mxu0 %v238
  %874 = vmatpush1.bf16.msra.mxu0 %v237
  %875 = vmatprep.subr.bf16.mxu0 %v234
  %876 = vmatpush1.bf16.msra.mxu0 %v233
  %877 = vmatprep.subr.bf16.mxu0 %v230
  %878 = vmatpush1.bf16.msra.mxu0 %v229
  %879 = vmatprep.subr.bf16.mxu0 %v226
  %880 = vmatpush1.bf16.msra.mxu0 %v225
  %881 = vmatprep.subr.bf16.mxu0 %v222
  %882 = vmatpush1.bf16.msra.mxu0 %v221
  %883 = vmatprep.subr.bf16.mxu0 %v218
  %884 = vmatpush1.bf16.msra.mxu0 %v217
  %885 = vmatprep.subr.bf16.mxu0 %v214
  %886 = vmatpush1.bf16.msra.mxu0 %v213
  %887 = vmatprep.subr.bf16.mxu0 0
  %888 = vmatpush2.bf16.msra.mxu0 0
  %889 = vmatprep.subr.bf16.mxu0 0
  %890 = vmatpush2.bf16.msra.mxu0 0
  %891 = vmatprep.subr.bf16.mxu0 0
  %892 = vmatpush2.bf16.msra.mxu0 0
  %893 = vmatprep.subr.bf16.mxu0 0
  %894 = vmatpush2.bf16.msra.mxu0 0
  %895 = vmatprep.subr.bf16.mxu0 0
  %896 = vmatpush2.bf16.msra.mxu0 0
  %897 = vmatprep.subr.bf16.mxu0 0
  %898 = vmatpush2.bf16.msra.mxu0 0
  %899 = vmatprep.subr.bf16.mxu0 0
  %900 = vmatpush2.bf16.msra.mxu0 0
  %901 = vmatprep.subr.bf16.mxu0 0
  %902 = vmatpush2.bf16.msra.mxu0 0
  %903 = vmatprep.mubr.bf16.mxu0 0
  %904 = vmatmul.mubr.bf16.gmra.mxu0 %v829
  %v905 = vpop.f32.mrf.mxu0
  %v906 = vadd.f32 0.0, %v905
  %v907 = vpop.f32.mrf.mxu0
  %v908 = vadd.f32 0.0, %v907
  %v909 = vpop.f32.mrf.mxu0
  %v910 = vpop.f32.mrf.mxu0
  %911 = vdwg.mxu0
  %v912 = vadd.f32 %v71, %v865
  %v913 = vadd.f32 %v72, %v867
  %v914 = vadd.f32 %v73, %v906
  %v915 = vadd.f32 %v74, %v908
  %v916 = vxor.u32 %v912, 2147483648
  %v917 = vmul.f32 %v916, 1.442695
  %v918 = vpow.pop %v917
  %v919 = vadd.f32 %v918, 1.0
  %v920 = vrcp.pop %v919
  %v921 = vmul.f32 1.0, %v920
  %v922 = vxor.u32 %v913, 2147483648
  %v923 = vmul.f32 %v922, 1.442695
  %v924 = vpow.pop %v923
  %v925 = vadd.f32 %v924, 1.0
  %v926 = vrcp.pop %v925
  %v927 = vmul.f32 1.0, %v926
  %v928 = vtanh.pop %v914
  %v929 = vxor.u32 %v915, 2147483648
  %v930 = vmul.f32 %v929, 1.442695
  %v931 = vpow.pop %v930
  %v932 = vadd.f32 %v931, 1.0
  %v933 = vrcp.pop %v932
  %v934 = vmul.f32 1.0, %v933
  %v935 = vmul.f32 %v927, %v826
  %v936 = vmul.f32 %v921, %v928
  %v937 = vadd.f32 %v935, %v936
  %v938 = vtanh.pop %v937
  %v939 = vmul.f32 %v934, %v938
  %v940 = vpack.c.bf16 %v939, %v939
  %941 = vmatprep.subr.bf16.mxu0 %v240
  %942 = vmatpush1.bf16.msra.mxu0 %v239
  %943 = vmatprep.subr.bf16.mxu0 %v236
  %944 = vmatpush1.bf16.msra.mxu0 %v235
  %945 = vmatprep.subr.bf16.mxu0 %v232
  %946 = vmatpush1.bf16.msra.mxu0 %v231
  %947 = vmatprep.subr.bf16.mxu0 %v228
  %948 = vmatpush1.bf16.msra.mxu0 %v227
  %949 = vmatprep.subr.bf16.mxu0 %v224
  %950 = vmatpush1.bf16.msra.mxu0 %v223
  %951 = vmatprep.subr.bf16.mxu0 %v220
  %952 = vmatpush1.bf16.msra.mxu0 %v219
  %953 = vmatprep.subr.bf16.mxu0 %v216
  %954 = vmatpush1.bf16.msra.mxu0 %v215
  %955 = vmatprep.subr.bf16.mxu0 %v212
  %956 = vmatpush1.bf16.msra.mxu0 %v211
  %957 = vmatprep.subr.bf16.mxu0 0
  %958 = vmatpush2.bf16.msra.mxu0 0
  %959 = vmatprep.subr.bf16.mxu0 0
  %960 = vmatpush2.bf16.msra.mxu0 0
  %961 = vmatprep.subr.bf16.mxu0 0
  %962 = vmatpush2.bf16.msra.mxu0 0
  %963 = vmatprep.subr.bf16.mxu0 0
  %964 = vmatpush2.bf16.msra.mxu0 0
  %965 = vmatprep.subr.bf16.mxu0 0
  %966 = vmatpush2.bf16.msra.mxu0 0
  %967 = vmatprep.subr.bf16.mxu0 0
  %968 = vmatpush2.bf16.msra.mxu0 0
  %969 = vmatprep.subr.bf16.mxu0 0
  %970 = vmatpush2.bf16.msra.mxu0 0
  %971 = vmatprep.subr.bf16.mxu0 0
  %972 = vmatpush2.bf16.msra.mxu0 0
  %973 = vmatprep.mubr.bf16.mxu0 0
  %974 = vmatmul.mubr.bf16.gmra.mxu0 %v940
  %v975 = vpop.f32.mrf.mxu0
  %v976 = vadd.f32 0.0, %v975
  %v977 = vpop.f32.mrf.mxu0
  %v978 = vadd.f32 0.0, %v977
  %v979 = vpop.f32.mrf.mxu0
  %v980 = vpop.f32.mrf.mxu0
  %981 = vdwg.mxu0
  %982 = vmatprep.subr.bf16.mxu0 %v242
  %983 = vmatpush1.bf16.msra.mxu0 %v241
  %984 = vmatprep.subr.bf16.mxu0 %v238
  %985 = vmatpush1.bf16.msra.mxu0 %v237
  %986 = vmatprep.subr.bf16.mxu0 %v234
  %987 = vmatpush1.bf16.msra.mxu0 %v233
  %988 = vmatprep.subr.bf16.mxu0 %v230
  %989 = vmatpush1.bf16.msra.mxu0 %v229
  %990 = vmatprep.subr.bf16.mxu0 %v226
  %991 = vmatpush1.bf16.msra.mxu0 %v225
  %992 = vmatprep.subr.bf16.mxu0 %v222
  %993 = vmatpush1.bf16.msra.mxu0 %v221
  %994 = vmatprep.subr.bf16.mxu0 %v218
  %995 = vmatpush1.bf16.msra.mxu0 %v217
  %996 = vmatprep.subr.bf16.mxu0 %v214
  %997 = vmatpush1.bf16.msra.mxu0 %v213
  %998 = vmatprep.subr.bf16.mxu0 0
  %999 = vmatpush2.bf16.msra.mxu0 0
  %1000 = vmatprep.subr.bf16.mxu0 0
  %1001 = vmatpush2.bf16.msra.mxu0 0
  %1002 = vmatprep.subr.bf16.mxu0 0
  %1003 = vmatpush2.bf16.msra.mxu0 0
  %1004 = vmatprep.subr.bf16.mxu0 0
  %1005 = vmatpush2.bf16.msra.mxu0 0
  %1006 = vmatprep.subr.bf16.mxu0 0
  %1007 = vmatpush2.bf16.msra.mxu0 0
  %1008 = vmatprep.subr.bf16.mxu0 0
  %1009 = vmatpush2.bf16.msra.mxu0 0
  %1010 = vmatprep.subr.bf16.mxu0 0
  %1011 = vmatpush2.bf16.msra.mxu0 0
  %1012 = vmatprep.subr.bf16.mxu0 0
  %1013 = vmatpush2.bf16.msra.mxu0 0
  %1014 = vmatprep.mubr.bf16.mxu0 0
  %1015 = vmatmul.mubr.bf16.gmra.mxu0 %v940
  %v1016 = vpop.f32.mrf.mxu0
  %v1017 = vadd.f32 0.0, %v1016
  %v1018 = vpop.f32.mrf.mxu0
  %v1019 = vadd.f32 0.0, %v1018
  %v1020 = vpop.f32.mrf.mxu0
  %v1021 = vpop.f32.mrf.mxu0
  %1022 = vdwg.mxu0
  %v1023 = vadd.f32 %v75, %v976
  %v1024 = vadd.f32 %v76, %v978
  %v1025 = vadd.f32 %v77, %v1017
  %v1026 = vadd.f32 %v78, %v1019
  %v1027 = vxor.u32 %v1023, 2147483648
  %v1028 = vmul.f32 %v1027, 1.442695
  %v1029 = vpow.pop %v1028
  %v1030 = vadd.f32 %v1029, 1.0
  %v1031 = vrcp.pop %v1030
  %v1032 = vmul.f32 1.0, %v1031
  %v1033 = vxor.u32 %v1024, 2147483648
  %v1034 = vmul.f32 %v1033, 1.442695
  %v1035 = vpow.pop %v1034
  %v1036 = vadd.f32 %v1035, 1.0
  %v1037 = vrcp.pop %v1036
  %v1038 = vmul.f32 1.0, %v1037
  %v1039 = vtanh.pop %v1025
  %v1040 = vxor.u32 %v1026, 2147483648
  %v1041 = vmul.f32 %v1040, 1.442695
  %v1042 = vpow.pop %v1041
  %v1043 = vadd.f32 %v1042, 1.0
  %v1044 = vrcp.pop %v1043
  %v1045 = vmul.f32 1.0, %v1044
  %v1046 = vmul.f32 %v1038, %v937
  %v1047 = vmul.f32 %v1032, %v1039
  %v1048 = vadd.f32 %v1046, %v1047
  %v1049 = vtanh.pop %v1048
  %v1050 = vmul.f32 %v1045, %v1049
  %v1051 = vpack.c.bf16 %v1050, %v1050
  %1052 = vmatprep.subr.bf16.mxu0 %v240
  %1053 = vmatpush1.bf16.msra.mxu0 %v239
  %1054 = vmatprep.subr.bf16.mxu0 %v236
  %1055 = vmatpush1.bf16.msra.mxu0 %v235
  %1056 = vmatprep.subr.bf16.mxu0 %v232
  %1057 = vmatpush1.bf16.msra.mxu0 %v231
  %1058 = vmatprep.subr.bf16.mxu0 %v228
  %1059 = vmatpush1.bf16.msra.mxu0 %v227
  %1060 = vmatprep.subr.bf16.mxu0 %v224
  %1061 = vmatpush1.bf16.msra.mxu0 %v223
  %1062 = vmatprep.subr.bf16.mxu0 %v220
  %1063 = vmatpush1.bf16.msra.mxu0 %v219
  %1064 = vmatprep.subr.bf16.mxu0 %v216
  %1065 = vmatpush1.bf16.msra.mxu0 %v215
  %1066 = vmatprep.subr.bf16.mxu0 %v212
  %1067 = vmatpush1.bf16.msra.mxu0 %v211
  %1068 = vmatprep.subr.bf16.mxu0 0
  %1069 = vmatpush2.bf16.msra.mxu0 0
  %1070 = vmatprep.subr.bf16.mxu0 0
  %1071 = vmatpush2.bf16.msra.mxu0 0
  %1072 = vmatprep.subr.bf16.mxu0 0
  %1073 = vmatpush2.bf16.msra.mxu0 0
  %1074 = vmatprep.subr.bf16.mxu0 0
  %1075 = vmatpush2.bf16.msra.mxu0 0
  %1076 = vmatprep.subr.bf16.mxu0 0
  %1077 = vmatpush2.bf16.msra.mxu0 0
  %1078 = vmatprep.subr.bf16.mxu0 0
  %1079 = vmatpush2.bf16.msra.mxu0 0
  %1080 = vmatprep.subr.bf16.mxu0 0
  %1081 = vmatpush2.bf16.msra.mxu0 0
  %1082 = vmatprep.subr.bf16.mxu0 0
  %1083 = vmatpush2.bf16.msra.mxu0 0
  %1084 = vmatprep.mubr.bf16.mxu0 0
  %1085 = vmatmul.mubr.bf16.gmra.mxu0 %v1051
  %v1086 = vpop.f32.mrf.mxu0
  %v1087 = vadd.f32 0.0, %v1086
  %v1088 = vpop.f32.mrf.mxu0
  %v1089 = vadd.f32 0.0, %v1088
  %v1090 = vpop.f32.mrf.mxu0
  %v1091 = vpop.f32.mrf.mxu0
  %1092 = vdwg.mxu0
  %1093 = vmatprep.subr.bf16.mxu0 %v242
  %1094 = vmatpush1.bf16.msra.mxu0 %v241
  %1095 = vmatprep.subr.bf16.mxu0 %v238
  %1096 = vmatpush1.bf16.msra.mxu0 %v237
  %1097 = vmatprep.subr.bf16.mxu0 %v234
  %1098 = vmatpush1.bf16.msra.mxu0 %v233
  %1099 = vmatprep.subr.bf16.mxu0 %v230
  %1100 = vmatpush1.bf16.msra.mxu0 %v229
  %1101 = vmatprep.subr.bf16.mxu0 %v226
  %1102 = vmatpush1.bf16.msra.mxu0 %v225
  %1103 = vmatprep.subr.bf16.mxu0 %v222
  %1104 = vmatpush1.bf16.msra.mxu0 %v221
  %1105 = vmatprep.subr.bf16.mxu0 %v218
  %1106 = vmatpush1.bf16.msra.mxu0 %v217
  %1107 = vmatprep.subr.bf16.mxu0 %v214
  %1108 = vmatpush1.bf16.msra.mxu0 %v213
  %1109 = vmatprep.subr.bf16.mxu0 0
  %1110 = vmatpush2.bf16.msra.mxu0 0
  %1111 = vmatprep.subr.bf16.mxu0 0
  %1112 = vmatpush2.bf16.msra.mxu0 0
  %1113 = vmatprep.subr.bf16.mxu0 0
  %1114 = vmatpush2.bf16.msra.mxu0 0
  %1115 = vmatprep.subr.bf16.mxu0 0
  %1116 = vmatpush2.bf16.msra.mxu0 0
  %1117 = vmatprep.subr.bf16.mxu0 0
  %1118 = vmatpush2.bf16.msra.mxu0 0
  %1119 = vmatprep.subr.bf16.mxu0 0
  %1120 = vmatpush2.bf16.msra.mxu0 0
  %1121 = vmatprep.subr.bf16.mxu0 0
  %1122 = vmatpush2.bf16.msra.mxu0 0
  %1123 = vmatprep.subr.bf16.mxu0 0
  %1124 = vmatpush2.bf16.msra.mxu0 0
  %1125 = vmatprep.mubr.bf16.mxu0 0
  %1126 = vmatmul.mubr.bf16.gmra.mxu0 %v1051
  %v1127 = vpop.f32.mrf.mxu0
  %v1128 = vadd.f32 0.0, %v1127
  %v1129 = vpop.f32.mrf.mxu0
  %v1130 = vadd.f32 0.0, %v1129
  %v1131 = vpop.f32.mrf.mxu0
  %v1132 = vpop.f32.mrf.mxu0
  %1133 = vdwg.mxu0
  %v1134 = vadd.f32 %v79, %v1087
  %v1135 = vadd.f32 %v80, %v1089
  %v1136 = vadd.f32 %v81, %v1128
  %v1137 = vadd.f32 %v82, %v1130
  %v1138 = vxor.u32 %v1134, 2147483648
  %v1139 = vmul.f32 %v1138, 1.442695
  %v1140 = vpow.pop %v1139
  %v1141 = vadd.f32 %v1140, 1.0
  %v1142 = vrcp.pop %v1141
  %v1143 = vmul.f32 1.0, %v1142
  %v1144 = vxor.u32 %v1135, 2147483648
  %v1145 = vmul.f32 %v1144, 1.442695
  %v1146 = vpow.pop %v1145
  %v1147 = vadd.f32 %v1146, 1.0
  %v1148 = vrcp.pop %v1147
  %v1149 = vmul.f32 1.0, %v1148
  %v1150 = vtanh.pop %v1136
  %v1151 = vxor.u32 %v1137, 2147483648
  %v1152 = vmul.f32 %v1151, 1.442695
  %v1153 = vpow.pop %v1152
  %v1154 = vadd.f32 %v1153, 1.0
  %v1155 = vrcp.pop %v1154
  %v1156 = vmul.f32 1.0, %v1155
  %v1157 = vmul.f32 %v1149, %v1048
  %v1158 = vmul.f32 %v1143, %v1150
  %v1159 = vadd.f32 %v1157, %v1158
  %v1160 = vtanh.pop %v1159
  %v1161 = vmul.f32 %v1156, %v1160
  %v1162 = vld [vmem:[%s1] sm:$0xff]
  %v1163 = vpack.c.bf16 %v1162, %v1162
  %v1164 = vld [vmem:[%s3] sm:$0xff]
  %v1165 = vld [vmem:[%s3 + $0x8] sm:$0xff]
  %v1166 = vld [vmem:[%s3 + $0x10] sm:$0xff]
  %v1167 = vld [vmem:[%s3 + $0x18] sm:$0xff]
  %v1168 = vld [vmem:[%s3 + $0x20] sm:$0xff]
  %v1169 = vld [vmem:[%s3 + $0x28] sm:$0xff]
  %v1170 = vld [vmem:[%s3 + $0x30] sm:$0xff]
  %v1171 = vld [vmem:[%s3 + $0x38] sm:$0xff]
  %v1172 = vld [vmem:[%s3 + $0x40] sm:$0xff]
  %v1173 = vld [vmem:[%s3 + $0x48] sm:$0xff]
  %v1174 = vld [vmem:[%s3 + $0x50] sm:$0xff]
  %v1175 = vld [vmem:[%s3 + $0x58] sm:$0xff]
  %v1176 = vld [vmem:[%s3 + $0x60] sm:$0xff]
  %v1177 = vld [vmem:[%s3 + $0x68] sm:$0xff]
  %v1178 = vld [vmem:[%s3 + $0x70] sm:$0xff]
  %v1179 = vld [vmem:[%s3 + $0x78] sm:$0xff]
  %v1180 = vld [vmem:[%s3 + $0x80] sm:$0xff]
  %v1181 = vld [vmem:[%s3 + $0x88] sm:$0xff]
  %v1182 = vld [vmem:[%s3 + $0x90] sm:$0xff]
  %v1183 = vld [vmem:[%s3 + $0x98] sm:$0xff]
  %v1184 = vld [vmem:[%s3 + $0xa0] sm:$0xff]
  %v1185 = vld [vmem:[%s3 + $0xa8] sm:$0xff]
  %v1186 = vld [vmem:[%s3 + $0xb0] sm:$0xff]
  %v1187 = vld [vmem:[%s3 + $0xb8] sm:$0xff]
  %v1188 = vld [vmem:[%s3 + $0xc0] sm:$0xff]
  %v1189 = vld [vmem:[%s3 + $0xc8] sm:$0xff]
  %v1190 = vld [vmem:[%s3 + $0xd0] sm:$0xff]
  %v1191 = vld [vmem:[%s3 + $0xd8] sm:$0xff]
  %v1192 = vld [vmem:[%s3 + $0xe0] sm:$0xff]
  %v1193 = vld [vmem:[%s3 + $0xe8] sm:$0xff]
  %v1194 = vld [vmem:[%s3 + $0xf0] sm:$0xff]
  %v1195 = vld [vmem:[%s3 + $0xf8] sm:$0xff]
  %v1196 = vld [vmem:[%s3 + $0x100] sm:$0xff]
  %v1197 = vld [vmem:[%s3 + $0x108] sm:$0xff]
  %v1198 = vld [vmem:[%s3 + $0x110] sm:$0xff]
  %v1199 = vld [vmem:[%s3 + $0x118] sm:$0xff]
  %v1200 = vld [vmem:[%s3 + $0x120] sm:$0xff]
  %v1201 = vld [vmem:[%s3 + $0x128] sm:$0xff]
  %v1202 = vld [vmem:[%s3 + $0x130] sm:$0xff]
  %v1203 = vld [vmem:[%s3 + $0x138] sm:$0xff]
  %v1204 = vld [vmem:[%s3 + $0x140] sm:$0xff]
  %v1205 = vld [vmem:[%s3 + $0x148] sm:$0xff]
  %v1206 = vld [vmem:[%s3 + $0x150] sm:$0xff]
  %v1207 = vld [vmem:[%s3 + $0x158] sm:$0xff]
  %v1208 = vld [vmem:[%s3 + $0x160] sm:$0xff]
  %v1209 = vld [vmem:[%s3 + $0x168] sm:$0xff]
  %v1210 = vld [vmem:[%s3 + $0x170] sm:$0xff]
  %v1211 = vld [vmem:[%s3 + $0x178] sm:$0xff]
  %v1212 = vld [vmem:[%s3 + $0x180] sm:$0xff]
  %v1213 = vld [vmem:[%s3 + $0x188] sm:$0xff]
  %v1214 = vld [vmem:[%s3 + $0x190] sm:$0xff]
  %v1215 = vld [vmem:[%s3 + $0x198] sm:$0xff]
  %v1216 = vld [vmem:[%s3 + $0x1a0] sm:$0xff]
  %v1217 = vld [vmem:[%s3 + $0x1a8] sm:$0xff]
  %v1218 = vld [vmem:[%s3 + $0x1b0] sm:$0xff]
  %v1219 = vld [vmem:[%s3 + $0x1b8] sm:$0xff]
  %v1220 = vld [vmem:[%s3 + $0x1c0] sm:$0xff]
  %v1221 = vld [vmem:[%s3 + $0x1c8] sm:$0xff]
  %v1222 = vld [vmem:[%s3 + $0x1d0] sm:$0xff]
  %v1223 = vld [vmem:[%s3 + $0x1d8] sm:$0xff]
  %v1224 = vld [vmem:[%s3 + $0x1e0] sm:$0xff]
  %v1225 = vld [vmem:[%s3 + $0x1e8] sm:$0xff]
  %v1226 = vld [vmem:[%s3 + $0x1f0] sm:$0xff]
  %v1227 = vld [vmem:[%s3 + $0x1f8] sm:$0xff]
  %v1228 = vld [vmem:[%s4] sm:$0xff]
  %v1229 = vld [vmem:[%s4 + $0x8] sm:$0xff]
  %v1232 = vlaneseq
  %v1233 = vshrl.u32 %v1232, 7
  %v1234 = vsub.s32 0, %v1233
  %v1235 = vrot.slane %v1228, %v1234
  %v1236 = vlaneseq
  %v1237 = vshrl.u32 %v1236, 7
  %v1238 = vsub.s32 1, %v1237
  %v1239 = vrot.slane %v1228, %v1238
  %v1240 = vlaneseq
  %v1241 = vshrl.u32 %v1240, 7
  %v1242 = vsub.s32 2, %v1241
  %v1243 = vrot.slane %v1228, %v1242
  %v1244 = vlaneseq
  %v1245 = vshrl.u32 %v1244, 7
  %v1246 = vsub.s32 3, %v1245
  %v1247 = vrot.slane %v1228, %v1246
  %v1248 = vlaneseq
  %v1249 = vshrl.u32 %v1248, 7
  %v1250 = vsub.s32 4, %v1249
  %v1251 = vrot.slane %v1228, %v1250
  %v1252 = vlaneseq
  %v1253 = vshrl.u32 %v1252, 7
  %v1254 = vsub.s32 5, %v1253
  %v1255 = vrot.slane %v1228, %v1254
  %v1256 = vlaneseq
  %v1257 = vshrl.u32 %v1256, 7
  %v1258 = vsub.s32 6, %v1257
  %v1259 = vrot.slane %v1228, %v1258
  %v1260 = vlaneseq
  %v1261 = vshrl.u32 %v1260, 7
  %v1262 = vsub.s32 7, %v1261
  %v1263 = vrot.slane %v1228, %v1262
  %v1264 = vlaneseq
  %v1265 = vshrl.u32 %v1264, 7
  %v1266 = vsub.s32 0, %v1265
  %v1267 = vrot.slane %v1229, %v1266
  %v1268 = vlaneseq
  %v1269 = vshrl.u32 %v1268, 7
  %v1270 = vsub.s32 1, %v1269
  %v1271 = vrot.slane %v1229, %v1270
  %v1272 = vlaneseq
  %v1273 = vshrl.u32 %v1272, 7
  %v1274 = vsub.s32 2, %v1273
  %v1275 = vrot.slane %v1229, %v1274
  %v1276 = vlaneseq
  %v1277 = vshrl.u32 %v1276, 7
  %v1278 = vsub.s32 3, %v1277
  %v1279 = vrot.slane %v1229, %v1278
  %v1280 = vlaneseq
  %v1281 = vshrl.u32 %v1280, 7
  %v1282 = vsub.s32 4, %v1281
  %v1283 = vrot.slane %v1229, %v1282
  %v1284 = vlaneseq
  %v1285 = vshrl.u32 %v1284, 7
  %v1286 = vsub.s32 5, %v1285
  %v1287 = vrot.slane %v1229, %v1286
  %v1288 = vlaneseq
  %v1289 = vshrl.u32 %v1288, 7
  %v1290 = vsub.s32 6, %v1289
  %v1291 = vrot.slane %v1229, %v1290
  %v1292 = vlaneseq
  %v1293 = vshrl.u32 %v1292, 7
  %v1294 = vsub.s32 7, %v1293
  %v1295 = vrot.slane %v1229, %v1294
  %v1376 = vunpack.c.l.b16 %v1164
  %v1377 = vunpack.c.h.b16 %v1164
  %v1378 = vunpack.c.l.b16 %v1165
  %v1379 = vunpack.c.h.b16 %v1165
  %v1380 = vunpack.c.l.b16 %v1166
  %v1381 = vunpack.c.h.b16 %v1166
  %v1382 = vunpack.c.l.b16 %v1167
  %v1383 = vunpack.c.h.b16 %v1167
  %v1384 = vunpack.c.l.b16 %v1168
  %v1385 = vunpack.c.h.b16 %v1168
  %v1386 = vunpack.c.l.b16 %v1169
  %v1387 = vunpack.c.h.b16 %v1169
  %v1388 = vunpack.c.l.b16 %v1170
  %v1389 = vunpack.c.h.b16 %v1170
  %v1390 = vunpack.c.l.b16 %v1171
  %v1391 = vunpack.c.h.b16 %v1171
  %v1392 = vunpack.c.l.b16 %v1172
  %v1393 = vunpack.c.h.b16 %v1172
  %v1394 = vunpack.c.l.b16 %v1173
  %v1395 = vunpack.c.h.b16 %v1173
  %v1396 = vunpack.c.l.b16 %v1174
  %v1397 = vunpack.c.h.b16 %v1174
  %v1398 = vunpack.c.l.b16 %v1175
  %v1399 = vunpack.c.h.b16 %v1175
  %v1400 = vunpack.c.l.b16 %v1176
  %v1401 = vunpack.c.h.b16 %v1176
  %v1402 = vunpack.c.l.b16 %v1177
  %v1403 = vunpack.c.h.b16 %v1177
  %v1404 = vunpack.c.l.b16 %v1178
  %v1405 = vunpack.c.h.b16 %v1178
  %v1406 = vunpack.c.l.b16 %v1179
  %v1407 = vunpack.c.h.b16 %v1179
  %v1408 = vunpack.c.l.b16 %v1180
  %v1409 = vunpack.c.h.b16 %v1180
  %v1410 = vunpack.c.l.b16 %v1181
  %v1411 = vunpack.c.h.b16 %v1181
  %v1412 = vunpack.c.l.b16 %v1182
  %v1413 = vunpack.c.h.b16 %v1182
  %v1414 = vunpack.c.l.b16 %v1183
  %v1415 = vunpack.c.h.b16 %v1183
  %v1416 = vunpack.c.l.b16 %v1184
  %v1417 = vunpack.c.h.b16 %v1184
  %v1418 = vunpack.c.l.b16 %v1185
  %v1419 = vunpack.c.h.b16 %v1185
  %v1420 = vunpack.c.l.b16 %v1186
  %v1421 = vunpack.c.h.b16 %v1186
  %v1422 = vunpack.c.l.b16 %v1187
  %v1423 = vunpack.c.h.b16 %v1187
  %v1424 = vunpack.c.l.b16 %v1188
  %v1425 = vunpack.c.h.b16 %v1188
  %v1426 = vunpack.c.l.b16 %v1189
  %v1427 = vunpack.c.h.b16 %v1189
  %v1428 = vunpack.c.l.b16 %v1190
  %v1429 = vunpack.c.h.b16 %v1190
  %v1430 = vunpack.c.l.b16 %v1191
  %v1431 = vunpack.c.h.b16 %v1191
  %v1432 = vunpack.c.l.b16 %v1192
  %v1433 = vunpack.c.h.b16 %v1192
  %v1434 = vunpack.c.l.b16 %v1193
  %v1435 = vunpack.c.h.b16 %v1193
  %v1436 = vunpack.c.l.b16 %v1194
  %v1437 = vunpack.c.h.b16 %v1194
  %v1438 = vunpack.c.l.b16 %v1195
  %v1439 = vunpack.c.h.b16 %v1195
  %v1440 = vunpack.c.l.b16 %v1196
  %v1441 = vunpack.c.h.b16 %v1196
  %v1442 = vunpack.c.l.b16 %v1197
  %v1443 = vunpack.c.h.b16 %v1197
  %v1444 = vunpack.c.l.b16 %v1198
  %v1445 = vunpack.c.h.b16 %v1198
  %v1446 = vunpack.c.l.b16 %v1199
  %v1447 = vunpack.c.h.b16 %v1199
  %v1448 = vunpack.c.l.b16 %v1200
  %v1449 = vunpack.c.h.b16 %v1200
  %v1450 = vunpack.c.l.b16 %v1201
  %v1451 = vunpack.c.h.b16 %v1201
  %v1452 = vunpack.c.l.b16 %v1202
  %v1453 = vunpack.c.h.b16 %v1202
  %v1454 = vunpack.c.l.b16 %v1203
  %v1455 = vunpack.c.h.b16 %v1203
  %v1456 = vunpack.c.l.b16 %v1204
  %v1457 = vunpack.c.h.b16 %v1204
  %v1458 = vunpack.c.l.b16 %v1205
  %v1459 = vunpack.c.h.b16 %v1205
  %v1460 = vunpack.c.l.b16 %v1206
  %v1461 = vunpack.c.h.b16 %v1206
  %v1462 = vunpack.c.l.b16 %v1207
  %v1463 = vunpack.c.h.b16 %v1207
  %v1464 = vunpack.c.l.b16 %v1208
  %v1465 = vunpack.c.h.b16 %v1208
  %v1466 = vunpack.c.l.b16 %v1209
  %v1467 = vunpack.c.h.b16 %v1209
  %v1468 = vunpack.c.l.b16 %v1210
  %v1469 = vunpack.c.h.b16 %v1210
  %v1470 = vunpack.c.l.b16 %v1211
  %v1471 = vunpack.c.h.b16 %v1211
  %v1472 = vunpack.c.l.b16 %v1212
  %v1473 = vunpack.c.h.b16 %v1212
  %v1474 = vunpack.c.l.b16 %v1213
  %v1475 = vunpack.c.h.b16 %v1213
  %v1476 = vunpack.c.l.b16 %v1214
  %v1477 = vunpack.c.h.b16 %v1214
  %v1478 = vunpack.c.l.b16 %v1215
  %v1479 = vunpack.c.h.b16 %v1215
  %v1480 = vunpack.c.l.b16 %v1216
  %v1481 = vunpack.c.h.b16 %v1216
  %v1482 = vunpack.c.l.b16 %v1217
  %v1483 = vunpack.c.h.b16 %v1217
  %v1484 = vunpack.c.l.b16 %v1218
  %v1485 = vunpack.c.h.b16 %v1218
  %v1486 = vunpack.c.l.b16 %v1219
  %v1487 = vunpack.c.h.b16 %v1219
  %v1488 = vunpack.c.l.b16 %v1220
  %v1489 = vunpack.c.h.b16 %v1220
  %v1490 = vunpack.c.l.b16 %v1221
  %v1491 = vunpack.c.h.b16 %v1221
  %v1492 = vunpack.c.l.b16 %v1222
  %v1493 = vunpack.c.h.b16 %v1222
  %v1494 = vunpack.c.l.b16 %v1223
  %v1495 = vunpack.c.h.b16 %v1223
  %v1496 = vunpack.c.l.b16 %v1224
  %v1497 = vunpack.c.h.b16 %v1224
  %v1498 = vunpack.c.l.b16 %v1225
  %v1499 = vunpack.c.h.b16 %v1225
  %v1500 = vunpack.c.l.b16 %v1226
  %v1501 = vunpack.c.h.b16 %v1226
  %v1502 = vunpack.c.l.b16 %v1227
  %v1503 = vunpack.c.h.b16 %v1227
  %v1504 = vpack.c.b16 %v1392, %v1376
  %v1505 = vpack.c.b16 %v1393, %v1377
  %v1506 = vpack.c.b16 %v1394, %v1378
  %v1507 = vpack.c.b16 %v1395, %v1379
  %v1508 = vpack.c.b16 %v1396, %v1380
  %v1509 = vpack.c.b16 %v1397, %v1381
  %v1510 = vpack.c.b16 %v1398, %v1382
  %v1511 = vpack.c.b16 %v1399, %v1383
  %v1512 = vpack.c.b16 %v1400, %v1384
  %v1513 = vpack.c.b16 %v1401, %v1385
  %v1514 = vpack.c.b16 %v1402, %v1386
  %v1515 = vpack.c.b16 %v1403, %v1387
  %v1516 = vpack.c.b16 %v1404, %v1388
  %v1517 = vpack.c.b16 %v1405, %v1389
  %v1518 = vpack.c.b16 %v1406, %v1390
  %v1519 = vpack.c.b16 %v1407, %v1391
  %v1520 = vpack.c.b16 %v1424, %v1408
  %v1521 = vpack.c.b16 %v1425, %v1409
  %v1522 = vpack.c.b16 %v1426, %v1410
  %v1523 = vpack.c.b16 %v1427, %v1411
  %v1524 = vpack.c.b16 %v1428, %v1412
  %v1525 = vpack.c.b16 %v1429, %v1413
  %v1526 = vpack.c.b16 %v1430, %v1414
  %v1527 = vpack.c.b16 %v1431, %v1415
  %v1528 = vpack.c.b16 %v1432, %v1416
  %v1529 = vpack.c.b16 %v1433, %v1417
  %v1530 = vpack.c.b16 %v1434, %v1418
  %v1531 = vpack.c.b16 %v1435, %v1419
  %v1532 = vpack.c.b16 %v1436, %v1420
  %v1533 = vpack.c.b16 %v1437, %v1421
  %v1534 = vpack.c.b16 %v1438, %v1422
  %v1535 = vpack.c.b16 %v1439, %v1423
  %v1536 = vpack.c.b16 %v1456, %v1440
  %v1537 = vpack.c.b16 %v1457, %v1441
  %v1538 = vpack.c.b16 %v1458, %v1442
  %v1539 = vpack.c.b16 %v1459, %v1443
  %v1540 = vpack.c.b16 %v1460, %v1444
  %v1541 = vpack.c.b16 %v1461, %v1445
  %v1542 = vpack.c.b16 %v1462, %v1446
  %v1543 = vpack.c.b16 %v1463, %v1447
  %v1544 = vpack.c.b16 %v1464, %v1448
  %v1545 = vpack.c.b16 %v1465, %v1449
  %v1546 = vpack.c.b16 %v1466, %v1450
  %v1547 = vpack.c.b16 %v1467, %v1451
  %v1548 = vpack.c.b16 %v1468, %v1452
  %v1549 = vpack.c.b16 %v1469, %v1453
  %v1550 = vpack.c.b16 %v1470, %v1454
  %v1551 = vpack.c.b16 %v1471, %v1455
  %v1552 = vpack.c.b16 %v1488, %v1472
  %v1553 = vpack.c.b16 %v1489, %v1473
  %v1554 = vpack.c.b16 %v1490, %v1474
  %v1555 = vpack.c.b16 %v1491, %v1475
  %v1556 = vpack.c.b16 %v1492, %v1476
  %v1557 = vpack.c.b16 %v1493, %v1477
  %v1558 = vpack.c.b16 %v1494, %v1478
  %v1559 = vpack.c.b16 %v1495, %v1479
  %v1560 = vpack.c.b16 %v1496, %v1480
  %v1561 = vpack.c.b16 %v1497, %v1481
  %v1562 = vpack.c.b16 %v1498, %v1482
  %v1563 = vpack.c.b16 %v1499, %v1483
  %v1564 = vpack.c.b16 %v1500, %v1484
  %v1565 = vpack.c.b16 %v1501, %v1485
  %v1566 = vpack.c.b16 %v1502, %v1486
  %v1567 = vpack.c.b16 %v1503, %v1487
  %vm1632 = vcmask 523264
  %v1634 = vsel %vm1632, %v1163, 0
  %1636 = vmatprep.subr.bf16.mxu0 0
  %1637 = vmatpush1.bf16.msra.mxu0 0
  %1638 = vmatprep.subr.bf16.mxu0 0
  %1639 = vmatpush1.bf16.msra.mxu0 0
  %1640 = vmatprep.subr.bf16.mxu0 0
  %1641 = vmatpush1.bf16.msra.mxu0 0
  %1642 = vmatprep.subr.bf16.mxu0 0
  %1643 = vmatpush1.bf16.msra.mxu0 0
  %1644 = vmatprep.subr.bf16.mxu0 %v1553
  %1645 = vmatpush1.bf16.msra.mxu0 %v1552
  %1646 = vmatprep.subr.bf16.mxu0 %v1537
  %1647 = vmatpush1.bf16.msra.mxu0 %v1536
  %1648 = vmatprep.subr.bf16.mxu0 %v1521
  %1649 = vmatpush1.bf16.msra.mxu0 %v1520
  %1650 = vmatprep.subr.bf16.mxu0 %v1505
  %1651 = vmatpush1.bf16.msra.mxu0 %v1504
  %1652 = vmatprep.subr.bf16.mxu0 0
  %1653 = vmatpush2.bf16.msra.mxu0 0
  %1654 = vmatprep.subr.bf16.mxu0 0
  %1655 = vmatpush2.bf16.msra.mxu0 0
  %1656 = vmatprep.subr.bf16.mxu0 0
  %1657 = vmatpush2.bf16.msra.mxu0 0
  %1658 = vmatprep.subr.bf16.mxu0 0
  %1659 = vmatpush2.bf16.msra.mxu0 0
  %1660 = vmatprep.subr.bf16.mxu0 0
  %1661 = vmatpush2.bf16.msra.mxu0 0
  %1662 = vmatprep.subr.bf16.mxu0 0
  %1663 = vmatpush2.bf16.msra.mxu0 0
  %1664 = vmatprep.subr.bf16.mxu0 0
  %1665 = vmatpush2.bf16.msra.mxu0 0
  %1666 = vmatprep.subr.bf16.mxu0 0
  %1667 = vmatpush2.bf16.msra.mxu0 0
  %1668 = vmatprep.mubr.bf16.mxu0 0
  %1669 = vmatmul.mubr.bf16.gmra.mxu0 %v1634
  %v1670 = vpop.f32.mrf.mxu0
  %v1671 = vadd.f32 %v1235, %v1670
  %v1672 = vpop.f32.mrf.mxu0
  %v1673 = vadd.f32 %v1239, %v1672
  %v1674 = vpop.f32.mrf.mxu0
  %v1675 = vpop.f32.mrf.mxu0
  %1676 = vdwg.mxu0
  %1677 = vmatprep.subr.bf16.mxu0 0
  %1678 = vmatpush1.bf16.msra.mxu0 0
  %1679 = vmatprep.subr.bf16.mxu0 0
  %1680 = vmatpush1.bf16.msra.mxu0 0
  %1681 = vmatprep.subr.bf16.mxu0 0
  %1682 = vmatpush1.bf16.msra.mxu0 0
  %1683 = vmatprep.subr.bf16.mxu0 0
  %1684 = vmatpush1.bf16.msra.mxu0 0
  %1685 = vmatprep.subr.bf16.mxu0 %v1555
  %1686 = vmatpush1.bf16.msra.mxu0 %v1554
  %1687 = vmatprep.subr.bf16.mxu0 %v1539
  %1688 = vmatpush1.bf16.msra.mxu0 %v1538
  %1689 = vmatprep.subr.bf16.mxu0 %v1523
  %1690 = vmatpush1.bf16.msra.mxu0 %v1522
  %1691 = vmatprep.subr.bf16.mxu0 %v1507
  %1692 = vmatpush1.bf16.msra.mxu0 %v1506
  %1693 = vmatprep.subr.bf16.mxu0 0
  %1694 = vmatpush2.bf16.msra.mxu0 0
  %1695 = vmatprep.subr.bf16.mxu0 0
  %1696 = vmatpush2.bf16.msra.mxu0 0
  %1697 = vmatprep.subr.bf16.mxu0 0
  %1698 = vmatpush2.bf16.msra.mxu0 0
  %1699 = vmatprep.subr.bf16.mxu0 0
  %1700 = vmatpush2.bf16.msra.mxu0 0
  %1701 = vmatprep.subr.bf16.mxu0 0
  %1702 = vmatpush2.bf16.msra.mxu0 0
  %1703 = vmatprep.subr.bf16.mxu0 0
  %1704 = vmatpush2.bf16.msra.mxu0 0
  %1705 = vmatprep.subr.bf16.mxu0 0
  %1706 = vmatpush2.bf16.msra.mxu0 0
  %1707 = vmatprep.subr.bf16.mxu0 0
  %1708 = vmatpush2.bf16.msra.mxu0 0
  %1709 = vmatprep.mubr.bf16.mxu0 0
  %1710 = vmatmul.mubr.bf16.gmra.mxu0 %v1634
  %v1711 = vpop.f32.mrf.mxu0
  %v1712 = vadd.f32 %v1243, %v1711
  %v1713 = vpop.f32.mrf.mxu0
  %v1714 = vadd.f32 %v1247, %v1713
  %v1715 = vpop.f32.mrf.mxu0
  %v1716 = vpop.f32.mrf.mxu0
  %1717 = vdwg.mxu0
  %1718 = vmatprep.subr.bf16.mxu0 0
  %1719 = vmatpush1.bf16.msra.mxu0 0
  %1720 = vmatprep.subr.bf16.mxu0 0
  %1721 = vmatpush1.bf16.msra.mxu0 0
  %1722 = vmatprep.subr.bf16.mxu0 0
  %1723 = vmatpush1.bf16.msra.mxu0 0
  %1724 = vmatprep.subr.bf16.mxu0 0
  %1725 = vmatpush1.bf16.msra.mxu0 0
  %1726 = vmatprep.subr.bf16.mxu0 %v1557
  %1727 = vmatpush1.bf16.msra.mxu0 %v1556
  %1728 = vmatprep.subr.bf16.mxu0 %v1541
  %1729 = vmatpush1.bf16.msra.mxu0 %v1540
  %1730 = vmatprep.subr.bf16.mxu0 %v1525
  %1731 = vmatpush1.bf16.msra.mxu0 %v1524
  %1732 = vmatprep.subr.bf16.mxu0 %v1509
  %1733 = vmatpush1.bf16.msra.mxu0 %v1508
  %1734 = vmatprep.subr.bf16.mxu0 0
  %1735 = vmatpush2.bf16.msra.mxu0 0
  %1736 = vmatprep.subr.bf16.mxu0 0
  %1737 = vmatpush2.bf16.msra.mxu0 0
  %1738 = vmatprep.subr.bf16.mxu0 0
  %1739 = vmatpush2.bf16.msra.mxu0 0
  %1740 = vmatprep.subr.bf16.mxu0 0
  %1741 = vmatpush2.bf16.msra.mxu0 0
  %1742 = vmatprep.subr.bf16.mxu0 0
  %1743 = vmatpush2.bf16.msra.mxu0 0
  %1744 = vmatprep.subr.bf16.mxu0 0
  %1745 = vmatpush2.bf16.msra.mxu0 0
  %1746 = vmatprep.subr.bf16.mxu0 0
  %1747 = vmatpush2.bf16.msra.mxu0 0
  %1748 = vmatprep.subr.bf16.mxu0 0
  %1749 = vmatpush2.bf16.msra.mxu0 0
  %1750 = vmatprep.mubr.bf16.mxu0 0
  %1751 = vmatmul.mubr.bf16.gmra.mxu0 %v1634
  %v1752 = vpop.f32.mrf.mxu0
  %v1753 = vadd.f32 %v1251, %v1752
  %v1754 = vpop.f32.mrf.mxu0
  %v1755 = vadd.f32 %v1255, %v1754
  %v1756 = vpop.f32.mrf.mxu0
  %v1757 = vpop.f32.mrf.mxu0
  %1758 = vdwg.mxu0
  %1759 = vmatprep.subr.bf16.mxu0 0
  %1760 = vmatpush1.bf16.msra.mxu0 0
  %1761 = vmatprep.subr.bf16.mxu0 0
  %1762 = vmatpush1.bf16.msra.mxu0 0
  %1763 = vmatprep.subr.bf16.mxu0 0
  %1764 = vmatpush1.bf16.msra.mxu0 0
  %1765 = vmatprep.subr.bf16.mxu0 0
  %1766 = vmatpush1.bf16.msra.mxu0 0
  %1767 = vmatprep.subr.bf16.mxu0 %v1559
  %1768 = vmatpush1.bf16.msra.mxu0 %v1558
  %1769 = vmatprep.subr.bf16.mxu0 %v1543
  %1770 = vmatpush1.bf16.msra.mxu0 %v1542
  %1771 = vmatprep.subr.bf16.mxu0 %v1527
  %1772 = vmatpush1.bf16.msra.mxu0 %v1526
  %1773 = vmatprep.subr.bf16.mxu0 %v1511
  %1774 = vmatpush1.bf16.msra.mxu0 %v1510
  %1775 = vmatprep.subr.bf16.mxu0 0
  %1776 = vmatpush2.bf16.msra.mxu0 0
  %1777 = vmatprep.subr.bf16.mxu0 0
  %1778 = vmatpush2.bf16.msra.mxu0 0
  %1779 = vmatprep.subr.bf16.mxu0 0
  %1780 = vmatpush2.bf16.msra.mxu0 0
  %1781 = vmatprep.subr.bf16.mxu0 0
  %1782 = vmatpush2.bf16.msra.mxu0 0
  %1783 = vmatprep.subr.bf16.mxu0 0
  %1784 = vmatpush2.bf16.msra.mxu0 0
  %1785 = vmatprep.subr.bf16.mxu0 0
  %1786 = vmatpush2.bf16.msra.mxu0 0
  %1787 = vmatprep.subr.bf16.mxu0 0
  %1788 = vmatpush2.bf16.msra.mxu0 0
  %1789 = vmatprep.subr.bf16.mxu0 0
  %1790 = vmatpush2.bf16.msra.mxu0 0
  %1791 = vmatprep.mubr.bf16.mxu0 0
  %1792 = vmatmul.mubr.bf16.gmra.mxu0 %v1634
  %v1793 = vpop.f32.mrf.mxu0
  %v1794 = vadd.f32 %v1259, %v1793
  %v1795 = vpop.f32.mrf.mxu0
  %v1796 = vadd.f32 %v1263, %v1795
  %v1797 = vpop.f32.mrf.mxu0
  %v1798 = vpop.f32.mrf.mxu0
  %1799 = vdwg.mxu0
  %1800 = vmatprep.subr.bf16.mxu0 0
  %1801 = vmatpush1.bf16.msra.mxu0 0
  %1802 = vmatprep.subr.bf16.mxu0 0
  %1803 = vmatpush1.bf16.msra.mxu0 0
  %1804 = vmatprep.subr.bf16.mxu0 0
  %1805 = vmatpush1.bf16.msra.mxu0 0
  %1806 = vmatprep.subr.bf16.mxu0 0
  %1807 = vmatpush1.bf16.msra.mxu0 0
  %1808 = vmatprep.subr.bf16.mxu0 %v1561
  %1809 = vmatpush1.bf16.msra.mxu0 %v1560
  %1810 = vmatprep.subr.bf16.mxu0 %v1545
  %1811 = vmatpush1.bf16.msra.mxu0 %v1544
  %1812 = vmatprep.subr.bf16.mxu0 %v1529
  %1813 = vmatpush1.bf16.msra.mxu0 %v1528
  %1814 = vmatprep.subr.bf16.mxu0 %v1513
  %1815 = vmatpush1.bf16.msra.mxu0 %v1512
  %1816 = vmatprep.subr.bf16.mxu0 0
  %1817 = vmatpush2.bf16.msra.mxu0 0
  %1818 = vmatprep.subr.bf16.mxu0 0
  %1819 = vmatpush2.bf16.msra.mxu0 0
  %1820 = vmatprep.subr.bf16.mxu0 0
  %1821 = vmatpush2.bf16.msra.mxu0 0
  %1822 = vmatprep.subr.bf16.mxu0 0
  %1823 = vmatpush2.bf16.msra.mxu0 0
  %1824 = vmatprep.subr.bf16.mxu0 0
  %1825 = vmatpush2.bf16.msra.mxu0 0
  %1826 = vmatprep.subr.bf16.mxu0 0
  %1827 = vmatpush2.bf16.msra.mxu0 0
  %1828 = vmatprep.subr.bf16.mxu0 0
  %1829 = vmatpush2.bf16.msra.mxu0 0
  %1830 = vmatprep.subr.bf16.mxu0 0
  %1831 = vmatpush2.bf16.msra.mxu0 0
  %1832 = vmatprep.mubr.bf16.mxu0 0
  %1833 = vmatmul.mubr.bf16.gmra.mxu0 %v1634
  %v1834 = vpop.f32.mrf.mxu0
  %v1835 = vadd.f32 %v1267, %v1834
  %v1836 = vpop.f32.mrf.mxu0
  %v1837 = vadd.f32 %v1271, %v1836
  %v1838 = vpop.f32.mrf.mxu0
  %v1839 = vpop.f32.mrf.mxu0
  %1840 = vdwg.mxu0
  %1841 = vmatprep.subr.bf16.mxu0 0
  %1842 = vmatpush1.bf16.msra.mxu0 0
  %1843 = vmatprep.subr.bf16.mxu0 0
  %1844 = vmatpush1.bf16.msra.mxu0 0
  %1845 = vmatprep.subr.bf16.mxu0 0
  %1846 = vmatpush1.bf16.msra.mxu0 0
  %1847 = vmatprep.subr.bf16.mxu0 0
  %1848 = vmatpush1.bf16.msra.mxu0 0
  %1849 = vmatprep.subr.bf16.mxu0 %v1563
  %1850 = vmatpush1.bf16.msra.mxu0 %v1562
  %1851 = vmatprep.subr.bf16.mxu0 %v1547
  %1852 = vmatpush1.bf16.msra.mxu0 %v1546
  %1853 = vmatprep.subr.bf16.mxu0 %v1531
  %1854 = vmatpush1.bf16.msra.mxu0 %v1530
  %1855 = vmatprep.subr.bf16.mxu0 %v1515
  %1856 = vmatpush1.bf16.msra.mxu0 %v1514
  %1857 = vmatprep.subr.bf16.mxu0 0
  %1858 = vmatpush2.bf16.msra.mxu0 0
  %1859 = vmatprep.subr.bf16.mxu0 0
  %1860 = vmatpush2.bf16.msra.mxu0 0
  %1861 = vmatprep.subr.bf16.mxu0 0
  %1862 = vmatpush2.bf16.msra.mxu0 0
  %1863 = vmatprep.subr.bf16.mxu0 0
  %1864 = vmatpush2.bf16.msra.mxu0 0
  %1865 = vmatprep.subr.bf16.mxu0 0
  %1866 = vmatpush2.bf16.msra.mxu0 0
  %1867 = vmatprep.subr.bf16.mxu0 0
  %1868 = vmatpush2.bf16.msra.mxu0 0
  %1869 = vmatprep.subr.bf16.mxu0 0
  %1870 = vmatpush2.bf16.msra.mxu0 0
  %1871 = vmatprep.subr.bf16.mxu0 0
  %1872 = vmatpush2.bf16.msra.mxu0 0
  %1873 = vmatprep.mubr.bf16.mxu0 0
  %1874 = vmatmul.mubr.bf16.gmra.mxu0 %v1634
  %v1875 = vpop.f32.mrf.mxu0
  %v1876 = vadd.f32 %v1275, %v1875
  %v1877 = vpop.f32.mrf.mxu0
  %v1878 = vadd.f32 %v1279, %v1877
  %v1879 = vpop.f32.mrf.mxu0
  %v1880 = vpop.f32.mrf.mxu0
  %1881 = vdwg.mxu0
  %1882 = vmatprep.subr.bf16.mxu0 0
  %1883 = vmatpush1.bf16.msra.mxu0 0
  %1884 = vmatprep.subr.bf16.mxu0 0
  %1885 = vmatpush1.bf16.msra.mxu0 0
  %1886 = vmatprep.subr.bf16.mxu0 0
  %1887 = vmatpush1.bf16.msra.mxu0 0
  %1888 = vmatprep.subr.bf16.mxu0 0
  %1889 = vmatpush1.bf16.msra.mxu0 0
  %1890 = vmatprep.subr.bf16.mxu0 %v1565
  %1891 = vmatpush1.bf16.msra.mxu0 %v1564
  %1892 = vmatprep.subr.bf16.mxu0 %v1549
  %1893 = vmatpush1.bf16.msra.mxu0 %v1548
  %1894 = vmatprep.subr.bf16.mxu0 %v1533
  %1895 = vmatpush1.bf16.msra.mxu0 %v1532
  %1896 = vmatprep.subr.bf16.mxu0 %v1517
  %1897 = vmatpush1.bf16.msra.mxu0 %v1516
  %1898 = vmatprep.subr.bf16.mxu0 0
  %1899 = vmatpush2.bf16.msra.mxu0 0
  %1900 = vmatprep.subr.bf16.mxu0 0
  %1901 = vmatpush2.bf16.msra.mxu0 0
  %1902 = vmatprep.subr.bf16.mxu0 0
  %1903 = vmatpush2.bf16.msra.mxu0 0
  %1904 = vmatprep.subr.bf16.mxu0 0
  %1905 = vmatpush2.bf16.msra.mxu0 0
  %1906 = vmatprep.subr.bf16.mxu0 0
  %1907 = vmatpush2.bf16.msra.mxu0 0
  %1908 = vmatprep.subr.bf16.mxu0 0
  %1909 = vmatpush2.bf16.msra.mxu0 0
  %1910 = vmatprep.subr.bf16.mxu0 0
  %1911 = vmatpush2.bf16.msra.mxu0 0
  %1912 = vmatprep.subr.bf16.mxu0 0
  %1913 = vmatpush2.bf16.msra.mxu0 0
  %1914 = vmatprep.mubr.bf16.mxu0 0
  %1915 = vmatmul.mubr.bf16.gmra.mxu0 %v1634
  %v1916 = vpop.f32.mrf.mxu0
  %v1917 = vadd.f32 %v1283, %v1916
  %v1918 = vpop.f32.mrf.mxu0
  %v1919 = vadd.f32 %v1287, %v1918
  %v1920 = vpop.f32.mrf.mxu0
  %v1921 = vpop.f32.mrf.mxu0
  %1922 = vdwg.mxu0
  %1923 = vmatprep.subr.bf16.mxu0 0
  %1924 = vmatpush1.bf16.msra.mxu0 0
  %1925 = vmatprep.subr.bf16.mxu0 0
  %1926 = vmatpush1.bf16.msra.mxu0 0
  %1927 = vmatprep.subr.bf16.mxu0 0
  %1928 = vmatpush1.bf16.msra.mxu0 0
  %1929 = vmatprep.subr.bf16.mxu0 0
  %1930 = vmatpush1.bf16.msra.mxu0 0
  %1931 = vmatprep.subr.bf16.mxu0 %v1567
  %1932 = vmatpush1.bf16.msra.mxu0 %v1566
  %1933 = vmatprep.subr.bf16.mxu0 %v1551
  %1934 = vmatpush1.bf16.msra.mxu0 %v1550
  %1935 = vmatprep.subr.bf16.mxu0 %v1535
  %1936 = vmatpush1.bf16.msra.mxu0 %v1534
  %1937 = vmatprep.subr.bf16.mxu0 %v1519
  %1938 = vmatpush1.bf16.msra.mxu0 %v1518
  %1939 = vmatprep.subr.bf16.mxu0 0
  %1940 = vmatpush2.bf16.msra.mxu0 0
  %1941 = vmatprep.subr.bf16.mxu0 0
  %1942 = vmatpush2.bf16.msra.mxu0 0
  %1943 = vmatprep.subr.bf16.mxu0 0
  %1944 = vmatpush2.bf16.msra.mxu0 0
  %1945 = vmatprep.subr.bf16.mxu0 0
  %1946 = vmatpush2.bf16.msra.mxu0 0
  %1947 = vmatprep.subr.bf16.mxu0 0
  %1948 = vmatpush2.bf16.msra.mxu0 0
  %1949 = vmatprep.subr.bf16.mxu0 0
  %1950 = vmatpush2.bf16.msra.mxu0 0
  %1951 = vmatprep.subr.bf16.mxu0 0
  %1952 = vmatpush2.bf16.msra.mxu0 0
  %1953 = vmatprep.subr.bf16.mxu0 0
  %1954 = vmatpush2.bf16.msra.mxu0 0
  %1955 = vmatprep.mubr.bf16.mxu0 0
  %1956 = vmatmul.mubr.bf16.gmra.mxu0 %v1634
  %v1957 = vpop.f32.mrf.mxu0
  %v1958 = vadd.f32 %v1291, %v1957
  %v1959 = vpop.f32.mrf.mxu0
  %v1960 = vadd.f32 %v1295, %v1959
  %v1961 = vpop.f32.mrf.mxu0
  %v1962 = vpop.f32.mrf.mxu0
  %1963 = vdwg.mxu0
  %v1964 = vpack.c.bf16 %v1159, %v1159
  %v1965 = vld [vmem:[%s5] sm:$0xf]
  %v1966 = vld [vmem:[%s5 + $0x4] sm:$0xf]
  %v1967 = vld [vmem:[%s5 + $0x8] sm:$0xf]
  %v1968 = vld [vmem:[%s5 + $0xc] sm:$0xf]
  %v1969 = vld [vmem:[%s5 + $0x10] sm:$0xf]
  %v1970 = vld [vmem:[%s5 + $0x14] sm:$0xf]
  %v1971 = vld [vmem:[%s5 + $0x18] sm:$0xf]
  %v1972 = vld [vmem:[%s5 + $0x1c] sm:$0xf]
  %v1973 = vld [vmem:[%s5 + $0x20] sm:$0xf]
  %v1974 = vld [vmem:[%s5 + $0x24] sm:$0xf]
  %v1975 = vld [vmem:[%s5 + $0x28] sm:$0xf]
  %v1976 = vld [vmem:[%s5 + $0x2c] sm:$0xf]
  %v1977 = vld [vmem:[%s5 + $0x30] sm:$0xf]
  %v1978 = vld [vmem:[%s5 + $0x34] sm:$0xf]
  %v1979 = vld [vmem:[%s5 + $0x38] sm:$0xf]
  %v1980 = vld [vmem:[%s5 + $0x3c] sm:$0xf]
  %v1981 = vld [vmem:[%s6] sm:$0x1]
  %v1983 = vlaneseq
  %v1984 = vshrl.u32 %v1983, 7
  %v1985 = vsub.s32 0, %v1984
  %v1986 = vrot.slane %v1981, %v1985
  %v2004 = vunpack.c.l.b16 %v1965
  %v2005 = vunpack.c.l.b16 %v1966
  %v2006 = vunpack.c.l.b16 %v1967
  %v2007 = vunpack.c.l.b16 %v1968
  %v2008 = vunpack.c.l.b16 %v1969
  %v2009 = vunpack.c.l.b16 %v1970
  %v2010 = vunpack.c.l.b16 %v1971
  %v2011 = vunpack.c.l.b16 %v1972
  %v2012 = vunpack.c.l.b16 %v1973
  %v2013 = vunpack.c.l.b16 %v1974
  %v2014 = vunpack.c.l.b16 %v1975
  %v2015 = vunpack.c.l.b16 %v1976
  %v2016 = vunpack.c.l.b16 %v1977
  %v2017 = vunpack.c.l.b16 %v1978
  %v2018 = vunpack.c.l.b16 %v1979
  %v2019 = vunpack.c.l.b16 %v1980
  %v2020 = vpack.c.b16 %v2005, %v2004
  %v2021 = vpack.c.b16 %v2007, %v2006
  %v2022 = vpack.c.b16 %v2009, %v2008
  %v2023 = vpack.c.b16 %v2011, %v2010
  %v2024 = vpack.c.b16 %v2013, %v2012
  %v2025 = vpack.c.b16 %v2015, %v2014
  %v2026 = vpack.c.b16 %v2017, %v2016
  %v2027 = vpack.c.b16 %v2019, %v2018
  %2036 = vmatprep.subr.bf16.mxu0 0
  %2037 = vmatpush1.bf16.msra.mxu0 %v2027
  %2038 = vmatprep.subr.bf16.mxu0 0
  %2039 = vmatpush1.bf16.msra.mxu0 %v2026
  %2040 = vmatprep.subr.bf16.mxu0 0
  %2041 = vmatpush1.bf16.msra.mxu0 %v2025
  %2042 = vmatprep.subr.bf16.mxu0 0
  %2043 = vmatpush1.bf16.msra.mxu0 %v2024
  %2044 = vmatprep.subr.bf16.mxu0 0
  %2045 = vmatpush1.bf16.msra.mxu0 %v2023
  %2046 = vmatprep.subr.bf16.mxu0 0
  %2047 = vmatpush1.bf16.msra.mxu0 %v2022
  %2048 = vmatprep.subr.bf16.mxu0 0
  %2049 = vmatpush1.bf16.msra.mxu0 %v2021
  %2050 = vmatprep.subr.bf16.mxu0 0
  %2051 = vmatpush1.bf16.msra.mxu0 %v2020
  %2052 = vmatprep.subr.bf16.mxu0 0
  %2053 = vmatpush2.bf16.msra.mxu0 0
  %2054 = vmatprep.subr.bf16.mxu0 0
  %2055 = vmatpush2.bf16.msra.mxu0 0
  %2056 = vmatprep.subr.bf16.mxu0 0
  %2057 = vmatpush2.bf16.msra.mxu0 0
  %2058 = vmatprep.subr.bf16.mxu0 0
  %2059 = vmatpush2.bf16.msra.mxu0 0
  %2060 = vmatprep.subr.bf16.mxu0 0
  %2061 = vmatpush2.bf16.msra.mxu0 0
  %2062 = vmatprep.subr.bf16.mxu0 0
  %2063 = vmatpush2.bf16.msra.mxu0 0
  %2064 = vmatprep.subr.bf16.mxu0 0
  %2065 = vmatpush2.bf16.msra.mxu0 0
  %2066 = vmatprep.subr.bf16.mxu0 0
  %2067 = vmatpush2.bf16.msra.mxu0 0
  %2068 = vmatprep.mubr.bf16.mxu0 0
  %2069 = vmatmul.mubr.bf16.gmra.mxu0 %v1964
  %v2070 = vpop.f32.mrf.mxu0
  %v2071 = vadd.f32 %v1986, %v2070
  %v2072 = vpop.f32.mrf.mxu0
  %v2073 = vpop.f32.mrf.mxu0
  %v2074 = vpop.f32.mrf.mxu0
  %2075 = vdwg.mxu0
  %v2076 = vmax.f32 %v2071, 0.0
  %v2077 = vpack.c.bf16 %v1671, %v1671
  %v2078 = vpack.c.bf16 %v1673, %v1673
  %v2079 = vpack.c.bf16 %v1712, %v1712
  %v2080 = vpack.c.bf16 %v1714, %v1714
  %v2081 = vpack.c.bf16 %v1753, %v1753
  %v2082 = vpack.c.bf16 %v1755, %v1755
  %v2083 = vpack.c.bf16 %v1794, %v1794
  %v2084 = vpack.c.bf16 %v1796, %v1796
  %v2085 = vpack.c.bf16 %v1835, %v1835
  %v2086 = vpack.c.bf16 %v1837, %v1837
  %v2087 = vpack.c.bf16 %v1876, %v1876
  %v2088 = vpack.c.bf16 %v1878, %v1878
  %v2089 = vpack.c.bf16 %v1917, %v1917
  %v2090 = vpack.c.bf16 %v1919, %v1919
  %v2091 = vpack.c.bf16 %v1958, %v1958
  %v2092 = vpack.c.bf16 %v1960, %v1960
  %v2093 = vld [vmem:[%s7] sm:$0xf]
  %v2094 = vld [vmem:[%s7 + $0x4] sm:$0xf]
  %v2095 = vld [vmem:[%s7 + $0x8] sm:$0xf]
  %v2096 = vld [vmem:[%s7 + $0xc] sm:$0xf]
  %v2097 = vld [vmem:[%s7 + $0x10] sm:$0xf]
  %v2098 = vld [vmem:[%s7 + $0x14] sm:$0xf]
  %v2099 = vld [vmem:[%s7 + $0x18] sm:$0xf]
  %v2100 = vld [vmem:[%s7 + $0x1c] sm:$0xf]
  %v2101 = vld [vmem:[%s7 + $0x20] sm:$0xf]
  %v2102 = vld [vmem:[%s7 + $0x24] sm:$0xf]
  %v2103 = vld [vmem:[%s7 + $0x28] sm:$0xf]
  %v2104 = vld [vmem:[%s7 + $0x2c] sm:$0xf]
  %v2105 = vld [vmem:[%s7 + $0x30] sm:$0xf]
  %v2106 = vld [vmem:[%s7 + $0x34] sm:$0xf]
  %v2107 = vld [vmem:[%s7 + $0x38] sm:$0xf]
  %v2108 = vld [vmem:[%s7 + $0x3c] sm:$0xf]
  %v2109 = vld [vmem:[%s7 + $0x40] sm:$0xf]
  %v2110 = vld [vmem:[%s7 + $0x44] sm:$0xf]
  %v2111 = vld [vmem:[%s7 + $0x48] sm:$0xf]
  %v2112 = vld [vmem:[%s7 + $0x4c] sm:$0xf]
  %v2113 = vld [vmem:[%s7 + $0x50] sm:$0xf]
  %v2114 = vld [vmem:[%s7 + $0x54] sm:$0xf]
  %v2115 = vld [vmem:[%s7 + $0x58] sm:$0xf]
  %v2116 = vld [vmem:[%s7 + $0x5c] sm:$0xf]
  %v2117 = vld [vmem:[%s7 + $0x60] sm:$0xf]
  %v2118 = vld [vmem:[%s7 + $0x64] sm:$0xf]
  %v2119 = vld [vmem:[%s7 + $0x68] sm:$0xf]
  %v2120 = vld [vmem:[%s7 + $0x6c] sm:$0xf]
  %v2121 = vld [vmem:[%s7 + $0x70] sm:$0xf]
  %v2122 = vld [vmem:[%s7 + $0x74] sm:$0xf]
  %v2123 = vld [vmem:[%s7 + $0x78] sm:$0xf]
  %v2124 = vld [vmem:[%s7 + $0x7c] sm:$0xf]
  %v2125 = vld [vmem:[%s7 + $0x80] sm:$0xf]
  %v2126 = vld [vmem:[%s7 + $0x84] sm:$0xf]
  %v2127 = vld [vmem:[%s7 + $0x88] sm:$0xf]
  %v2128 = vld [vmem:[%s7 + $0x8c] sm:$0xf]
  %v2129 = vld [vmem:[%s7 + $0x90] sm:$0xf]
  %v2130 = vld [vmem:[%s7 + $0x94] sm:$0xf]
  %v2131 = vld [vmem:[%s7 + $0x98] sm:$0xf]
  %v2132 = vld [vmem:[%s7 + $0x9c] sm:$0xf]
  %v2133 = vld [vmem:[%s7 + $0xa0] sm:$0xf]
  %v2134 = vld [vmem:[%s7 + $0xa4] sm:$0xf]
  %v2135 = vld [vmem:[%s7 + $0xa8] sm:$0xf]
  %v2136 = vld [vmem:[%s7 + $0xac] sm:$0xf]
  %v2137 = vld [vmem:[%s7 + $0xb0] sm:$0xf]
  %v2138 = vld [vmem:[%s7 + $0xb4] sm:$0xf]
  %v2139 = vld [vmem:[%s7 + $0xb8] sm:$0xf]
  %v2140 = vld [vmem:[%s7 + $0xbc] sm:$0xf]
  %v2141 = vld [vmem:[%s7 + $0xc0] sm:$0xf]
  %v2142 = vld [vmem:[%s7 + $0xc4] sm:$0xf]
  %v2143 = vld [vmem:[%s7 + $0xc8] sm:$0xf]
  %v2144 = vld [vmem:[%s7 + $0xcc] sm:$0xf]
  %v2145 = vld [vmem:[%s7 + $0xd0] sm:$0xf]
  %v2146 = vld [vmem:[%s7 + $0xd4] sm:$0xf]
  %v2147 = vld [vmem:[%s7 + $0xd8] sm:$0xf]
  %v2148 = vld [vmem:[%s7 + $0xdc] sm:$0xf]
  %v2149 = vld [vmem:[%s7 + $0xe0] sm:$0xf]
  %v2150 = vld [vmem:[%s7 + $0xe4] sm:$0xf]
  %v2151 = vld [vmem:[%s7 + $0xe8] sm:$0xf]
  %v2152 = vld [vmem:[%s7 + $0xec] sm:$0xf]
  %v2153 = vld [vmem:[%s7 + $0xf0] sm:$0xf]
  %v2154 = vld [vmem:[%s7 + $0xf4] sm:$0xf]
  %v2155 = vld [vmem:[%s7 + $0xf8] sm:$0xf]
  %v2156 = vld [vmem:[%s7 + $0xfc] sm:$0xf]
  %v2157 = vld [vmem:[%s7 + $0x100] sm:$0xf]
  %v2158 = vld [vmem:[%s7 + $0x104] sm:$0xf]
  %v2159 = vld [vmem:[%s7 + $0x108] sm:$0xf]
  %v2160 = vld [vmem:[%s7 + $0x10c] sm:$0xf]
  %v2161 = vld [vmem:[%s7 + $0x110] sm:$0xf]
  %v2162 = vld [vmem:[%s7 + $0x114] sm:$0xf]
  %v2163 = vld [vmem:[%s7 + $0x118] sm:$0xf]
  %v2164 = vld [vmem:[%s7 + $0x11c] sm:$0xf]
  %v2165 = vld [vmem:[%s7 + $0x120] sm:$0xf]
  %v2166 = vld [vmem:[%s7 + $0x124] sm:$0xf]
  %v2167 = vld [vmem:[%s7 + $0x128] sm:$0xf]
  %v2168 = vld [vmem:[%s7 + $0x12c] sm:$0xf]
  %v2169 = vld [vmem:[%s7 + $0x130] sm:$0xf]
  %v2170 = vld [vmem:[%s7 + $0x134] sm:$0xf]
  %v2171 = vld [vmem:[%s7 + $0x138] sm:$0xf]
  %v2172 = vld [vmem:[%s7 + $0x13c] sm:$0xf]
  %v2173 = vld [vmem:[%s7 + $0x140] sm:$0xf]
  %v2174 = vld [vmem:[%s7 + $0x144] sm:$0xf]
  %v2175 = vld [vmem:[%s7 + $0x148] sm:$0xf]
  %v2176 = vld [vmem:[%s7 + $0x14c] sm:$0xf]
  %v2177 = vld [vmem:[%s7 + $0x150] sm:$0xf]
  %v2178 = vld [vmem:[%s7 + $0x154] sm:$0xf]
  %v2179 = vld [vmem:[%s7 + $0x158] sm:$0xf]
  %v2180 = vld [vmem:[%s7 + $0x15c] sm:$0xf]
  %v2181 = vld [vmem:[%s7 + $0x160] sm:$0xf]
  %v2182 = vld [vmem:[%s7 + $0x164] sm:$0xf]
  %v2183 = vld [vmem:[%s7 + $0x168] sm:$0xf]
  %v2184 = vld [vmem:[%s7 + $0x16c] sm:$0xf]
  %v2185 = vld [vmem:[%s7 + $0x170] sm:$0xf]
  %v2186 = vld [vmem:[%s7 + $0x174] sm:$0xf]
  %v2187 = vld [vmem:[%s7 + $0x178] sm:$0xf]
  %v2188 = vld [vmem:[%s7 + $0x17c] sm:$0xf]
  %v2189 = vld [vmem:[%s7 + $0x180] sm:$0xf]
  %v2190 = vld [vmem:[%s7 + $0x184] sm:$0xf]
  %v2191 = vld [vmem:[%s7 + $0x188] sm:$0xf]
  %v2192 = vld [vmem:[%s7 + $0x18c] sm:$0xf]
  %v2193 = vld [vmem:[%s7 + $0x190] sm:$0xf]
  %v2194 = vld [vmem:[%s7 + $0x194] sm:$0xf]
  %v2195 = vld [vmem:[%s7 + $0x198] sm:$0xf]
  %v2196 = vld [vmem:[%s7 + $0x19c] sm:$0xf]
  %v2197 = vld [vmem:[%s7 + $0x1a0] sm:$0xf]
  %v2198 = vld [vmem:[%s7 + $0x1a4] sm:$0xf]
  %v2199 = vld [vmem:[%s7 + $0x1a8] sm:$0xf]
  %v2200 = vld [vmem:[%s7 + $0x1ac] sm:$0xf]
  %v2201 = vld [vmem:[%s7 + $0x1b0] sm:$0xf]
  %v2202 = vld [vmem:[%s7 + $0x1b4] sm:$0xf]
  %v2203 = vld [vmem:[%s7 + $0x1b8] sm:$0xf]
  %v2204 = vld [vmem:[%s7 + $0x1bc] sm:$0xf]
  %v2205 = vld [vmem:[%s7 + $0x1c0] sm:$0xf]
  %v2206 = vld [vmem:[%s7 + $0x1c4] sm:$0xf]
  %v2207 = vld [vmem:[%s7 + $0x1c8] sm:$0xf]
  %v2208 = vld [vmem:[%s7 + $0x1cc] sm:$0xf]
  %v2209 = vld [vmem:[%s7 + $0x1d0] sm:$0xf]
  %v2210 = vld [vmem:[%s7 + $0x1d4] sm:$0xf]
  %v2211 = vld [vmem:[%s7 + $0x1d8] sm:$0xf]
  %v2212 = vld [vmem:[%s7 + $0x1dc] sm:$0xf]
  %v2213 = vld [vmem:[%s7 + $0x1e0] sm:$0xf]
  %v2214 = vld [vmem:[%s7 + $0x1e4] sm:$0xf]
  %v2215 = vld [vmem:[%s7 + $0x1e8] sm:$0xf]
  %v2216 = vld [vmem:[%s7 + $0x1ec] sm:$0xf]
  %v2217 = vld [vmem:[%s7 + $0x1f0] sm:$0xf]
  %v2218 = vld [vmem:[%s7 + $0x1f4] sm:$0xf]
  %v2219 = vld [vmem:[%s7 + $0x1f8] sm:$0xf]
  %v2220 = vld [vmem:[%s7 + $0x1fc] sm:$0xf]
  %v2221 = vld [vmem:[%s7 + $0x200] sm:$0xf]
  %v2222 = vld [vmem:[%s7 + $0x204] sm:$0xf]
  %v2223 = vld [vmem:[%s7 + $0x208] sm:$0xf]
  %v2224 = vld [vmem:[%s7 + $0x20c] sm:$0xf]
  %v2225 = vld [vmem:[%s7 + $0x210] sm:$0xf]
  %v2226 = vld [vmem:[%s7 + $0x214] sm:$0xf]
  %v2227 = vld [vmem:[%s7 + $0x218] sm:$0xf]
  %v2228 = vld [vmem:[%s7 + $0x21c] sm:$0xf]
  %v2229 = vld [vmem:[%s7 + $0x220] sm:$0xf]
  %v2230 = vld [vmem:[%s7 + $0x224] sm:$0xf]
  %v2231 = vld [vmem:[%s7 + $0x228] sm:$0xf]
  %v2232 = vld [vmem:[%s7 + $0x22c] sm:$0xf]
  %v2233 = vld [vmem:[%s7 + $0x230] sm:$0xf]
  %v2234 = vld [vmem:[%s7 + $0x234] sm:$0xf]
  %v2235 = vld [vmem:[%s7 + $0x238] sm:$0xf]
  %v2236 = vld [vmem:[%s7 + $0x23c] sm:$0xf]
  %v2237 = vld [vmem:[%s7 + $0x240] sm:$0xf]
  %v2238 = vld [vmem:[%s7 + $0x244] sm:$0xf]
  %v2239 = vld [vmem:[%s7 + $0x248] sm:$0xf]
  %v2240 = vld [vmem:[%s7 + $0x24c] sm:$0xf]
  %v2241 = vld [vmem:[%s7 + $0x250] sm:$0xf]
  %v2242 = vld [vmem:[%s7 + $0x254] sm:$0xf]
  %v2243 = vld [vmem:[%s7 + $0x258] sm:$0xf]
  %v2244 = vld [vmem:[%s7 + $0x25c] sm:$0xf]
  %v2245 = vld [vmem:[%s7 + $0x260] sm:$0xf]
  %v2246 = vld [vmem:[%s7 + $0x264] sm:$0xf]
  %v2247 = vld [vmem:[%s7 + $0x268] sm:$0xf]
  %v2248 = vld [vmem:[%s7 + $0x26c] sm:$0xf]
  %v2249 = vld [vmem:[%s7 + $0x270] sm:$0xf]
  %v2250 = vld [vmem:[%s7 + $0x274] sm:$0xf]
  %v2251 = vld [vmem:[%s7 + $0x278] sm:$0xf]
  %v2252 = vld [vmem:[%s7 + $0x27c] sm:$0xf]
  %v2253 = vld [vmem:[%s7 + $0x280] sm:$0xf]
  %v2254 = vld [vmem:[%s7 + $0x284] sm:$0xf]
  %v2255 = vld [vmem:[%s7 + $0x288] sm:$0xf]
  %v2256 = vld [vmem:[%s7 + $0x28c] sm:$0xf]
  %v2257 = vld [vmem:[%s7 + $0x290] sm:$0xf]
  %v2258 = vld [vmem:[%s7 + $0x294] sm:$0xf]
  %v2259 = vld [vmem:[%s7 + $0x298] sm:$0xf]
  %v2260 = vld [vmem:[%s7 + $0x29c] sm:$0xf]
  %v2261 = vld [vmem:[%s7 + $0x2a0] sm:$0xf]
  %v2262 = vld [vmem:[%s7 + $0x2a4] sm:$0xf]
  %v2263 = vld [vmem:[%s7 + $0x2a8] sm:$0xf]
  %v2264 = vld [vmem:[%s7 + $0x2ac] sm:$0xf]
  %v2265 = vld [vmem:[%s7 + $0x2b0] sm:$0xf]
  %v2266 = vld [vmem:[%s7 + $0x2b4] sm:$0xf]
  %v2267 = vld [vmem:[%s7 + $0x2b8] sm:$0xf]
  %v2268 = vld [vmem:[%s7 + $0x2bc] sm:$0xf]
  %v2269 = vld [vmem:[%s7 + $0x2c0] sm:$0xf]
  %v2270 = vld [vmem:[%s7 + $0x2c4] sm:$0xf]
  %v2271 = vld [vmem:[%s7 + $0x2c8] sm:$0xf]
  %v2272 = vld [vmem:[%s7 + $0x2cc] sm:$0xf]
  %v2273 = vld [vmem:[%s7 + $0x2d0] sm:$0xf]
  %v2274 = vld [vmem:[%s7 + $0x2d4] sm:$0xf]
  %v2275 = vld [vmem:[%s7 + $0x2d8] sm:$0xf]
  %v2276 = vld [vmem:[%s7 + $0x2dc] sm:$0xf]
  %v2277 = vld [vmem:[%s7 + $0x2e0] sm:$0xf]
  %v2278 = vld [vmem:[%s7 + $0x2e4] sm:$0xf]
  %v2279 = vld [vmem:[%s7 + $0x2e8] sm:$0xf]
  %v2280 = vld [vmem:[%s7 + $0x2ec] sm:$0xf]
  %v2281 = vld [vmem:[%s7 + $0x2f0] sm:$0xf]
  %v2282 = vld [vmem:[%s7 + $0x2f4] sm:$0xf]
  %v2283 = vld [vmem:[%s7 + $0x2f8] sm:$0xf]
  %v2284 = vld [vmem:[%s7 + $0x2fc] sm:$0xf]
  %v2285 = vld [vmem:[%s7 + $0x300] sm:$0xf]
  %v2286 = vld [vmem:[%s7 + $0x304] sm:$0xf]
  %v2287 = vld [vmem:[%s7 + $0x308] sm:$0xf]
  %v2288 = vld [vmem:[%s7 + $0x30c] sm:$0xf]
  %v2289 = vld [vmem:[%s7 + $0x310] sm:$0xf]
  %v2290 = vld [vmem:[%s7 + $0x314] sm:$0xf]
  %v2291 = vld [vmem:[%s7 + $0x318] sm:$0xf]
  %v2292 = vld [vmem:[%s7 + $0x31c] sm:$0xf]
  %v2293 = vld [vmem:[%s7 + $0x320] sm:$0xf]
  %v2294 = vld [vmem:[%s7 + $0x324] sm:$0xf]
  %v2295 = vld [vmem:[%s7 + $0x328] sm:$0xf]
  %v2296 = vld [vmem:[%s7 + $0x32c] sm:$0xf]
  %v2297 = vld [vmem:[%s7 + $0x330] sm:$0xf]
  %v2298 = vld [vmem:[%s7 + $0x334] sm:$0xf]
  %v2299 = vld [vmem:[%s7 + $0x338] sm:$0xf]
  %v2300 = vld [vmem:[%s7 + $0x33c] sm:$0xf]
  %v2301 = vld [vmem:[%s7 + $0x340] sm:$0xf]
  %v2302 = vld [vmem:[%s7 + $0x344] sm:$0xf]
  %v2303 = vld [vmem:[%s7 + $0x348] sm:$0xf]
  %v2304 = vld [vmem:[%s7 + $0x34c] sm:$0xf]
  %v2305 = vld [vmem:[%s7 + $0x350] sm:$0xf]
  %v2306 = vld [vmem:[%s7 + $0x354] sm:$0xf]
  %v2307 = vld [vmem:[%s7 + $0x358] sm:$0xf]
  %v2308 = vld [vmem:[%s7 + $0x35c] sm:$0xf]
  %v2309 = vld [vmem:[%s7 + $0x360] sm:$0xf]
  %v2310 = vld [vmem:[%s7 + $0x364] sm:$0xf]
  %v2311 = vld [vmem:[%s7 + $0x368] sm:$0xf]
  %v2312 = vld [vmem:[%s7 + $0x36c] sm:$0xf]
  %v2313 = vld [vmem:[%s7 + $0x370] sm:$0xf]
  %v2314 = vld [vmem:[%s7 + $0x374] sm:$0xf]
  %v2315 = vld [vmem:[%s7 + $0x378] sm:$0xf]
  %v2316 = vld [vmem:[%s7 + $0x37c] sm:$0xf]
  %v2317 = vld [vmem:[%s7 + $0x380] sm:$0xf]
  %v2318 = vld [vmem:[%s7 + $0x384] sm:$0xf]
  %v2319 = vld [vmem:[%s7 + $0x388] sm:$0xf]
  %v2320 = vld [vmem:[%s7 + $0x38c] sm:$0xf]
  %v2321 = vld [vmem:[%s7 + $0x390] sm:$0xf]
  %v2322 = vld [vmem:[%s7 + $0x394] sm:$0xf]
  %v2323 = vld [vmem:[%s7 + $0x398] sm:$0xf]
  %v2324 = vld [vmem:[%s7 + $0x39c] sm:$0xf]
  %v2325 = vld [vmem:[%s7 + $0x3a0] sm:$0xf]
  %v2326 = vld [vmem:[%s7 + $0x3a4] sm:$0xf]
  %v2327 = vld [vmem:[%s7 + $0x3a8] sm:$0xf]
  %v2328 = vld [vmem:[%s7 + $0x3ac] sm:$0xf]
  %v2329 = vld [vmem:[%s7 + $0x3b0] sm:$0xf]
  %v2330 = vld [vmem:[%s7 + $0x3b4] sm:$0xf]
  %v2331 = vld [vmem:[%s7 + $0x3b8] sm:$0xf]
  %v2332 = vld [vmem:[%s7 + $0x3bc] sm:$0xf]
  %v2333 = vld [vmem:[%s7 + $0x3c0] sm:$0xf]
  %v2334 = vld [vmem:[%s7 + $0x3c4] sm:$0xf]
  %v2335 = vld [vmem:[%s7 + $0x3c8] sm:$0xf]
  %v2336 = vld [vmem:[%s7 + $0x3cc] sm:$0xf]
  %v2337 = vld [vmem:[%s7 + $0x3d0] sm:$0xf]
  %v2338 = vld [vmem:[%s7 + $0x3d4] sm:$0xf]
  %v2339 = vld [vmem:[%s7 + $0x3d8] sm:$0xf]
  %v2340 = vld [vmem:[%s7 + $0x3dc] sm:$0xf]
  %v2341 = vld [vmem:[%s7 + $0x3e0] sm:$0xf]
  %v2342 = vld [vmem:[%s7 + $0x3e4] sm:$0xf]
  %v2343 = vld [vmem:[%s7 + $0x3e8] sm:$0xf]
  %v2344 = vld [vmem:[%s7 + $0x3ec] sm:$0xf]
  %v2345 = vld [vmem:[%s7 + $0x3f0] sm:$0xf]
  %v2346 = vld [vmem:[%s7 + $0x3f4] sm:$0xf]
  %v2347 = vld [vmem:[%s7 + $0x3f8] sm:$0xf]
  %v2348 = vld [vmem:[%s7 + $0x3fc] sm:$0xf]
  %v2349 = vld [vmem:[%s8] sm:$0x1]
  %v2351 = vlaneseq
  %v2352 = vshrl.u32 %v2351, 7
  %v2353 = vsub.s32 0, %v2352
  %v2354 = vrot.slane %v2349, %v2353
  %v2612 = vunpack.c.l.b16 %v2093
  %v2613 = vunpack.c.l.b16 %v2094
  %v2614 = vunpack.c.l.b16 %v2095
  %v2615 = vunpack.c.l.b16 %v2096
  %v2616 = vunpack.c.l.b16 %v2097
  %v2617 = vunpack.c.l.b16 %v2098
  %v2618 = vunpack.c.l.b16 %v2099
  %v2619 = vunpack.c.l.b16 %v2100
  %v2620 = vunpack.c.l.b16 %v2101
  %v2621 = vunpack.c.l.b16 %v2102
  %v2622 = vunpack.c.l.b16 %v2103
  %v2623 = vunpack.c.l.b16 %v2104
  %v2624 = vunpack.c.l.b16 %v2105
  %v2625 = vunpack.c.l.b16 %v2106
  %v2626 = vunpack.c.l.b16 %v2107
  %v2627 = vunpack.c.l.b16 %v2108
  %v2628 = vunpack.c.l.b16 %v2109
  %v2629 = vunpack.c.l.b16 %v2110
  %v2630 = vunpack.c.l.b16 %v2111
  %v2631 = vunpack.c.l.b16 %v2112
  %v2632 = vunpack.c.l.b16 %v2113
  %v2633 = vunpack.c.l.b16 %v2114
  %v2634 = vunpack.c.l.b16 %v2115
  %v2635 = vunpack.c.l.b16 %v2116
  %v2636 = vunpack.c.l.b16 %v2117
  %v2637 = vunpack.c.l.b16 %v2118
  %v2638 = vunpack.c.l.b16 %v2119
  %v2639 = vunpack.c.l.b16 %v2120
  %v2640 = vunpack.c.l.b16 %v2121
  %v2641 = vunpack.c.l.b16 %v2122
  %v2642 = vunpack.c.l.b16 %v2123
  %v2643 = vunpack.c.l.b16 %v2124
  %v2644 = vunpack.c.l.b16 %v2125
  %v2645 = vunpack.c.l.b16 %v2126
  %v2646 = vunpack.c.l.b16 %v2127
  %v2647 = vunpack.c.l.b16 %v2128
  %v2648 = vunpack.c.l.b16 %v2129
  %v2649 = vunpack.c.l.b16 %v2130
  %v2650 = vunpack.c.l.b16 %v2131
  %v2651 = vunpack.c.l.b16 %v2132
  %v2652 = vunpack.c.l.b16 %v2133
  %v2653 = vunpack.c.l.b16 %v2134
  %v2654 = vunpack.c.l.b16 %v2135
  %v2655 = vunpack.c.l.b16 %v2136
  %v2656 = vunpack.c.l.b16 %v2137
  %v2657 = vunpack.c.l.b16 %v2138
  %v2658 = vunpack.c.l.b16 %v2139
  %v2659 = vunpack.c.l.b16 %v2140
  %v2660 = vunpack.c.l.b16 %v2141
  %v2661 = vunpack.c.l.b16 %v2142
  %v2662 = vunpack.c.l.b16 %v2143
  %v2663 = vunpack.c.l.b16 %v2144
  %v2664 = vunpack.c.l.b16 %v2145
  %v2665 = vunpack.c.l.b16 %v2146
  %v2666 = vunpack.c.l.b16 %v2147
  %v2667 = vunpack.c.l.b16 %v2148
  %v2668 = vunpack.c.l.b16 %v2149
  %v2669 = vunpack.c.l.b16 %v2150
  %v2670 = vunpack.c.l.b16 %v2151
  %v2671 = vunpack.c.l.b16 %v2152
  %v2672 = vunpack.c.l.b16 %v2153
  %v2673 = vunpack.c.l.b16 %v2154
  %v2674 = vunpack.c.l.b16 %v2155
  %v2675 = vunpack.c.l.b16 %v2156
  %v2676 = vunpack.c.l.b16 %v2157
  %v2677 = vunpack.c.l.b16 %v2158
  %v2678 = vunpack.c.l.b16 %v2159
  %v2679 = vunpack.c.l.b16 %v2160
  %v2680 = vunpack.c.l.b16 %v2161
  %v2681 = vunpack.c.l.b16 %v2162
  %v2682 = vunpack.c.l.b16 %v2163
  %v2683 = vunpack.c.l.b16 %v2164
  %v2684 = vunpack.c.l.b16 %v2165
  %v2685 = vunpack.c.l.b16 %v2166
  %v2686 = vunpack.c.l.b16 %v2167
  %v2687 = vunpack.c.l.b16 %v2168
  %v2688 = vunpack.c.l.b16 %v2169
  %v2689 = vunpack.c.l.b16 %v2170
  %v2690 = vunpack.c.l.b16 %v2171
  %v2691 = vunpack.c.l.b16 %v2172
  %v2692 = vunpack.c.l.b16 %v2173
  %v2693 = vunpack.c.l.b16 %v2174
  %v2694 = vunpack.c.l.b16 %v2175
  %v2695 = vunpack.c.l.b16 %v2176
  %v2696 = vunpack.c.l.b16 %v2177
  %v2697 = vunpack.c.l.b16 %v2178
  %v2698 = vunpack.c.l.b16 %v2179
  %v2699 = vunpack.c.l.b16 %v2180
  %v2700 = vunpack.c.l.b16 %v2181
  %v2701 = vunpack.c.l.b16 %v2182
  %v2702 = vunpack.c.l.b16 %v2183
  %v2703 = vunpack.c.l.b16 %v2184
  %v2704 = vunpack.c.l.b16 %v2185
  %v2705 = vunpack.c.l.b16 %v2186
  %v2706 = vunpack.c.l.b16 %v2187
  %v2707 = vunpack.c.l.b16 %v2188
  %v2708 = vunpack.c.l.b16 %v2189
  %v2709 = vunpack.c.l.b16 %v2190
  %v2710 = vunpack.c.l.b16 %v2191
  %v2711 = vunpack.c.l.b16 %v2192
  %v2712 = vunpack.c.l.b16 %v2193
  %v2713 = vunpack.c.l.b16 %v2194
  %v2714 = vunpack.c.l.b16 %v2195
  %v2715 = vunpack.c.l.b16 %v2196
  %v2716 = vunpack.c.l.b16 %v2197
  %v2717 = vunpack.c.l.b16 %v2198
  %v2718 = vunpack.c.l.b16 %v2199
  %v2719 = vunpack.c.l.b16 %v2200
  %v2720 = vunpack.c.l.b16 %v2201
  %v2721 = vunpack.c.l.b16 %v2202
  %v2722 = vunpack.c.l.b16 %v2203
  %v2723 = vunpack.c.l.b16 %v2204
  %v2724 = vunpack.c.l.b16 %v2205
  %v2725 = vunpack.c.l.b16 %v2206
  %v2726 = vunpack.c.l.b16 %v2207
  %v2727 = vunpack.c.l.b16 %v2208
  %v2728 = vunpack.c.l.b16 %v2209
  %v2729 = vunpack.c.l.b16 %v2210
  %v2730 = vunpack.c.l.b16 %v2211
  %v2731 = vunpack.c.l.b16 %v2212
  %v2732 = vunpack.c.l.b16 %v2213
  %v2733 = vunpack.c.l.b16 %v2214
  %v2734 = vunpack.c.l.b16 %v2215
  %v2735 = vunpack.c.l.b16 %v2216
  %v2736 = vunpack.c.l.b16 %v2217
  %v2737 = vunpack.c.l.b16 %v2218
  %v2738 = vunpack.c.l.b16 %v2219
  %v2739 = vunpack.c.l.b16 %v2220
  %v2740 = vunpack.c.l.b16 %v2221
  %v2741 = vunpack.c.l.b16 %v2222
  %v2742 = vunpack.c.l.b16 %v2223
  %v2743 = vunpack.c.l.b16 %v2224
  %v2744 = vunpack.c.l.b16 %v2225
  %v2745 = vunpack.c.l.b16 %v2226
  %v2746 = vunpack.c.l.b16 %v2227
  %v2747 = vunpack.c.l.b16 %v2228
  %v2748 = vunpack.c.l.b16 %v2229
  %v2749 = vunpack.c.l.b16 %v2230
  %v2750 = vunpack.c.l.b16 %v2231
  %v2751 = vunpack.c.l.b16 %v2232
  %v2752 = vunpack.c.l.b16 %v2233
  %v2753 = vunpack.c.l.b16 %v2234
  %v2754 = vunpack.c.l.b16 %v2235
  %v2755 = vunpack.c.l.b16 %v2236
  %v2756 = vunpack.c.l.b16 %v2237
  %v2757 = vunpack.c.l.b16 %v2238
  %v2758 = vunpack.c.l.b16 %v2239
  %v2759 = vunpack.c.l.b16 %v2240
  %v2760 = vunpack.c.l.b16 %v2241
  %v2761 = vunpack.c.l.b16 %v2242
  %v2762 = vunpack.c.l.b16 %v2243
  %v2763 = vunpack.c.l.b16 %v2244
  %v2764 = vunpack.c.l.b16 %v2245
  %v2765 = vunpack.c.l.b16 %v2246
  %v2766 = vunpack.c.l.b16 %v2247
  %v2767 = vunpack.c.l.b16 %v2248
  %v2768 = vunpack.c.l.b16 %v2249
  %v2769 = vunpack.c.l.b16 %v2250
  %v2770 = vunpack.c.l.b16 %v2251
  %v2771 = vunpack.c.l.b16 %v2252
  %v2772 = vunpack.c.l.b16 %v2253
  %v2773 = vunpack.c.l.b16 %v2254
  %v2774 = vunpack.c.l.b16 %v2255
  %v2775 = vunpack.c.l.b16 %v2256
  %v2776 = vunpack.c.l.b16 %v2257
  %v2777 = vunpack.c.l.b16 %v2258
  %v2778 = vunpack.c.l.b16 %v2259
  %v2779 = vunpack.c.l.b16 %v2260
  %v2780 = vunpack.c.l.b16 %v2261
  %v2781 = vunpack.c.l.b16 %v2262
  %v2782 = vunpack.c.l.b16 %v2263
  %v2783 = vunpack.c.l.b16 %v2264
  %v2784 = vunpack.c.l.b16 %v2265
  %v2785 = vunpack.c.l.b16 %v2266
  %v2786 = vunpack.c.l.b16 %v2267
  %v2787 = vunpack.c.l.b16 %v2268
  %v2788 = vunpack.c.l.b16 %v2269
  %v2789 = vunpack.c.l.b16 %v2270
  %v2790 = vunpack.c.l.b16 %v2271
  %v2791 = vunpack.c.l.b16 %v2272
  %v2792 = vunpack.c.l.b16 %v2273
  %v2793 = vunpack.c.l.b16 %v2274
  %v2794 = vunpack.c.l.b16 %v2275
  %v2795 = vunpack.c.l.b16 %v2276
  %v2796 = vunpack.c.l.b16 %v2277
  %v2797 = vunpack.c.l.b16 %v2278
  %v2798 = vunpack.c.l.b16 %v2279
  %v2799 = vunpack.c.l.b16 %v2280
  %v2800 = vunpack.c.l.b16 %v2281
  %v2801 = vunpack.c.l.b16 %v2282
  %v2802 = vunpack.c.l.b16 %v2283
  %v2803 = vunpack.c.l.b16 %v2284
  %v2804 = vunpack.c.l.b16 %v2285
  %v2805 = vunpack.c.l.b16 %v2286
  %v2806 = vunpack.c.l.b16 %v2287
  %v2807 = vunpack.c.l.b16 %v2288
  %v2808 = vunpack.c.l.b16 %v2289
  %v2809 = vunpack.c.l.b16 %v2290
  %v2810 = vunpack.c.l.b16 %v2291
  %v2811 = vunpack.c.l.b16 %v2292
  %v2812 = vunpack.c.l.b16 %v2293
  %v2813 = vunpack.c.l.b16 %v2294
  %v2814 = vunpack.c.l.b16 %v2295
  %v2815 = vunpack.c.l.b16 %v2296
  %v2816 = vunpack.c.l.b16 %v2297
  %v2817 = vunpack.c.l.b16 %v2298
  %v2818 = vunpack.c.l.b16 %v2299
  %v2819 = vunpack.c.l.b16 %v2300
  %v2820 = vunpack.c.l.b16 %v2301
  %v2821 = vunpack.c.l.b16 %v2302
  %v2822 = vunpack.c.l.b16 %v2303
  %v2823 = vunpack.c.l.b16 %v2304
  %v2824 = vunpack.c.l.b16 %v2305
  %v2825 = vunpack.c.l.b16 %v2306
  %v2826 = vunpack.c.l.b16 %v2307
  %v2827 = vunpack.c.l.b16 %v2308
  %v2828 = vunpack.c.l.b16 %v2309
  %v2829 = vunpack.c.l.b16 %v2310
  %v2830 = vunpack.c.l.b16 %v2311
  %v2831 = vunpack.c.l.b16 %v2312
  %v2832 = vunpack.c.l.b16 %v2313
  %v2833 = vunpack.c.l.b16 %v2314
  %v2834 = vunpack.c.l.b16 %v2315
  %v2835 = vunpack.c.l.b16 %v2316
  %v2836 = vunpack.c.l.b16 %v2317
  %v2837 = vunpack.c.l.b16 %v2318
  %v2838 = vunpack.c.l.b16 %v2319
  %v2839 = vunpack.c.l.b16 %v2320
  %v2840 = vunpack.c.l.b16 %v2321
  %v2841 = vunpack.c.l.b16 %v2322
  %v2842 = vunpack.c.l.b16 %v2323
  %v2843 = vunpack.c.l.b16 %v2324
  %v2844 = vunpack.c.l.b16 %v2325
  %v2845 = vunpack.c.l.b16 %v2326
  %v2846 = vunpack.c.l.b16 %v2327
  %v2847 = vunpack.c.l.b16 %v2328
  %v2848 = vunpack.c.l.b16 %v2329
  %v2849 = vunpack.c.l.b16 %v2330
  %v2850 = vunpack.c.l.b16 %v2331
  %v2851 = vunpack.c.l.b16 %v2332
  %v2852 = vunpack.c.l.b16 %v2333
  %v2853 = vunpack.c.l.b16 %v2334
  %v2854 = vunpack.c.l.b16 %v2335
  %v2855 = vunpack.c.l.b16 %v2336
  %v2856 = vunpack.c.l.b16 %v2337
  %v2857 = vunpack.c.l.b16 %v2338
  %v2858 = vunpack.c.l.b16 %v2339
  %v2859 = vunpack.c.l.b16 %v2340
  %v2860 = vunpack.c.l.b16 %v2341
  %v2861 = vunpack.c.l.b16 %v2342
  %v2862 = vunpack.c.l.b16 %v2343
  %v2863 = vunpack.c.l.b16 %v2344
  %v2864 = vunpack.c.l.b16 %v2345
  %v2865 = vunpack.c.l.b16 %v2346
  %v2866 = vunpack.c.l.b16 %v2347
  %v2867 = vunpack.c.l.b16 %v2348
  %v2868 = vpack.c.b16 %v2613, %v2612
  %v2869 = vpack.c.b16 %v2615, %v2614
  %v2870 = vpack.c.b16 %v2617, %v2616
  %v2871 = vpack.c.b16 %v2619, %v2618
  %v2872 = vpack.c.b16 %v2621, %v2620
  %v2873 = vpack.c.b16 %v2623, %v2622
  %v2874 = vpack.c.b16 %v2625, %v2624
  %v2875 = vpack.c.b16 %v2627, %v2626
  %v2876 = vpack.c.b16 %v2629, %v2628
  %v2877 = vpack.c.b16 %v2631, %v2630
  %v2878 = vpack.c.b16 %v2633, %v2632
  %v2879 = vpack.c.b16 %v2635, %v2634
  %v2880 = vpack.c.b16 %v2637, %v2636
  %v2881 = vpack.c.b16 %v2639, %v2638
  %v2882 = vpack.c.b16 %v2641, %v2640
  %v2883 = vpack.c.b16 %v2643, %v2642
  %v2884 = vpack.c.b16 %v2645, %v2644
  %v2885 = vpack.c.b16 %v2647, %v2646
  %v2886 = vpack.c.b16 %v2649, %v2648
  %v2887 = vpack.c.b16 %v2651, %v2650
  %v2888 = vpack.c.b16 %v2653, %v2652
  %v2889 = vpack.c.b16 %v2655, %v2654
  %v2890 = vpack.c.b16 %v2657, %v2656
  %v2891 = vpack.c.b16 %v2659, %v2658
  %v2892 = vpack.c.b16 %v2661, %v2660
  %v2893 = vpack.c.b16 %v2663, %v2662
  %v2894 = vpack.c.b16 %v2665, %v2664
  %v2895 = vpack.c.b16 %v2667, %v2666
  %v2896 = vpack.c.b16 %v2669, %v2668
  %v2897 = vpack.c.b16 %v2671, %v2670
  %v2898 = vpack.c.b16 %v2673, %v2672
  %v2899 = vpack.c.b16 %v2675, %v2674
  %v2900 = vpack.c.b16 %v2677, %v2676
  %v2901 = vpack.c.b16 %v2679, %v2678
  %v2902 = vpack.c.b16 %v2681, %v2680
  %v2903 = vpack.c.b16 %v2683, %v2682
  %v2904 = vpack.c.b16 %v2685, %v2684
  %v2905 = vpack.c.b16 %v2687, %v2686
  %v2906 = vpack.c.b16 %v2689, %v2688
  %v2907 = vpack.c.b16 %v2691, %v2690
  %v2908 = vpack.c.b16 %v2693, %v2692
  %v2909 = vpack.c.b16 %v2695, %v2694
  %v2910 = vpack.c.b16 %v2697, %v2696
  %v2911 = vpack.c.b16 %v2699, %v2698
  %v2912 = vpack.c.b16 %v2701, %v2700
  %v2913 = vpack.c.b16 %v2703, %v2702
  %v2914 = vpack.c.b16 %v2705, %v2704
  %v2915 = vpack.c.b16 %v2707, %v2706
  %v2916 = vpack.c.b16 %v2709, %v2708
  %v2917 = vpack.c.b16 %v2711, %v2710
  %v2918 = vpack.c.b16 %v2713, %v2712
  %v2919 = vpack.c.b16 %v2715, %v2714
  %v2920 = vpack.c.b16 %v2717, %v2716
  %v2921 = vpack.c.b16 %v2719, %v2718
  %v2922 = vpack.c.b16 %v2721, %v2720
  %v2923 = vpack.c.b16 %v2723, %v2722
  %v2924 = vpack.c.b16 %v2725, %v2724
  %v2925 = vpack.c.b16 %v2727, %v2726
  %v2926 = vpack.c.b16 %v2729, %v2728
  %v2927 = vpack.c.b16 %v2731, %v2730
  %v2928 = vpack.c.b16 %v2733, %v2732
  %v2929 = vpack.c.b16 %v2735, %v2734
  %v2930 = vpack.c.b16 %v2737, %v2736
  %v2931 = vpack.c.b16 %v2739, %v2738
  %v2932 = vpack.c.b16 %v2741, %v2740
  %v2933 = vpack.c.b16 %v2743, %v2742
  %v2934 = vpack.c.b16 %v2745, %v2744
  %v2935 = vpack.c.b16 %v2747, %v2746
  %v2936 = vpack.c.b16 %v2749, %v2748
  %v2937 = vpack.c.b16 %v2751, %v2750
  %v2938 = vpack.c.b16 %v2753, %v2752
  %v2939 = vpack.c.b16 %v2755, %v2754
  %v2940 = vpack.c.b16 %v2757, %v2756
  %v2941 = vpack.c.b16 %v2759, %v2758
  %v2942 = vpack.c.b16 %v2761, %v2760
  %v2943 = vpack.c.b16 %v2763, %v2762
  %v2944 = vpack.c.b16 %v2765, %v2764
  %v2945 = vpack.c.b16 %v2767, %v2766
  %v2946 = vpack.c.b16 %v2769, %v2768
  %v2947 = vpack.c.b16 %v2771, %v2770
  %v2948 = vpack.c.b16 %v2773, %v2772
  %v2949 = vpack.c.b16 %v2775, %v2774
  %v2950 = vpack.c.b16 %v2777, %v2776
  %v2951 = vpack.c.b16 %v2779, %v2778
  %v2952 = vpack.c.b16 %v2781, %v2780
  %v2953 = vpack.c.b16 %v2783, %v2782
  %v2954 = vpack.c.b16 %v2785, %v2784
  %v2955 = vpack.c.b16 %v2787, %v2786
  %v2956 = vpack.c.b16 %v2789, %v2788
  %v2957 = vpack.c.b16 %v2791, %v2790
  %v2958 = vpack.c.b16 %v2793, %v2792
  %v2959 = vpack.c.b16 %v2795, %v2794
  %v2960 = vpack.c.b16 %v2797, %v2796
  %v2961 = vpack.c.b16 %v2799, %v2798
  %v2962 = vpack.c.b16 %v2801, %v2800
  %v2963 = vpack.c.b16 %v2803, %v2802
  %v2964 = vpack.c.b16 %v2805, %v2804
  %v2965 = vpack.c.b16 %v2807, %v2806
  %v2966 = vpack.c.b16 %v2809, %v2808
  %v2967 = vpack.c.b16 %v2811, %v2810
  %v2968 = vpack.c.b16 %v2813, %v2812
  %v2969 = vpack.c.b16 %v2815, %v2814
  %v2970 = vpack.c.b16 %v2817, %v2816
  %v2971 = vpack.c.b16 %v2819, %v2818
  %v2972 = vpack.c.b16 %v2821, %v2820
  %v2973 = vpack.c.b16 %v2823, %v2822
  %v2974 = vpack.c.b16 %v2825, %v2824
  %v2975 = vpack.c.b16 %v2827, %v2826
  %v2976 = vpack.c.b16 %v2829, %v2828
  %v2977 = vpack.c.b16 %v2831, %v2830
  %v2978 = vpack.c.b16 %v2833, %v2832
  %v2979 = vpack.c.b16 %v2835, %v2834
  %v2980 = vpack.c.b16 %v2837, %v2836
  %v2981 = vpack.c.b16 %v2839, %v2838
  %v2982 = vpack.c.b16 %v2841, %v2840
  %v2983 = vpack.c.b16 %v2843, %v2842
  %v2984 = vpack.c.b16 %v2845, %v2844
  %v2985 = vpack.c.b16 %v2847, %v2846
  %v2986 = vpack.c.b16 %v2849, %v2848
  %v2987 = vpack.c.b16 %v2851, %v2850
  %v2988 = vpack.c.b16 %v2853, %v2852
  %v2989 = vpack.c.b16 %v2855, %v2854
  %v2990 = vpack.c.b16 %v2857, %v2856
  %v2991 = vpack.c.b16 %v2859, %v2858
  %v2992 = vpack.c.b16 %v2861, %v2860
  %v2993 = vpack.c.b16 %v2863, %v2862
  %v2994 = vpack.c.b16 %v2865, %v2864
  %v2995 = vpack.c.b16 %v2867, %v2866
  %3124 = vmatprep.subr.bf16.mxu0 0
  %3125 = vmatpush1.bf16.msra.mxu0 %v2875
  %3126 = vmatprep.subr.bf16.mxu0 0
  %3127 = vmatpush1.bf16.msra.mxu0 %v2874
  %3128 = vmatprep.subr.bf16.mxu0 0
  %3129 = vmatpush1.bf16.msra.mxu0 %v2873
  %3130 = vmatprep.subr.bf16.mxu0 0
  %3131 = vmatpush1.bf16.msra.mxu0 %v2872
  %3132 = vmatprep.subr.bf16.mxu0 0
  %3133 = vmatpush1.bf16.msra.mxu0 %v2871
  %3134 = vmatprep.subr.bf16.mxu0 0
  %3135 = vmatpush1.bf16.msra.mxu0 %v2870
  %3136 = vmatprep.subr.bf16.mxu0 0
  %3137 = vmatpush1.bf16.msra.mxu0 %v2869
  %3138 = vmatprep.subr.bf16.mxu0 0
  %3139 = vmatpush1.bf16.msra.mxu0 %v2868
  %3140 = vmatprep.subr.bf16.mxu0 0
  %3141 = vmatpush2.bf16.msra.mxu0 %v2883
  %3142 = vmatprep.subr.bf16.mxu0 0
  %3143 = vmatpush2.bf16.msra.mxu0 %v2882
  %3144 = vmatprep.subr.bf16.mxu0 0
  %3145 = vmatpush2.bf16.msra.mxu0 %v2881
  %3146 = vmatprep.subr.bf16.mxu0 0
  %3147 = vmatpush2.bf16.msra.mxu0 %v2880
  %3148 = vmatprep.subr.bf16.mxu0 0
  %3149 = vmatpush2.bf16.msra.mxu0 %v2879
  %3150 = vmatprep.subr.bf16.mxu0 0
  %3151 = vmatpush2.bf16.msra.mxu0 %v2878
  %3152 = vmatprep.subr.bf16.mxu0 0
  %3153 = vmatpush2.bf16.msra.mxu0 %v2877
  %3154 = vmatprep.subr.bf16.mxu0 0
  %3155 = vmatpush2.bf16.msra.mxu0 %v2876
  %3156 = vmatprep.mubr.bf16.mxu0 %v2078
  %3157 = vmatmul.mubr.bf16.gmra.mxu0 %v2077
  %v3158 = vpop.f32.mrf.mxu0
  %v3159 = vadd.f32 %v2354, %v3158
  %v3160 = vpop.f32.mrf.mxu0
  %v3161 = vpop.f32.mrf.mxu0
  %v3162 = vpop.f32.mrf.mxu0
  %3163 = vdwg.mxu0
  %3164 = vmatprep.subr.bf16.mxu0 0
  %3165 = vmatpush1.bf16.msra.mxu0 %v2891
  %3166 = vmatprep.subr.bf16.mxu0 0
  %3167 = vmatpush1.bf16.msra.mxu0 %v2890
  %3168 = vmatprep.subr.bf16.mxu0 0
  %3169 = vmatpush1.bf16.msra.mxu0 %v2889
  %3170 = vmatprep.subr.bf16.mxu0 0
  %3171 = vmatpush1.bf16.msra.mxu0 %v2888
  %3172 = vmatprep.subr.bf16.mxu0 0
  %3173 = vmatpush1.bf16.msra.mxu0 %v2887
  %3174 = vmatprep.subr.bf16.mxu0 0
  %3175 = vmatpush1.bf16.msra.mxu0 %v2886
  %3176 = vmatprep.subr.bf16.mxu0 0
  %3177 = vmatpush1.bf16.msra.mxu0 %v2885
  %3178 = vmatprep.subr.bf16.mxu0 0
  %3179 = vmatpush1.bf16.msra.mxu0 %v2884
  %3180 = vmatprep.subr.bf16.mxu0 0
  %3181 = vmatpush2.bf16.msra.mxu0 %v2899
  %3182 = vmatprep.subr.bf16.mxu0 0
  %3183 = vmatpush2.bf16.msra.mxu0 %v2898
  %3184 = vmatprep.subr.bf16.mxu0 0
  %3185 = vmatpush2.bf16.msra.mxu0 %v2897
  %3186 = vmatprep.subr.bf16.mxu0 0
  %3187 = vmatpush2.bf16.msra.mxu0 %v2896
  %3188 = vmatprep.subr.bf16.mxu0 0
  %3189 = vmatpush2.bf16.msra.mxu0 %v2895
  %3190 = vmatprep.subr.bf16.mxu0 0
  %3191 = vmatpush2.bf16.msra.mxu0 %v2894
  %3192 = vmatprep.subr.bf16.mxu0 0
  %3193 = vmatpush2.bf16.msra.mxu0 %v2893
  %3194 = vmatprep.subr.bf16.mxu0 0
  %3195 = vmatpush2.bf16.msra.mxu0 %v2892
  %3196 = vmatprep.mubr.bf16.mxu0 %v2080
  %3197 = vmatmul.mubr.bf16.gmra.mxu0 %v2079
  %v3198 = vpop.f32.mrf.mxu0
  %v3199 = vadd.f32 %v3159, %v3198
  %v3200 = vpop.f32.mrf.mxu0
  %v3201 = vpop.f32.mrf.mxu0
  %v3202 = vpop.f32.mrf.mxu0
  %3203 = vdwg.mxu0
  %3204 = vmatprep.subr.bf16.mxu0 0
  %3205 = vmatpush1.bf16.msra.mxu0 %v2907
  %3206 = vmatprep.subr.bf16.mxu0 0
  %3207 = vmatpush1.bf16.msra.mxu0 %v2906
  %3208 = vmatprep.subr.bf16.mxu0 0
  %3209 = vmatpush1.bf16.msra.mxu0 %v2905
  %3210 = vmatprep.subr.bf16.mxu0 0
  %3211 = vmatpush1.bf16.msra.mxu0 %v2904
  %3212 = vmatprep.subr.bf16.mxu0 0
  %3213 = vmatpush1.bf16.msra.mxu0 %v2903
  %3214 = vmatprep.subr.bf16.mxu0 0
  %3215 = vmatpush1.bf16.msra.mxu0 %v2902
  %3216 = vmatprep.subr.bf16.mxu0 0
  %3217 = vmatpush1.bf16.msra.mxu0 %v2901
  %3218 = vmatprep.subr.bf16.mxu0 0
  %3219 = vmatpush1.bf16.msra.mxu0 %v2900
  %3220 = vmatprep.subr.bf16.mxu0 0
  %3221 = vmatpush2.bf16.msra.mxu0 %v2915
  %3222 = vmatprep.subr.bf16.mxu0 0
  %3223 = vmatpush2.bf16.msra.mxu0 %v2914
  %3224 = vmatprep.subr.bf16.mxu0 0
  %3225 = vmatpush2.bf16.msra.mxu0 %v2913
  %3226 = vmatprep.subr.bf16.mxu0 0
  %3227 = vmatpush2.bf16.msra.mxu0 %v2912
  %3228 = vmatprep.subr.bf16.mxu0 0
  %3229 = vmatpush2.bf16.msra.mxu0 %v2911
  %3230 = vmatprep.subr.bf16.mxu0 0
  %3231 = vmatpush2.bf16.msra.mxu0 %v2910
  %3232 = vmatprep.subr.bf16.mxu0 0
  %3233 = vmatpush2.bf16.msra.mxu0 %v2909
  %3234 = vmatprep.subr.bf16.mxu0 0
  %3235 = vmatpush2.bf16.msra.mxu0 %v2908
  %3236 = vmatprep.mubr.bf16.mxu0 %v2082
  %3237 = vmatmul.mubr.bf16.gmra.mxu0 %v2081
  %v3238 = vpop.f32.mrf.mxu0
  %v3239 = vadd.f32 %v3199, %v3238
  %v3240 = vpop.f32.mrf.mxu0
  %v3241 = vpop.f32.mrf.mxu0
  %v3242 = vpop.f32.mrf.mxu0
  %3243 = vdwg.mxu0
  %3244 = vmatprep.subr.bf16.mxu0 0
  %3245 = vmatpush1.bf16.msra.mxu0 %v2923
  %3246 = vmatprep.subr.bf16.mxu0 0
  %3247 = vmatpush1.bf16.msra.mxu0 %v2922
  %3248 = vmatprep.subr.bf16.mxu0 0
  %3249 = vmatpush1.bf16.msra.mxu0 %v2921
  %3250 = vmatprep.subr.bf16.mxu0 0
  %3251 = vmatpush1.bf16.msra.mxu0 %v2920
  %3252 = vmatprep.subr.bf16.mxu0 0
  %3253 = vmatpush1.bf16.msra.mxu0 %v2919
  %3254 = vmatprep.subr.bf16.mxu0 0
  %3255 = vmatpush1.bf16.msra.mxu0 %v2918
  %3256 = vmatprep.subr.bf16.mxu0 0
  %3257 = vmatpush1.bf16.msra.mxu0 %v2917
  %3258 = vmatprep.subr.bf16.mxu0 0
  %3259 = vmatpush1.bf16.msra.mxu0 %v2916
  %3260 = vmatprep.subr.bf16.mxu0 0
  %3261 = vmatpush2.bf16.msra.mxu0 %v2931
  %3262 = vmatprep.subr.bf16.mxu0 0
  %3263 = vmatpush2.bf16.msra.mxu0 %v2930
  %3264 = vmatprep.subr.bf16.mxu0 0
  %3265 = vmatpush2.bf16.msra.mxu0 %v2929
  %3266 = vmatprep.subr.bf16.mxu0 0
  %3267 = vmatpush2.bf16.msra.mxu0 %v2928
  %3268 = vmatprep.subr.bf16.mxu0 0
  %3269 = vmatpush2.bf16.msra.mxu0 %v2927
  %3270 = vmatprep.subr.bf16.mxu0 0
  %3271 = vmatpush2.bf16.msra.mxu0 %v2926
  %3272 = vmatprep.subr.bf16.mxu0 0
  %3273 = vmatpush2.bf16.msra.mxu0 %v2925
  %3274 = vmatprep.subr.bf16.mxu0 0
  %3275 = vmatpush2.bf16.msra.mxu0 %v2924
  %3276 = vmatprep.mubr.bf16.mxu0 %v2084
  %3277 = vmatmul.mubr.bf16.gmra.mxu0 %v2083
  %v3278 = vpop.f32.mrf.mxu0
  %v3279 = vadd.f32 %v3239, %v3278
  %v3280 = vpop.f32.mrf.mxu0
  %v3281 = vpop.f32.mrf.mxu0
  %v3282 = vpop.f32.mrf.mxu0
  %3283 = vdwg.mxu0
  %3284 = vmatprep.subr.bf16.mxu0 0
  %3285 = vmatpush1.bf16.msra.mxu0 %v2939
  %3286 = vmatprep.subr.bf16.mxu0 0
  %3287 = vmatpush1.bf16.msra.mxu0 %v2938
  %3288 = vmatprep.subr.bf16.mxu0 0
  %3289 = vmatpush1.bf16.msra.mxu0 %v2937
  %3290 = vmatprep.subr.bf16.mxu0 0
  %3291 = vmatpush1.bf16.msra.mxu0 %v2936
  %3292 = vmatprep.subr.bf16.mxu0 0
  %3293 = vmatpush1.bf16.msra.mxu0 %v2935
  %3294 = vmatprep.subr.bf16.mxu0 0
  %3295 = vmatpush1.bf16.msra.mxu0 %v2934
  %3296 = vmatprep.subr.bf16.mxu0 0
  %3297 = vmatpush1.bf16.msra.mxu0 %v2933
  %3298 = vmatprep.subr.bf16.mxu0 0
  %3299 = vmatpush1.bf16.msra.mxu0 %v2932
  %3300 = vmatprep.subr.bf16.mxu0 0
  %3301 = vmatpush2.bf16.msra.mxu0 %v2947
  %3302 = vmatprep.subr.bf16.mxu0 0
  %3303 = vmatpush2.bf16.msra.mxu0 %v2946
  %3304 = vmatprep.subr.bf16.mxu0 0
  %3305 = vmatpush2.bf16.msra.mxu0 %v2945
  %3306 = vmatprep.subr.bf16.mxu0 0
  %3307 = vmatpush2.bf16.msra.mxu0 %v2944
  %3308 = vmatprep.subr.bf16.mxu0 0
  %3309 = vmatpush2.bf16.msra.mxu0 %v2943
  %3310 = vmatprep.subr.bf16.mxu0 0
  %3311 = vmatpush2.bf16.msra.mxu0 %v2942
  %3312 = vmatprep.subr.bf16.mxu0 0
  %3313 = vmatpush2.bf16.msra.mxu0 %v2941
  %3314 = vmatprep.subr.bf16.mxu0 0
  %3315 = vmatpush2.bf16.msra.mxu0 %v2940
  %3316 = vmatprep.mubr.bf16.mxu0 %v2086
  %3317 = vmatmul.mubr.bf16.gmra.mxu0 %v2085
  %v3318 = vpop.f32.mrf.mxu0
  %v3319 = vadd.f32 %v3279, %v3318
  %v3320 = vpop.f32.mrf.mxu0
  %v3321 = vpop.f32.mrf.mxu0
  %v3322 = vpop.f32.mrf.mxu0
  %3323 = vdwg.mxu0
  %3324 = vmatprep.subr.bf16.mxu0 0
  %3325 = vmatpush1.bf16.msra.mxu0 %v2955
  %3326 = vmatprep.subr.bf16.mxu0 0
  %3327 = vmatpush1.bf16.msra.mxu0 %v2954
  %3328 = vmatprep.subr.bf16.mxu0 0
  %3329 = vmatpush1.bf16.msra.mxu0 %v2953
  %3330 = vmatprep.subr.bf16.mxu0 0
  %3331 = vmatpush1.bf16.msra.mxu0 %v2952
  %3332 = vmatprep.subr.bf16.mxu0 0
  %3333 = vmatpush1.bf16.msra.mxu0 %v2951
  %3334 = vmatprep.subr.bf16.mxu0 0
  %3335 = vmatpush1.bf16.msra.mxu0 %v2950
  %3336 = vmatprep.subr.bf16.mxu0 0
  %3337 = vmatpush1.bf16.msra.mxu0 %v2949
  %3338 = vmatprep.subr.bf16.mxu0 0
  %3339 = vmatpush1.bf16.msra.mxu0 %v2948
  %3340 = vmatprep.subr.bf16.mxu0 0
  %3341 = vmatpush2.bf16.msra.mxu0 %v2963
  %3342 = vmatprep.subr.bf16.mxu0 0
  %3343 = vmatpush2.bf16.msra.mxu0 %v2962
  %3344 = vmatprep.subr.bf16.mxu0 0
  %3345 = vmatpush2.bf16.msra.mxu0 %v2961
  %3346 = vmatprep.subr.bf16.mxu0 0
  %3347 = vmatpush2.bf16.msra.mxu0 %v2960
  %3348 = vmatprep.subr.bf16.mxu0 0
  %3349 = vmatpush2.bf16.msra.mxu0 %v2959
  %3350 = vmatprep.subr.bf16.mxu0 0
  %3351 = vmatpush2.bf16.msra.mxu0 %v2958
  %3352 = vmatprep.subr.bf16.mxu0 0
  %3353 = vmatpush2.bf16.msra.mxu0 %v2957
  %3354 = vmatprep.subr.bf16.mxu0 0
  %3355 = vmatpush2.bf16.msra.mxu0 %v2956
  %3356 = vmatprep.mubr.bf16.mxu0 %v2088
  %3357 = vmatmul.mubr.bf16.gmra.mxu0 %v2087
  %v3358 = vpop.f32.mrf.mxu0
  %v3359 = vadd.f32 %v3319, %v3358
  %v3360 = vpop.f32.mrf.mxu0
  %v3361 = vpop.f32.mrf.mxu0
  %v3362 = vpop.f32.mrf.mxu0
  %3363 = vdwg.mxu0
  %3364 = vmatprep.subr.bf16.mxu0 0
  %3365 = vmatpush1.bf16.msra.mxu0 %v2971
  %3366 = vmatprep.subr.bf16.mxu0 0
  %3367 = vmatpush1.bf16.msra.mxu0 %v2970
  %3368 = vmatprep.subr.bf16.mxu0 0
  %3369 = vmatpush1.bf16.msra.mxu0 %v2969
  %3370 = vmatprep.subr.bf16.mxu0 0
  %3371 = vmatpush1.bf16.msra.mxu0 %v2968
  %3372 = vmatprep.subr.bf16.mxu0 0
  %3373 = vmatpush1.bf16.msra.mxu0 %v2967
  %3374 = vmatprep.subr.bf16.mxu0 0
  %3375 = vmatpush1.bf16.msra.mxu0 %v2966
  %3376 = vmatprep.subr.bf16.mxu0 0
  %3377 = vmatpush1.bf16.msra.mxu0 %v2965
  %3378 = vmatprep.subr.bf16.mxu0 0
  %3379 = vmatpush1.bf16.msra.mxu0 %v2964
  %3380 = vmatprep.subr.bf16.mxu0 0
  %3381 = vmatpush2.bf16.msra.mxu0 %v2979
  %3382 = vmatprep.subr.bf16.mxu0 0
  %3383 = vmatpush2.bf16.msra.mxu0 %v2978
  %3384 = vmatprep.subr.bf16.mxu0 0
  %3385 = vmatpush2.bf16.msra.mxu0 %v2977
  %3386 = vmatprep.subr.bf16.mxu0 0
  %3387 = vmatpush2.bf16.msra.mxu0 %v2976
  %3388 = vmatprep.subr.bf16.mxu0 0
  %3389 = vmatpush2.bf16.msra.mxu0 %v2975
  %3390 = vmatprep.subr.bf16.mxu0 0
  %3391 = vmatpush2.bf16.msra.mxu0 %v2974
  %3392 = vmatprep.subr.bf16.mxu0 0
  %3393 = vmatpush2.bf16.msra.mxu0 %v2973
  %3394 = vmatprep.subr.bf16.mxu0 0
  %3395 = vmatpush2.bf16.msra.mxu0 %v2972
  %3396 = vmatprep.mubr.bf16.mxu0 %v2090
  %3397 = vmatmul.mubr.bf16.gmra.mxu0 %v2089
  %v3398 = vpop.f32.mrf.mxu0
  %v3399 = vadd.f32 %v3359, %v3398
  %v3400 = vpop.f32.mrf.mxu0
  %v3401 = vpop.f32.mrf.mxu0
  %v3402 = vpop.f32.mrf.mxu0
  %3403 = vdwg.mxu0
  %3404 = vmatprep.subr.bf16.mxu0 0
  %3405 = vmatpush1.bf16.msra.mxu0 %v2987
  %3406 = vmatprep.subr.bf16.mxu0 0
  %3407 = vmatpush1.bf16.msra.mxu0 %v2986
  %3408 = vmatprep.subr.bf16.mxu0 0
  %3409 = vmatpush1.bf16.msra.mxu0 %v2985
  %3410 = vmatprep.subr.bf16.mxu0 0
  %3411 = vmatpush1.bf16.msra.mxu0 %v2984
  %3412 = vmatprep.subr.bf16.mxu0 0
  %3413 = vmatpush1.bf16.msra.mxu0 %v2983
  %3414 = vmatprep.subr.bf16.mxu0 0
  %3415 = vmatpush1.bf16.msra.mxu0 %v2982
  %3416 = vmatprep.subr.bf16.mxu0 0
  %3417 = vmatpush1.bf16.msra.mxu0 %v2981
  %3418 = vmatprep.subr.bf16.mxu0 0
  %3419 = vmatpush1.bf16.msra.mxu0 %v2980
  %3420 = vmatprep.subr.bf16.mxu0 0
  %3421 = vmatpush2.bf16.msra.mxu0 %v2995
  %3422 = vmatprep.subr.bf16.mxu0 0
  %3423 = vmatpush2.bf16.msra.mxu0 %v2994
  %3424 = vmatprep.subr.bf16.mxu0 0
  %3425 = vmatpush2.bf16.msra.mxu0 %v2993
  %3426 = vmatprep.subr.bf16.mxu0 0
  %3427 = vmatpush2.bf16.msra.mxu0 %v2992
  %3428 = vmatprep.subr.bf16.mxu0 0
  %3429 = vmatpush2.bf16.msra.mxu0 %v2991
  %3430 = vmatprep.subr.bf16.mxu0 0
  %3431 = vmatpush2.bf16.msra.mxu0 %v2990
  %3432 = vmatprep.subr.bf16.mxu0 0
  %3433 = vmatpush2.bf16.msra.mxu0 %v2989
  %3434 = vmatprep.subr.bf16.mxu0 0
  %3435 = vmatpush2.bf16.msra.mxu0 %v2988
  %3436 = vmatprep.mubr.bf16.mxu0 %v2092
  %3437 = vmatmul.mubr.bf16.gmra.mxu0 %v2091
  %v3438 = vpop.f32.mrf.mxu0
  %v3439 = vadd.f32 %v3399, %v3438
  %v3440 = vpop.f32.mrf.mxu0
  %v3441 = vpop.f32.mrf.mxu0
  %v3442 = vpop.f32.mrf.mxu0
  %3443 = vdwg.mxu0
  %v3444 = vmax.f32 %v3439, 0.0
  %v3445 = vpack.c.bf16 %v2076, %v2076
  %v3446 = vld [vmem:[%s9] sm:$0xff]
  %v3447 = vld [vmem:[%s9 + $0x8] sm:$0xff]
  %v3448 = vld [vmem:[%s9 + $0x10] sm:$0xff]
  %v3449 = vld [vmem:[%s9 + $0x18] sm:$0xff]
  %v3450 = vpack.c.bf16 %v3444, %v3444
  %v3451 = vld [vmem:[%s10] sm:$0xff]
  %v3452 = vld [vmem:[%s10 + $0x8] sm:$0xff]
  %v3453 = vld [vmem:[%s10 + $0x10] sm:$0xff]
  %v3454 = vld [vmem:[%s10 + $0x18] sm:$0xff]
  %v3459 = vunpack.c.l.b16 %v3451
  %v3460 = vunpack.c.h.b16 %v3451
  %v3461 = vunpack.c.l.b16 %v3452
  %v3462 = vunpack.c.h.b16 %v3452
  %v3463 = vunpack.c.l.b16 %v3453
  %v3464 = vunpack.c.h.b16 %v3453
  %v3465 = vunpack.c.l.b16 %v3454
  %v3466 = vunpack.c.h.b16 %v3454
  %v3467 = vpack.c.b16 %v3463, %v3459
  %v3468 = vpack.c.b16 %v3464, %v3460
  %v3469 = vpack.c.b16 %v3465, %v3461
  %v3470 = vpack.c.b16 %v3466, %v3462
  %vm3475 = vcmask 130048
  %v3477 = vsel %vm3475, %v3450, 0
  %3479 = vmatprep.subr.bf16.mxu0 0
  %3480 = vmatpush1.bf16.msra.mxu0 0
  %3481 = vmatprep.subr.bf16.mxu0 0
  %3482 = vmatpush1.bf16.msra.mxu0 0
  %3483 = vmatprep.subr.bf16.mxu0 0
  %3484 = vmatpush1.bf16.msra.mxu0 0
  %3485 = vmatprep.subr.bf16.mxu0 0
  %3486 = vmatpush1.bf16.msra.mxu0 0
  %3487 = vmatprep.subr.bf16.mxu0 0
  %3488 = vmatpush1.bf16.msra.mxu0 0
  %3489 = vmatprep.subr.bf16.mxu0 0
  %3490 = vmatpush1.bf16.msra.mxu0 0
  %3491 = vmatprep.subr.bf16.mxu0 0
  %3492 = vmatpush1.bf16.msra.mxu0 0
  %3493 = vmatprep.subr.bf16.mxu0 %v3468
  %3494 = vmatpush1.bf16.msra.mxu0 %v3467
  %3495 = vmatprep.subr.bf16.mxu0 0
  %3496 = vmatpush2.bf16.msra.mxu0 0
  %3497 = vmatprep.subr.bf16.mxu0 0
  %3498 = vmatpush2.bf16.msra.mxu0 0
  %3499 = vmatprep.subr.bf16.mxu0 0
  %3500 = vmatpush2.bf16.msra.mxu0 0
  %3501 = vmatprep.subr.bf16.mxu0 0
  %3502 = vmatpush2.bf16.msra.mxu0 0
  %3503 = vmatprep.subr.bf16.mxu0 0
  %3504 = vmatpush2.bf16.msra.mxu0 0
  %3505 = vmatprep.subr.bf16.mxu0 0
  %3506 = vmatpush2.bf16.msra.mxu0 0
  %3507 = vmatprep.subr.bf16.mxu0 0
  %3508 = vmatpush2.bf16.msra.mxu0 0
  %3509 = vmatprep.subr.bf16.mxu0 0
  %3510 = vmatpush2.bf16.msra.mxu0 0
  %3511 = vmatprep.mubr.bf16.mxu0 0
  %3512 = vmatmul.mubr.bf16.gmra.mxu0 %v3477
  %v3513 = vpop.f32.mrf.mxu0
  %v3514 = vadd.f32 0.0, %v3513
  %v3515 = vpop.f32.mrf.mxu0
  %v3516 = vadd.f32 0.0, %v3515
  %v3517 = vpop.f32.mrf.mxu0
  %v3518 = vpop.f32.mrf.mxu0
  %3519 = vdwg.mxu0
  %3520 = vmatprep.subr.bf16.mxu0 0
  %3521 = vmatpush1.bf16.msra.mxu0 0
  %3522 = vmatprep.subr.bf16.mxu0 0
  %3523 = vmatpush1.bf16.msra.mxu0 0
  %3524 = vmatprep.subr.bf16.mxu0 0
  %3525 = vmatpush1.bf16.msra.mxu0 0
  %3526 = vmatprep.subr.bf16.mxu0 0
  %3527 = vmatpush1.bf16.msra.mxu0 0
  %3528 = vmatprep.subr.bf16.mxu0 0
  %3529 = vmatpush1.bf16.msra.mxu0 0
  %3530 = vmatprep.subr.bf16.mxu0 0
  %3531 = vmatpush1.bf16.msra.mxu0 0
  %3532 = vmatprep.subr.bf16.mxu0 0
  %3533 = vmatpush1.bf16.msra.mxu0 0
  %3534 = vmatprep.subr.bf16.mxu0 %v3470
  %3535 = vmatpush1.bf16.msra.mxu0 %v3469
  %3536 = vmatprep.subr.bf16.mxu0 0
  %3537 = vmatpush2.bf16.msra.mxu0 0
  %3538 = vmatprep.subr.bf16.mxu0 0
  %3539 = vmatpush2.bf16.msra.mxu0 0
  %3540 = vmatprep.subr.bf16.mxu0 0
  %3541 = vmatpush2.bf16.msra.mxu0 0
  %3542 = vmatprep.subr.bf16.mxu0 0
  %3543 = vmatpush2.bf16.msra.mxu0 0
  %3544 = vmatprep.subr.bf16.mxu0 0
  %3545 = vmatpush2.bf16.msra.mxu0 0
  %3546 = vmatprep.subr.bf16.mxu0 0
  %3547 = vmatpush2.bf16.msra.mxu0 0
  %3548 = vmatprep.subr.bf16.mxu0 0
  %3549 = vmatpush2.bf16.msra.mxu0 0
  %3550 = vmatprep.subr.bf16.mxu0 0
  %3551 = vmatpush2.bf16.msra.mxu0 0
  %3552 = vmatprep.mubr.bf16.mxu0 0
  %3553 = vmatmul.mubr.bf16.gmra.mxu0 %v3477
  %v3554 = vpop.f32.mrf.mxu0
  %v3555 = vadd.f32 0.0, %v3554
  %v3556 = vpop.f32.mrf.mxu0
  %v3557 = vadd.f32 0.0, %v3556
  %v3558 = vpop.f32.mrf.mxu0
  %v3559 = vpop.f32.mrf.mxu0
  %3560 = vdwg.mxu0
  %v3565 = vunpack.c.l.b16 %v3446
  %v3566 = vunpack.c.h.b16 %v3446
  %v3567 = vunpack.c.l.b16 %v3447
  %v3568 = vunpack.c.h.b16 %v3447
  %v3569 = vunpack.c.l.b16 %v3448
  %v3570 = vunpack.c.h.b16 %v3448
  %v3571 = vunpack.c.l.b16 %v3449
  %v3572 = vunpack.c.h.b16 %v3449
  %v3573 = vpack.c.b16 %v3569, %v3565
  %v3574 = vpack.c.b16 %v3570, %v3566
  %v3575 = vpack.c.b16 %v3571, %v3567
  %v3576 = vpack.c.b16 %v3572, %v3568
  %v3582 = vsel %vm3475, %v3445, 0
  %3584 = vmatprep.subr.bf16.mxu0 0
  %3585 = vmatpush1.bf16.msra.mxu0 0
  %3586 = vmatprep.subr.bf16.mxu0 0
  %3587 = vmatpush1.bf16.msra.mxu0 0
  %3588 = vmatprep.subr.bf16.mxu0 0
  %3589 = vmatpush1.bf16.msra.mxu0 0
  %3590 = vmatprep.subr.bf16.mxu0 0
  %3591 = vmatpush1.bf16.msra.mxu0 0
  %3592 = vmatprep.subr.bf16.mxu0 0
  %3593 = vmatpush1.bf16.msra.mxu0 0
  %3594 = vmatprep.subr.bf16.mxu0 0
  %3595 = vmatpush1.bf16.msra.mxu0 0
  %3596 = vmatprep.subr.bf16.mxu0 0
  %3597 = vmatpush1.bf16.msra.mxu0 0
  %3598 = vmatprep.subr.bf16.mxu0 %v3574
  %3599 = vmatpush1.bf16.msra.mxu0 %v3573
  %3600 = vmatprep.subr.bf16.mxu0 0
  %3601 = vmatpush2.bf16.msra.mxu0 0
  %3602 = vmatprep.subr.bf16.mxu0 0
  %3603 = vmatpush2.bf16.msra.mxu0 0
  %3604 = vmatprep.subr.bf16.mxu0 0
  %3605 = vmatpush2.bf16.msra.mxu0 0
  %3606 = vmatprep.subr.bf16.mxu0 0
  %3607 = vmatpush2.bf16.msra.mxu0 0
  %3608 = vmatprep.subr.bf16.mxu0 0
  %3609 = vmatpush2.bf16.msra.mxu0 0
  %3610 = vmatprep.subr.bf16.mxu0 0
  %3611 = vmatpush2.bf16.msra.mxu0 0
  %3612 = vmatprep.subr.bf16.mxu0 0
  %3613 = vmatpush2.bf16.msra.mxu0 0
  %3614 = vmatprep.subr.bf16.mxu0 0
  %3615 = vmatpush2.bf16.msra.mxu0 0
  %3616 = vmatprep.mubr.bf16.mxu0 0
  %3617 = vmatmul.mubr.bf16.gmra.mxu0 %v3582
  %v3618 = vpop.f32.mrf.mxu0
  %v3619 = vadd.f32 %v3514, %v3618
  %v3620 = vpop.f32.mrf.mxu0
  %v3621 = vadd.f32 %v3516, %v3620
  %v3622 = vpop.f32.mrf.mxu0
  %v3623 = vpop.f32.mrf.mxu0
  %3624 = vdwg.mxu0
  %3625 = vmatprep.subr.bf16.mxu0 0
  %3626 = vmatpush1.bf16.msra.mxu0 0
  %3627 = vmatprep.subr.bf16.mxu0 0
  %3628 = vmatpush1.bf16.msra.mxu0 0
  %3629 = vmatprep.subr.bf16.mxu0 0
  %3630 = vmatpush1.bf16.msra.mxu0 0
  %3631 = vmatprep.subr.bf16.mxu0 0
  %3632 = vmatpush1.bf16.msra.mxu0 0
  %3633 = vmatprep.subr.bf16.mxu0 0
  %3634 = vmatpush1.bf16.msra.mxu0 0
  %3635 = vmatprep.subr.bf16.mxu0 0
  %3636 = vmatpush1.bf16.msra.mxu0 0
  %3637 = vmatprep.subr.bf16.mxu0 0
  %3638 = vmatpush1.bf16.msra.mxu0 0
  %3639 = vmatprep.subr.bf16.mxu0 %v3576
  %3640 = vmatpush1.bf16.msra.mxu0 %v3575
  %3641 = vmatprep.subr.bf16.mxu0 0
  %3642 = vmatpush2.bf16.msra.mxu0 0
  %3643 = vmatprep.subr.bf16.mxu0 0
  %3644 = vmatpush2.bf16.msra.mxu0 0
  %3645 = vmatprep.subr.bf16.mxu0 0
  %3646 = vmatpush2.bf16.msra.mxu0 0
  %3647 = vmatprep.subr.bf16.mxu0 0
  %3648 = vmatpush2.bf16.msra.mxu0 0
  %3649 = vmatprep.subr.bf16.mxu0 0
  %3650 = vmatpush2.bf16.msra.mxu0 0
  %3651 = vmatprep.subr.bf16.mxu0 0
  %3652 = vmatpush2.bf16.msra.mxu0 0
  %3653 = vmatprep.subr.bf16.mxu0 0
  %3654 = vmatpush2.bf16.msra.mxu0 0
  %3655 = vmatprep.subr.bf16.mxu0 0
  %3656 = vmatpush2.bf16.msra.mxu0 0
  %3657 = vmatprep.mubr.bf16.mxu0 0
  %3658 = vmatmul.mubr.bf16.gmra.mxu0 %v3582
  %v3659 = vpop.f32.mrf.mxu0
  %v3660 = vadd.f32 %v3555, %v3659
  %v3661 = vpop.f32.mrf.mxu0
  %v3662 = vadd.f32 %v3557, %v3661
  %v3663 = vpop.f32.mrf.mxu0
  %v3664 = vpop.f32.mrf.mxu0
  %3665 = vdwg.mxu0
  %v3666 = vld [vmem:[%s11] sm:$0xf]
  %v3668 = vlaneseq
  %v3669 = vshrl.u32 %v3668, 7
  %v3670 = vsub.s32 0, %v3669
  %v3671 = vrot.slane %v3666, %v3670
  %v3672 = vlaneseq
  %v3673 = vshrl.u32 %v3672, 7
  %v3674 = vsub.s32 1, %v3673
  %v3675 = vrot.slane %v3666, %v3674
  %v3676 = vlaneseq
  %v3677 = vshrl.u32 %v3676, 7
  %v3678 = vsub.s32 2, %v3677
  %v3679 = vrot.slane %v3666, %v3678
  %v3680 = vlaneseq
  %v3681 = vshrl.u32 %v3680, 7
  %v3682 = vsub.s32 3, %v3681
  %v3683 = vrot.slane %v3666, %v3682
  %v3688 = vadd.f32 %v3619, %v3671
  %v3689 = vadd.f32 %v3621, %v3675
  %v3690 = vadd.f32 %v3660, %v3679
  %v3691 = vadd.f32 %v3662, %v3683
  %v3692 = vld [vmem:[%s12] sm:$0xff]
  %v3693 = vld [vmem:[%s12 + $0x8] sm:$0xff]
  %v3694 = vld [vmem:[%s12 + $0x10] sm:$0xff]
  %v3695 = vld [vmem:[%s12 + $0x18] sm:$0xff]
  %v3696 = vld [vmem:[%s12 + $0x20] sm:$0xff]
  %v3697 = vld [vmem:[%s12 + $0x28] sm:$0xff]
  %v3698 = vld [vmem:[%s12 + $0x30] sm:$0xff]
  %v3699 = vld [vmem:[%s12 + $0x38] sm:$0xff]
  %v3700 = vld [vmem:[%s12 + $0x40] sm:$0xff]
  %v3701 = vld [vmem:[%s12 + $0x48] sm:$0xff]
  %v3702 = vld [vmem:[%s12 + $0x50] sm:$0xff]
  %v3703 = vld [vmem:[%s12 + $0x58] sm:$0xff]
  %v3704 = vld [vmem:[%s12 + $0x60] sm:$0xff]
  %v3705 = vld [vmem:[%s12 + $0x68] sm:$0xff]
  %v3706 = vld [vmem:[%s12 + $0x70] sm:$0xff]
  %v3707 = vld [vmem:[%s12 + $0x78] sm:$0xff]
  %v3708 = vld [vmem:[%s12 + $0x80] sm:$0xff]
  %v3709 = vld [vmem:[%s12 + $0x88] sm:$0xff]
  %v3710 = vld [vmem:[%s12 + $0x90] sm:$0xff]
  %v3711 = vld [vmem:[%s12 + $0x98] sm:$0xff]
  %v3712 = vld [vmem:[%s12 + $0xa0] sm:$0xff]
  %v3713 = vld [vmem:[%s12 + $0xa8] sm:$0xff]
  %v3714 = vld [vmem:[%s12 + $0xb0] sm:$0xff]
  %v3715 = vld [vmem:[%s12 + $0xb8] sm:$0xff]
  %v3716 = vld [vmem:[%s12 + $0xc0] sm:$0xff]
  %v3717 = vld [vmem:[%s12 + $0xc8] sm:$0xff]
  %v3718 = vld [vmem:[%s12 + $0xd0] sm:$0xff]
  %v3719 = vld [vmem:[%s12 + $0xd8] sm:$0xff]
  %v3720 = vld [vmem:[%s12 + $0xe0] sm:$0xff]
  %v3721 = vld [vmem:[%s12 + $0xe8] sm:$0xff]
  %v3722 = vld [vmem:[%s12 + $0xf0] sm:$0xff]
  %v3723 = vld [vmem:[%s12 + $0xf8] sm:$0xff]
  %v3724 = vpack.c.bf16 %v1161, %v1161
  %v3757 = vunpack.c.l.b16 %v3692
  %v3758 = vunpack.c.h.b16 %v3692
  %v3759 = vunpack.c.l.b16 %v3693
  %v3760 = vunpack.c.h.b16 %v3693
  %v3761 = vunpack.c.l.b16 %v3694
  %v3762 = vunpack.c.h.b16 %v3694
  %v3763 = vunpack.c.l.b16 %v3695
  %v3764 = vunpack.c.h.b16 %v3695
  %v3765 = vunpack.c.l.b16 %v3696
  %v3766 = vunpack.c.h.b16 %v3696
  %v3767 = vunpack.c.l.b16 %v3697
  %v3768 = vunpack.c.h.b16 %v3697
  %v3769 = vunpack.c.l.b16 %v3698
  %v3770 = vunpack.c.h.b16 %v3698
  %v3771 = vunpack.c.l.b16 %v3699
  %v3772 = vunpack.c.h.b16 %v3699
  %v3773 = vunpack.c.l.b16 %v3700
  %v3774 = vunpack.c.h.b16 %v3700
  %v3775 = vunpack.c.l.b16 %v3701
  %v3776 = vunpack.c.h.b16 %v3701
  %v3777 = vunpack.c.l.b16 %v3702
  %v3778 = vunpack.c.h.b16 %v3702
  %v3779 = vunpack.c.l.b16 %v3703
  %v3780 = vunpack.c.h.b16 %v3703
  %v3781 = vunpack.c.l.b16 %v3704
  %v3782 = vunpack.c.h.b16 %v3704
  %v3783 = vunpack.c.l.b16 %v3705
  %v3784 = vunpack.c.h.b16 %v3705
  %v3785 = vunpack.c.l.b16 %v3706
  %v3786 = vunpack.c.h.b16 %v3706
  %v3787 = vunpack.c.l.b16 %v3707
  %v3788 = vunpack.c.h.b16 %v3707
  %v3789 = vunpack.c.l.b16 %v3708
  %v3790 = vunpack.c.h.b16 %v3708
  %v3791 = vunpack.c.l.b16 %v3709
  %v3792 = vunpack.c.h.b16 %v3709
  %v3793 = vunpack.c.l.b16 %v3710
  %v3794 = vunpack.c.h.b16 %v3710
  %v3795 = vunpack.c.l.b16 %v3711
  %v3796 = vunpack.c.h.b16 %v3711
  %v3797 = vunpack.c.l.b16 %v3712
  %v3798 = vunpack.c.h.b16 %v3712
  %v3799 = vunpack.c.l.b16 %v3713
  %v3800 = vunpack.c.h.b16 %v3713
  %v3801 = vunpack.c.l.b16 %v3714
  %v3802 = vunpack.c.h.b16 %v3714
  %v3803 = vunpack.c.l.b16 %v3715
  %v3804 = vunpack.c.h.b16 %v3715
  %v3805 = vunpack.c.l.b16 %v3716
  %v3806 = vunpack.c.h.b16 %v3716
  %v3807 = vunpack.c.l.b16 %v3717
  %v3808 = vunpack.c.h.b16 %v3717
  %v3809 = vunpack.c.l.b16 %v3718
  %v3810 = vunpack.c.h.b16 %v3718
  %v3811 = vunpack.c.l.b16 %v3719
  %v3812 = vunpack.c.h.b16 %v3719
  %v3813 = vunpack.c.l.b16 %v3720
  %v3814 = vunpack.c.h.b16 %v3720
  %v3815 = vunpack.c.l.b16 %v3721
  %v3816 = vunpack.c.h.b16 %v3721
  %v3817 = vunpack.c.l.b16 %v3722
  %v3818 = vunpack.c.h.b16 %v3722
  %v3819 = vunpack.c.l.b16 %v3723
  %v3820 = vunpack.c.h.b16 %v3723
  %v3821 = vpack.c.b16 %v3761, %v3757
  %v3822 = vpack.c.b16 %v3762, %v3758
  %v3823 = vpack.c.b16 %v3763, %v3759
  %v3824 = vpack.c.b16 %v3764, %v3760
  %v3825 = vpack.c.b16 %v3769, %v3765
  %v3826 = vpack.c.b16 %v3770, %v3766
  %v3827 = vpack.c.b16 %v3771, %v3767
  %v3828 = vpack.c.b16 %v3772, %v3768
  %v3829 = vpack.c.b16 %v3777, %v3773
  %v3830 = vpack.c.b16 %v3778, %v3774
  %v3831 = vpack.c.b16 %v3779, %v3775
  %v3832 = vpack.c.b16 %v3780, %v3776
  %v3833 = vpack.c.b16 %v3785, %v3781
  %v3834 = vpack.c.b16 %v3786, %v3782
  %v3835 = vpack.c.b16 %v3787, %v3783
  %v3836 = vpack.c.b16 %v3788, %v3784
  %v3837 = vpack.c.b16 %v3793, %v3789
  %v3838 = vpack.c.b16 %v3794, %v3790
  %v3839 = vpack.c.b16 %v3795, %v3791
  %v3840 = vpack.c.b16 %v3796, %v3792
  %v3841 = vpack.c.b16 %v3801, %v3797
  %v3842 = vpack.c.b16 %v3802, %v3798
  %v3843 = vpack.c.b16 %v3803, %v3799
  %v3844 = vpack.c.b16 %v3804, %v3800
  %v3845 = vpack.c.b16 %v3809, %v3805
  %v3846 = vpack.c.b16 %v3810, %v3806
  %v3847 = vpack.c.b16 %v3811, %v3807
  %v3848 = vpack.c.b16 %v3812, %v3808
  %v3849 = vpack.c.b16 %v3817, %v3813
  %v3850 = vpack.c.b16 %v3818, %v3814
  %v3851 = vpack.c.b16 %v3819, %v3815
  %v3852 = vpack.c.b16 %v3820, %v3816
  %3885 = vmatprep.subr.bf16.mxu0 %v3850
  %3886 = vmatpush1.bf16.msra.mxu0 %v3849
  %3887 = vmatprep.subr.bf16.mxu0 %v3846
  %3888 = vmatpush1.bf16.msra.mxu0 %v3845
  %3889 = vmatprep.subr.bf16.mxu0 %v3842
  %3890 = vmatpush1.bf16.msra.mxu0 %v3841
  %3891 = vmatprep.subr.bf16.mxu0 %v3838
  %3892 = vmatpush1.bf16.msra.mxu0 %v3837
  %3893 = vmatprep.subr.bf16.mxu0 %v3834
  %3894 = vmatpush1.bf16.msra.mxu0 %v3833
  %3895 = vmatprep.subr.bf16.mxu0 %v3830
  %3896 = vmatpush1.bf16.msra.mxu0 %v3829
  %3897 = vmatprep.subr.bf16.mxu0 %v3826
  %3898 = vmatpush1.bf16.msra.mxu0 %v3825
  %3899 = vmatprep.subr.bf16.mxu0 %v3822
  %3900 = vmatpush1.bf16.msra.mxu0 %v3821
  %3901 = vmatprep.subr.bf16.mxu0 0
  %3902 = vmatpush2.bf16.msra.mxu0 0
  %3903 = vmatprep.subr.bf16.mxu0 0
  %3904 = vmatpush2.bf16.msra.mxu0 0
  %3905 = vmatprep.subr.bf16.mxu0 0
  %3906 = vmatpush2.bf16.msra.mxu0 0
  %3907 = vmatprep.subr.bf16.mxu0 0
  %3908 = vmatpush2.bf16.msra.mxu0 0
  %3909 = vmatprep.subr.bf16.mxu0 0
  %3910 = vmatpush2.bf16.msra.mxu0 0
  %3911 = vmatprep.subr.bf16.mxu0 0
  %3912 = vmatpush2.bf16.msra.mxu0 0
  %3913 = vmatprep.subr.bf16.mxu0 0
  %3914 = vmatpush2.bf16.msra.mxu0 0
  %3915 = vmatprep.subr.bf16.mxu0 0
  %3916 = vmatpush2.bf16.msra.mxu0 0
  %3917 = vmatprep.mubr.bf16.mxu0 0
  %3918 = vmatmul.mubr.bf16.gmra.mxu0 %v3724
  %v3919 = vpop.f32.mrf.mxu0
  %v3920 = vadd.f32 0.0, %v3919
  %v3921 = vpop.f32.mrf.mxu0
  %v3922 = vadd.f32 0.0, %v3921
  %v3923 = vpop.f32.mrf.mxu0
  %v3924 = vpop.f32.mrf.mxu0
  %3925 = vdwg.mxu0
  %3926 = vmatprep.subr.bf16.mxu0 %v3852
  %3927 = vmatpush1.bf16.msra.mxu0 %v3851
  %3928 = vmatprep.subr.bf16.mxu0 %v3848
  %3929 = vmatpush1.bf16.msra.mxu0 %v3847
  %3930 = vmatprep.subr.bf16.mxu0 %v3844
  %3931 = vmatpush1.bf16.msra.mxu0 %v3843
  %3932 = vmatprep.subr.bf16.mxu0 %v3840
  %3933 = vmatpush1.bf16.msra.mxu0 %v3839
  %3934 = vmatprep.subr.bf16.mxu0 %v3836
  %3935 = vmatpush1.bf16.msra.mxu0 %v3835
  %3936 = vmatprep.subr.bf16.mxu0 %v3832
  %3937 = vmatpush1.bf16.msra.mxu0 %v3831
  %3938 = vmatprep.subr.bf16.mxu0 %v3828
  %3939 = vmatpush1.bf16.msra.mxu0 %v3827
  %3940 = vmatprep.subr.bf16.mxu0 %v3824
  %3941 = vmatpush1.bf16.msra.mxu0 %v3823
  %3942 = vmatprep.subr.bf16.mxu0 0
  %3943 = vmatpush2.bf16.msra.mxu0 0
  %3944 = vmatprep.subr.bf16.mxu0 0
  %3945 = vmatpush2.bf16.msra.mxu0 0
  %3946 = vmatprep.subr.bf16.mxu0 0
  %3947 = vmatpush2.bf16.msra.mxu0 0
  %3948 = vmatprep.subr.bf16.mxu0 0
  %3949 = vmatpush2.bf16.msra.mxu0 0
  %3950 = vmatprep.subr.bf16.mxu0 0
  %3951 = vmatpush2.bf16.msra.mxu0 0
  %3952 = vmatprep.subr.bf16.mxu0 0
  %3953 = vmatpush2.bf16.msra.mxu0 0
  %3954 = vmatprep.subr.bf16.mxu0 0
  %3955 = vmatpush2.bf16.msra.mxu0 0
  %3956 = vmatprep.subr.bf16.mxu0 0
  %3957 = vmatpush2.bf16.msra.mxu0 0
  %3958 = vmatprep.mubr.bf16.mxu0 0
  %3959 = vmatmul.mubr.bf16.gmra.mxu0 %v3724
  %v3960 = vpop.f32.mrf.mxu0
  %v3961 = vadd.f32 0.0, %v3960
  %v3962 = vpop.f32.mrf.mxu0
  %v3963 = vadd.f32 0.0, %v3962
  %v3964 = vpop.f32.mrf.mxu0
  %v3965 = vpop.f32.mrf.mxu0
  %3966 = vdwg.mxu0
  %v3967 = vadd.f32 %v3688, %v3920
  %v3968 = vadd.f32 %v3689, %v3922
  %v3969 = vadd.f32 %v3690, %v3961
  %v3970 = vadd.f32 %v3691, %v3963
  %v3971 = vxor.u32 %v3967, 2147483648
  %v3972 = vmul.f32 %v3971, 1.442695
  %v3973 = vpow.pop %v3972
  %v3974 = vadd.f32 %v3973, 1.0
  %v3975 = vrcp.pop %v3974
  %v3976 = vmul.f32 1.0, %v3975
  %v3977 = vxor.u32 %v3968, 2147483648
  %v3978 = vmul.f32 %v3977, 1.442695
  %v3979 = vpow.pop %v3978
  %v3980 = vadd.f32 %v3979, 1.0
  %v3981 = vrcp.pop %v3980
  %v3982 = vmul.f32 1.0, %v3981
  %v3983 = vtanh.pop %v3969
  %v3984 = vxor.u32 %v3970, 2147483648
  %v3985 = vmul.f32 %v3984, 1.442695
  %v3986 = vpow.pop %v3985
  %v3987 = vadd.f32 %v3986, 1.0
  %v3988 = vrcp.pop %v3987
  %v3989 = vmul.f32 1.0, %v3988
  %v3990 = vmul.f32 %v3982, %v1159
  %v3991 = vmul.f32 %v3976, %v3983
  %v3992 = vadd.f32 %v3990, %v3991
  %v3993 = vtanh.pop %v3992
  %v3994 = vmul.f32 %v3989, %v3993
  %v3995 = vpack.c.bf16 %v3994, %v3994
  %3996 = vmatprep.subr.bf16.mxu0 %v3850
  %3997 = vmatpush1.bf16.msra.mxu0 %v3849
  %3998 = vmatprep.subr.bf16.mxu0 %v3846
  %3999 = vmatpush1.bf16.msra.mxu0 %v3845
  %4000 = vmatprep.subr.bf16.mxu0 %v3842
  %4001 = vmatpush1.bf16.msra.mxu0 %v3841
  %4002 = vmatprep.subr.bf16.mxu0 %v3838
  %4003 = vmatpush1.bf16.msra.mxu0 %v3837
  %4004 = vmatprep.subr.bf16.mxu0 %v3834
  %4005 = vmatpush1.bf16.msra.mxu0 %v3833
  %4006 = vmatprep.subr.bf16.mxu0 %v3830
  %4007 = vmatpush1.bf16.msra.mxu0 %v3829
  %4008 = vmatprep.subr.bf16.mxu0 %v3826
  %4009 = vmatpush1.bf16.msra.mxu0 %v3825
  %4010 = vmatprep.subr.bf16.mxu0 %v3822
  %4011 = vmatpush1.bf16.msra.mxu0 %v3821
  %4012 = vmatprep.subr.bf16.mxu0 0
  %4013 = vmatpush2.bf16.msra.mxu0 0
  %4014 = vmatprep.subr.bf16.mxu0 0
  %4015 = vmatpush2.bf16.msra.mxu0 0
  %4016 = vmatprep.subr.bf16.mxu0 0
  %4017 = vmatpush2.bf16.msra.mxu0 0
  %4018 = vmatprep.subr.bf16.mxu0 0
  %4019 = vmatpush2.bf16.msra.mxu0 0
  %4020 = vmatprep.subr.bf16.mxu0 0
  %4021 = vmatpush2.bf16.msra.mxu0 0
  %4022 = vmatprep.subr.bf16.mxu0 0
  %4023 = vmatpush2.bf16.msra.mxu0 0
  %4024 = vmatprep.subr.bf16.mxu0 0
  %4025 = vmatpush2.bf16.msra.mxu0 0
  %4026 = vmatprep.subr.bf16.mxu0 0
  %4027 = vmatpush2.bf16.msra.mxu0 0
  %4028 = vmatprep.mubr.bf16.mxu0 0
  %4029 = vmatmul.mubr.bf16.gmra.mxu0 %v3995
  %v4030 = vpop.f32.mrf.mxu0
  %v4031 = vadd.f32 0.0, %v4030
  %v4032 = vpop.f32.mrf.mxu0
  %v4033 = vadd.f32 0.0, %v4032
  %v4034 = vpop.f32.mrf.mxu0
  %v4035 = vpop.f32.mrf.mxu0
  %4036 = vdwg.mxu0
  %4037 = vmatprep.subr.bf16.mxu0 %v3852
  %4038 = vmatpush1.bf16.msra.mxu0 %v3851
  %4039 = vmatprep.subr.bf16.mxu0 %v3848
  %4040 = vmatpush1.bf16.msra.mxu0 %v3847
  %4041 = vmatprep.subr.bf16.mxu0 %v3844
  %4042 = vmatpush1.bf16.msra.mxu0 %v3843
  %4043 = vmatprep.subr.bf16.mxu0 %v3840
  %4044 = vmatpush1.bf16.msra.mxu0 %v3839
  %4045 = vmatprep.subr.bf16.mxu0 %v3836
  %4046 = vmatpush1.bf16.msra.mxu0 %v3835
  %4047 = vmatprep.subr.bf16.mxu0 %v3832
  %4048 = vmatpush1.bf16.msra.mxu0 %v3831
  %4049 = vmatprep.subr.bf16.mxu0 %v3828
  %4050 = vmatpush1.bf16.msra.mxu0 %v3827
  %4051 = vmatprep.subr.bf16.mxu0 %v3824
  %4052 = vmatpush1.bf16.msra.mxu0 %v3823
  %4053 = vmatprep.subr.bf16.mxu0 0
  %4054 = vmatpush2.bf16.msra.mxu0 0
  %4055 = vmatprep.subr.bf16.mxu0 0
  %4056 = vmatpush2.bf16.msra.mxu0 0
  %4057 = vmatprep.subr.bf16.mxu0 0
  %4058 = vmatpush2.bf16.msra.mxu0 0
  %4059 = vmatprep.subr.bf16.mxu0 0
  %4060 = vmatpush2.bf16.msra.mxu0 0
  %4061 = vmatprep.subr.bf16.mxu0 0
  %4062 = vmatpush2.bf16.msra.mxu0 0
  %4063 = vmatprep.subr.bf16.mxu0 0
  %4064 = vmatpush2.bf16.msra.mxu0 0
  %4065 = vmatprep.subr.bf16.mxu0 0
  %4066 = vmatpush2.bf16.msra.mxu0 0
  %4067 = vmatprep.subr.bf16.mxu0 0
  %4068 = vmatpush2.bf16.msra.mxu0 0
  %4069 = vmatprep.mubr.bf16.mxu0 0
  %4070 = vmatmul.mubr.bf16.gmra.mxu0 %v3995
  %v4071 = vpop.f32.mrf.mxu0
  %v4072 = vadd.f32 0.0, %v4071
  %v4073 = vpop.f32.mrf.mxu0
  %v4074 = vadd.f32 0.0, %v4073
  %v4075 = vpop.f32.mrf.mxu0
  %v4076 = vpop.f32.mrf.mxu0
  %4077 = vdwg.mxu0
  %v4078 = vadd.f32 %v3688, %v4031
  %v4079 = vadd.f32 %v3689, %v4033
  %v4080 = vadd.f32 %v3690, %v4072
  %v4081 = vadd.f32 %v3691, %v4074
  %v4082 = vxor.u32 %v4078, 2147483648
  %v4083 = vmul.f32 %v4082, 1.442695
  %v4084 = vpow.pop %v4083
  %v4085 = vadd.f32 %v4084, 1.0
  %v4086 = vrcp.pop %v4085
  %v4087 = vmul.f32 1.0, %v4086
  %v4088 = vxor.u32 %v4079, 2147483648
  %v4089 = vmul.f32 %v4088, 1.442695
  %v4090 = vpow.pop %v4089
  %v4091 = vadd.f32 %v4090, 1.0
  %v4092 = vrcp.pop %v4091
  %v4093 = vmul.f32 1.0, %v4092
  %v4094 = vtanh.pop %v4080
  %v4095 = vxor.u32 %v4081, 2147483648
  %v4096 = vmul.f32 %v4095, 1.442695
  %v4097 = vpow.pop %v4096
  %v4098 = vadd.f32 %v4097, 1.0
  %v4099 = vrcp.pop %v4098
  %v4100 = vmul.f32 1.0, %v4099
  %v4101 = vmul.f32 %v4093, %v3992
  %v4102 = vmul.f32 %v4087, %v4094
  %v4103 = vadd.f32 %v4101, %v4102
  %v4104 = vtanh.pop %v4103
  %v4105 = vmul.f32 %v4100, %v4104
  %v4106 = vpack.c.bf16 %v4105, %v4105
  %4107 = vmatprep.subr.bf16.mxu0 %v3850
  %4108 = vmatpush1.bf16.msra.mxu0 %v3849
  %4109 = vmatprep.subr.bf16.mxu0 %v3846
  %4110 = vmatpush1.bf16.msra.mxu0 %v3845
  %4111 = vmatprep.subr.bf16.mxu0 %v3842
  %4112 = vmatpush1.bf16.msra.mxu0 %v3841
  %4113 = vmatprep.subr.bf16.mxu0 %v3838
  %4114 = vmatpush1.bf16.msra.mxu0 %v3837
  %4115 = vmatprep.subr.bf16.mxu0 %v3834
  %4116 = vmatpush1.bf16.msra.mxu0 %v3833
  %4117 = vmatprep.subr.bf16.mxu0 %v3830
  %4118 = vmatpush1.bf16.msra.mxu0 %v3829
  %4119 = vmatprep.subr.bf16.mxu0 %v3826
  %4120 = vmatpush1.bf16.msra.mxu0 %v3825
  %4121 = vmatprep.subr.bf16.mxu0 %v3822
  %4122 = vmatpush1.bf16.msra.mxu0 %v3821
  %4123 = vmatprep.subr.bf16.mxu0 0
  %4124 = vmatpush2.bf16.msra.mxu0 0
  %4125 = vmatprep.subr.bf16.mxu0 0
  %4126 = vmatpush2.bf16.msra.mxu0 0
  %4127 = vmatprep.subr.bf16.mxu0 0
  %4128 = vmatpush2.bf16.msra.mxu0 0
  %4129 = vmatprep.subr.bf16.mxu0 0
  %4130 = vmatpush2.bf16.msra.mxu0 0
  %4131 = vmatprep.subr.bf16.mxu0 0
  %4132 = vmatpush2.bf16.msra.mxu0 0
  %4133 = vmatprep.subr.bf16.mxu0 0
  %4134 = vmatpush2.bf16.msra.mxu0 0
  %4135 = vmatprep.subr.bf16.mxu0 0
  %4136 = vmatpush2.bf16.msra.mxu0 0
  %4137 = vmatprep.subr.bf16.mxu0 0
  %4138 = vmatpush2.bf16.msra.mxu0 0
  %4139 = vmatprep.mubr.bf16.mxu0 0
  %4140 = vmatmul.mubr.bf16.gmra.mxu0 %v4106
  %v4141 = vpop.f32.mrf.mxu0
  %v4142 = vadd.f32 0.0, %v4141
  %v4143 = vpop.f32.mrf.mxu0
  %v4144 = vadd.f32 0.0, %v4143
  %v4145 = vpop.f32.mrf.mxu0
  %v4146 = vpop.f32.mrf.mxu0
  %4147 = vdwg.mxu0
  %4148 = vmatprep.subr.bf16.mxu0 %v3852
  %4149 = vmatpush1.bf16.msra.mxu0 %v3851
  %4150 = vmatprep.subr.bf16.mxu0 %v3848
  %4151 = vmatpush1.bf16.msra.mxu0 %v3847
  %4152 = vmatprep.subr.bf16.mxu0 %v3844
  %4153 = vmatpush1.bf16.msra.mxu0 %v3843
  %4154 = vmatprep.subr.bf16.mxu0 %v3840
  %4155 = vmatpush1.bf16.msra.mxu0 %v3839
  %4156 = vmatprep.subr.bf16.mxu0 %v3836
  %4157 = vmatpush1.bf16.msra.mxu0 %v3835
  %4158 = vmatprep.subr.bf16.mxu0 %v3832
  %4159 = vmatpush1.bf16.msra.mxu0 %v3831
  %4160 = vmatprep.subr.bf16.mxu0 %v3828
  %4161 = vmatpush1.bf16.msra.mxu0 %v3827
  %4162 = vmatprep.subr.bf16.mxu0 %v3824
  %4163 = vmatpush1.bf16.msra.mxu0 %v3823
  %4164 = vmatprep.subr.bf16.mxu0 0
  %4165 = vmatpush2.bf16.msra.mxu0 0
  %4166 = vmatprep.subr.bf16.mxu0 0
  %4167 = vmatpush2.bf16.msra.mxu0 0
  %4168 = vmatprep.subr.bf16.mxu0 0
  %4169 = vmatpush2.bf16.msra.mxu0 0
  %4170 = vmatprep.subr.bf16.mxu0 0
  %4171 = vmatpush2.bf16.msra.mxu0 0
  %4172 = vmatprep.subr.bf16.mxu0 0
  %4173 = vmatpush2.bf16.msra.mxu0 0
  %4174 = vmatprep.subr.bf16.mxu0 0
  %4175 = vmatpush2.bf16.msra.mxu0 0
  %4176 = vmatprep.subr.bf16.mxu0 0
  %4177 = vmatpush2.bf16.msra.mxu0 0
  %4178 = vmatprep.subr.bf16.mxu0 0
  %4179 = vmatpush2.bf16.msra.mxu0 0
  %4180 = vmatprep.mubr.bf16.mxu0 0
  %4181 = vmatmul.mubr.bf16.gmra.mxu0 %v4106
  %v4182 = vpop.f32.mrf.mxu0
  %v4183 = vadd.f32 0.0, %v4182
  %v4184 = vpop.f32.mrf.mxu0
  %v4185 = vadd.f32 0.0, %v4184
  %v4186 = vpop.f32.mrf.mxu0
  %v4187 = vpop.f32.mrf.mxu0
  %4188 = vdwg.mxu0
  %v4189 = vadd.f32 %v3688, %v4142
  %v4190 = vadd.f32 %v3689, %v4144
  %v4191 = vadd.f32 %v3690, %v4183
  %v4192 = vadd.f32 %v3691, %v4185
  %v4193 = vxor.u32 %v4189, 2147483648
  %v4194 = vmul.f32 %v4193, 1.442695
  %v4195 = vpow.pop %v4194
  %v4196 = vadd.f32 %v4195, 1.0
  %v4197 = vrcp.pop %v4196
  %v4198 = vmul.f32 1.0, %v4197
  %v4199 = vxor.u32 %v4190, 2147483648
  %v4200 = vmul.f32 %v4199, 1.442695
  %v4201 = vpow.pop %v4200
  %v4202 = vadd.f32 %v4201, 1.0
  %v4203 = vrcp.pop %v4202
  %v4204 = vmul.f32 1.0, %v4203
  %v4205 = vtanh.pop %v4191
  %v4206 = vxor.u32 %v4192, 2147483648
  %v4207 = vmul.f32 %v4206, 1.442695
  %v4208 = vpow.pop %v4207
  %v4209 = vadd.f32 %v4208, 1.0
  %v4210 = vrcp.pop %v4209
  %v4211 = vmul.f32 1.0, %v4210
  %v4212 = vmul.f32 %v4204, %v4103
  %v4213 = vmul.f32 %v4198, %v4205
  %v4214 = vadd.f32 %v4212, %v4213
  %v4215 = vtanh.pop %v4214
  %v4216 = vmul.f32 %v4211, %v4215
  %v4217 = vpack.c.bf16 %v4216, %v4216
  %4218 = vmatprep.subr.bf16.mxu0 %v3850
  %4219 = vmatpush1.bf16.msra.mxu0 %v3849
  %4220 = vmatprep.subr.bf16.mxu0 %v3846
  %4221 = vmatpush1.bf16.msra.mxu0 %v3845
  %4222 = vmatprep.subr.bf16.mxu0 %v3842
  %4223 = vmatpush1.bf16.msra.mxu0 %v3841
  %4224 = vmatprep.subr.bf16.mxu0 %v3838
  %4225 = vmatpush1.bf16.msra.mxu0 %v3837
  %4226 = vmatprep.subr.bf16.mxu0 %v3834
  %4227 = vmatpush1.bf16.msra.mxu0 %v3833
  %4228 = vmatprep.subr.bf16.mxu0 %v3830
  %4229 = vmatpush1.bf16.msra.mxu0 %v3829
  %4230 = vmatprep.subr.bf16.mxu0 %v3826
  %4231 = vmatpush1.bf16.msra.mxu0 %v3825
  %4232 = vmatprep.subr.bf16.mxu0 %v3822
  %4233 = vmatpush1.bf16.msra.mxu0 %v3821
  %4234 = vmatprep.subr.bf16.mxu0 0
  %4235 = vmatpush2.bf16.msra.mxu0 0
  %4236 = vmatprep.subr.bf16.mxu0 0
  %4237 = vmatpush2.bf16.msra.mxu0 0
  %4238 = vmatprep.subr.bf16.mxu0 0
  %4239 = vmatpush2.bf16.msra.mxu0 0
  %4240 = vmatprep.subr.bf16.mxu0 0
  %4241 = vmatpush2.bf16.msra.mxu0 0
  %4242 = vmatprep.subr.bf16.mxu0 0
  %4243 = vmatpush2.bf16.msra.mxu0 0
  %4244 = vmatprep.subr.bf16.mxu0 0
  %4245 = vmatpush2.bf16.msra.mxu0 0
  %4246 = vmatprep.subr.bf16.mxu0 0
  %4247 = vmatpush2.bf16.msra.mxu0 0
  %4248 = vmatprep.subr.bf16.mxu0 0
  %4249 = vmatpush2.bf16.msra.mxu0 0
  %4250 = vmatprep.mubr.bf16.mxu0 0
  %4251 = vmatmul.mubr.bf16.gmra.mxu0 %v4217
  %v4252 = vpop.f32.mrf.mxu0
  %v4253 = vadd.f32 0.0, %v4252
  %v4254 = vpop.f32.mrf.mxu0
  %v4255 = vadd.f32 0.0, %v4254
  %v4256 = vpop.f32.mrf.mxu0
  %v4257 = vpop.f32.mrf.mxu0
  %4258 = vdwg.mxu0
  %4259 = vmatprep.subr.bf16.mxu0 %v3852
  %4260 = vmatpush1.bf16.msra.mxu0 %v3851
  %4261 = vmatprep.subr.bf16.mxu0 %v3848
  %4262 = vmatpush1.bf16.msra.mxu0 %v3847
  %4263 = vmatprep.subr.bf16.mxu0 %v3844
  %4264 = vmatpush1.bf16.msra.mxu0 %v3843
  %4265 = vmatprep.subr.bf16.mxu0 %v3840
  %4266 = vmatpush1.bf16.msra.mxu0 %v3839
  %4267 = vmatprep.subr.bf16.mxu0 %v3836
  %4268 = vmatpush1.bf16.msra.mxu0 %v3835
  %4269 = vmatprep.subr.bf16.mxu0 %v3832
  %4270 = vmatpush1.bf16.msra.mxu0 %v3831
  %4271 = vmatprep.subr.bf16.mxu0 %v3828
  %4272 = vmatpush1.bf16.msra.mxu0 %v3827
  %4273 = vmatprep.subr.bf16.mxu0 %v3824
  %4274 = vmatpush1.bf16.msra.mxu0 %v3823
  %4275 = vmatprep.subr.bf16.mxu0 0
  %4276 = vmatpush2.bf16.msra.mxu0 0
  %4277 = vmatprep.subr.bf16.mxu0 0
  %4278 = vmatpush2.bf16.msra.mxu0 0
  %4279 = vmatprep.subr.bf16.mxu0 0
  %4280 = vmatpush2.bf16.msra.mxu0 0
  %4281 = vmatprep.subr.bf16.mxu0 0
  %4282 = vmatpush2.bf16.msra.mxu0 0
  %4283 = vmatprep.subr.bf16.mxu0 0
  %4284 = vmatpush2.bf16.msra.mxu0 0
  %4285 = vmatprep.subr.bf16.mxu0 0
  %4286 = vmatpush2.bf16.msra.mxu0 0
  %4287 = vmatprep.subr.bf16.mxu0 0
  %4288 = vmatpush2.bf16.msra.mxu0 0
  %4289 = vmatprep.subr.bf16.mxu0 0
  %4290 = vmatpush2.bf16.msra.mxu0 0
  %4291 = vmatprep.mubr.bf16.mxu0 0
  %4292 = vmatmul.mubr.bf16.gmra.mxu0 %v4217
  %v4293 = vpop.f32.mrf.mxu0
  %v4294 = vadd.f32 0.0, %v4293
  %v4295 = vpop.f32.mrf.mxu0
  %v4296 = vadd.f32 0.0, %v4295
  %v4297 = vpop.f32.mrf.mxu0
  %v4298 = vpop.f32.mrf.mxu0
  %4299 = vdwg.mxu0
  %v4300 = vadd.f32 %v3688, %v4253
  %v4301 = vadd.f32 %v3689, %v4255
  %v4302 = vadd.f32 %v3690, %v4294
  %v4303 = vadd.f32 %v3691, %v4296
  %v4304 = vxor.u32 %v4300, 2147483648
  %v4305 = vmul.f32 %v4304, 1.442695
  %v4306 = vpow.pop %v4305
  %v4307 = vadd.f32 %v4306, 1.0
  %v4308 = vrcp.pop %v4307
  %v4309 = vmul.f32 1.0, %v4308
  %v4310 = vxor.u32 %v4301, 2147483648
  %v4311 = vmul.f32 %v4310, 1.442695
  %v4312 = vpow.pop %v4311
  %v4313 = vadd.f32 %v4312, 1.0
  %v4314 = vrcp.pop %v4313
  %v4315 = vmul.f32 1.0, %v4314
  %v4316 = vtanh.pop %v4302
  %v4317 = vxor.u32 %v4303, 2147483648
  %v4318 = vmul.f32 %v4317, 1.442695
  %v4319 = vpow.pop %v4318
  %v4320 = vadd.f32 %v4319, 1.0
  %v4321 = vrcp.pop %v4320
  %v4322 = vmul.f32 1.0, %v4321
  %v4323 = vmul.f32 %v4315, %v4214
  %v4324 = vmul.f32 %v4309, %v4316
  %v4325 = vadd.f32 %v4323, %v4324
  %v4326 = vtanh.pop %v4325
  %v4327 = vmul.f32 %v4322, %v4326
  %v4328 = vpack.c.bf16 %v4327, %v4327
  %4329 = vmatprep.subr.bf16.mxu0 %v3850
  %4330 = vmatpush1.bf16.msra.mxu0 %v3849
  %4331 = vmatprep.subr.bf16.mxu0 %v3846
  %4332 = vmatpush1.bf16.msra.mxu0 %v3845
  %4333 = vmatprep.subr.bf16.mxu0 %v3842
  %4334 = vmatpush1.bf16.msra.mxu0 %v3841
  %4335 = vmatprep.subr.bf16.mxu0 %v3838
  %4336 = vmatpush1.bf16.msra.mxu0 %v3837
  %4337 = vmatprep.subr.bf16.mxu0 %v3834
  %4338 = vmatpush1.bf16.msra.mxu0 %v3833
  %4339 = vmatprep.subr.bf16.mxu0 %v3830
  %4340 = vmatpush1.bf16.msra.mxu0 %v3829
  %4341 = vmatprep.subr.bf16.mxu0 %v3826
  %4342 = vmatpush1.bf16.msra.mxu0 %v3825
  %4343 = vmatprep.subr.bf16.mxu0 %v3822
  %4344 = vmatpush1.bf16.msra.mxu0 %v3821
  %4345 = vmatprep.subr.bf16.mxu0 0
  %4346 = vmatpush2.bf16.msra.mxu0 0
  %4347 = vmatprep.subr.bf16.mxu0 0
  %4348 = vmatpush2.bf16.msra.mxu0 0
  %4349 = vmatprep.subr.bf16.mxu0 0
  %4350 = vmatpush2.bf16.msra.mxu0 0
  %4351 = vmatprep.subr.bf16.mxu0 0
  %4352 = vmatpush2.bf16.msra.mxu0 0
  %4353 = vmatprep.subr.bf16.mxu0 0
  %4354 = vmatpush2.bf16.msra.mxu0 0
  %4355 = vmatprep.subr.bf16.mxu0 0
  %4356 = vmatpush2.bf16.msra.mxu0 0
  %4357 = vmatprep.subr.bf16.mxu0 0
  %4358 = vmatpush2.bf16.msra.mxu0 0
  %4359 = vmatprep.subr.bf16.mxu0 0
  %4360 = vmatpush2.bf16.msra.mxu0 0
  %4361 = vmatprep.mubr.bf16.mxu0 0
  %4362 = vmatmul.mubr.bf16.gmra.mxu0 %v4328
  %v4363 = vpop.f32.mrf.mxu0
  %v4364 = vadd.f32 0.0, %v4363
  %v4365 = vpop.f32.mrf.mxu0
  %v4366 = vadd.f32 0.0, %v4365
  %v4367 = vpop.f32.mrf.mxu0
  %v4368 = vpop.f32.mrf.mxu0
  %4369 = vdwg.mxu0
  %4370 = vmatprep.subr.bf16.mxu0 %v3852
  %4371 = vmatpush1.bf16.msra.mxu0 %v3851
  %4372 = vmatprep.subr.bf16.mxu0 %v3848
  %4373 = vmatpush1.bf16.msra.mxu0 %v3847
  %4374 = vmatprep.subr.bf16.mxu0 %v3844
  %4375 = vmatpush1.bf16.msra.mxu0 %v3843
  %4376 = vmatprep.subr.bf16.mxu0 %v3840
  %4377 = vmatpush1.bf16.msra.mxu0 %v3839
  %4378 = vmatprep.subr.bf16.mxu0 %v3836
  %4379 = vmatpush1.bf16.msra.mxu0 %v3835
  %4380 = vmatprep.subr.bf16.mxu0 %v3832
  %4381 = vmatpush1.bf16.msra.mxu0 %v3831
  %4382 = vmatprep.subr.bf16.mxu0 %v3828
  %4383 = vmatpush1.bf16.msra.mxu0 %v3827
  %4384 = vmatprep.subr.bf16.mxu0 %v3824
  %4385 = vmatpush1.bf16.msra.mxu0 %v3823
  %4386 = vmatprep.subr.bf16.mxu0 0
  %4387 = vmatpush2.bf16.msra.mxu0 0
  %4388 = vmatprep.subr.bf16.mxu0 0
  %4389 = vmatpush2.bf16.msra.mxu0 0
  %4390 = vmatprep.subr.bf16.mxu0 0
  %4391 = vmatpush2.bf16.msra.mxu0 0
  %4392 = vmatprep.subr.bf16.mxu0 0
  %4393 = vmatpush2.bf16.msra.mxu0 0
  %4394 = vmatprep.subr.bf16.mxu0 0
  %4395 = vmatpush2.bf16.msra.mxu0 0
  %4396 = vmatprep.subr.bf16.mxu0 0
  %4397 = vmatpush2.bf16.msra.mxu0 0
  %4398 = vmatprep.subr.bf16.mxu0 0
  %4399 = vmatpush2.bf16.msra.mxu0 0
  %4400 = vmatprep.subr.bf16.mxu0 0
  %4401 = vmatpush2.bf16.msra.mxu0 0
  %4402 = vmatprep.mubr.bf16.mxu0 0
  %4403 = vmatmul.mubr.bf16.gmra.mxu0 %v4328
  %v4404 = vpop.f32.mrf.mxu0
  %v4405 = vadd.f32 0.0, %v4404
  %v4406 = vpop.f32.mrf.mxu0
  %v4407 = vadd.f32 0.0, %v4406
  %v4408 = vpop.f32.mrf.mxu0
  %v4409 = vpop.f32.mrf.mxu0
  %4410 = vdwg.mxu0
  %v4411 = vadd.f32 %v3688, %v4364
  %v4412 = vadd.f32 %v3689, %v4366
  %v4413 = vadd.f32 %v3690, %v4405
  %v4414 = vadd.f32 %v3691, %v4407
  %v4415 = vxor.u32 %v4411, 2147483648
  %v4416 = vmul.f32 %v4415, 1.442695
  %v4417 = vpow.pop %v4416
  %v4418 = vadd.f32 %v4417, 1.0
  %v4419 = vrcp.pop %v4418
  %v4420 = vmul.f32 1.0, %v4419
  %v4421 = vxor.u32 %v4412, 2147483648
  %v4422 = vmul.f32 %v4421, 1.442695
  %v4423 = vpow.pop %v4422
  %v4424 = vadd.f32 %v4423, 1.0
  %v4425 = vrcp.pop %v4424
  %v4426 = vmul.f32 1.0, %v4425
  %v4427 = vtanh.pop %v4413
  %v4428 = vxor.u32 %v4414, 2147483648
  %v4429 = vmul.f32 %v4428, 1.442695
  %v4430 = vpow.pop %v4429
  %v4431 = vadd.f32 %v4430, 1.0
  %v4432 = vrcp.pop %v4431
  %v4433 = vmul.f32 1.0, %v4432
  %v4434 = vmul.f32 %v4426, %v4325
  %v4435 = vmul.f32 %v4420, %v4427
  %v4436 = vadd.f32 %v4434, %v4435
  %v4437 = vtanh.pop %v4436
  %v4438 = vmul.f32 %v4433, %v4437
  %v4439 = vpack.c.bf16 %v4105, %v3994
  %v4440 = vpack.c.bf16 %v4327, %v4216
  %v4441 = vpack.c.bf16 %v4438, %v4438
  %v4442 = vld [vmem:[%s13] sm:$0xf]
  %v4443 = vld [vmem:[%s13 + $0x4] sm:$0xf]
  %v4444 = vld [vmem:[%s13 + $0x8] sm:$0xf]
  %v4445 = vld [vmem:[%s13 + $0xc] sm:$0xf]
  %v4446 = vld [vmem:[%s13 + $0x10] sm:$0xf]
  %v4447 = vld [vmem:[%s13 + $0x14] sm:$0xf]
  %v4448 = vld [vmem:[%s13 + $0x18] sm:$0xf]
  %v4449 = vld [vmem:[%s13 + $0x1c] sm:$0xf]
  %v4450 = vld [vmem:[%s13 + $0x20] sm:$0xf]
  %v4451 = vld [vmem:[%s13 + $0x24] sm:$0xf]
  %v4452 = vld [vmem:[%s13 + $0x28] sm:$0xf]
  %v4453 = vld [vmem:[%s13 + $0x2c] sm:$0xf]
  %v4454 = vld [vmem:[%s13 + $0x30] sm:$0xf]
  %v4455 = vld [vmem:[%s13 + $0x34] sm:$0xf]
  %v4456 = vld [vmem:[%s13 + $0x38] sm:$0xf]
  %v4457 = vld [vmem:[%s13 + $0x3c] sm:$0xf]
  %v4458 = vld [vmem:[%s14] sm:$0x1]
  %v4460 = vlaneseq
  %v4461 = vshrl.u32 %v4460, 7
  %v4462 = vsub.s32 0, %v4461
  %v4463 = vrot.slane %v4458, %v4462
  %v4481 = vunpack.c.l.b16 %v4442
  %v4482 = vunpack.c.l.b16 %v4443
  %v4483 = vunpack.c.l.b16 %v4444
  %v4484 = vunpack.c.l.b16 %v4445
  %v4485 = vunpack.c.l.b16 %v4446
  %v4486 = vunpack.c.l.b16 %v4447
  %v4487 = vunpack.c.l.b16 %v4448
  %v4488 = vunpack.c.l.b16 %v4449
  %v4489 = vunpack.c.l.b16 %v4450
  %v4490 = vunpack.c.l.b16 %v4451
  %v4491 = vunpack.c.l.b16 %v4452
  %v4492 = vunpack.c.l.b16 %v4453
  %v4493 = vunpack.c.l.b16 %v4454
  %v4494 = vunpack.c.l.b16 %v4455
  %v4495 = vunpack.c.l.b16 %v4456
  %v4496 = vunpack.c.l.b16 %v4457
  %v4497 = vpack.c.b16 %v4482, %v4481
  %v4498 = vpack.c.b16 %v4484, %v4483
  %v4499 = vpack.c.b16 %v4486, %v4485
  %v4500 = vpack.c.b16 %v4488, %v4487
  %v4501 = vpack.c.b16 %v4490, %v4489
  %v4502 = vpack.c.b16 %v4492, %v4491
  %v4503 = vpack.c.b16 %v4494, %v4493
  %v4504 = vpack.c.b16 %v4496, %v4495
  %4513 = vmatprep.subr.bf16.mxu0 0
  %4514 = vmatpush1.bf16.msra.mxu0 %v4504
  %4515 = vmatprep.subr.bf16.mxu0 0
  %4516 = vmatpush1.bf16.msra.mxu0 %v4503
  %4517 = vmatprep.subr.bf16.mxu0 0
  %4518 = vmatpush1.bf16.msra.mxu0 %v4502
  %4519 = vmatprep.subr.bf16.mxu0 0
  %4520 = vmatpush1.bf16.msra.mxu0 %v4501
  %4521 = vmatprep.subr.bf16.mxu0 0
  %4522 = vmatpush1.bf16.msra.mxu0 %v4500
  %4523 = vmatprep.subr.bf16.mxu0 0
  %4524 = vmatpush1.bf16.msra.mxu0 %v4499
  %4525 = vmatprep.subr.bf16.mxu0 0
  %4526 = vmatpush1.bf16.msra.mxu0 %v4498
  %4527 = vmatprep.subr.bf16.mxu0 0
  %4528 = vmatpush1.bf16.msra.mxu0 %v4497
  %4529 = vmatprep.subr.bf16.mxu0 0
  %4530 = vmatpush2.bf16.msra.mxu0 0
  %4531 = vmatprep.subr.bf16.mxu0 0
  %4532 = vmatpush2.bf16.msra.mxu0 0
  %4533 = vmatprep.subr.bf16.mxu0 0
  %4534 = vmatpush2.bf16.msra.mxu0 0
  %4535 = vmatprep.subr.bf16.mxu0 0
  %4536 = vmatpush2.bf16.msra.mxu0 0
  %4537 = vmatprep.subr.bf16.mxu0 0
  %4538 = vmatpush2.bf16.msra.mxu0 0
  %4539 = vmatprep.subr.bf16.mxu0 0
  %4540 = vmatpush2.bf16.msra.mxu0 0
  %4541 = vmatprep.subr.bf16.mxu0 0
  %4542 = vmatpush2.bf16.msra.mxu0 0
  %4543 = vmatprep.subr.bf16.mxu0 0
  %4544 = vmatpush2.bf16.msra.mxu0 0
  %4545 = vmatprep.mubr.bf16.mxu0 0
  %4546 = vmatmul.mubr.bf16.gmra.mxu0 %v4439
  %v4547 = vpop.f32.mrf.mxu0
  %v4548 = vadd.f32 %v4463, %v4547
  %v4549 = vpop.f32.mrf.mxu0
  %v4550 = vpop.f32.mrf.mxu0
  %v4551 = vadd.f32 %v4463, %v4550
  %v4552 = vpop.f32.mrf.mxu0
  %4553 = vmatprep.mubr.bf16.mxu0 0
  %4554 = vmatmul.mubr.bf16.gmra.mxu0 %v4440
  %v4555 = vpop.f32.mrf.mxu0
  %v4556 = vadd.f32 %v4463, %v4555
  %v4557 = vpop.f32.mrf.mxu0
  %v4558 = vpop.f32.mrf.mxu0
  %v4559 = vadd.f32 %v4463, %v4558
  %v4560 = vpop.f32.mrf.mxu0
  %4561 = vmatprep.mubr.bf16.mxu0 0
  %4562 = vmatmul.mubr.bf16.gmra.mxu0 %v4441
  %v4563 = vpop.f32.mrf.mxu0
  %v4564 = vadd.f32 %v4463, %v4563
  %v4565 = vpop.f32.mrf.mxu0
  %v4566 = vpop.f32.mrf.mxu0
  %v4567 = vpop.f32.mrf.mxu0
  %4568 = vdwg.mxu0
  %4569 = vst [vmem:[%s15] sm:$0xff] %v4548
  %4570 = vst [vmem:[%s15 + $0x8] sm:$0xff] %v4551
  %4571 = vst [vmem:[%s15 + $0x10] sm:$0xff] %v4556
  %4572 = vst [vmem:[%s15 + $0x18] sm:$0xff] %v4559
  %4573 = vst [vmem:[%s15 + $0x20] sm:$0xff] %v4564
  // Predicated region
  $region62: #{_lambda_.3} parent=0 // pred_check
    _
  $region63: #{_lambda_.3} parent=0 // pred_check_branch
    %4575 = sbr.rel (0) target = $region65
  $region64: #{_lambda_.3} parent=0 // pred_region
    _
  $region65: #{_lambda_.3} parent=0 // pred_fallthru
    _
  // Predicated region
  $region66: #{_lambda_.3} parent=0 // pred_check
    _
  $region67: #{_lambda_.3} parent=0 // pred_check_branch
    %4577 = sbr.rel (0) target = $region69
  $region68: #{_lambda_.3} parent=0 // pred_region
    _
  $region69: #{_lambda_.3} parent=0 // pred_fallthru
    _

</llo_original>
